<compile_context>
chip_gen: v7x
topology: tpu7x:2x2x1
jax: 0.10.0
libtpu: 0.0.40
codegen_flags: <defaults>
</compile_context>

<pallas_src>
import jax
import jax.numpy as jnp
from jax import lax
from jax.experimental import pallas as pl
from jax.experimental.pallas import tpu as pltpu

# ----------------------------- model hyper-params -----------------------------
NUM_CLASSES = 5
OUTPUT_SIZE = 128          # PointFeatureExtractor output_size
LSTM_HIDDEN = 32
LSTM_LAYERS = 2
FACE_POINTS = 33
HAND_POINTS = 42
POINT_DIM = 3
POINT_PAD = 8              # K of the first conv zero-padded 3 -> 8 for clean MXU tiling
C1, C2 = 64, 128           # conv channel widths


# --------------------------------- kernel -------------------------------------
def _make_fused_kernel(num_layers, batch):
    """Fused feature extractor (every grid step) + LSTM/classifier epilogue."""

    def kernel(*refs):
        (face_ref, hand_ref,
         fw1_ref, fb1_ref, fw2_ref, fb2_ref,
         hw1_ref, hb1_ref, hw2_ref, hb2_ref,
         wfc1_ref, bfc1_ref) = refs[:12]
        lstm_refs = refs[12:12 + 3 * num_layers]
        w2_ref = refs[12 + 3 * num_layers]
        b2_ref = refs[13 + 3 * num_layers]
        o_ref = refs[14 + 3 * num_layers]
        feats_ref = refs[15 + 3 * num_layers]          # VMEM scratch [N, 128]

        nb = face_ref.shape[1]
        pf = face_ref.shape[0]
        ph = hand_ref.shape[0]

        # ---------------- per-frame feature extractor (runs every grid step) ----
        def point_mlp(x_ref, w1_ref, b1_ref, wc2_ref, bc2_ref, npts):
            # x_ref: [npts, nb, 8] point-major; leading-dim collapse is layout
            # trivial because nb is a multiple of 8 (or the whole array).
            x = x_ref[...].reshape(npts * nb, POINT_PAD)
            h = jnp.dot(x, w1_ref[...], preferred_element_type=jnp.float32) + b1_ref[...]
            h = jnp.maximum(h, 0.0)
            h = jnp.dot(h, wc2_ref[...], preferred_element_type=jnp.float32) + bc2_ref[...]
            h = jnp.maximum(h, 0.0)
            # bf16 only for the MXU operand of the big fc1 matmul (f32 accumulate).
            return h.astype(jnp.bfloat16)              # [npts*nb, C2], rows = p*nb + n

        ff = point_mlp(face_ref, fw1_ref, fb1_ref, fw2_ref, fb2_ref, pf)
        hf = point_mlp(hand_ref, hw1_ref, hb1_ref, hw2_ref, hb2_ref, ph)

        # Flatten to [nb, (pf+ph)*C2] (point-major, channel-minor columns) with a lane
        # concat of contiguous, 8-aligned [nb, C2] row blocks, then ONE long-K matmul
        # against the pre-permuted bf16 fc1 weight.
        pieces = [ff[p * nb:(p + 1) * nb, :] for p in range(pf)]
        pieces += [hf[p * nb:(p + 1) * nb, :] for p in range(ph)]
        flat = jnp.concatenate(pieces, axis=1)                         # [nb, 9600] bf16
        feat = (jnp.dot(flat, wfc1_ref[...], preferred_element_type=jnp.float32)
                + bfc1_ref[...])                                       # [nb, 128] f32

        row0 = pl.multiple_of(pl.program_id(0) * nb, 8)
        feats_ref[pl.ds(row0, nb), :] = feat

        # ---------------- LSTM + classifier epilogue (last grid step only) ------
        @pl.when(pl.program_id(0) == pl.num_programs(0) - 1)
        def _lstm_head():
            H = LSTM_HIDDEN
            B = batch
            xs = feats_ref[...]                                        # [T*B, 128] f32
            T = xs.shape[0] // B

            # Hoist loop-invariant weight loads / bias broadcasts out of the loop.
            wih = [lstm_refs[3 * l][...] for l in range(num_layers)]       # [D, 4H]
            whh = [lstm_refs[3 * l + 1][...] for l in range(num_layers)]   # [H, 4H]
            bias = [None] + [jnp.broadcast_to(lstm_refs[3 * l + 2][...], (B, 4 * H))
                             for l in range(1, num_layers)]

            # Layer-0 input projection hoisted off the serial critical path.
            xp0 = (jnp.dot(xs, wih[0], preferred_element_type=jnp.float32)
                   + lstm_refs[2][...])                                # [T*B, 4H]

            def cell(gates, c_prev):
                # Gate columns pre-ordered (i, f, o, g): sigmoid only on i/f/o,
                # tanh only on g (half the EUP work vs full-width passes).
                sig = jax.nn.sigmoid(gates[:, :3 * H])
                g_g = jnp.tanh(gates[:, 3 * H:])
                c_new = sig[:, H:2 * H] * c_prev + sig[:, 0:H] * g_g
                h_new = sig[:, 2 * H:3 * H] * jnp.tanh(c_new)
                return h_new, c_new

            def timestep(x_gates, h, c):
                for l in range(num_layers):
                    if l == 0:
                        g = x_gates + jnp.dot(h[0], whh[0],
                                              preferred_element_type=jnp.float32)
                    else:
                        g = (jnp.dot(h[l - 1], wih[l],
                                     preferred_element_type=jnp.float32)
                             + jnp.dot(h[l], whh[l],
                                       preferred_element_type=jnp.float32)
                             + bias[l])
                    h[l], c[l] = cell(g, c[l])
                return h, c

            h = [jnp.zeros((B, H), jnp.float32) for _ in range(num_layers)]
            c = [jnp.zeros((B, H), jnp.float32) for _ in range(num_layers)]

            if T <= 16:
                # Small T: fully unrolled -> full scheduler visibility.
                for t in range(T):
                    h, c = timestep(xp0[t * B:(t + 1) * B, :], h, c)
            else:
                # Large T: bound instruction count / vreg pressure.
                def body(t, carry):
                    hs, cs = carry
                    x_g = lax.dynamic_slice_in_dim(xp0, t * B, B, axis=0)
                    hs, cs = timestep(list(hs), list(cs)) if False else timestep(x_g, list(hs), list(cs))
                    return tuple(hs), tuple(cs)
                hs, _ = lax.fori_loop(0, T, body, (tuple(h), tuple(c)))
                h = list(hs)

            o_ref[...] = (jnp.dot(h[-1], w2_ref[...],
                                  preferred_element_type=jnp.float32)
                          + b2_ref[...])

    return kernel


# ------------------------------ kernel wrapper ---------------------------------
def _pick_tile_n(n, cap=32):
    """Largest frame block: whole N if small, else a multiple of 8 dividing N."""
    if n <= cap or n % 8 != 0:
        return n
    t = cap - (cap % 8)
    while t >= 8:
        if n % t == 0:
            return t
        t -= 8
    return n


def forward(params, face_points, hand_points):
    """face_points: [B, T, 33*3], hand_points: [B, T, 42*3] -> logits [B, NUM_CLASSES]."""
    B, T, _ = face_points.shape
    N = B * T
    num_layers = len(params["lstm"])

    # Point-major, time-major frame layout [P, N(=t*B+b), 3->8]: a tiny XLA transpose
    # of the raw inputs; features are then produced already time-major for the LSTM.
    facep = (face_points.reshape(B, T, FACE_POINTS, POINT_DIM)
             .transpose(2, 1, 0, 3).reshape(FACE_POINTS, N, POINT_DIM))
    handp = (hand_points.reshape(B, T, HAND_POINTS, POINT_DIM)
             .transpose(2, 1, 0, 3).reshape(HAND_POINTS, N, POINT_DIM))
    pad = ((0, 0), (0, 0), (0, POINT_PAD - POINT_DIM))
    facep = jnp.pad(facep, pad)
    handp = jnp.pad(handp, pad)

    tile_n = _pick_tile_n(N)
    assert N % tile_n == 0
    grid = (N // tile_n,)

    weight_args = [
        params["face_w1"], params["face_b1"], params["face_w2"], params["face_b2"],
        params["hand_w1"], params["hand_b1"], params["hand_w2"], params["hand_b2"],
        params["fc1_w"], params["fc1_b"],
    ]
    for layer in params["lstm"]:
        weight_args += [layer["wih_t"], layer["whh_t"], layer["b"]]
    weight_args += [params["fc2_w"], params["fc2_b"]]

    const2 = lambda i: (0, 0)            # all weights are 2-D, grid-invariant blocks
    in_specs = ([pl.BlockSpec((FACE_POINTS, tile_n, POINT_PAD), lambda i: (0, i, 0)),
                 pl.BlockSpec((HAND_POINTS, tile_n, POINT_PAD), lambda i: (0, i, 0))]
                + [pl.BlockSpec(w.shape, const2) for w in weight_args])

    npts = FACE_POINTS + HAND_POINTS
    flops = (2 * N * npts * (POINT_DIM * C1 + C1 * C2)         # point MLPs
             + 2 * N * npts * C2 * OUTPUT_SIZE                 # fc1 (one long-K matmul)
             + 2 * N * OUTPUT_SIZE * 4 * LSTM_HIDDEN           # hoisted layer-0 proj
             + 2 * T * B * (2 * num_layers) * LSTM_HIDDEN * 4 * LSTM_HIDDEN
             + 2 * B * LSTM_HIDDEN * NUM_CLASSES)
    transcendentals = T * B * num_layers * 5 * LSTM_HIDDEN
    bytes_accessed = int(4 * (facep.size + handp.size + B * NUM_CLASSES)
                         + sum(int(w.size) * w.dtype.itemsize for w in weight_args))

    return pl.pallas_call(
        _make_fused_kernel(num_layers, B),
        out_shape=jax.ShapeDtypeStruct((B, NUM_CLASSES), jnp.float32),
        grid_spec=pltpu.PrefetchScalarGridSpec(
            num_scalar_prefetch=0,
            grid=grid,
            in_specs=in_specs,
            out_specs=pl.BlockSpec((B, NUM_CLASSES), lambda i: (0, 0)),
            scratch_shapes=[pltpu.VMEM((N, OUTPUT_SIZE), jnp.float32)],
        ),
        # Sequential grid: the VMEM feature scratch carries across steps and the LSTM
        # runs as a last-step epilogue; also avoids duplicating the (weight-DMA-bound)
        # bf16 fc1 transfer across both v7x TensorCores.
        compiler_params=pltpu.CompilerParams(dimension_semantics=("arbitrary",)),
        cost_estimate=pl.CostEstimate(flops=int(flops),
                                      transcendentals=int(transcendentals),
                                      bytes_accessed=bytes_accessed),
    )(facep, handp, *weight_args)


forward_jit = jax.jit(forward)


# -------------------------------- parameters -----------------------------------
def init_params(key):
    keys = iter(jax.random.split(key, 32))

    def rnd(shape, scale=0.05):
        return scale * jax.random.normal(next(keys), shape, dtype=jnp.float32)

    def pad_k(w):  # [3, C1] -> [8, C1] with zero rows (matches zero-padded inputs)
        return jnp.pad(w, ((0, POINT_PAD - POINT_DIM), (0, 0)))

    p = {}
    # Conv1d(3->64, k=1) and Conv1d(64->128, k=1), stored transposed [in, out].
    p["face_w1"] = pad_k(rnd((POINT_DIM, C1))); p["face_b1"] = rnd((1, C1))
    p["face_w2"] = rnd((C1, C2));               p["face_b2"] = rnd((1, C2))
    p["hand_w1"] = pad_k(rnd((POINT_DIM, C1))); p["hand_b1"] = rnd((1, C1))
    p["hand_w2"] = rnd((C1, C2));               p["hand_b2"] = rnd((1, C2))

    # fc of PointFeatureExtractor (PyTorch Linear [128, (33+42)*128]): the input index
    # is the concat of flatten(face [B,128,33]) -> c*33+p and flatten(hand) -> c*42+p.
    # Repack to ONE [(33+42)*128, 128] matrix whose row index is point-major /
    # channel-minor (p*128 + c) to match the kernel's lane-concat activation layout,
    # and cast to bf16 (dominant HBM transfer; accumulation stays f32 in-kernel).
    wfc = rnd((OUTPUT_SIZE, (FACE_POINTS + HAND_POINTS) * C2))
    wf = (wfc[:, :FACE_POINTS * C2].reshape(OUTPUT_SIZE, C2, FACE_POINTS)
          .transpose(2, 1, 0).reshape(FACE_POINTS * C2, OUTPUT_SIZE))
    wh = (wfc[:, FACE_POINTS * C2:].reshape(OUTPUT_SIZE, C2, HAND_POINTS)
          .transpose(2, 1, 0).reshape(HAND_POINTS * C2, OUTPUT_SIZE))
    p["fc1_w"] = jnp.concatenate([wf, wh], axis=0).astype(jnp.bfloat16)  # [9600, 128]
    p["fc1_b"] = rnd((1, OUTPUT_SIZE))

    # LSTM layers.  PyTorch layout: weight_ih [4H, D], weight_hh [4H, H], biases [4H],
    # gate blocks ordered (i, f, g, o).  Reorder to (i, f, o, g) so the kernel can run
    # sigmoid on one contiguous 3H slice and tanh on the trailing H slice.
    def reorder_gates(w):
        i, f, g, o = jnp.split(w, 4, axis=0)
        return jnp.concatenate([i, f, o, g], axis=0)

    p["lstm"] = []
    for layer in range(LSTM_LAYERS):
        d_in = OUTPUT_SIZE if layer == 0 else LSTM_HIDDEN
        wih = rnd((4 * LSTM_HIDDEN, d_in))
        whh = rnd((4 * LSTM_HIDDEN, LSTM_HIDDEN))
        b_ih = rnd((4 * LSTM_HIDDEN,))
        b_hh = rnd((4 * LSTM_HIDDEN,))
        p["lstm"].append({
            "wih_t": reorder_gates(wih).T,                                   # [D, 4H]
            "whh_t": reorder_gates(whh).T,                                   # [H, 4H]
            "b": reorder_gates(b_ih + b_hh).reshape(1, 4 * LSTM_HIDDEN),     # [1, 4H]
        })

    # Final classifier fc: [num_classes, H] in PyTorch -> stored transposed.
    wfc2 = rnd((NUM_CLASSES, LSTM_HIDDEN))
    p["fc2_w"] = wfc2.T                                                      # [H, 5]
    p["fc2_b"] = rnd((1, NUM_CLASSES))
    return p


# ----------------------------------- main ---------------------------------------
if __name__ == "__main__":
    key = jax.random.PRNGKey(0)
    k_face, k_hand, k_param = jax.random.split(key, 3)

    B, T = 2, 8
    face_points = jax.random.normal(k_face, (B, T, FACE_POINTS * POINT_DIM),
                                    dtype=jnp.float32)
    hand_points = jax.random.normal(k_hand, (B, T, HAND_POINTS * POINT_DIM),
                                    dtype=jnp.float32)

    params = init_params(k_param)

    out = forward_jit(params, face_points, hand_points)
    out = jax.block_until_ready(out)
    assert out.shape == (B, NUM_CLASSES), out.shape
    assert bool(jnp.all(jnp.isfinite(out)))
    print("KERNEL_OK")
</pallas_src>

<mosaic_0001>
module attributes {stable_mosaic.version = 11 : i64} {
  func.func @kernel(%arg0: i32, %arg1: memref<33x16x8xf32, #tpu.memory_space<vmem>>, %arg2: memref<42x16x8xf32, #tpu.memory_space<vmem>>, %arg3: memref<8x64xf32, #tpu.memory_space<vmem>>, %arg4: memref<1x64xf32, #tpu.memory_space<vmem>>, %arg5: memref<64x128xf32, #tpu.memory_space<vmem>>, %arg6: memref<1x128xf32, #tpu.memory_space<vmem>>, %arg7: memref<8x64xf32, #tpu.memory_space<vmem>>, %arg8: memref<1x64xf32, #tpu.memory_space<vmem>>, %arg9: memref<64x128xf32, #tpu.memory_space<vmem>>, %arg10: memref<1x128xf32, #tpu.memory_space<vmem>>, %arg11: memref<9600x128xbf16, #tpu.memory_space<vmem>>, %arg12: memref<1x128xf32, #tpu.memory_space<vmem>>, %arg13: memref<128x128xf32, #tpu.memory_space<vmem>>, %arg14: memref<32x128xf32, #tpu.memory_space<vmem>>, %arg15: memref<1x128xf32, #tpu.memory_space<vmem>>, %arg16: memref<32x128xf32, #tpu.memory_space<vmem>>, %arg17: memref<32x128xf32, #tpu.memory_space<vmem>>, %arg18: memref<1x128xf32, #tpu.memory_space<vmem>>, %arg19: memref<32x5xf32, #tpu.memory_space<vmem>>, %arg20: memref<1x5xf32, #tpu.memory_space<vmem>>, %arg21: memref<2x5xf32, #tpu.memory_space<vmem>>, %arg22: memref<16x128xf32, #tpu.memory_space<vmem>>) attributes {dimension_semantics = [#tpu.dimension_semantics<arbitrary>], iteration_bounds = array<i64: 1>, scalar_prefetch = 0 : i64, scratch_operands = 1 : i64, tpu.core_type = #tpu.core_type<tc>, window_params = [{transform_indices = @transform_0, window_bounds = array<i64: 33, 16, 8>}, {transform_indices = @transform_1, window_bounds = array<i64: 42, 16, 8>}, {pipeline_mode = #tpu.pipeline_mode<synchronous>, transform_indices = @transform_2, window_bounds = array<i64: 8, 64>}, {pipeline_mode = #tpu.pipeline_mode<synchronous>, transform_indices = @transform_3, window_bounds = array<i64: 1, 64>}, {pipeline_mode = #tpu.pipeline_mode<synchronous>, transform_indices = @transform_4, window_bounds = array<i64: 64, 128>}, {pipeline_mode = #tpu.pipeline_mode<synchronous>, transform_indices = @transform_5, window_bounds = array<i64: 1, 128>}, {pipeline_mode = #tpu.pipeline_mode<synchronous>, transform_indices = @transform_6, window_bounds = array<i64: 8, 64>}, {pipeline_mode = #tpu.pipeline_mode<synchronous>, transform_indices = @transform_7, window_bounds = array<i64: 1, 64>}, {pipeline_mode = #tpu.pipeline_mode<synchronous>, transform_indices = @transform_8, window_bounds = array<i64: 64, 128>}, {pipeline_mode = #tpu.pipeline_mode<synchronous>, transform_indices = @transform_9, window_bounds = array<i64: 1, 128>}, {pipeline_mode = #tpu.pipeline_mode<synchronous>, transform_indices = @transform_10, window_bounds = array<i64: 9600, 128>}, {pipeline_mode = #tpu.pipeline_mode<synchronous>, transform_indices = @transform_11, window_bounds = array<i64: 1, 128>}, {pipeline_mode = #tpu.pipeline_mode<synchronous>, transform_indices = @transform_12, window_bounds = array<i64: 128, 128>}, {pipeline_mode = #tpu.pipeline_mode<synchronous>, transform_indices = @transform_13, window_bounds = array<i64: 32, 128>}, {pipeline_mode = #tpu.pipeline_mode<synchronous>, transform_indices = @transform_14, window_bounds = array<i64: 1, 128>}, {pipeline_mode = #tpu.pipeline_mode<synchronous>, transform_indices = @transform_15, window_bounds = array<i64: 32, 128>}, {pipeline_mode = #tpu.pipeline_mode<synchronous>, transform_indices = @transform_16, window_bounds = array<i64: 32, 128>}, {pipeline_mode = #tpu.pipeline_mode<synchronous>, transform_indices = @transform_17, window_bounds = array<i64: 1, 128>}, {pipeline_mode = #tpu.pipeline_mode<synchronous>, transform_indices = @transform_18, window_bounds = array<i64: 32, 5>}, {pipeline_mode = #tpu.pipeline_mode<synchronous>, transform_indices = @transform_19, window_bounds = array<i64: 1, 5>}, {pipeline_mode = #tpu.pipeline_mode<synchronous>, transform_indices = @transform_20, window_bounds = array<i64: 2, 5>}]} {
    %c0 = arith.constant 0 : index
    %c0_0 = arith.constant 0 : index
    %c0_1 = arith.constant 0 : index
    %0 = vector.load %arg1[%c0, %c0_0, %c0_1] : memref<33x16x8xf32, #tpu.memory_space<vmem>>, vector<33x16x8xf32>
    %1 = vector.shape_cast %0 : vector<33x16x8xf32> to vector<528x8xf32>
    %c0_2 = arith.constant 0 : index
    %c0_3 = arith.constant 0 : index
    %2 = vector.load %arg3[%c0_2, %c0_3] : memref<8x64xf32, #tpu.memory_space<vmem>>, vector<8x64xf32>
    %cst = arith.constant dense<0.000000e+00> : vector<528x64xf32>
    %3 = tpu.matmul %1, %2, %cst {dimension_numbers = #tpu.dot_dimension_numbers<[1], [0], [0], [1], [0, 0, 1, 1], [], []>} : vector<528x8xf32>, vector<8x64xf32>, vector<528x64xf32> -> vector<528x64xf32>
    %c0_4 = arith.constant 0 : index
    %c0_5 = arith.constant 0 : index
    %4 = vector.load %arg4[%c0_4, %c0_5] : memref<1x64xf32, #tpu.memory_space<vmem>>, vector<1x64xf32>
    %5 = vector.broadcast %4 : vector<1x64xf32> to vector<528x64xf32>
    %6 = arith.addf %3, %5 : vector<528x64xf32>
    %cst_6 = arith.constant 0.000000e+00 : f32
    %7 = vector.broadcast %cst_6 : f32 to vector<528x64xf32>
    %8 = arith.maximumf %6, %7 : vector<528x64xf32>
    %c0_7 = arith.constant 0 : index
    %c0_8 = arith.constant 0 : index
    %9 = vector.load %arg5[%c0_7, %c0_8] : memref<64x128xf32, #tpu.memory_space<vmem>>, vector<64x128xf32>
    %cst_9 = arith.constant dense<0.000000e+00> : vector<528x128xf32>
    %10 = tpu.matmul %8, %9, %cst_9 {dimension_numbers = #tpu.dot_dimension_numbers<[1], [0], [0], [1], [0, 0, 1, 1], [], []>} : vector<528x64xf32>, vector<64x128xf32>, vector<528x128xf32> -> vector<528x128xf32>
    %c0_10 = arith.constant 0 : index
    %c0_11 = arith.constant 0 : index
    %11 = vector.load %arg6[%c0_10, %c0_11] : memref<1x128xf32, #tpu.memory_space<vmem>>, vector<1x128xf32>
    %12 = vector.broadcast %11 : vector<1x128xf32> to vector<528x128xf32>
    %13 = arith.addf %10, %12 : vector<528x128xf32>
    %cst_12 = arith.constant 0.000000e+00 : f32
    %14 = vector.broadcast %cst_12 : f32 to vector<528x128xf32>
    %15 = arith.maximumf %13, %14 : vector<528x128xf32>
    %16 = arith.truncf %15 : vector<528x128xf32> to vector<528x128xbf16>
    %c0_13 = arith.constant 0 : index
    %c0_14 = arith.constant 0 : index
    %c0_15 = arith.constant 0 : index
    %17 = vector.load %arg2[%c0_13, %c0_14, %c0_15] : memref<42x16x8xf32, #tpu.memory_space<vmem>>, vector<42x16x8xf32>
    %18 = vector.shape_cast %17 : vector<42x16x8xf32> to vector<672x8xf32>
    %c0_16 = arith.constant 0 : index
    %c0_17 = arith.constant 0 : index
    %19 = vector.load %arg7[%c0_16, %c0_17] : memref<8x64xf32, #tpu.memory_space<vmem>>, vector<8x64xf32>
    %cst_18 = arith.constant dense<0.000000e+00> : vector<672x64xf32>
    %20 = tpu.matmul %18, %19, %cst_18 {dimension_numbers = #tpu.dot_dimension_numbers<[1], [0], [0], [1], [0, 0, 1, 1], [], []>} : vector<672x8xf32>, vector<8x64xf32>, vector<672x64xf32> -> vector<672x64xf32>
    %c0_19 = arith.constant 0 : index
    %c0_20 = arith.constant 0 : index
    %21 = vector.load %arg8[%c0_19, %c0_20] : memref<1x64xf32, #tpu.memory_space<vmem>>, vector<1x64xf32>
    %22 = vector.broadcast %21 : vector<1x64xf32> to vector<672x64xf32>
    %23 = arith.addf %20, %22 : vector<672x64xf32>
    %cst_21 = arith.constant 0.000000e+00 : f32
    %24 = vector.broadcast %cst_21 : f32 to vector<672x64xf32>
    %25 = arith.maximumf %23, %24 : vector<672x64xf32>
    %c0_22 = arith.constant 0 : index
    %c0_23 = arith.constant 0 : index
    %26 = vector.load %arg9[%c0_22, %c0_23] : memref<64x128xf32, #tpu.memory_space<vmem>>, vector<64x128xf32>
    %cst_24 = arith.constant dense<0.000000e+00> : vector<672x128xf32>
    %27 = tpu.matmul %25, %26, %cst_24 {dimension_numbers = #tpu.dot_dimension_numbers<[1], [0], [0], [1], [0, 0, 1, 1], [], []>} : vector<672x64xf32>, vector<64x128xf32>, vector<672x128xf32> -> vector<672x128xf32>
    %c0_25 = arith.constant 0 : index
    %c0_26 = arith.constant 0 : index
    %28 = vector.load %arg10[%c0_25, %c0_26] : memref<1x128xf32, #tpu.memory_space<vmem>>, vector<1x128xf32>
    %29 = vector.broadcast %28 : vector<1x128xf32> to vector<672x128xf32>
    %30 = arith.addf %27, %29 : vector<672x128xf32>
    %cst_27 = arith.constant 0.000000e+00 : f32
    %31 = vector.broadcast %cst_27 : f32 to vector<672x128xf32>
    %32 = arith.maximumf %30, %31 : vector<672x128xf32>
    %33 = arith.truncf %32 : vector<672x128xf32> to vector<672x128xbf16>
    %34 = vector.extract_strided_slice %16 {offsets = [0, 0], sizes = [16, 128], strides = [1, 1]} : vector<528x128xbf16> to vector<16x128xbf16>
    %35 = vector.extract_strided_slice %16 {offsets = [16, 0], sizes = [16, 128], strides = [1, 1]} : vector<528x128xbf16> to vector<16x128xbf16>
    %36 = vector.extract_strided_slice %16 {offsets = [32, 0], sizes = [16, 128], strides = [1, 1]} : vector<528x128xbf16> to vector<16x128xbf16>
    %37 = vector.extract_strided_slice %16 {offsets = [48, 0], sizes = [16, 128], strides = [1, 1]} : vector<528x128xbf16> to vector<16x128xbf16>
    %38 = vector.extract_strided_slice %16 {offsets = [64, 0], sizes = [16, 128], strides = [1, 1]} : vector<528x128xbf16> to vector<16x128xbf16>
    %39 = vector.extract_strided_slice %16 {offsets = [80, 0], sizes = [16, 128], strides = [1, 1]} : vector<528x128xbf16> to vector<16x128xbf16>
    %40 = vector.extract_strided_slice %16 {offsets = [96, 0], sizes = [16, 128], strides = [1, 1]} : vector<528x128xbf16> to vector<16x128xbf16>
    %41 = vector.extract_strided_slice %16 {offsets = [112, 0], sizes = [16, 128], strides = [1, 1]} : vector<528x128xbf16> to vector<16x128xbf16>
    %42 = vector.extract_strided_slice %16 {offsets = [128, 0], sizes = [16, 128], strides = [1, 1]} : vector<528x128xbf16> to vector<16x128xbf16>
    %43 = vector.extract_strided_slice %16 {offsets = [144, 0], sizes = [16, 128], strides = [1, 1]} : vector<528x128xbf16> to vector<16x128xbf16>
    %44 = vector.extract_strided_slice %16 {offsets = [160, 0], sizes = [16, 128], strides = [1, 1]} : vector<528x128xbf16> to vector<16x128xbf16>
    %45 = vector.extract_strided_slice %16 {offsets = [176, 0], sizes = [16, 128], strides = [1, 1]} : vector<528x128xbf16> to vector<16x128xbf16>
    %46 = vector.extract_strided_slice %16 {offsets = [192, 0], sizes = [16, 128], strides = [1, 1]} : vector<528x128xbf16> to vector<16x128xbf16>
    %47 = vector.extract_strided_slice %16 {offsets = [208, 0], sizes = [16, 128], strides = [1, 1]} : vector<528x128xbf16> to vector<16x128xbf16>
    %48 = vector.extract_strided_slice %16 {offsets = [224, 0], sizes = [16, 128], strides = [1, 1]} : vector<528x128xbf16> to vector<16x128xbf16>
    %49 = vector.extract_strided_slice %16 {offsets = [240, 0], sizes = [16, 128], strides = [1, 1]} : vector<528x128xbf16> to vector<16x128xbf16>
    %50 = vector.extract_strided_slice %16 {offsets = [256, 0], sizes = [16, 128], strides = [1, 1]} : vector<528x128xbf16> to vector<16x128xbf16>
    %51 = vector.extract_strided_slice %16 {offsets = [272, 0], sizes = [16, 128], strides = [1, 1]} : vector<528x128xbf16> to vector<16x128xbf16>
    %52 = vector.extract_strided_slice %16 {offsets = [288, 0], sizes = [16, 128], strides = [1, 1]} : vector<528x128xbf16> to vector<16x128xbf16>
    %53 = vector.extract_strided_slice %16 {offsets = [304, 0], sizes = [16, 128], strides = [1, 1]} : vector<528x128xbf16> to vector<16x128xbf16>
    %54 = vector.extract_strided_slice %16 {offsets = [320, 0], sizes = [16, 128], strides = [1, 1]} : vector<528x128xbf16> to vector<16x128xbf16>
    %55 = vector.extract_strided_slice %16 {offsets = [336, 0], sizes = [16, 128], strides = [1, 1]} : vector<528x128xbf16> to vector<16x128xbf16>
    %56 = vector.extract_strided_slice %16 {offsets = [352, 0], sizes = [16, 128], strides = [1, 1]} : vector<528x128xbf16> to vector<16x128xbf16>
    %57 = vector.extract_strided_slice %16 {offsets = [368, 0], sizes = [16, 128], strides = [1, 1]} : vector<528x128xbf16> to vector<16x128xbf16>
    %58 = vector.extract_strided_slice %16 {offsets = [384, 0], sizes = [16, 128], strides = [1, 1]} : vector<528x128xbf16> to vector<16x128xbf16>
    %59 = vector.extract_strided_slice %16 {offsets = [400, 0], sizes = [16, 128], strides = [1, 1]} : vector<528x128xbf16> to vector<16x128xbf16>
    %60 = vector.extract_strided_slice %16 {offsets = [416, 0], sizes = [16, 128], strides = [1, 1]} : vector<528x128xbf16> to vector<16x128xbf16>
    %61 = vector.extract_strided_slice %16 {offsets = [432, 0], sizes = [16, 128], strides = [1, 1]} : vector<528x128xbf16> to vector<16x128xbf16>
    %62 = vector.extract_strided_slice %16 {offsets = [448, 0], sizes = [16, 128], strides = [1, 1]} : vector<528x128xbf16> to vector<16x128xbf16>
    %63 = vector.extract_strided_slice %16 {offsets = [464, 0], sizes = [16, 128], strides = [1, 1]} : vector<528x128xbf16> to vector<16x128xbf16>
    %64 = vector.extract_strided_slice %16 {offsets = [480, 0], sizes = [16, 128], strides = [1, 1]} : vector<528x128xbf16> to vector<16x128xbf16>
    %65 = vector.extract_strided_slice %16 {offsets = [496, 0], sizes = [16, 128], strides = [1, 1]} : vector<528x128xbf16> to vector<16x128xbf16>
    %66 = vector.extract_strided_slice %16 {offsets = [512, 0], sizes = [16, 128], strides = [1, 1]} : vector<528x128xbf16> to vector<16x128xbf16>
    %67 = vector.extract_strided_slice %33 {offsets = [0, 0], sizes = [16, 128], strides = [1, 1]} : vector<672x128xbf16> to vector<16x128xbf16>
    %68 = vector.extract_strided_slice %33 {offsets = [16, 0], sizes = [16, 128], strides = [1, 1]} : vector<672x128xbf16> to vector<16x128xbf16>
    %69 = vector.extract_strided_slice %33 {offsets = [32, 0], sizes = [16, 128], strides = [1, 1]} : vector<672x128xbf16> to vector<16x128xbf16>
    %70 = vector.extract_strided_slice %33 {offsets = [48, 0], sizes = [16, 128], strides = [1, 1]} : vector<672x128xbf16> to vector<16x128xbf16>
    %71 = vector.extract_strided_slice %33 {offsets = [64, 0], sizes = [16, 128], strides = [1, 1]} : vector<672x128xbf16> to vector<16x128xbf16>
    %72 = vector.extract_strided_slice %33 {offsets = [80, 0], sizes = [16, 128], strides = [1, 1]} : vector<672x128xbf16> to vector<16x128xbf16>
    %73 = vector.extract_strided_slice %33 {offsets = [96, 0], sizes = [16, 128], strides = [1, 1]} : vector<672x128xbf16> to vector<16x128xbf16>
    %74 = vector.extract_strided_slice %33 {offsets = [112, 0], sizes = [16, 128], strides = [1, 1]} : vector<672x128xbf16> to vector<16x128xbf16>
    %75 = vector.extract_strided_slice %33 {offsets = [128, 0], sizes = [16, 128], strides = [1, 1]} : vector<672x128xbf16> to vector<16x128xbf16>
    %76 = vector.extract_strided_slice %33 {offsets = [144, 0], sizes = [16, 128], strides = [1, 1]} : vector<672x128xbf16> to vector<16x128xbf16>
    %77 = vector.extract_strided_slice %33 {offsets = [160, 0], sizes = [16, 128], strides = [1, 1]} : vector<672x128xbf16> to vector<16x128xbf16>
    %78 = vector.extract_strided_slice %33 {offsets = [176, 0], sizes = [16, 128], strides = [1, 1]} : vector<672x128xbf16> to vector<16x128xbf16>
    %79 = vector.extract_strided_slice %33 {offsets = [192, 0], sizes = [16, 128], strides = [1, 1]} : vector<672x128xbf16> to vector<16x128xbf16>
    %80 = vector.extract_strided_slice %33 {offsets = [208, 0], sizes = [16, 128], strides = [1, 1]} : vector<672x128xbf16> to vector<16x128xbf16>
    %81 = vector.extract_strided_slice %33 {offsets = [224, 0], sizes = [16, 128], strides = [1, 1]} : vector<672x128xbf16> to vector<16x128xbf16>
    %82 = vector.extract_strided_slice %33 {offsets = [240, 0], sizes = [16, 128], strides = [1, 1]} : vector<672x128xbf16> to vector<16x128xbf16>
    %83 = vector.extract_strided_slice %33 {offsets = [256, 0], sizes = [16, 128], strides = [1, 1]} : vector<672x128xbf16> to vector<16x128xbf16>
    %84 = vector.extract_strided_slice %33 {offsets = [272, 0], sizes = [16, 128], strides = [1, 1]} : vector<672x128xbf16> to vector<16x128xbf16>
    %85 = vector.extract_strided_slice %33 {offsets = [288, 0], sizes = [16, 128], strides = [1, 1]} : vector<672x128xbf16> to vector<16x128xbf16>
    %86 = vector.extract_strided_slice %33 {offsets = [304, 0], sizes = [16, 128], strides = [1, 1]} : vector<672x128xbf16> to vector<16x128xbf16>
    %87 = vector.extract_strided_slice %33 {offsets = [320, 0], sizes = [16, 128], strides = [1, 1]} : vector<672x128xbf16> to vector<16x128xbf16>
    %88 = vector.extract_strided_slice %33 {offsets = [336, 0], sizes = [16, 128], strides = [1, 1]} : vector<672x128xbf16> to vector<16x128xbf16>
    %89 = vector.extract_strided_slice %33 {offsets = [352, 0], sizes = [16, 128], strides = [1, 1]} : vector<672x128xbf16> to vector<16x128xbf16>
    %90 = vector.extract_strided_slice %33 {offsets = [368, 0], sizes = [16, 128], strides = [1, 1]} : vector<672x128xbf16> to vector<16x128xbf16>
    %91 = vector.extract_strided_slice %33 {offsets = [384, 0], sizes = [16, 128], strides = [1, 1]} : vector<672x128xbf16> to vector<16x128xbf16>
    %92 = vector.extract_strided_slice %33 {offsets = [400, 0], sizes = [16, 128], strides = [1, 1]} : vector<672x128xbf16> to vector<16x128xbf16>
    %93 = vector.extract_strided_slice %33 {offsets = [416, 0], sizes = [16, 128], strides = [1, 1]} : vector<672x128xbf16> to vector<16x128xbf16>
    %94 = vector.extract_strided_slice %33 {offsets = [432, 0], sizes = [16, 128], strides = [1, 1]} : vector<672x128xbf16> to vector<16x128xbf16>
    %95 = vector.extract_strided_slice %33 {offsets = [448, 0], sizes = [16, 128], strides = [1, 1]} : vector<672x128xbf16> to vector<16x128xbf16>
    %96 = vector.extract_strided_slice %33 {offsets = [464, 0], sizes = [16, 128], strides = [1, 1]} : vector<672x128xbf16> to vector<16x128xbf16>
    %97 = vector.extract_strided_slice %33 {offsets = [480, 0], sizes = [16, 128], strides = [1, 1]} : vector<672x128xbf16> to vector<16x128xbf16>
    %98 = vector.extract_strided_slice %33 {offsets = [496, 0], sizes = [16, 128], strides = [1, 1]} : vector<672x128xbf16> to vector<16x128xbf16>
    %99 = vector.extract_strided_slice %33 {offsets = [512, 0], sizes = [16, 128], strides = [1, 1]} : vector<672x128xbf16> to vector<16x128xbf16>
    %100 = vector.extract_strided_slice %33 {offsets = [528, 0], sizes = [16, 128], strides = [1, 1]} : vector<672x128xbf16> to vector<16x128xbf16>
    %101 = vector.extract_strided_slice %33 {offsets = [544, 0], sizes = [16, 128], strides = [1, 1]} : vector<672x128xbf16> to vector<16x128xbf16>
    %102 = vector.extract_strided_slice %33 {offsets = [560, 0], sizes = [16, 128], strides = [1, 1]} : vector<672x128xbf16> to vector<16x128xbf16>
    %103 = vector.extract_strided_slice %33 {offsets = [576, 0], sizes = [16, 128], strides = [1, 1]} : vector<672x128xbf16> to vector<16x128xbf16>
    %104 = vector.extract_strided_slice %33 {offsets = [592, 0], sizes = [16, 128], strides = [1, 1]} : vector<672x128xbf16> to vector<16x128xbf16>
    %105 = vector.extract_strided_slice %33 {offsets = [608, 0], sizes = [16, 128], strides = [1, 1]} : vector<672x128xbf16> to vector<16x128xbf16>
    %106 = vector.extract_strided_slice %33 {offsets = [624, 0], sizes = [16, 128], strides = [1, 1]} : vector<672x128xbf16> to vector<16x128xbf16>
    %107 = vector.extract_strided_slice %33 {offsets = [640, 0], sizes = [16, 128], strides = [1, 1]} : vector<672x128xbf16> to vector<16x128xbf16>
    %108 = vector.extract_strided_slice %33 {offsets = [656, 0], sizes = [16, 128], strides = [1, 1]} : vector<672x128xbf16> to vector<16x128xbf16>
    %109 = tpu.concatenate %34, %35, %36, %37, %38, %39, %40, %41, %42, %43, %44, %45, %46, %47, %48, %49 in 1 : vector<16x128xbf16>, vector<16x128xbf16>, vector<16x128xbf16>, vector<16x128xbf16>, vector<16x128xbf16>, vector<16x128xbf16>, vector<16x128xbf16>, vector<16x128xbf16>, vector<16x128xbf16>, vector<16x128xbf16>, vector<16x128xbf16>, vector<16x128xbf16>, vector<16x128xbf16>, vector<16x128xbf16>, vector<16x128xbf16>, vector<16x128xbf16> -> vector<16x2048xbf16>
    %110 = tpu.concatenate %50, %51, %52, %53, %54, %55, %56, %57, %58, %59, %60, %61, %62, %63, %64, %65 in 1 : vector<16x128xbf16>, vector<16x128xbf16>, vector<16x128xbf16>, vector<16x128xbf16>, vector<16x128xbf16>, vector<16x128xbf16>, vector<16x128xbf16>, vector<16x128xbf16>, vector<16x128xbf16>, vector<16x128xbf16>, vector<16x128xbf16>, vector<16x128xbf16>, vector<16x128xbf16>, vector<16x128xbf16>, vector<16x128xbf16>, vector<16x128xbf16> -> vector<16x2048xbf16>
    %111 = tpu.concatenate %66, %67, %68, %69, %70, %71, %72, %73, %74, %75, %76, %77, %78, %79, %80, %81 in 1 : vector<16x128xbf16>, vector<16x128xbf16>, vector<16x128xbf16>, vector<16x128xbf16>, vector<16x128xbf16>, vector<16x128xbf16>, vector<16x128xbf16>, vector<16x128xbf16>, vector<16x128xbf16>, vector<16x128xbf16>, vector<16x128xbf16>, vector<16x128xbf16>, vector<16x128xbf16>, vector<16x128xbf16>, vector<16x128xbf16>, vector<16x128xbf16> -> vector<16x2048xbf16>
    %112 = tpu.concatenate %82, %83, %84, %85, %86, %87, %88, %89, %90, %91, %92, %93, %94, %95, %96, %97 in 1 : vector<16x128xbf16>, vector<16x128xbf16>, vector<16x128xbf16>, vector<16x128xbf16>, vector<16x128xbf16>, vector<16x128xbf16>, vector<16x128xbf16>, vector<16x128xbf16>, vector<16x128xbf16>, vector<16x128xbf16>, vector<16x128xbf16>, vector<16x128xbf16>, vector<16x128xbf16>, vector<16x128xbf16>, vector<16x128xbf16>, vector<16x128xbf16> -> vector<16x2048xbf16>
    %113 = tpu.concatenate %98, %99, %100, %101, %102, %103, %104, %105, %106, %107, %108 in 1 : vector<16x128xbf16>, vector<16x128xbf16>, vector<16x128xbf16>, vector<16x128xbf16>, vector<16x128xbf16>, vector<16x128xbf16>, vector<16x128xbf16>, vector<16x128xbf16>, vector<16x128xbf16>, vector<16x128xbf16>, vector<16x128xbf16> -> vector<16x1408xbf16>
    %114 = tpu.concatenate %109, %110, %111, %112, %113 in 1 : vector<16x2048xbf16>, vector<16x2048xbf16>, vector<16x2048xbf16>, vector<16x2048xbf16>, vector<16x1408xbf16> -> vector<16x9600xbf16>
    %c0_28 = arith.constant 0 : index
    %c0_29 = arith.constant 0 : index
    %115 = vector.load %arg11[%c0_28, %c0_29] : memref<9600x128xbf16, #tpu.memory_space<vmem>>, vector<9600x128xbf16>
    %cst_30 = arith.constant dense<0.000000e+00> : vector<16x128xf32>
    %116 = tpu.matmul %114, %115, %cst_30 {dimension_numbers = #tpu.dot_dimension_numbers<[1], [0], [0], [1], [0, 0, 1, 1], [], []>} : vector<16x9600xbf16>, vector<9600x128xbf16>, vector<16x128xf32> -> vector<16x128xf32>
    %c0_31 = arith.constant 0 : index
    %c0_32 = arith.constant 0 : index
    %117 = vector.load %arg12[%c0_31, %c0_32] : memref<1x128xf32, #tpu.memory_space<vmem>>, vector<1x128xf32>
    %118 = vector.broadcast %117 : vector<1x128xf32> to vector<16x128xf32>
    %119 = arith.addf %116, %118 : vector<16x128xf32>
    %c16_i32 = arith.constant 16 : i32
    %120 = arith.muli %arg0, %c16_i32 : i32
    %121 = tpu.assume_multiple %120, 8 : i32
    %122 = arith.index_cast %121 : i32 to index
    %c0_33 = arith.constant 0 : index
    %123 = vector.load %arg22[%122, %c0_33] : memref<16x128xf32, #tpu.memory_space<vmem>>, vector<16x128xf32>
    tpu.vector_store %arg22[%122, %c0_33], %119 {strides = array<i32>} : memref<16x128xf32, #tpu.memory_space<vmem>>, vector<16x128xf32>,
    %c0_i32 = arith.constant 0 : i32
    %124 = arith.cmpi eq, %arg0, %c0_i32 : i32
    %125 = arith.extui %124 : i1 to i32
    %c0_i32_34 = arith.constant 0 : i32
    %126 = arith.cmpi ne, %125, %c0_i32_34 : i32
    scf.if %126 {
      %c0_35 = arith.constant 0 : index
      %c0_36 = arith.constant 0 : index
      %127 = vector.load %arg22[%c0_35, %c0_36] : memref<16x128xf32, #tpu.memory_space<vmem>>, vector<16x128xf32>
      %c0_37 = arith.constant 0 : index
      %c0_38 = arith.constant 0 : index
      %128 = vector.load %arg13[%c0_37, %c0_38] : memref<128x128xf32, #tpu.memory_space<vmem>>, vector<128x128xf32>
      %c0_39 = arith.constant 0 : index
      %c0_40 = arith.constant 0 : index
      %129 = vector.load %arg16[%c0_39, %c0_40] : memref<32x128xf32, #tpu.memory_space<vmem>>, vector<32x128xf32>
      %c0_41 = arith.constant 0 : index
      %c0_42 = arith.constant 0 : index
      %130 = vector.load %arg14[%c0_41, %c0_42] : memref<32x128xf32, #tpu.memory_space<vmem>>, vector<32x128xf32>
      %c0_43 = arith.constant 0 : index
      %c0_44 = arith.constant 0 : index
      %131 = vector.load %arg17[%c0_43, %c0_44] : memref<32x128xf32, #tpu.memory_space<vmem>>, vector<32x128xf32>
      %c0_45 = arith.constant 0 : index
      %c0_46 = arith.constant 0 : index
      %132 = vector.load %arg18[%c0_45, %c0_46] : memref<1x128xf32, #tpu.memory_space<vmem>>, vector<1x128xf32>
      %133 = vector.shape_cast %132 : vector<1x128xf32> to vector<1x128xf32>
      %134 = vector.broadcast %133 : vector<1x128xf32> to vector<2x128xf32>
      %cst_47 = arith.constant dense<0.000000e+00> : vector<16x128xf32>
      %135 = tpu.matmul %127, %128, %cst_47 {dimension_numbers = #tpu.dot_dimension_numbers<[1], [0], [0], [1], [0, 0, 1, 1], [], []>} : vector<16x128xf32>, vector<128x128xf32>, vector<16x128xf32> -> vector<16x128xf32>
      %c0_48 = arith.constant 0 : index
      %c0_49 = arith.constant 0 : index
      %136 = vector.load %arg15[%c0_48, %c0_49] : memref<1x128xf32, #tpu.memory_space<vmem>>, vector<1x128xf32>
      %137 = vector.broadcast %136 : vector<1x128xf32> to vector<16x128xf32>
      %138 = arith.addf %135, %137 : vector<16x128xf32>
      %cst_50 = arith.constant 0.000000e+00 : f32
      %139 = vector.broadcast %cst_50 : f32 to vector<2x32xf32>
      %cst_51 = arith.constant 0.000000e+00 : f32
      %140 = vector.broadcast %cst_51 : f32 to vector<2x32xf32>
      %cst_52 = arith.constant 0.000000e+00 : f32
      %141 = vector.broadcast %cst_52 : f32 to vector<2x32xf32>
      %cst_53 = arith.constant 0.000000e+00 : f32
      %142 = vector.broadcast %cst_53 : f32 to vector<2x32xf32>
      %143 = vector.extract_strided_slice %138 {offsets = [0, 0], sizes = [2, 128], strides = [1, 1]} : vector<16x128xf32> to vector<2x128xf32>
      %cst_54 = arith.constant dense<0.000000e+00> : vector<2x128xf32>
      %144 = tpu.matmul %139, %130, %cst_54 {dimension_numbers = #tpu.dot_dimension_numbers<[1], [0], [0], [1], [0, 0, 1, 1], [], []>} : vector<2x32xf32>, vector<32x128xf32>, vector<2x128xf32> -> vector<2x128xf32>
      %145 = arith.addf %143, %144 : vector<2x128xf32>
      %146 = vector.extract_strided_slice %145 {offsets = [0, 0], sizes = [2, 96], strides = [1, 1]} : vector<2x128xf32> to vector<2x96xf32>
      %147 = arith.negf %146 : vector<2x96xf32>
      %148 = math.exp %147 : vector<2x96xf32>
      %cst_55 = arith.constant 1.000000e+00 : f32
      %149 = vector.broadcast %cst_55 : f32 to vector<2x96xf32>
      %150 = arith.addf %149, %148 : vector<2x96xf32>
      %151 = arith.divf %149, %150 : vector<2x96xf32>
      %152 = vector.extract_strided_slice %145 {offsets = [0, 96], sizes = [2, 32], strides = [1, 1]} : vector<2x128xf32> to vector<2x32xf32>
      %153 = math.tanh %152 : vector<2x32xf32>
      %154 = vector.extract_strided_slice %151 {offsets = [0, 32], sizes = [2, 32], strides = [1, 1]} : vector<2x96xf32> to vector<2x32xf32>
      %155 = arith.mulf %154, %141 : vector<2x32xf32>
      %156 = vector.extract_strided_slice %151 {offsets = [0, 0], sizes = [2, 32], strides = [1, 1]} : vector<2x96xf32> to vector<2x32xf32>
      %157 = arith.mulf %156, %153 : vector<2x32xf32>
      %158 = arith.addf %155, %157 : vector<2x32xf32>
      %159 = vector.extract_strided_slice %151 {offsets = [0, 64], sizes = [2, 32], strides = [1, 1]} : vector<2x96xf32> to vector<2x32xf32>
      %160 = math.tanh %158 : vector<2x32xf32>
      %161 = arith.mulf %159, %160 : vector<2x32xf32>
      %cst_56 = arith.constant dense<0.000000e+00> : vector<2x128xf32>
      %162 = tpu.matmul %161, %129, %cst_56 {dimension_numbers = #tpu.dot_dimension_numbers<[1], [0], [0], [1], [0, 0, 1, 1], [], []>} : vector<2x32xf32>, vector<32x128xf32>, vector<2x128xf32> -> vector<2x128xf32>
      %cst_57 = arith.constant dense<0.000000e+00> : vector<2x128xf32>
      %163 = tpu.matmul %140, %131, %cst_57 {dimension_numbers = #tpu.dot_dimension_numbers<[1], [0], [0], [1], [0, 0, 1, 1], [], []>} : vector<2x32xf32>, vector<32x128xf32>, vector<2x128xf32> -> vector<2x128xf32>
      %164 = arith.addf %162, %163 : vector<2x128xf32>
      %165 = arith.addf %164, %134 : vector<2x128xf32>
      %166 = vector.extract_strided_slice %165 {offsets = [0, 0], sizes = [2, 96], strides = [1, 1]} : vector<2x128xf32> to vector<2x96xf32>
      %167 = arith.negf %166 : vector<2x96xf32>
      %168 = math.exp %167 : vector<2x96xf32>
      %cst_58 = arith.constant 1.000000e+00 : f32
      %169 = vector.broadcast %cst_58 : f32 to vector<2x96xf32>
      %170 = arith.addf %169, %168 : vector<2x96xf32>
      %171 = arith.divf %169, %170 : vector<2x96xf32>
      %172 = vector.extract_strided_slice %165 {offsets = [0, 96], sizes = [2, 32], strides = [1, 1]} : vector<2x128xf32> to vector<2x32xf32>
      %173 = math.tanh %172 : vector<2x32xf32>
      %174 = vector.extract_strided_slice %171 {offsets = [0, 32], sizes = [2, 32], strides = [1, 1]} : vector<2x96xf32> to vector<2x32xf32>
      %175 = arith.mulf %174, %142 : vector<2x32xf32>
      %176 = vector.extract_strided_slice %171 {offsets = [0, 0], sizes = [2, 32], strides = [1, 1]} : vector<2x96xf32> to vector<2x32xf32>
      %177 = arith.mulf %176, %173 : vector<2x32xf32>
      %178 = arith.addf %175, %177 : vector<2x32xf32>
      %179 = vector.extract_strided_slice %171 {offsets = [0, 64], sizes = [2, 32], strides = [1, 1]} : vector<2x96xf32> to vector<2x32xf32>
      %180 = math.tanh %178 : vector<2x32xf32>
      %181 = arith.mulf %179, %180 : vector<2x32xf32>
      %182 = vector.extract_strided_slice %138 {offsets = [2, 0], sizes = [2, 128], strides = [1, 1]} : vector<16x128xf32> to vector<2x128xf32>
      %cst_59 = arith.constant dense<0.000000e+00> : vector<2x128xf32>
      %183 = tpu.matmul %161, %130, %cst_59 {dimension_numbers = #tpu.dot_dimension_numbers<[1], [0], [0], [1], [0, 0, 1, 1], [], []>} : vector<2x32xf32>, vector<32x128xf32>, vector<2x128xf32> -> vector<2x128xf32>
      %184 = arith.addf %182, %183 : vector<2x128xf32>
      %185 = vector.extract_strided_slice %184 {offsets = [0, 0], sizes = [2, 96], strides = [1, 1]} : vector<2x128xf32> to vector<2x96xf32>
      %186 = arith.negf %185 : vector<2x96xf32>
      %187 = math.exp %186 : vector<2x96xf32>
      %cst_60 = arith.constant 1.000000e+00 : f32
      %188 = vector.broadcast %cst_60 : f32 to vector<2x96xf32>
      %189 = arith.addf %188, %187 : vector<2x96xf32>
      %190 = arith.divf %188, %189 : vector<2x96xf32>
      %191 = vector.extract_strided_slice %184 {offsets = [0, 96], sizes = [2, 32], strides = [1, 1]} : vector<2x128xf32> to vector<2x32xf32>
      %192 = math.tanh %191 : vector<2x32xf32>
      %193 = vector.extract_strided_slice %190 {offsets = [0, 32], sizes = [2, 32], strides = [1, 1]} : vector<2x96xf32> to vector<2x32xf32>
      %194 = arith.mulf %193, %158 : vector<2x32xf32>
      %195 = vector.extract_strided_slice %190 {offsets = [0, 0], sizes = [2, 32], strides = [1, 1]} : vector<2x96xf32> to vector<2x32xf32>
      %196 = arith.mulf %195, %192 : vector<2x32xf32>
      %197 = arith.addf %194, %196 : vector<2x32xf32>
      %198 = vector.extract_strided_slice %190 {offsets = [0, 64], sizes = [2, 32], strides = [1, 1]} : vector<2x96xf32> to vector<2x32xf32>
      %199 = math.tanh %197 : vector<2x32xf32>
      %200 = arith.mulf %198, %199 : vector<2x32xf32>
      %cst_61 = arith.constant dense<0.000000e+00> : vector<2x128xf32>
      %201 = tpu.matmul %200, %129, %cst_61 {dimension_numbers = #tpu.dot_dimension_numbers<[1], [0], [0], [1], [0, 0, 1, 1], [], []>} : vector<2x32xf32>, vector<32x128xf32>, vector<2x128xf32> -> vector<2x128xf32>
      %cst_62 = arith.constant dense<0.000000e+00> : vector<2x128xf32>
      %202 = tpu.matmul %181, %131, %cst_62 {dimension_numbers = #tpu.dot_dimension_numbers<[1], [0], [0], [1], [0, 0, 1, 1], [], []>} : vector<2x32xf32>, vector<32x128xf32>, vector<2x128xf32> -> vector<2x128xf32>
      %203 = arith.addf %201, %202 : vector<2x128xf32>
      %204 = arith.addf %203, %134 : vector<2x128xf32>
      %205 = vector.extract_strided_slice %204 {offsets = [0, 0], sizes = [2, 96], strides = [1, 1]} : vector<2x128xf32> to vector<2x96xf32>
      %206 = arith.negf %205 : vector<2x96xf32>
      %207 = math.exp %206 : vector<2x96xf32>
      %cst_63 = arith.constant 1.000000e+00 : f32
      %208 = vector.broadcast %cst_63 : f32 to vector<2x96xf32>
      %209 = arith.addf %208, %207 : vector<2x96xf32>
      %210 = arith.divf %208, %209 : vector<2x96xf32>
      %211 = vector.extract_strided_slice %204 {offsets = [0, 96], sizes = [2, 32], strides = [1, 1]} : vector<2x128xf32> to vector<2x32xf32>
      %212 = math.tanh %211 : vector<2x32xf32>
      %213 = vector.extract_strided_slice %210 {offsets = [0, 32], sizes = [2, 32], strides = [1, 1]} : vector<2x96xf32> to vector<2x32xf32>
      %214 = arith.mulf %213, %178 : vector<2x32xf32>
      %215 = vector.extract_strided_slice %210 {offsets = [0, 0], sizes = [2, 32], strides = [1, 1]} : vector<2x96xf32> to vector<2x32xf32>
      %216 = arith.mulf %215, %212 : vector<2x32xf32>
      %217 = arith.addf %214, %216 : vector<2x32xf32>
      %218 = vector.extract_strided_slice %210 {offsets = [0, 64], sizes = [2, 32], strides = [1, 1]} : vector<2x96xf32> to vector<2x32xf32>
      %219 = math.tanh %217 : vector<2x32xf32>
      %220 = arith.mulf %218, %219 : vector<2x32xf32>
      %221 = vector.extract_strided_slice %138 {offsets = [4, 0], sizes = [2, 128], strides = [1, 1]} : vector<16x128xf32> to vector<2x128xf32>
      %cst_64 = arith.constant dense<0.000000e+00> : vector<2x128xf32>
      %222 = tpu.matmul %200, %130, %cst_64 {dimension_numbers = #tpu.dot_dimension_numbers<[1], [0], [0], [1], [0, 0, 1, 1], [], []>} : vector<2x32xf32>, vector<32x128xf32>, vector<2x128xf32> -> vector<2x128xf32>
      %223 = arith.addf %221, %222 : vector<2x128xf32>
      %224 = vector.extract_strided_slice %223 {offsets = [0, 0], sizes = [2, 96], strides = [1, 1]} : vector<2x128xf32> to vector<2x96xf32>
      %225 = arith.negf %224 : vector<2x96xf32>
      %226 = math.exp %225 : vector<2x96xf32>
      %cst_65 = arith.constant 1.000000e+00 : f32
      %227 = vector.broadcast %cst_65 : f32 to vector<2x96xf32>
      %228 = arith.addf %227, %226 : vector<2x96xf32>
      %229 = arith.divf %227, %228 : vector<2x96xf32>
      %230 = vector.extract_strided_slice %223 {offsets = [0, 96], sizes = [2, 32], strides = [1, 1]} : vector<2x128xf32> to vector<2x32xf32>
      %231 = math.tanh %230 : vector<2x32xf32>
      %232 = vector.extract_strided_slice %229 {offsets = [0, 32], sizes = [2, 32], strides = [1, 1]} : vector<2x96xf32> to vector<2x32xf32>
      %233 = arith.mulf %232, %197 : vector<2x32xf32>
      %234 = vector.extract_strided_slice %229 {offsets = [0, 0], sizes = [2, 32], strides = [1, 1]} : vector<2x96xf32> to vector<2x32xf32>
      %235 = arith.mulf %234, %231 : vector<2x32xf32>
      %236 = arith.addf %233, %235 : vector<2x32xf32>
      %237 = vector.extract_strided_slice %229 {offsets = [0, 64], sizes = [2, 32], strides = [1, 1]} : vector<2x96xf32> to vector<2x32xf32>
      %238 = math.tanh %236 : vector<2x32xf32>
      %239 = arith.mulf %237, %238 : vector<2x32xf32>
      %cst_66 = arith.constant dense<0.000000e+00> : vector<2x128xf32>
      %240 = tpu.matmul %239, %129, %cst_66 {dimension_numbers = #tpu.dot_dimension_numbers<[1], [0], [0], [1], [0, 0, 1, 1], [], []>} : vector<2x32xf32>, vector<32x128xf32>, vector<2x128xf32> -> vector<2x128xf32>
      %cst_67 = arith.constant dense<0.000000e+00> : vector<2x128xf32>
      %241 = tpu.matmul %220, %131, %cst_67 {dimension_numbers = #tpu.dot_dimension_numbers<[1], [0], [0], [1], [0, 0, 1, 1], [], []>} : vector<2x32xf32>, vector<32x128xf32>, vector<2x128xf32> -> vector<2x128xf32>
      %242 = arith.addf %240, %241 : vector<2x128xf32>
      %243 = arith.addf %242, %134 : vector<2x128xf32>
      %244 = vector.extract_strided_slice %243 {offsets = [0, 0], sizes = [2, 96], strides = [1, 1]} : vector<2x128xf32> to vector<2x96xf32>
      %245 = arith.negf %244 : vector<2x96xf32>
      %246 = math.exp %245 : vector<2x96xf32>
      %cst_68 = arith.constant 1.000000e+00 : f32
      %247 = vector.broadcast %cst_68 : f32 to vector<2x96xf32>
      %248 = arith.addf %247, %246 : vector<2x96xf32>
      %249 = arith.divf %247, %248 : vector<2x96xf32>
      %250 = vector.extract_strided_slice %243 {offsets = [0, 96], sizes = [2, 32], strides = [1, 1]} : vector<2x128xf32> to vector<2x32xf32>
      %251 = math.tanh %250 : vector<2x32xf32>
      %252 = vector.extract_strided_slice %249 {offsets = [0, 32], sizes = [2, 32], strides = [1, 1]} : vector<2x96xf32> to vector<2x32xf32>
      %253 = arith.mulf %252, %217 : vector<2x32xf32>
      %254 = vector.extract_strided_slice %249 {offsets = [0, 0], sizes = [2, 32], strides = [1, 1]} : vector<2x96xf32> to vector<2x32xf32>
      %255 = arith.mulf %254, %251 : vector<2x32xf32>
      %256 = arith.addf %253, %255 : vector<2x32xf32>
      %257 = vector.extract_strided_slice %249 {offsets = [0, 64], sizes = [2, 32], strides = [1, 1]} : vector<2x96xf32> to vector<2x32xf32>
      %258 = math.tanh %256 : vector<2x32xf32>
      %259 = arith.mulf %257, %258 : vector<2x32xf32>
      %260 = vector.extract_strided_slice %138 {offsets = [6, 0], sizes = [2, 128], strides = [1, 1]} : vector<16x128xf32> to vector<2x128xf32>
      %cst_69 = arith.constant dense<0.000000e+00> : vector<2x128xf32>
      %261 = tpu.matmul %239, %130, %cst_69 {dimension_numbers = #tpu.dot_dimension_numbers<[1], [0], [0], [1], [0, 0, 1, 1], [], []>} : vector<2x32xf32>, vector<32x128xf32>, vector<2x128xf32> -> vector<2x128xf32>
      %262 = arith.addf %260, %261 : vector<2x128xf32>
      %263 = vector.extract_strided_slice %262 {offsets = [0, 0], sizes = [2, 96], strides = [1, 1]} : vector<2x128xf32> to vector<2x96xf32>
      %264 = arith.negf %263 : vector<2x96xf32>
      %265 = math.exp %264 : vector<2x96xf32>
      %cst_70 = arith.constant 1.000000e+00 : f32
      %266 = vector.broadcast %cst_70 : f32 to vector<2x96xf32>
      %267 = arith.addf %266, %265 : vector<2x96xf32>
      %268 = arith.divf %266, %267 : vector<2x96xf32>
      %269 = vector.extract_strided_slice %262 {offsets = [0, 96], sizes = [2, 32], strides = [1, 1]} : vector<2x128xf32> to vector<2x32xf32>
      %270 = math.tanh %269 : vector<2x32xf32>
      %271 = vector.extract_strided_slice %268 {offsets = [0, 32], sizes = [2, 32], strides = [1, 1]} : vector<2x96xf32> to vector<2x32xf32>
      %272 = arith.mulf %271, %236 : vector<2x32xf32>
      %273 = vector.extract_strided_slice %268 {offsets = [0, 0], sizes = [2, 32], strides = [1, 1]} : vector<2x96xf32> to vector<2x32xf32>
      %274 = arith.mulf %273, %270 : vector<2x32xf32>
      %275 = arith.addf %272, %274 : vector<2x32xf32>
      %276 = vector.extract_strided_slice %268 {offsets = [0, 64], sizes = [2, 32], strides = [1, 1]} : vector<2x96xf32> to vector<2x32xf32>
      %277 = math.tanh %275 : vector<2x32xf32>
      %278 = arith.mulf %276, %277 : vector<2x32xf32>
      %cst_71 = arith.constant dense<0.000000e+00> : vector<2x128xf32>
      %279 = tpu.matmul %278, %129, %cst_71 {dimension_numbers = #tpu.dot_dimension_numbers<[1], [0], [0], [1], [0, 0, 1, 1], [], []>} : vector<2x32xf32>, vector<32x128xf32>, vector<2x128xf32> -> vector<2x128xf32>
      %cst_72 = arith.constant dense<0.000000e+00> : vector<2x128xf32>
      %280 = tpu.matmul %259, %131, %cst_72 {dimension_numbers = #tpu.dot_dimension_numbers<[1], [0], [0], [1], [0, 0, 1, 1], [], []>} : vector<2x32xf32>, vector<32x128xf32>, vector<2x128xf32> -> vector<2x128xf32>
      %281 = arith.addf %279, %280 : vector<2x128xf32>
      %282 = arith.addf %281, %134 : vector<2x128xf32>
      %283 = vector.extract_strided_slice %282 {offsets = [0, 0], sizes = [2, 96], strides = [1, 1]} : vector<2x128xf32> to vector<2x96xf32>
      %284 = arith.negf %283 : vector<2x96xf32>
      %285 = math.exp %284 : vector<2x96xf32>
      %cst_73 = arith.constant 1.000000e+00 : f32
      %286 = vector.broadcast %cst_73 : f32 to vector<2x96xf32>
      %287 = arith.addf %286, %285 : vector<2x96xf32>
      %288 = arith.divf %286, %287 : vector<2x96xf32>
      %289 = vector.extract_strided_slice %282 {offsets = [0, 96], sizes = [2, 32], strides = [1, 1]} : vector<2x128xf32> to vector<2x32xf32>
      %290 = math.tanh %289 : vector<2x32xf32>
      %291 = vector.extract_strided_slice %288 {offsets = [0, 32], sizes = [2, 32], strides = [1, 1]} : vector<2x96xf32> to vector<2x32xf32>
      %292 = arith.mulf %291, %256 : vector<2x32xf32>
      %293 = vector.extract_strided_slice %288 {offsets = [0, 0], sizes = [2, 32], strides = [1, 1]} : vector<2x96xf32> to vector<2x32xf32>
      %294 = arith.mulf %293, %290 : vector<2x32xf32>
      %295 = arith.addf %292, %294 : vector<2x32xf32>
      %296 = vector.extract_strided_slice %288 {offsets = [0, 64], sizes = [2, 32], strides = [1, 1]} : vector<2x96xf32> to vector<2x32xf32>
      %297 = math.tanh %295 : vector<2x32xf32>
      %298 = arith.mulf %296, %297 : vector<2x32xf32>
      %299 = vector.extract_strided_slice %138 {offsets = [8, 0], sizes = [2, 128], strides = [1, 1]} : vector<16x128xf32> to vector<2x128xf32>
      %cst_74 = arith.constant dense<0.000000e+00> : vector<2x128xf32>
      %300 = tpu.matmul %278, %130, %cst_74 {dimension_numbers = #tpu.dot_dimension_numbers<[1], [0], [0], [1], [0, 0, 1, 1], [], []>} : vector<2x32xf32>, vector<32x128xf32>, vector<2x128xf32> -> vector<2x128xf32>
      %301 = arith.addf %299, %300 : vector<2x128xf32>
      %302 = vector.extract_strided_slice %301 {offsets = [0, 0], sizes = [2, 96], strides = [1, 1]} : vector<2x128xf32> to vector<2x96xf32>
      %303 = arith.negf %302 : vector<2x96xf32>
      %304 = math.exp %303 : vector<2x96xf32>
      %cst_75 = arith.constant 1.000000e+00 : f32
      %305 = vector.broadcast %cst_75 : f32 to vector<2x96xf32>
      %306 = arith.addf %305, %304 : vector<2x96xf32>
      %307 = arith.divf %305, %306 : vector<2x96xf32>
      %308 = vector.extract_strided_slice %301 {offsets = [0, 96], sizes = [2, 32], strides = [1, 1]} : vector<2x128xf32> to vector<2x32xf32>
      %309 = math.tanh %308 : vector<2x32xf32>
      %310 = vector.extract_strided_slice %307 {offsets = [0, 32], sizes = [2, 32], strides = [1, 1]} : vector<2x96xf32> to vector<2x32xf32>
      %311 = arith.mulf %310, %275 : vector<2x32xf32>
      %312 = vector.extract_strided_slice %307 {offsets = [0, 0], sizes = [2, 32], strides = [1, 1]} : vector<2x96xf32> to vector<2x32xf32>
      %313 = arith.mulf %312, %309 : vector<2x32xf32>
      %314 = arith.addf %311, %313 : vector<2x32xf32>
      %315 = vector.extract_strided_slice %307 {offsets = [0, 64], sizes = [2, 32], strides = [1, 1]} : vector<2x96xf32> to vector<2x32xf32>
      %316 = math.tanh %314 : vector<2x32xf32>
      %317 = arith.mulf %315, %316 : vector<2x32xf32>
      %cst_76 = arith.constant dense<0.000000e+00> : vector<2x128xf32>
      %318 = tpu.matmul %317, %129, %cst_76 {dimension_numbers = #tpu.dot_dimension_numbers<[1], [0], [0], [1], [0, 0, 1, 1], [], []>} : vector<2x32xf32>, vector<32x128xf32>, vector<2x128xf32> -> vector<2x128xf32>
      %cst_77 = arith.constant dense<0.000000e+00> : vector<2x128xf32>
      %319 = tpu.matmul %298, %131, %cst_77 {dimension_numbers = #tpu.dot_dimension_numbers<[1], [0], [0], [1], [0, 0, 1, 1], [], []>} : vector<2x32xf32>, vector<32x128xf32>, vector<2x128xf32> -> vector<2x128xf32>
      %320 = arith.addf %318, %319 : vector<2x128xf32>
      %321 = arith.addf %320, %134 : vector<2x128xf32>
      %322 = vector.extract_strided_slice %321 {offsets = [0, 0], sizes = [2, 96], strides = [1, 1]} : vector<2x128xf32> to vector<2x96xf32>
      %323 = arith.negf %322 : vector<2x96xf32>
      %324 = math.exp %323 : vector<2x96xf32>
      %cst_78 = arith.constant 1.000000e+00 : f32
      %325 = vector.broadcast %cst_78 : f32 to vector<2x96xf32>
      %326 = arith.addf %325, %324 : vector<2x96xf32>
      %327 = arith.divf %325, %326 : vector<2x96xf32>
      %328 = vector.extract_strided_slice %321 {offsets = [0, 96], sizes = [2, 32], strides = [1, 1]} : vector<2x128xf32> to vector<2x32xf32>
      %329 = math.tanh %328 : vector<2x32xf32>
      %330 = vector.extract_strided_slice %327 {offsets = [0, 32], sizes = [2, 32], strides = [1, 1]} : vector<2x96xf32> to vector<2x32xf32>
      %331 = arith.mulf %330, %295 : vector<2x32xf32>
      %332 = vector.extract_strided_slice %327 {offsets = [0, 0], sizes = [2, 32], strides = [1, 1]} : vector<2x96xf32> to vector<2x32xf32>
      %333 = arith.mulf %332, %329 : vector<2x32xf32>
      %334 = arith.addf %331, %333 : vector<2x32xf32>
      %335 = vector.extract_strided_slice %327 {offsets = [0, 64], sizes = [2, 32], strides = [1, 1]} : vector<2x96xf32> to vector<2x32xf32>
      %336 = math.tanh %334 : vector<2x32xf32>
      %337 = arith.mulf %335, %336 : vector<2x32xf32>
      %338 = vector.extract_strided_slice %138 {offsets = [10, 0], sizes = [2, 128], strides = [1, 1]} : vector<16x128xf32> to vector<2x128xf32>
      %cst_79 = arith.constant dense<0.000000e+00> : vector<2x128xf32>
      %339 = tpu.matmul %317, %130, %cst_79 {dimension_numbers = #tpu.dot_dimension_numbers<[1], [0], [0], [1], [0, 0, 1, 1], [], []>} : vector<2x32xf32>, vector<32x128xf32>, vector<2x128xf32> -> vector<2x128xf32>
      %340 = arith.addf %338, %339 : vector<2x128xf32>
      %341 = vector.extract_strided_slice %340 {offsets = [0, 0], sizes = [2, 96], strides = [1, 1]} : vector<2x128xf32> to vector<2x96xf32>
      %342 = arith.negf %341 : vector<2x96xf32>
      %343 = math.exp %342 : vector<2x96xf32>
      %cst_80 = arith.constant 1.000000e+00 : f32
      %344 = vector.broadcast %cst_80 : f32 to vector<2x96xf32>
      %345 = arith.addf %344, %343 : vector<2x96xf32>
      %346 = arith.divf %344, %345 : vector<2x96xf32>
      %347 = vector.extract_strided_slice %340 {offsets = [0, 96], sizes = [2, 32], strides = [1, 1]} : vector<2x128xf32> to vector<2x32xf32>
      %348 = math.tanh %347 : vector<2x32xf32>
      %349 = vector.extract_strided_slice %346 {offsets = [0, 32], sizes = [2, 32], strides = [1, 1]} : vector<2x96xf32> to vector<2x32xf32>
      %350 = arith.mulf %349, %314 : vector<2x32xf32>
      %351 = vector.extract_strided_slice %346 {offsets = [0, 0], sizes = [2, 32], strides = [1, 1]} : vector<2x96xf32> to vector<2x32xf32>
      %352 = arith.mulf %351, %348 : vector<2x32xf32>
      %353 = arith.addf %350, %352 : vector<2x32xf32>
      %354 = vector.extract_strided_slice %346 {offsets = [0, 64], sizes = [2, 32], strides = [1, 1]} : vector<2x96xf32> to vector<2x32xf32>
      %355 = math.tanh %353 : vector<2x32xf32>
      %356 = arith.mulf %354, %355 : vector<2x32xf32>
      %cst_81 = arith.constant dense<0.000000e+00> : vector<2x128xf32>
      %357 = tpu.matmul %356, %129, %cst_81 {dimension_numbers = #tpu.dot_dimension_numbers<[1], [0], [0], [1], [0, 0, 1, 1], [], []>} : vector<2x32xf32>, vector<32x128xf32>, vector<2x128xf32> -> vector<2x128xf32>
      %cst_82 = arith.constant dense<0.000000e+00> : vector<2x128xf32>
      %358 = tpu.matmul %337, %131, %cst_82 {dimension_numbers = #tpu.dot_dimension_numbers<[1], [0], [0], [1], [0, 0, 1, 1], [], []>} : vector<2x32xf32>, vector<32x128xf32>, vector<2x128xf32> -> vector<2x128xf32>
      %359 = arith.addf %357, %358 : vector<2x128xf32>
      %360 = arith.addf %359, %134 : vector<2x128xf32>
      %361 = vector.extract_strided_slice %360 {offsets = [0, 0], sizes = [2, 96], strides = [1, 1]} : vector<2x128xf32> to vector<2x96xf32>
      %362 = arith.negf %361 : vector<2x96xf32>
      %363 = math.exp %362 : vector<2x96xf32>
      %cst_83 = arith.constant 1.000000e+00 : f32
      %364 = vector.broadcast %cst_83 : f32 to vector<2x96xf32>
      %365 = arith.addf %364, %363 : vector<2x96xf32>
      %366 = arith.divf %364, %365 : vector<2x96xf32>
      %367 = vector.extract_strided_slice %360 {offsets = [0, 96], sizes = [2, 32], strides = [1, 1]} : vector<2x128xf32> to vector<2x32xf32>
      %368 = math.tanh %367 : vector<2x32xf32>
      %369 = vector.extract_strided_slice %366 {offsets = [0, 32], sizes = [2, 32], strides = [1, 1]} : vector<2x96xf32> to vector<2x32xf32>
      %370 = arith.mulf %369, %334 : vector<2x32xf32>
      %371 = vector.extract_strided_slice %366 {offsets = [0, 0], sizes = [2, 32], strides = [1, 1]} : vector<2x96xf32> to vector<2x32xf32>
      %372 = arith.mulf %371, %368 : vector<2x32xf32>
      %373 = arith.addf %370, %372 : vector<2x32xf32>
      %374 = vector.extract_strided_slice %366 {offsets = [0, 64], sizes = [2, 32], strides = [1, 1]} : vector<2x96xf32> to vector<2x32xf32>
      %375 = math.tanh %373 : vector<2x32xf32>
      %376 = arith.mulf %374, %375 : vector<2x32xf32>
      %377 = vector.extract_strided_slice %138 {offsets = [12, 0], sizes = [2, 128], strides = [1, 1]} : vector<16x128xf32> to vector<2x128xf32>
      %cst_84 = arith.constant dense<0.000000e+00> : vector<2x128xf32>
      %378 = tpu.matmul %356, %130, %cst_84 {dimension_numbers = #tpu.dot_dimension_numbers<[1], [0], [0], [1], [0, 0, 1, 1], [], []>} : vector<2x32xf32>, vector<32x128xf32>, vector<2x128xf32> -> vector<2x128xf32>
      %379 = arith.addf %377, %378 : vector<2x128xf32>
      %380 = vector.extract_strided_slice %379 {offsets = [0, 0], sizes = [2, 96], strides = [1, 1]} : vector<2x128xf32> to vector<2x96xf32>
      %381 = arith.negf %380 : vector<2x96xf32>
      %382 = math.exp %381 : vector<2x96xf32>
      %cst_85 = arith.constant 1.000000e+00 : f32
      %383 = vector.broadcast %cst_85 : f32 to vector<2x96xf32>
      %384 = arith.addf %383, %382 : vector<2x96xf32>
      %385 = arith.divf %383, %384 : vector<2x96xf32>
      %386 = vector.extract_strided_slice %379 {offsets = [0, 96], sizes = [2, 32], strides = [1, 1]} : vector<2x128xf32> to vector<2x32xf32>
      %387 = math.tanh %386 : vector<2x32xf32>
      %388 = vector.extract_strided_slice %385 {offsets = [0, 32], sizes = [2, 32], strides = [1, 1]} : vector<2x96xf32> to vector<2x32xf32>
      %389 = arith.mulf %388, %353 : vector<2x32xf32>
      %390 = vector.extract_strided_slice %385 {offsets = [0, 0], sizes = [2, 32], strides = [1, 1]} : vector<2x96xf32> to vector<2x32xf32>
      %391 = arith.mulf %390, %387 : vector<2x32xf32>
      %392 = arith.addf %389, %391 : vector<2x32xf32>
      %393 = vector.extract_strided_slice %385 {offsets = [0, 64], sizes = [2, 32], strides = [1, 1]} : vector<2x96xf32> to vector<2x32xf32>
      %394 = math.tanh %392 : vector<2x32xf32>
      %395 = arith.mulf %393, %394 : vector<2x32xf32>
      %cst_86 = arith.constant dense<0.000000e+00> : vector<2x128xf32>
      %396 = tpu.matmul %395, %129, %cst_86 {dimension_numbers = #tpu.dot_dimension_numbers<[1], [0], [0], [1], [0, 0, 1, 1], [], []>} : vector<2x32xf32>, vector<32x128xf32>, vector<2x128xf32> -> vector<2x128xf32>
      %cst_87 = arith.constant dense<0.000000e+00> : vector<2x128xf32>
      %397 = tpu.matmul %376, %131, %cst_87 {dimension_numbers = #tpu.dot_dimension_numbers<[1], [0], [0], [1], [0, 0, 1, 1], [], []>} : vector<2x32xf32>, vector<32x128xf32>, vector<2x128xf32> -> vector<2x128xf32>
      %398 = arith.addf %396, %397 : vector<2x128xf32>
      %399 = arith.addf %398, %134 : vector<2x128xf32>
      %400 = vector.extract_strided_slice %399 {offsets = [0, 0], sizes = [2, 96], strides = [1, 1]} : vector<2x128xf32> to vector<2x96xf32>
      %401 = arith.negf %400 : vector<2x96xf32>
      %402 = math.exp %401 : vector<2x96xf32>
      %cst_88 = arith.constant 1.000000e+00 : f32
      %403 = vector.broadcast %cst_88 : f32 to vector<2x96xf32>
      %404 = arith.addf %403, %402 : vector<2x96xf32>
      %405 = arith.divf %403, %404 : vector<2x96xf32>
      %406 = vector.extract_strided_slice %399 {offsets = [0, 96], sizes = [2, 32], strides = [1, 1]} : vector<2x128xf32> to vector<2x32xf32>
      %407 = math.tanh %406 : vector<2x32xf32>
      %408 = vector.extract_strided_slice %405 {offsets = [0, 32], sizes = [2, 32], strides = [1, 1]} : vector<2x96xf32> to vector<2x32xf32>
      %409 = arith.mulf %408, %373 : vector<2x32xf32>
      %410 = vector.extract_strided_slice %405 {offsets = [0, 0], sizes = [2, 32], strides = [1, 1]} : vector<2x96xf32> to vector<2x32xf32>
      %411 = arith.mulf %410, %407 : vector<2x32xf32>
      %412 = arith.addf %409, %411 : vector<2x32xf32>
      %413 = vector.extract_strided_slice %405 {offsets = [0, 64], sizes = [2, 32], strides = [1, 1]} : vector<2x96xf32> to vector<2x32xf32>
      %414 = math.tanh %412 : vector<2x32xf32>
      %415 = arith.mulf %413, %414 : vector<2x32xf32>
      %416 = vector.extract_strided_slice %138 {offsets = [14, 0], sizes = [2, 128], strides = [1, 1]} : vector<16x128xf32> to vector<2x128xf32>
      %cst_89 = arith.constant dense<0.000000e+00> : vector<2x128xf32>
      %417 = tpu.matmul %395, %130, %cst_89 {dimension_numbers = #tpu.dot_dimension_numbers<[1], [0], [0], [1], [0, 0, 1, 1], [], []>} : vector<2x32xf32>, vector<32x128xf32>, vector<2x128xf32> -> vector<2x128xf32>
      %418 = arith.addf %416, %417 : vector<2x128xf32>
      %419 = vector.extract_strided_slice %418 {offsets = [0, 0], sizes = [2, 96], strides = [1, 1]} : vector<2x128xf32> to vector<2x96xf32>
      %420 = arith.negf %419 : vector<2x96xf32>
      %421 = math.exp %420 : vector<2x96xf32>
      %cst_90 = arith.constant 1.000000e+00 : f32
      %422 = vector.broadcast %cst_90 : f32 to vector<2x96xf32>
      %423 = arith.addf %422, %421 : vector<2x96xf32>
      %424 = arith.divf %422, %423 : vector<2x96xf32>
      %425 = vector.extract_strided_slice %418 {offsets = [0, 96], sizes = [2, 32], strides = [1, 1]} : vector<2x128xf32> to vector<2x32xf32>
      %426 = math.tanh %425 : vector<2x32xf32>
      %427 = vector.extract_strided_slice %424 {offsets = [0, 32], sizes = [2, 32], strides = [1, 1]} : vector<2x96xf32> to vector<2x32xf32>
      %428 = arith.mulf %427, %392 : vector<2x32xf32>
      %429 = vector.extract_strided_slice %424 {offsets = [0, 0], sizes = [2, 32], strides = [1, 1]} : vector<2x96xf32> to vector<2x32xf32>
      %430 = arith.mulf %429, %426 : vector<2x32xf32>
      %431 = arith.addf %428, %430 : vector<2x32xf32>
      %432 = vector.extract_strided_slice %424 {offsets = [0, 64], sizes = [2, 32], strides = [1, 1]} : vector<2x96xf32> to vector<2x32xf32>
      %433 = math.tanh %431 : vector<2x32xf32>
      %434 = arith.mulf %432, %433 : vector<2x32xf32>
      %cst_91 = arith.constant dense<0.000000e+00> : vector<2x128xf32>
      %435 = tpu.matmul %434, %129, %cst_91 {dimension_numbers = #tpu.dot_dimension_numbers<[1], [0], [0], [1], [0, 0, 1, 1], [], []>} : vector<2x32xf32>, vector<32x128xf32>, vector<2x128xf32> -> vector<2x128xf32>
      %cst_92 = arith.constant dense<0.000000e+00> : vector<2x128xf32>
      %436 = tpu.matmul %415, %131, %cst_92 {dimension_numbers = #tpu.dot_dimension_numbers<[1], [0], [0], [1], [0, 0, 1, 1], [], []>} : vector<2x32xf32>, vector<32x128xf32>, vector<2x128xf32> -> vector<2x128xf32>
      %437 = arith.addf %435, %436 : vector<2x128xf32>
      %438 = arith.addf %437, %134 : vector<2x128xf32>
      %439 = vector.extract_strided_slice %438 {offsets = [0, 0], sizes = [2, 96], strides = [1, 1]} : vector<2x128xf32> to vector<2x96xf32>
      %440 = arith.negf %439 : vector<2x96xf32>
      %441 = math.exp %440 : vector<2x96xf32>
      %cst_93 = arith.constant 1.000000e+00 : f32
      %442 = vector.broadcast %cst_93 : f32 to vector<2x96xf32>
      %443 = arith.addf %442, %441 : vector<2x96xf32>
      %444 = arith.divf %442, %443 : vector<2x96xf32>
      %445 = vector.extract_strided_slice %438 {offsets = [0, 96], sizes = [2, 32], strides = [1, 1]} : vector<2x128xf32> to vector<2x32xf32>
      %446 = math.tanh %445 : vector<2x32xf32>
      %447 = vector.extract_strided_slice %444 {offsets = [0, 32], sizes = [2, 32], strides = [1, 1]} : vector<2x96xf32> to vector<2x32xf32>
      %448 = arith.mulf %447, %412 : vector<2x32xf32>
      %449 = vector.extract_strided_slice %444 {offsets = [0, 0], sizes = [2, 32], strides = [1, 1]} : vector<2x96xf32> to vector<2x32xf32>
      %450 = arith.mulf %449, %446 : vector<2x32xf32>
      %451 = arith.addf %448, %450 : vector<2x32xf32>
      %452 = vector.extract_strided_slice %444 {offsets = [0, 64], sizes = [2, 32], strides = [1, 1]} : vector<2x96xf32> to vector<2x32xf32>
      %453 = math.tanh %451 : vector<2x32xf32>
      %454 = arith.mulf %452, %453 : vector<2x32xf32>
      %c0_94 = arith.constant 0 : index
      %c0_95 = arith.constant 0 : index
      %455 = vector.load %arg19[%c0_94, %c0_95] : memref<32x5xf32, #tpu.memory_space<vmem>>, vector<32x5xf32>
      %cst_96 = arith.constant dense<0.000000e+00> : vector<2x5xf32>
      %456 = tpu.matmul %454, %455, %cst_96 {dimension_numbers = #tpu.dot_dimension_numbers<[1], [0], [0], [1], [0, 0, 1, 1], [], []>} : vector<2x32xf32>, vector<32x5xf32>, vector<2x5xf32> -> vector<2x5xf32>
      %c0_97 = arith.constant 0 : index
      %c0_98 = arith.constant 0 : index
      %457 = vector.load %arg20[%c0_97, %c0_98] : memref<1x5xf32, #tpu.memory_space<vmem>>, vector<1x5xf32>
      %458 = vector.broadcast %457 : vector<1x5xf32> to vector<2x5xf32>
      %459 = arith.addf %456, %458 : vector<2x5xf32>
      %c0_99 = arith.constant 0 : index
      %c0_100 = arith.constant 0 : index
      %460 = vector.load %arg21[%c0_99, %c0_100] : memref<2x5xf32, #tpu.memory_space<vmem>>, vector<2x5xf32>
      tpu.vector_store %arg21[%c0_99, %c0_100], %459 {strides = array<i32>} : memref<2x5xf32, #tpu.memory_space<vmem>>, vector<2x5xf32>,
    } else {
    }
    return
  }
  func.func @transform_0(%arg0: i32) -> (i32, i32, i32) {
    %c0_i32 = arith.constant 0 : i32
    %c0_i32_0 = arith.constant 0 : i32
    %c0_i32_1 = arith.constant 0 : i32
    return %c0_i32, %arg0, %c0_i32_0 : i32, i32, i32
  }
  func.func @transform_1(%arg0: i32) -> (i32, i32, i32) {
    %c0_i32 = arith.constant 0 : i32
    %c0_i32_0 = arith.constant 0 : i32
    %c0_i32_1 = arith.constant 0 : i32
    return %c0_i32, %arg0, %c0_i32_0 : i32, i32, i32
  }
  func.func @transform_2(%arg0: i32) -> (i32, i32) {
    %c0_i32 = arith.constant 0 : i32
    %c0_i32_0 = arith.constant 0 : i32
    %c0_i32_1 = arith.constant 0 : i32
    return %c0_i32, %c0_i32_0 : i32, i32
  }
  func.func @transform_3(%arg0: i32) -> (i32, i32) {
    %c0_i32 = arith.constant 0 : i32
    %c0_i32_0 = arith.constant 0 : i32
    %c0_i32_1 = arith.constant 0 : i32
    return %c0_i32, %c0_i32_0 : i32, i32
  }
  func.func @transform_4(%arg0: i32) -> (i32, i32) {
    %c0_i32 = arith.constant 0 : i32
    %c0_i32_0 = arith.constant 0 : i32
    %c0_i32_1 = arith.constant 0 : i32
    return %c0_i32, %c0_i32_0 : i32, i32
  }
  func.func @transform_5(%arg0: i32) -> (i32, i32) {
    %c0_i32 = arith.constant 0 : i32
    %c0_i32_0 = arith.constant 0 : i32
    %c0_i32_1 = arith.constant 0 : i32
    return %c0_i32, %c0_i32_0 : i32, i32
  }
  func.func @transform_6(%arg0: i32) -> (i32, i32) {
    %c0_i32 = arith.constant 0 : i32
    %c0_i32_0 = arith.constant 0 : i32
    %c0_i32_1 = arith.constant 0 : i32
    return %c0_i32, %c0_i32_0 : i32, i32
  }
  func.func @transform_7(%arg0: i32) -> (i32, i32) {
    %c0_i32 = arith.constant 0 : i32
    %c0_i32_0 = arith.constant 0 : i32
    %c0_i32_1 = arith.constant 0 : i32
    return %c0_i32, %c0_i32_0 : i32, i32
  }
  func.func @transform_8(%arg0: i32) -> (i32, i32) {
    %c0_i32 = arith.constant 0 : i32
    %c0_i32_0 = arith.constant 0 : i32
    %c0_i32_1 = arith.constant 0 : i32
    return %c0_i32, %c0_i32_0 : i32, i32
  }
  func.func @transform_9(%arg0: i32) -> (i32, i32) {
    %c0_i32 = arith.constant 0 : i32
    %c0_i32_0 = arith.constant 0 : i32
    %c0_i32_1 = arith.constant 0 : i32
    return %c0_i32, %c0_i32_0 : i32, i32
  }
  func.func @transform_10(%arg0: i32) -> (i32, i32) {
    %c0_i32 = arith.constant 0 : i32
    %c0_i32_0 = arith.constant 0 : i32
    %c0_i32_1 = arith.constant 0 : i32
    return %c0_i32, %c0_i32_0 : i32, i32
  }
  func.func @transform_11(%arg0: i32) -> (i32, i32) {
    %c0_i32 = arith.constant 0 : i32
    %c0_i32_0 = arith.constant 0 : i32
    %c0_i32_1 = arith.constant 0 : i32
    return %c0_i32, %c0_i32_0 : i32, i32
  }
  func.func @transform_12(%arg0: i32) -> (i32, i32) {
    %c0_i32 = arith.constant 0 : i32
    %c0_i32_0 = arith.constant 0 : i32
    %c0_i32_1 = arith.constant 0 : i32
    return %c0_i32, %c0_i32_0 : i32, i32
  }
  func.func @transform_13(%arg0: i32) -> (i32, i32) {
    %c0_i32 = arith.constant 0 : i32
    %c0_i32_0 = arith.constant 0 : i32
    %c0_i32_1 = arith.constant 0 : i32
    return %c0_i32, %c0_i32_0 : i32, i32
  }
  func.func @transform_14(%arg0: i32) -> (i32, i32) {
    %c0_i32 = arith.constant 0 : i32
    %c0_i32_0 = arith.constant 0 : i32
    %c0_i32_1 = arith.constant 0 : i32
    return %c0_i32, %c0_i32_0 : i32, i32
  }
  func.func @transform_15(%arg0: i32) -> (i32, i32) {
    %c0_i32 = arith.constant 0 : i32
    %c0_i32_0 = arith.constant 0 : i32
    %c0_i32_1 = arith.constant 0 : i32
    return %c0_i32, %c0_i32_0 : i32, i32
  }
  func.func @transform_16(%arg0: i32) -> (i32, i32) {
    %c0_i32 = arith.constant 0 : i32
    %c0_i32_0 = arith.constant 0 : i32
    %c0_i32_1 = arith.constant 0 : i32
    return %c0_i32, %c0_i32_0 : i32, i32
  }
  func.func @transform_17(%arg0: i32) -> (i32, i32) {
    %c0_i32 = arith.constant 0 : i32
    %c0_i32_0 = arith.constant 0 : i32
    %c0_i32_1 = arith.constant 0 : i32
    return %c0_i32, %c0_i32_0 : i32, i32
  }
  func.func @transform_18(%arg0: i32) -> (i32, i32) {
    %c0_i32 = arith.constant 0 : i32
    %c0_i32_0 = arith.constant 0 : i32
    %c0_i32_1 = arith.constant 0 : i32
    return %c0_i32, %c0_i32_0 : i32, i32
  }
  func.func @transform_19(%arg0: i32) -> (i32, i32) {
    %c0_i32 = arith.constant 0 : i32
    %c0_i32_0 = arith.constant 0 : i32
    %c0_i32_1 = arith.constant 0 : i32
    return %c0_i32, %c0_i32_0 : i32, i32
  }
  func.func @transform_20(%arg0: i32) -> (i32, i32) {
    %c0_i32 = arith.constant 0 : i32
    %c0_i32_0 = arith.constant 0 : i32
    %c0_i32_1 = arith.constant 0 : i32
    return %c0_i32, %c0_i32_0 : i32, i32
  }
}

</mosaic_0001>

<llo_original>
// kernel: forward.1
$region0: #{forward.1}
  #allocation0 [shape = 'u32[]', space=smem, size = 0x4, offset = 0x4, fixed_abs, tag = 'smem constant byte address 0x4 - core index']
  #allocation1 [shape = 'u32[144,128]{1,0:T(1,128)}', space=vmem, size = 0x12000, scoped, tag = 'internal scratch']
  #allocation2 [shape = 'f32[16,128]{1,0:T(8,128)}', space=vmem, size = 0x2000, scoped, tag = 'scratch operand']
  %s0 = inlined_call_operand.vmem [shape: f32[33,16,8], index: 0, kind: input, shape index: {}]
  %s1 = inlined_call_operand.vmem [shape: f32[42,16,8], index: 1, kind: input, shape index: {}]
  %s2 = inlined_call_operand.hbm [shape: f32[8,64], index: 2, kind: input, shape index: {}]
  %s3 = inlined_call_operand.hbm [shape: f32[1,64], index: 3, kind: input, shape index: {}]
  %s4 = inlined_call_operand.hbm [shape: f32[64,128], index: 4, kind: input, shape index: {}]
  %s5 = inlined_call_operand.hbm [shape: f32[1,128], index: 5, kind: input, shape index: {}]
  %s6 = inlined_call_operand.hbm [shape: f32[8,64], index: 6, kind: input, shape index: {}]
  %s7 = inlined_call_operand.hbm [shape: f32[1,64], index: 7, kind: input, shape index: {}]
  %s8 = inlined_call_operand.hbm [shape: f32[64,128], index: 8, kind: input, shape index: {}]
  %s9 = inlined_call_operand.hbm [shape: f32[1,128], index: 9, kind: input, shape index: {}]
  %s10 = inlined_call_operand.hbm [shape: bf16[9600,128], index: 10, kind: input, shape index: {}]
  %s11 = inlined_call_operand.hbm [shape: f32[1,128], index: 11, kind: input, shape index: {}]
  %s12 = inlined_call_operand.hbm [shape: f32[128,128], index: 12, kind: input, shape index: {}]
  %s13 = inlined_call_operand.hbm [shape: f32[32,128], index: 13, kind: input, shape index: {}]
  %s14 = inlined_call_operand.hbm [shape: f32[1,128], index: 14, kind: input, shape index: {}]
  %s15 = inlined_call_operand.hbm [shape: f32[32,128], index: 15, kind: input, shape index: {}]
  %s16 = inlined_call_operand.hbm [shape: f32[32,128], index: 16, kind: input, shape index: {}]
  %s17 = inlined_call_operand.hbm [shape: f32[1,128], index: 17, kind: input, shape index: {}]
  %s18 = inlined_call_operand.vmem [shape: f32[32,5], index: 18, kind: input, shape index: {}]
  %s19 = inlined_call_operand.hbm [shape: f32[1,5], index: 19, kind: input, shape index: {}]
  %s20 = inlined_call_operand.hbm [shape: f32[2,5], index: 20, kind: output, shape index: {}]
  %s21 = sld [smem:[#allocation0]]
  $region162: #{forward.1} parent=0
    _
  %s23 = ssub.s32 1, %s21
  %s24 = scalar_select 0, %s23, %s21
  $region1: #{forward.1} parent=0
    #allocation3 [shape = 'u8[4096]{0}', space=vmem, size = 0x1000, scoped, tag = 'input window, operand 2, single buffered']
    #allocation4 [shape = 's32[1]{0}', space=sflag, size = 0x4, scoped, tag = 'scoped memory for forward.1']
    #allocation5 [shape = 's32[1]{0}', space=sflag, size = 0x4, scoped, tag = 'scoped memory for forward.1']
    #allocation6 [shape = 'u8[512]{0}', space=vmem, size = 0x400, scoped, tag = 'input window, operand 3, single buffered']
    #allocation7 [shape = 's32[1]{0}', space=sflag, size = 0x4, scoped, tag = 'scoped memory for forward.1']
    #allocation8 [shape = 'u8[32768]{0}', space=vmem, size = 0x8000, scoped, tag = 'input window, operand 4, single buffered']
    #allocation9 [shape = 'u8[512]{0}', space=vmem, size = 0x400, scoped, tag = 'input window, operand 5, single buffered']
    #allocation10 [shape = 's32[1]{0}', space=sflag, size = 0x4, scoped, tag = 'scoped memory for forward.1']
    #allocation11 [shape = 'u8[4096]{0}', space=vmem, size = 0x1000, scoped, tag = 'input window, operand 6, single buffered']
    #allocation12 [shape = 'u8[512]{0}', space=vmem, size = 0x400, scoped, tag = 'input window, operand 7, single buffered']
    #allocation13 [shape = 's32[1]{0}', space=sflag, size = 0x4, scoped, tag = 'scoped memory for forward.1']
    #allocation14 [shape = 'u8[32768]{0}', space=vmem, size = 0x8000, scoped, tag = 'input window, operand 8, single buffered']
    #allocation15 [shape = 'u8[512]{0}', space=vmem, size = 0x400, scoped, tag = 'input window, operand 9, single buffered']
    #allocation16 [shape = 's32[1]{0}', space=sflag, size = 0x4, scoped, tag = 'scoped memory for forward.1']
    #allocation17 [shape = 'u8[2457600]{0}', space=vmem, size = 0x258000, scoped, tag = 'input window, operand 10, single buffered']
    #allocation18 [shape = 'u8[512]{0}', space=vmem, size = 0x400, scoped, tag = 'input window, operand 11, single buffered']
    #allocation19 [shape = 's32[1]{0}', space=sflag, size = 0x4, scoped, tag = 'scoped memory for forward.1']
    #allocation20 [shape = 'u8[65536]{0}', space=vmem, size = 0x10000, scoped, tag = 'input window, operand 12, single buffered']
    #allocation21 [shape = 'u8[16384]{0}', space=vmem, size = 0x4000, scoped, tag = 'input window, operand 13, single buffered']
    #allocation22 [shape = 's32[1]{0}', space=sflag, size = 0x4, scoped, tag = 'scoped memory for forward.1']
    #allocation23 [shape = 'u8[512]{0}', space=vmem, size = 0x400, scoped, tag = 'input window, operand 14, single buffered']
    #allocation24 [shape = 'u8[16384]{0}', space=vmem, size = 0x4000, scoped, tag = 'input window, operand 15, single buffered']
    #allocation25 [shape = 's32[1]{0}', space=sflag, size = 0x4, scoped, tag = 'scoped memory for forward.1']
    #allocation26 [shape = 'u8[16384]{0}', space=vmem, size = 0x4000, scoped, tag = 'input window, operand 16, single buffered']
    #allocation27 [shape = 'u8[512]{0}', space=vmem, size = 0x400, scoped, tag = 'input window, operand 17, single buffered']
    #allocation28 [shape = 's32[1]{0}', space=sflag, size = 0x4, scoped, tag = 'scoped memory for forward.1']
    #allocation29 [shape = 'u8[512]{0}', space=vmem, size = 0x400, scoped, tag = 'input window, operand 19, single buffered']
    #allocation30 [shape = 'u8[1024]{0}', space=vmem, size = 0x400, scoped, tag = 'output window, operand 0, single buffered']
    %25 = vsyncpa [#allocation4], 0
    %26 = vsyncpa [#allocation7], 0
    %27 = vsyncpa [#allocation10], 0
    %28 = vsyncpa [#allocation13], 0
    %29 = vsyncpa [#allocation16], 0
    %30 = vsyncpa [#allocation19], 0
    %31 = vsyncpa [#allocation22], 0
    %32 = vsyncpa [#allocation25], 0
    %33 = vsyncpa [#allocation28], 0
    %34 = vsyncpa [#allocation5], 0
    // Predicated region
    $region2: #{forward.1} parent=1 // pred_check
      _
    $region3: #{forward.1} parent=1 // pred_check_branch
      %36 = sbr.rel (0) target = $region5
    $region4: #{forward.1} parent=1 // pred_region
      _
    $region5: #{forward.1} parent=1 // pred_fallthru
      _
    // Predicated region
    $region6: #{forward.1} parent=1 // pred_check
      _
    $region7: #{forward.1} parent=1 // pred_check_branch
      %38 = sbr.rel (0) target = $region9
    $region8: #{forward.1} parent=1 // pred_region
      _
    $region9: #{forward.1} parent=1 // pred_fallthru
      _
    // Predicated region
    $region10: #{forward.1} parent=1 // pred_check
      _
    $region11: #{forward.1} parent=1 // pred_check_branch
      %40 = sbr.rel (0) target = $region13
    $region12: #{forward.1} parent=1 // pred_region
      %s42 = ssub.s32 128, 128
      %43 = vsyncadd [#allocation4], %s42
      %s45 = sshll.u32 [#allocation3], 4
      %s46 = int_to_ptr.vmem [resolvable:$true] %s45
      %48 = dma.hbm_to_vmem [thread:$0]  %s2, 128, %s46, [#allocation4]
    $region13: #{forward.1} parent=1 // pred_fallthru
      _
    // Predicated region
    $region14: #{forward.1} parent=1 // pred_check
      _
    $region15: #{forward.1} parent=1 // pred_check_branch
      %50 = sbr.rel (0) target = $region17
    $region16: #{forward.1} parent=1 // pred_region
      %s52 = ssub.s32 16, 16
      %53 = vsyncadd [#allocation7], %s52
      %s55 = sshll.u32 [#allocation6], 4
      %s56 = int_to_ptr.vmem [resolvable:$true] %s55
      %58 = dma.hbm_to_vmem [thread:$0]  %s3, 16, %s56, [#allocation7]
    $region17: #{forward.1} parent=1 // pred_fallthru
      _
    // Predicated region
    $region18: #{forward.1} parent=1 // pred_check
      _
    $region19: #{forward.1} parent=1 // pred_check_branch
      %60 = sbr.rel (0) target = $region21
    $region20: #{forward.1} parent=1 // pred_region
      %s62 = ssub.s32 1024, 1024
      %63 = vsyncadd [#allocation7], %s62
      %s64 = sshll.u32 [#allocation8], 4
      %s65 = int_to_ptr.vmem [resolvable:$true] %s64
      %70 = dma.hbm_to_vmem [thread:$0]  %s4, 1024, %s65, [#allocation7], 128, 128, 8
    $region21: #{forward.1} parent=1 // pred_fallthru
      _
    // Predicated region
    $region22: #{forward.1} parent=1 // pred_check
      _
    $region23: #{forward.1} parent=1 // pred_check_branch
      %72 = sbr.rel (0) target = $region25
    $region24: #{forward.1} parent=1 // pred_region
      %s74 = ssub.s32 16, 16
      %75 = vsyncadd [#allocation10], %s74
      %s77 = sshll.u32 [#allocation9], 4
      %s78 = int_to_ptr.vmem [resolvable:$true] %s77
      %80 = dma.hbm_to_vmem [thread:$0]  %s5, 16, %s78, [#allocation10]
    $region25: #{forward.1} parent=1 // pred_fallthru
      _
    // Predicated region
    $region26: #{forward.1} parent=1 // pred_check
      _
    $region27: #{forward.1} parent=1 // pred_check_branch
      %82 = sbr.rel (0) target = $region29
    $region28: #{forward.1} parent=1 // pred_region
      %s84 = ssub.s32 128, 128
      %85 = vsyncadd [#allocation10], %s84
      %s87 = sshll.u32 [#allocation11], 4
      %s88 = int_to_ptr.vmem [resolvable:$true] %s87
      %90 = dma.hbm_to_vmem [thread:$0]  %s6, 128, %s88, [#allocation10]
    $region29: #{forward.1} parent=1 // pred_fallthru
      _
    // Predicated region
    $region30: #{forward.1} parent=1 // pred_check
      _
    $region31: #{forward.1} parent=1 // pred_check_branch
      %92 = sbr.rel (0) target = $region33
    $region32: #{forward.1} parent=1 // pred_region
      %s94 = ssub.s32 16, 16
      %95 = vsyncadd [#allocation13], %s94
      %s97 = sshll.u32 [#allocation12], 4
      %s98 = int_to_ptr.vmem [resolvable:$true] %s97
      %100 = dma.hbm_to_vmem [thread:$0]  %s7, 16, %s98, [#allocation13]
    $region33: #{forward.1} parent=1 // pred_fallthru
      _
    // Predicated region
    $region34: #{forward.1} parent=1 // pred_check
      _
    $region35: #{forward.1} parent=1 // pred_check_branch
      %102 = sbr.rel (0) target = $region37
    $region36: #{forward.1} parent=1 // pred_region
      %s104 = ssub.s32 1024, 1024
      %105 = vsyncadd [#allocation13], %s104
      %s106 = sshll.u32 [#allocation14], 4
      %s107 = int_to_ptr.vmem [resolvable:$true] %s106
      %112 = dma.hbm_to_vmem [thread:$0]  %s8, 1024, %s107, [#allocation13], 128, 128, 8
    $region37: #{forward.1} parent=1 // pred_fallthru
      _
    // Predicated region
    $region38: #{forward.1} parent=1 // pred_check
      _
    $region39: #{forward.1} parent=1 // pred_check_branch
      %114 = sbr.rel (0) target = $region41
    $region40: #{forward.1} parent=1 // pred_region
      %s116 = ssub.s32 16, 16
      %117 = vsyncadd [#allocation16], %s116
      %s119 = sshll.u32 [#allocation15], 4
      %s120 = int_to_ptr.vmem [resolvable:$true] %s119
      %122 = dma.hbm_to_vmem [thread:$0]  %s9, 16, %s120, [#allocation16]
    $region41: #{forward.1} parent=1 // pred_fallthru
      _
    // Predicated region
    $region42: #{forward.1} parent=1 // pred_check
      _
    $region43: #{forward.1} parent=1 // pred_check_branch
      %124 = sbr.rel (0) target = $region45
    $region44: #{forward.1} parent=1 // pred_region
      %s126 = ssub.s32 76800, 76800
      %127 = vsyncadd [#allocation16], %s126
      %s128 = sshll.u32 [#allocation17], 4
      %s129 = int_to_ptr.vmem [resolvable:$true] %s128
      %134 = dma.hbm_to_vmem [thread:$0]  %s10, 76800, %s129, [#allocation16], 64, 64, 4
    $region45: #{forward.1} parent=1 // pred_fallthru
      _
    // Predicated region
    $region46: #{forward.1} parent=1 // pred_check
      _
    $region47: #{forward.1} parent=1 // pred_check_branch
      %136 = sbr.rel (0) target = $region49
    $region48: #{forward.1} parent=1 // pred_region
      %s138 = ssub.s32 16, 16
      %139 = vsyncadd [#allocation19], %s138
      %s141 = sshll.u32 [#allocation18], 4
      %s142 = int_to_ptr.vmem [resolvable:$true] %s141
      %144 = dma.hbm_to_vmem [thread:$0]  %s11, 16, %s142, [#allocation19]
    $region49: #{forward.1} parent=1 // pred_fallthru
      _
    // Predicated region
    $region50: #{forward.1} parent=1 // pred_check
      _
    $region51: #{forward.1} parent=1 // pred_check_branch
      %146 = sbr.rel (0) target = $region53
    $region52: #{forward.1} parent=1 // pred_region
      %s148 = ssub.s32 2048, 2048
      %149 = vsyncadd [#allocation19], %s148
      %s150 = sshll.u32 [#allocation20], 4
      %s151 = int_to_ptr.vmem [resolvable:$true] %s150
      %156 = dma.hbm_to_vmem [thread:$0]  %s12, 2048, %s151, [#allocation19], 128, 128, 8
    $region53: #{forward.1} parent=1 // pred_fallthru
      _
    // Predicated region
    $region54: #{forward.1} parent=1 // pred_check
      _
    $region55: #{forward.1} parent=1 // pred_check_branch
      %158 = sbr.rel (0) target = $region57
    $region56: #{forward.1} parent=1 // pred_region
      %s160 = ssub.s32 512, 512
      %161 = vsyncadd [#allocation22], %s160
      %s162 = sshll.u32 [#allocation21], 4
      %s163 = int_to_ptr.vmem [resolvable:$true] %s162
      %168 = dma.hbm_to_vmem [thread:$0]  %s13, 512, %s163, [#allocation22], 128, 128, 8
    $region57: #{forward.1} parent=1 // pred_fallthru
      _
    // Predicated region
    $region58: #{forward.1} parent=1 // pred_check
      _
    $region59: #{forward.1} parent=1 // pred_check_branch
      %170 = sbr.rel (0) target = $region61
    $region60: #{forward.1} parent=1 // pred_region
      %s172 = ssub.s32 16, 16
      %173 = vsyncadd [#allocation22], %s172
      %s175 = sshll.u32 [#allocation23], 4
      %s176 = int_to_ptr.vmem [resolvable:$true] %s175
      %178 = dma.hbm_to_vmem [thread:$0]  %s14, 16, %s176, [#allocation22]
    $region61: #{forward.1} parent=1 // pred_fallthru
      _
    // Predicated region
    $region62: #{forward.1} parent=1 // pred_check
      _
    $region63: #{forward.1} parent=1 // pred_check_branch
      %180 = sbr.rel (0) target = $region65
    $region64: #{forward.1} parent=1 // pred_region
      %s182 = ssub.s32 512, 512
      %183 = vsyncadd [#allocation25], %s182
      %s184 = sshll.u32 [#allocation24], 4
      %s185 = int_to_ptr.vmem [resolvable:$true] %s184
      %190 = dma.hbm_to_vmem [thread:$0]  %s15, 512, %s185, [#allocation25], 128, 128, 8
    $region65: #{forward.1} parent=1 // pred_fallthru
      _
    // Predicated region
    $region66: #{forward.1} parent=1 // pred_check
      _
    $region67: #{forward.1} parent=1 // pred_check_branch
      %192 = sbr.rel (0) target = $region69
    $region68: #{forward.1} parent=1 // pred_region
      %s194 = ssub.s32 512, 512
      %195 = vsyncadd [#allocation25], %s194
      %s196 = sshll.u32 [#allocation26], 4
      %s197 = int_to_ptr.vmem [resolvable:$true] %s196
      %202 = dma.hbm_to_vmem [thread:$0]  %s16, 512, %s197, [#allocation25], 128, 128, 8
    $region69: #{forward.1} parent=1 // pred_fallthru
      _
    // Predicated region
    $region70: #{forward.1} parent=1 // pred_check
      _
    $region71: #{forward.1} parent=1 // pred_check_branch
      %204 = sbr.rel (0) target = $region73
    $region72: #{forward.1} parent=1 // pred_region
      %s206 = ssub.s32 16, 16
      %207 = vsyncadd [#allocation28], %s206
      %s209 = sshll.u32 [#allocation27], 4
      %s210 = int_to_ptr.vmem [resolvable:$true] %s209
      %212 = dma.hbm_to_vmem [thread:$0]  %s17, 16, %s210, [#allocation28]
    $region73: #{forward.1} parent=1 // pred_fallthru
      _
    // Predicated region
    $region74: #{forward.1} parent=1 // pred_check
      _
    $region75: #{forward.1} parent=1 // pred_check_branch
      %214 = sbr.rel (0) target = $region77
    $region76: #{forward.1} parent=1 // pred_region
      _
    $region77: #{forward.1} parent=1 // pred_fallthru
      _
    // Predicated region
    $region78: #{forward.1} parent=1 // pred_check
      _
    $region79: #{forward.1} parent=1 // pred_check_branch
      %216 = sbr.rel (0) target = $region81
    $region80: #{forward.1} parent=1 // pred_region
      %s218 = ssub.s32 16, 16
      %219 = vsyncadd [#allocation28], %s218
      %s221 = sshll.u32 [#allocation29], 4
      %s222 = int_to_ptr.vmem [resolvable:$true] %s221
      %224 = dma.hbm_to_vmem [thread:$0]  %s19, 16, %s222, [#allocation28]
    $region81: #{forward.1} parent=1 // pred_fallthru
      _
    // Predicated region
    $region82: #{forward.1} parent=1 // pred_check
      _
    $region83: #{forward.1} parent=1 // pred_check_branch
      %226 = sbr.rel (0) target = $region85
    $region84: #{forward.1} parent=1 // pred_region
      %227 = dma.done [#allocation4], 128
    $region85: #{forward.1} parent=1 // pred_fallthru
      _
    // Predicated region
    $region86: #{forward.1} parent=1 // pred_check
      _
    $region87: #{forward.1} parent=1 // pred_check_branch
      %229 = sbr.rel (0) target = $region89
    $region88: #{forward.1} parent=1 // pred_region
      %230 = dma.done [#allocation7], 16
    $region89: #{forward.1} parent=1 // pred_fallthru
      _
    // Predicated region
    $region90: #{forward.1} parent=1 // pred_check
      _
    $region91: #{forward.1} parent=1 // pred_check_branch
      %232 = sbr.rel (0) target = $region93
    $region92: #{forward.1} parent=1 // pred_region
      %233 = dma.done [#allocation7], 1024
    $region93: #{forward.1} parent=1 // pred_fallthru
      _
    // Predicated region
    $region94: #{forward.1} parent=1 // pred_check
      _
    $region95: #{forward.1} parent=1 // pred_check_branch
      %235 = sbr.rel (0) target = $region97
    $region96: #{forward.1} parent=1 // pred_region
      %236 = dma.done [#allocation10], 16
    $region97: #{forward.1} parent=1 // pred_fallthru
      _
    // Predicated region
    $region98: #{forward.1} parent=1 // pred_check
      _
    $region99: #{forward.1} parent=1 // pred_check_branch
      %238 = sbr.rel (0) target = $region101
    $region100: #{forward.1} parent=1 // pred_region
      %239 = dma.done [#allocation10], 128
    $region101: #{forward.1} parent=1 // pred_fallthru
      _
    // Predicated region
    $region102: #{forward.1} parent=1 // pred_check
      _
    $region103: #{forward.1} parent=1 // pred_check_branch
      %241 = sbr.rel (0) target = $region105
    $region104: #{forward.1} parent=1 // pred_region
      %242 = dma.done [#allocation13], 16
    $region105: #{forward.1} parent=1 // pred_fallthru
      _
    // Predicated region
    $region106: #{forward.1} parent=1 // pred_check
      _
    $region107: #{forward.1} parent=1 // pred_check_branch
      %244 = sbr.rel (0) target = $region109
    $region108: #{forward.1} parent=1 // pred_region
      %245 = dma.done [#allocation13], 1024
    $region109: #{forward.1} parent=1 // pred_fallthru
      _
    // Predicated region
    $region110: #{forward.1} parent=1 // pred_check
      _
    $region111: #{forward.1} parent=1 // pred_check_branch
      %247 = sbr.rel (0) target = $region113
    $region112: #{forward.1} parent=1 // pred_region
      %248 = dma.done [#allocation16], 16
    $region113: #{forward.1} parent=1 // pred_fallthru
      _
    // Predicated region
    $region114: #{forward.1} parent=1 // pred_check
      _
    $region115: #{forward.1} parent=1 // pred_check_branch
      %250 = sbr.rel (0) target = $region117
    $region116: #{forward.1} parent=1 // pred_region
      %251 = dma.done [#allocation16], 76800
    $region117: #{forward.1} parent=1 // pred_fallthru
      _
    // Predicated region
    $region118: #{forward.1} parent=1 // pred_check
      _
    $region119: #{forward.1} parent=1 // pred_check_branch
      %253 = sbr.rel (0) target = $region121
    $region120: #{forward.1} parent=1 // pred_region
      %254 = dma.done [#allocation19], 16
    $region121: #{forward.1} parent=1 // pred_fallthru
      _
    // Predicated region
    $region122: #{forward.1} parent=1 // pred_check
      _
    $region123: #{forward.1} parent=1 // pred_check_branch
      %256 = sbr.rel (0) target = $region125
    $region124: #{forward.1} parent=1 // pred_region
      %257 = dma.done [#allocation19], 2048
    $region125: #{forward.1} parent=1 // pred_fallthru
      _
    // Predicated region
    $region126: #{forward.1} parent=1 // pred_check
      _
    $region127: #{forward.1} parent=1 // pred_check_branch
      %259 = sbr.rel (0) target = $region129
    $region128: #{forward.1} parent=1 // pred_region
      %260 = dma.done [#allocation22], 512
    $region129: #{forward.1} parent=1 // pred_fallthru
      _
    // Predicated region
    $region130: #{forward.1} parent=1 // pred_check
      _
    $region131: #{forward.1} parent=1 // pred_check_branch
      %262 = sbr.rel (0) target = $region133
    $region132: #{forward.1} parent=1 // pred_region
      %263 = dma.done [#allocation22], 16
    $region133: #{forward.1} parent=1 // pred_fallthru
      _
    // Predicated region
    $region134: #{forward.1} parent=1 // pred_check
      _
    $region135: #{forward.1} parent=1 // pred_check_branch
      %265 = sbr.rel (0) target = $region137
    $region136: #{forward.1} parent=1 // pred_region
      %266 = dma.done [#allocation25], 512
    $region137: #{forward.1} parent=1 // pred_fallthru
      _
    // Predicated region
    $region138: #{forward.1} parent=1 // pred_check
      _
    $region139: #{forward.1} parent=1 // pred_check_branch
      %268 = sbr.rel (0) target = $region141
    $region140: #{forward.1} parent=1 // pred_region
      %269 = dma.done [#allocation25], 512
    $region141: #{forward.1} parent=1 // pred_fallthru
      _
    // Predicated region
    $region142: #{forward.1} parent=1 // pred_check
      _
    $region143: #{forward.1} parent=1 // pred_check_branch
      %271 = sbr.rel (0) target = $region145
    $region144: #{forward.1} parent=1 // pred_region
      %272 = dma.done [#allocation28], 16
    $region145: #{forward.1} parent=1 // pred_fallthru
      _
    // Predicated region
    $region146: #{forward.1} parent=1 // pred_check
      _
    $region147: #{forward.1} parent=1 // pred_check_branch
      %274 = sbr.rel (0) target = $region149
    $region148: #{forward.1} parent=1 // pred_region
      %275 = dma.done [#allocation28], 16
    $region149: #{forward.1} parent=1 // pred_fallthru
      _
    %v277 = vld [vmem:[%s0] sm:$0xff]
    %v278 = vld [vmem:[%s0 + $0x8] sm:$0xff]
    %v279 = vld [vmem:[%s0 + $0x10] sm:$0xff]
    %v280 = vld [vmem:[%s0 + $0x18] sm:$0xff]
    %v281 = vld [vmem:[%s0 + $0x20] sm:$0xff]
    %v282 = vld [vmem:[%s0 + $0x28] sm:$0xff]
    %v283 = vld [vmem:[%s0 + $0x30] sm:$0xff]
    %v284 = vld [vmem:[%s0 + $0x38] sm:$0xff]
    %v285 = vld [vmem:[%s0 + $0x40] sm:$0xff]
    %v286 = vld [vmem:[%s0 + $0x48] sm:$0xff]
    %v287 = vld [vmem:[%s0 + $0x50] sm:$0xff]
    %v288 = vld [vmem:[%s0 + $0x58] sm:$0xff]
    %v289 = vld [vmem:[%s0 + $0x60] sm:$0xff]
    %v290 = vld [vmem:[%s0 + $0x68] sm:$0xff]
    %v291 = vld [vmem:[%s0 + $0x70] sm:$0xff]
    %v292 = vld [vmem:[%s0 + $0x78] sm:$0xff]
    %v293 = vld [vmem:[%s0 + $0x80] sm:$0xff]
    %v294 = vld [vmem:[%s0 + $0x88] sm:$0xff]
    %v295 = vld [vmem:[%s0 + $0x90] sm:$0xff]
    %v296 = vld [vmem:[%s0 + $0x98] sm:$0xff]
    %v297 = vld [vmem:[%s0 + $0xa0] sm:$0xff]
    %v298 = vld [vmem:[%s0 + $0xa8] sm:$0xff]
    %v299 = vld [vmem:[%s0 + $0xb0] sm:$0xff]
    %v300 = vld [vmem:[%s0 + $0xb8] sm:$0xff]
    %v301 = vld [vmem:[%s0 + $0xc0] sm:$0xff]
    %v302 = vld [vmem:[%s0 + $0xc8] sm:$0xff]
    %v303 = vld [vmem:[%s0 + $0xd0] sm:$0xff]
    %v304 = vld [vmem:[%s0 + $0xd8] sm:$0xff]
    %v305 = vld [vmem:[%s0 + $0xe0] sm:$0xff]
    %v306 = vld [vmem:[%s0 + $0xe8] sm:$0xff]
    %v307 = vld [vmem:[%s0 + $0xf0] sm:$0xff]
    %v308 = vld [vmem:[%s0 + $0xf8] sm:$0xff]
    %v309 = vld [vmem:[%s0 + $0x100] sm:$0xff]
    %v310 = vld [vmem:[%s0 + $0x108] sm:$0xff]
    %v311 = vld [vmem:[%s0 + $0x110] sm:$0xff]
    %v312 = vld [vmem:[%s0 + $0x118] sm:$0xff]
    %v313 = vld [vmem:[%s0 + $0x120] sm:$0xff]
    %v314 = vld [vmem:[%s0 + $0x128] sm:$0xff]
    %v315 = vld [vmem:[%s0 + $0x130] sm:$0xff]
    %v316 = vld [vmem:[%s0 + $0x138] sm:$0xff]
    %v317 = vld [vmem:[%s0 + $0x140] sm:$0xff]
    %v318 = vld [vmem:[%s0 + $0x148] sm:$0xff]
    %v319 = vld [vmem:[%s0 + $0x150] sm:$0xff]
    %v320 = vld [vmem:[%s0 + $0x158] sm:$0xff]
    %v321 = vld [vmem:[%s0 + $0x160] sm:$0xff]
    %v322 = vld [vmem:[%s0 + $0x168] sm:$0xff]
    %v323 = vld [vmem:[%s0 + $0x170] sm:$0xff]
    %v324 = vld [vmem:[%s0 + $0x178] sm:$0xff]
    %v325 = vld [vmem:[%s0 + $0x180] sm:$0xff]
    %v326 = vld [vmem:[%s0 + $0x188] sm:$0xff]
    %v327 = vld [vmem:[%s0 + $0x190] sm:$0xff]
    %v328 = vld [vmem:[%s0 + $0x198] sm:$0xff]
    %v329 = vld [vmem:[%s0 + $0x1a0] sm:$0xff]
    %v330 = vld [vmem:[%s0 + $0x1a8] sm:$0xff]
    %v331 = vld [vmem:[%s0 + $0x1b0] sm:$0xff]
    %v332 = vld [vmem:[%s0 + $0x1b8] sm:$0xff]
    %v333 = vld [vmem:[%s0 + $0x1c0] sm:$0xff]
    %v334 = vld [vmem:[%s0 + $0x1c8] sm:$0xff]
    %v335 = vld [vmem:[%s0 + $0x1d0] sm:$0xff]
    %v336 = vld [vmem:[%s0 + $0x1d8] sm:$0xff]
    %v337 = vld [vmem:[%s0 + $0x1e0] sm:$0xff]
    %v338 = vld [vmem:[%s0 + $0x1e8] sm:$0xff]
    %v339 = vld [vmem:[%s0 + $0x1f0] sm:$0xff]
    %v340 = vld [vmem:[%s0 + $0x1f8] sm:$0xff]
    %v341 = vld [vmem:[%s0 + $0x200] sm:$0xff]
    %v342 = vld [vmem:[%s0 + $0x208] sm:$0xff]
    %v343 = vld [vmem:[#allocation3] sm:$0xff]
    %v344 = vld [vmem:[#allocation6] sm:$0x1]
    %v346 = vlaneseq
    %v347 = vshrl.u32 %v346, 7
    %v348 = vsub.s32 0, %v347
    %v349 = vrot.slane %v344, %v348
    %vm351 = vcmask 64512
    %v353 = vsel %vm351, %v277, 0
    %v356 = vsel %vm351, %v278, 0
    %v359 = vsel %vm351, %v279, 0
    %v362 = vsel %vm351, %v280, 0
    %v365 = vsel %vm351, %v281, 0
    %v368 = vsel %vm351, %v282, 0
    %v371 = vsel %vm351, %v283, 0
    %v374 = vsel %vm351, %v284, 0
    %v377 = vsel %vm351, %v285, 0
    %v380 = vsel %vm351, %v286, 0
    %v383 = vsel %vm351, %v287, 0
    %v386 = vsel %vm351, %v288, 0
    %v389 = vsel %vm351, %v289, 0
    %v392 = vsel %vm351, %v290, 0
    %v395 = vsel %vm351, %v291, 0
    %v398 = vsel %vm351, %v292, 0
    %v401 = vsel %vm351, %v293, 0
    %v404 = vsel %vm351, %v294, 0
    %v407 = vsel %vm351, %v295, 0
    %v410 = vsel %vm351, %v296, 0
    %v413 = vsel %vm351, %v297, 0
    %v416 = vsel %vm351, %v298, 0
    %v419 = vsel %vm351, %v299, 0
    %v422 = vsel %vm351, %v300, 0
    %v425 = vsel %vm351, %v301, 0
    %v428 = vsel %vm351, %v302, 0
    %v431 = vsel %vm351, %v303, 0
    %v434 = vsel %vm351, %v304, 0
    %v437 = vsel %vm351, %v305, 0
    %v440 = vsel %vm351, %v306, 0
    %v443 = vsel %vm351, %v307, 0
    %v446 = vsel %vm351, %v308, 0
    %v449 = vsel %vm351, %v309, 0
    %v452 = vsel %vm351, %v310, 0
    %v455 = vsel %vm351, %v311, 0
    %v458 = vsel %vm351, %v312, 0
    %v461 = vsel %vm351, %v313, 0
    %v464 = vsel %vm351, %v314, 0
    %v467 = vsel %vm351, %v315, 0
    %v470 = vsel %vm351, %v316, 0
    %v473 = vsel %vm351, %v317, 0
    %v476 = vsel %vm351, %v318, 0
    %v479 = vsel %vm351, %v319, 0
    %v482 = vsel %vm351, %v320, 0
    %v485 = vsel %vm351, %v321, 0
    %v488 = vsel %vm351, %v322, 0
    %v491 = vsel %vm351, %v323, 0
    %v494 = vsel %vm351, %v324, 0
    %v497 = vsel %vm351, %v325, 0
    %v500 = vsel %vm351, %v326, 0
    %v503 = vsel %vm351, %v327, 0
    %v506 = vsel %vm351, %v328, 0
    %v509 = vsel %vm351, %v329, 0
    %v512 = vsel %vm351, %v330, 0
    %v515 = vsel %vm351, %v331, 0
    %v518 = vsel %vm351, %v332, 0
    %v521 = vsel %vm351, %v333, 0
    %v524 = vsel %vm351, %v334, 0
    %v527 = vsel %vm351, %v335, 0
    %v530 = vsel %vm351, %v336, 0
    %v533 = vsel %vm351, %v337, 0
    %v536 = vsel %vm351, %v338, 0
    %v539 = vsel %vm351, %v339, 0
    %v542 = vsel %vm351, %v340, 0
    %v545 = vsel %vm351, %v341, 0
    %v548 = vsel %vm351, %v342, 0
    %550 = vmatprep.subr.mxu0 0.0
    %551 = vmatpush1.msra.mxu0 %v343
    %552 = vmatprep.subr.mxu0 0.0
    %553 = vmatpush1.msra.mxu0 0.0
    %554 = vmatprep.subr.mxu0 0.0
    %555 = vmatpush1.msra.mxu0 0.0
    %556 = vmatprep.subr.mxu0 0.0
    %557 = vmatpush1.msra.mxu0 0.0
    %558 = vmatprep.subr.mxu0 0.0
    %559 = vmatpush1.msra.mxu0 0.0
    %560 = vmatprep.subr.mxu0 0.0
    %561 = vmatpush1.msra.mxu0 0.0
    %562 = vmatprep.subr.mxu0 0.0
    %563 = vmatpush1.msra.mxu0 0.0
    %564 = vmatprep.subr.mxu0 0.0
    %565 = vmatpush1.msra.mxu0 0.0
    %566 = vmatprep.subr.mxu0 0.0
    %567 = vmatpush1.msra.mxu0 0.0
    %568 = vmatprep.subr.mxu0 0.0
    %569 = vmatpush1.msra.mxu0 0.0
    %570 = vmatprep.subr.mxu0 0.0
    %571 = vmatpush1.msra.mxu0 0.0
    %572 = vmatprep.subr.mxu0 0.0
    %573 = vmatpush1.msra.mxu0 0.0
    %574 = vmatprep.subr.mxu0 0.0
    %575 = vmatpush1.msra.mxu0 0.0
    %576 = vmatprep.subr.mxu0 0.0
    %577 = vmatpush1.msra.mxu0 0.0
    %578 = vmatprep.subr.mxu0 0.0
    %579 = vmatpush1.msra.mxu0 0.0
    %580 = vmatprep.subr.mxu0 0.0
    %581 = vmatpush1.msra.mxu0 0.0
    %582 = vmatprep.subr.mxu0 0.0
    %583 = vmatpush1.msra.mxu0 0.0
    %584 = vmatprep.subr.mxu0 0.0
    %585 = vmatpush1.msra.mxu0 0.0
    %586 = vmatprep.subr.mxu0 0.0
    %587 = vmatpush1.msra.mxu0 0.0
    %588 = vmatprep.subr.mxu0 0.0
    %589 = vmatpush1.msra.mxu0 0.0
    %590 = vmatprep.subr.mxu0 0.0
    %591 = vmatpush1.msra.mxu0 0.0
    %592 = vmatprep.subr.mxu0 0.0
    %593 = vmatpush1.msra.mxu0 0.0
    %594 = vmatprep.subr.mxu0 0.0
    %595 = vmatpush1.msra.mxu0 0.0
    %596 = vmatprep.subr.mxu0 0.0
    %597 = vmatpush1.msra.mxu0 0.0
    %598 = vmatprep.subr.mxu0 0.0
    %599 = vmatpush1.msra.mxu0 0.0
    %600 = vmatprep.subr.mxu0 0.0
    %601 = vmatpush1.msra.mxu0 0.0
    %602 = vmatprep.subr.mxu0 0.0
    %603 = vmatpush1.msra.mxu0 0.0
    %604 = vmatprep.subr.mxu0 0.0
    %605 = vmatpush1.msra.mxu0 0.0
    %606 = vmatprep.subr.mxu0 0.0
    %607 = vmatpush1.msra.mxu0 0.0
    %608 = vmatprep.subr.mxu0 0.0
    %609 = vmatpush1.msra.mxu0 0.0
    %610 = vmatprep.subr.mxu0 0.0
    %611 = vmatpush1.msra.mxu0 0.0
    %612 = vmatprep.subr.mxu0 0.0
    %613 = vmatpush1.msra.mxu0 0.0
    %614 = vmatprep.mubr.f32.mxu0 0.0
    %615 = vmatmul.mubr.f32.gmra.mrb[0].mxu0 %v353
    %v616 = vpop.f32.mrb[0].mxu0
    %v617 = vadd.f32 %v349, %v616
    %v618 = vpop.f32.mrb[0].mxu0
    %619 = vmatprep.mubr.f32.mxu0 0.0
    %620 = vmatmul.mubr.f32.gmra.mrb[0].mxu0 %v356
    %v621 = vpop.f32.mrb[0].mxu0
    %v622 = vadd.f32 %v349, %v621
    %v623 = vpop.f32.mrb[0].mxu0
    %624 = vmatprep.mubr.f32.mxu0 0.0
    %625 = vmatmul.mubr.f32.gmra.mrb[0].mxu0 %v359
    %v626 = vpop.f32.mrb[0].mxu0
    %v627 = vadd.f32 %v349, %v626
    %v628 = vpop.f32.mrb[0].mxu0
    %629 = vmatprep.mubr.f32.mxu0 0.0
    %630 = vmatmul.mubr.f32.gmra.mrb[0].mxu0 %v362
    %v631 = vpop.f32.mrb[0].mxu0
    %v632 = vadd.f32 %v349, %v631
    %v633 = vpop.f32.mrb[0].mxu0
    %634 = vmatprep.mubr.f32.mxu0 0.0
    %635 = vmatmul.mubr.f32.gmra.mrb[0].mxu0 %v365
    %v636 = vpop.f32.mrb[0].mxu0
    %v637 = vadd.f32 %v349, %v636
    %v638 = vpop.f32.mrb[0].mxu0
    %639 = vmatprep.mubr.f32.mxu0 0.0
    %640 = vmatmul.mubr.f32.gmra.mrb[0].mxu0 %v368
    %v641 = vpop.f32.mrb[0].mxu0
    %v642 = vadd.f32 %v349, %v641
    %v643 = vpop.f32.mrb[0].mxu0
    %644 = vmatprep.mubr.f32.mxu0 0.0
    %645 = vmatmul.mubr.f32.gmra.mrb[0].mxu0 %v371
    %v646 = vpop.f32.mrb[0].mxu0
    %v647 = vadd.f32 %v349, %v646
    %v648 = vpop.f32.mrb[0].mxu0
    %649 = vmatprep.mubr.f32.mxu0 0.0
    %650 = vmatmul.mubr.f32.gmra.mrb[0].mxu0 %v374
    %v651 = vpop.f32.mrb[0].mxu0
    %v652 = vadd.f32 %v349, %v651
    %v653 = vpop.f32.mrb[0].mxu0
    %654 = vmatprep.mubr.f32.mxu0 0.0
    %655 = vmatmul.mubr.f32.gmra.mrb[0].mxu0 %v377
    %v656 = vpop.f32.mrb[0].mxu0
    %v657 = vadd.f32 %v349, %v656
    %v658 = vpop.f32.mrb[0].mxu0
    %659 = vmatprep.mubr.f32.mxu0 0.0
    %660 = vmatmul.mubr.f32.gmra.mrb[0].mxu0 %v380
    %v661 = vpop.f32.mrb[0].mxu0
    %v662 = vadd.f32 %v349, %v661
    %v663 = vpop.f32.mrb[0].mxu0
    %664 = vmatprep.mubr.f32.mxu0 0.0
    %665 = vmatmul.mubr.f32.gmra.mrb[0].mxu0 %v383
    %v666 = vpop.f32.mrb[0].mxu0
    %v667 = vadd.f32 %v349, %v666
    %v668 = vpop.f32.mrb[0].mxu0
    %669 = vmatprep.mubr.f32.mxu0 0.0
    %670 = vmatmul.mubr.f32.gmra.mrb[0].mxu0 %v386
    %v671 = vpop.f32.mrb[0].mxu0
    %v672 = vadd.f32 %v349, %v671
    %v673 = vpop.f32.mrb[0].mxu0
    %674 = vmatprep.mubr.f32.mxu0 0.0
    %675 = vmatmul.mubr.f32.gmra.mrb[0].mxu0 %v389
    %v676 = vpop.f32.mrb[0].mxu0
    %v677 = vadd.f32 %v349, %v676
    %v678 = vpop.f32.mrb[0].mxu0
    %679 = vmatprep.mubr.f32.mxu0 0.0
    %680 = vmatmul.mubr.f32.gmra.mrb[0].mxu0 %v392
    %v681 = vpop.f32.mrb[0].mxu0
    %v682 = vadd.f32 %v349, %v681
    %v683 = vpop.f32.mrb[0].mxu0
    %684 = vmatprep.mubr.f32.mxu0 0.0
    %685 = vmatmul.mubr.f32.gmra.mrb[0].mxu0 %v395
    %v686 = vpop.f32.mrb[0].mxu0
    %v687 = vadd.f32 %v349, %v686
    %v688 = vpop.f32.mrb[0].mxu0
    %689 = vmatprep.mubr.f32.mxu0 0.0
    %690 = vmatmul.mubr.f32.gmra.mrb[0].mxu0 %v398
    %v691 = vpop.f32.mrb[0].mxu0
    %v692 = vadd.f32 %v349, %v691
    %v693 = vpop.f32.mrb[0].mxu0
    %694 = vmatprep.mubr.f32.mxu0 0.0
    %695 = vmatmul.mubr.f32.gmra.mrb[0].mxu0 %v401
    %v696 = vpop.f32.mrb[0].mxu0
    %v697 = vadd.f32 %v349, %v696
    %v698 = vpop.f32.mrb[0].mxu0
    %699 = vmatprep.mubr.f32.mxu0 0.0
    %700 = vmatmul.mubr.f32.gmra.mrb[0].mxu0 %v404
    %v701 = vpop.f32.mrb[0].mxu0
    %v702 = vadd.f32 %v349, %v701
    %v703 = vpop.f32.mrb[0].mxu0
    %704 = vmatprep.mubr.f32.mxu0 0.0
    %705 = vmatmul.mubr.f32.gmra.mrb[0].mxu0 %v407
    %v706 = vpop.f32.mrb[0].mxu0
    %v707 = vadd.f32 %v349, %v706
    %v708 = vpop.f32.mrb[0].mxu0
    %709 = vmatprep.mubr.f32.mxu0 0.0
    %710 = vmatmul.mubr.f32.gmra.mrb[0].mxu0 %v410
    %v711 = vpop.f32.mrb[0].mxu0
    %v712 = vadd.f32 %v349, %v711
    %v713 = vpop.f32.mrb[0].mxu0
    %714 = vmatprep.mubr.f32.mxu0 0.0
    %715 = vmatmul.mubr.f32.gmra.mrb[0].mxu0 %v413
    %v716 = vpop.f32.mrb[0].mxu0
    %v717 = vadd.f32 %v349, %v716
    %v718 = vpop.f32.mrb[0].mxu0
    %719 = vmatprep.mubr.f32.mxu0 0.0
    %720 = vmatmul.mubr.f32.gmra.mrb[0].mxu0 %v416
    %v721 = vpop.f32.mrb[0].mxu0
    %v722 = vadd.f32 %v349, %v721
    %v723 = vpop.f32.mrb[0].mxu0
    %724 = vmatprep.mubr.f32.mxu0 0.0
    %725 = vmatmul.mubr.f32.gmra.mrb[0].mxu0 %v419
    %v726 = vpop.f32.mrb[0].mxu0
    %v727 = vadd.f32 %v349, %v726
    %v728 = vpop.f32.mrb[0].mxu0
    %729 = vmatprep.mubr.f32.mxu0 0.0
    %730 = vmatmul.mubr.f32.gmra.mrb[0].mxu0 %v422
    %v731 = vpop.f32.mrb[0].mxu0
    %v732 = vadd.f32 %v349, %v731
    %v733 = vpop.f32.mrb[0].mxu0
    %734 = vmatprep.mubr.f32.mxu0 0.0
    %735 = vmatmul.mubr.f32.gmra.mrb[0].mxu0 %v425
    %v736 = vpop.f32.mrb[0].mxu0
    %v737 = vadd.f32 %v349, %v736
    %v738 = vpop.f32.mrb[0].mxu0
    %739 = vmatprep.mubr.f32.mxu0 0.0
    %740 = vmatmul.mubr.f32.gmra.mrb[0].mxu0 %v428
    %v741 = vpop.f32.mrb[0].mxu0
    %v742 = vadd.f32 %v349, %v741
    %v743 = vpop.f32.mrb[0].mxu0
    %744 = vmatprep.mubr.f32.mxu0 0.0
    %745 = vmatmul.mubr.f32.gmra.mrb[0].mxu0 %v431
    %v746 = vpop.f32.mrb[0].mxu0
    %v747 = vadd.f32 %v349, %v746
    %v748 = vpop.f32.mrb[0].mxu0
    %749 = vmatprep.mubr.f32.mxu0 0.0
    %750 = vmatmul.mubr.f32.gmra.mrb[0].mxu0 %v434
    %v751 = vpop.f32.mrb[0].mxu0
    %v752 = vadd.f32 %v349, %v751
    %v753 = vpop.f32.mrb[0].mxu0
    %754 = vmatprep.mubr.f32.mxu0 0.0
    %755 = vmatmul.mubr.f32.gmra.mrb[0].mxu0 %v437
    %v756 = vpop.f32.mrb[0].mxu0
    %v757 = vadd.f32 %v349, %v756
    %v758 = vpop.f32.mrb[0].mxu0
    %759 = vmatprep.mubr.f32.mxu0 0.0
    %760 = vmatmul.mubr.f32.gmra.mrb[0].mxu0 %v440
    %v761 = vpop.f32.mrb[0].mxu0
    %v762 = vadd.f32 %v349, %v761
    %v763 = vpop.f32.mrb[0].mxu0
    %764 = vmatprep.mubr.f32.mxu0 0.0
    %765 = vmatmul.mubr.f32.gmra.mrb[0].mxu0 %v443
    %v766 = vpop.f32.mrb[0].mxu0
    %v767 = vadd.f32 %v349, %v766
    %v768 = vpop.f32.mrb[0].mxu0
    %769 = vmatprep.mubr.f32.mxu0 0.0
    %770 = vmatmul.mubr.f32.gmra.mrb[0].mxu0 %v446
    %v771 = vpop.f32.mrb[0].mxu0
    %v772 = vadd.f32 %v349, %v771
    %v773 = vpop.f32.mrb[0].mxu0
    %774 = vmatprep.mubr.f32.mxu0 0.0
    %775 = vmatmul.mubr.f32.gmra.mrb[0].mxu0 %v449
    %v776 = vpop.f32.mrb[0].mxu0
    %v777 = vadd.f32 %v349, %v776
    %v778 = vpop.f32.mrb[0].mxu0
    %779 = vmatprep.mubr.f32.mxu0 0.0
    %780 = vmatmul.mubr.f32.gmra.mrb[0].mxu0 %v452
    %v781 = vpop.f32.mrb[0].mxu0
    %v782 = vadd.f32 %v349, %v781
    %v783 = vpop.f32.mrb[0].mxu0
    %784 = vmatprep.mubr.f32.mxu0 0.0
    %785 = vmatmul.mubr.f32.gmra.mrb[0].mxu0 %v455
    %v786 = vpop.f32.mrb[0].mxu0
    %v787 = vadd.f32 %v349, %v786
    %v788 = vpop.f32.mrb[0].mxu0
    %789 = vmatprep.mubr.f32.mxu0 0.0
    %790 = vmatmul.mubr.f32.gmra.mrb[0].mxu0 %v458
    %v791 = vpop.f32.mrb[0].mxu0
    %v792 = vadd.f32 %v349, %v791
    %v793 = vpop.f32.mrb[0].mxu0
    %794 = vmatprep.mubr.f32.mxu0 0.0
    %795 = vmatmul.mubr.f32.gmra.mrb[0].mxu0 %v461
    %v796 = vpop.f32.mrb[0].mxu0
    %v797 = vadd.f32 %v349, %v796
    %v798 = vpop.f32.mrb[0].mxu0
    %799 = vmatprep.mubr.f32.mxu0 0.0
    %800 = vmatmul.mubr.f32.gmra.mrb[0].mxu0 %v464
    %v801 = vpop.f32.mrb[0].mxu0
    %v802 = vadd.f32 %v349, %v801
    %v803 = vpop.f32.mrb[0].mxu0
    %804 = vmatprep.mubr.f32.mxu0 0.0
    %805 = vmatmul.mubr.f32.gmra.mrb[0].mxu0 %v467
    %v806 = vpop.f32.mrb[0].mxu0
    %v807 = vadd.f32 %v349, %v806
    %v808 = vpop.f32.mrb[0].mxu0
    %809 = vmatprep.mubr.f32.mxu0 0.0
    %810 = vmatmul.mubr.f32.gmra.mrb[0].mxu0 %v470
    %v811 = vpop.f32.mrb[0].mxu0
    %v812 = vadd.f32 %v349, %v811
    %v813 = vpop.f32.mrb[0].mxu0
    %814 = vmatprep.mubr.f32.mxu0 0.0
    %815 = vmatmul.mubr.f32.gmra.mrb[0].mxu0 %v473
    %v816 = vpop.f32.mrb[0].mxu0
    %v817 = vadd.f32 %v349, %v816
    %v818 = vpop.f32.mrb[0].mxu0
    %819 = vmatprep.mubr.f32.mxu0 0.0
    %820 = vmatmul.mubr.f32.gmra.mrb[0].mxu0 %v476
    %v821 = vpop.f32.mrb[0].mxu0
    %v822 = vadd.f32 %v349, %v821
    %v823 = vpop.f32.mrb[0].mxu0
    %824 = vmatprep.mubr.f32.mxu0 0.0
    %825 = vmatmul.mubr.f32.gmra.mrb[0].mxu0 %v479
    %v826 = vpop.f32.mrb[0].mxu0
    %v827 = vadd.f32 %v349, %v826
    %v828 = vpop.f32.mrb[0].mxu0
    %829 = vmatprep.mubr.f32.mxu0 0.0
    %830 = vmatmul.mubr.f32.gmra.mrb[0].mxu0 %v482
    %v831 = vpop.f32.mrb[0].mxu0
    %v832 = vadd.f32 %v349, %v831
    %v833 = vpop.f32.mrb[0].mxu0
    %834 = vmatprep.mubr.f32.mxu0 0.0
    %835 = vmatmul.mubr.f32.gmra.mrb[0].mxu0 %v485
    %v836 = vpop.f32.mrb[0].mxu0
    %v837 = vadd.f32 %v349, %v836
    %v838 = vpop.f32.mrb[0].mxu0
    %839 = vmatprep.mubr.f32.mxu0 0.0
    %840 = vmatmul.mubr.f32.gmra.mrb[0].mxu0 %v488
    %v841 = vpop.f32.mrb[0].mxu0
    %v842 = vadd.f32 %v349, %v841
    %v843 = vpop.f32.mrb[0].mxu0
    %844 = vmatprep.mubr.f32.mxu0 0.0
    %845 = vmatmul.mubr.f32.gmra.mrb[0].mxu0 %v491
    %v846 = vpop.f32.mrb[0].mxu0
    %v847 = vadd.f32 %v349, %v846
    %v848 = vpop.f32.mrb[0].mxu0
    %849 = vmatprep.mubr.f32.mxu0 0.0
    %850 = vmatmul.mubr.f32.gmra.mrb[0].mxu0 %v494
    %v851 = vpop.f32.mrb[0].mxu0
    %v852 = vadd.f32 %v349, %v851
    %v853 = vpop.f32.mrb[0].mxu0
    %854 = vmatprep.mubr.f32.mxu0 0.0
    %855 = vmatmul.mubr.f32.gmra.mrb[0].mxu0 %v497
    %v856 = vpop.f32.mrb[0].mxu0
    %v857 = vadd.f32 %v349, %v856
    %v858 = vpop.f32.mrb[0].mxu0
    %859 = vmatprep.mubr.f32.mxu0 0.0
    %860 = vmatmul.mubr.f32.gmra.mrb[0].mxu0 %v500
    %v861 = vpop.f32.mrb[0].mxu0
    %v862 = vadd.f32 %v349, %v861
    %v863 = vpop.f32.mrb[0].mxu0
    %864 = vmatprep.mubr.f32.mxu0 0.0
    %865 = vmatmul.mubr.f32.gmra.mrb[0].mxu0 %v503
    %v866 = vpop.f32.mrb[0].mxu0
    %v867 = vadd.f32 %v349, %v866
    %v868 = vpop.f32.mrb[0].mxu0
    %869 = vmatprep.mubr.f32.mxu0 0.0
    %870 = vmatmul.mubr.f32.gmra.mrb[0].mxu0 %v506
    %v871 = vpop.f32.mrb[0].mxu0
    %v872 = vadd.f32 %v349, %v871
    %v873 = vpop.f32.mrb[0].mxu0
    %874 = vmatprep.mubr.f32.mxu0 0.0
    %875 = vmatmul.mubr.f32.gmra.mrb[0].mxu0 %v509
    %v876 = vpop.f32.mrb[0].mxu0
    %v877 = vadd.f32 %v349, %v876
    %v878 = vpop.f32.mrb[0].mxu0
    %879 = vmatprep.mubr.f32.mxu0 0.0
    %880 = vmatmul.mubr.f32.gmra.mrb[0].mxu0 %v512
    %v881 = vpop.f32.mrb[0].mxu0
    %v882 = vadd.f32 %v349, %v881
    %v883 = vpop.f32.mrb[0].mxu0
    %884 = vmatprep.mubr.f32.mxu0 0.0
    %885 = vmatmul.mubr.f32.gmra.mrb[0].mxu0 %v515
    %v886 = vpop.f32.mrb[0].mxu0
    %v887 = vadd.f32 %v349, %v886
    %v888 = vpop.f32.mrb[0].mxu0
    %889 = vmatprep.mubr.f32.mxu0 0.0
    %890 = vmatmul.mubr.f32.gmra.mrb[0].mxu0 %v518
    %v891 = vpop.f32.mrb[0].mxu0
    %v892 = vadd.f32 %v349, %v891
    %v893 = vpop.f32.mrb[0].mxu0
    %894 = vmatprep.mubr.f32.mxu0 0.0
    %895 = vmatmul.mubr.f32.gmra.mrb[0].mxu0 %v521
    %v896 = vpop.f32.mrb[0].mxu0
    %v897 = vadd.f32 %v349, %v896
    %v898 = vpop.f32.mrb[0].mxu0
    %899 = vmatprep.mubr.f32.mxu0 0.0
    %900 = vmatmul.mubr.f32.gmra.mrb[0].mxu0 %v524
    %v901 = vpop.f32.mrb[0].mxu0
    %v902 = vadd.f32 %v349, %v901
    %v903 = vpop.f32.mrb[0].mxu0
    %904 = vmatprep.mubr.f32.mxu0 0.0
    %905 = vmatmul.mubr.f32.gmra.mrb[0].mxu0 %v527
    %v906 = vpop.f32.mrb[0].mxu0
    %v907 = vadd.f32 %v349, %v906
    %v908 = vpop.f32.mrb[0].mxu0
    %909 = vmatprep.mubr.f32.mxu0 0.0
    %910 = vmatmul.mubr.f32.gmra.mrb[0].mxu0 %v530
    %v911 = vpop.f32.mrb[0].mxu0
    %v912 = vadd.f32 %v349, %v911
    %v913 = vpop.f32.mrb[0].mxu0
    %914 = vmatprep.mubr.f32.mxu0 0.0
    %915 = vmatmul.mubr.f32.gmra.mrb[0].mxu0 %v533
    %v916 = vpop.f32.mrb[0].mxu0
    %v917 = vadd.f32 %v349, %v916
    %v918 = vpop.f32.mrb[0].mxu0
    %919 = vmatprep.mubr.f32.mxu0 0.0
    %920 = vmatmul.mubr.f32.gmra.mrb[0].mxu0 %v536
    %v921 = vpop.f32.mrb[0].mxu0
    %v922 = vadd.f32 %v349, %v921
    %v923 = vpop.f32.mrb[0].mxu0
    %924 = vmatprep.mubr.f32.mxu0 0.0
    %925 = vmatmul.mubr.f32.gmra.mrb[0].mxu0 %v539
    %v926 = vpop.f32.mrb[0].mxu0
    %v927 = vadd.f32 %v349, %v926
    %v928 = vpop.f32.mrb[0].mxu0
    %929 = vmatprep.mubr.f32.mxu0 0.0
    %930 = vmatmul.mubr.f32.gmra.mrb[0].mxu0 %v542
    %v931 = vpop.f32.mrb[0].mxu0
    %v932 = vadd.f32 %v349, %v931
    %v933 = vpop.f32.mrb[0].mxu0
    %934 = vmatprep.mubr.f32.mxu0 0.0
    %935 = vmatmul.mubr.f32.gmra.mrb[0].mxu0 %v545
    %v936 = vpop.f32.mrb[0].mxu0
    %v937 = vadd.f32 %v349, %v936
    %v938 = vpop.f32.mrb[0].mxu0
    %939 = vmatprep.mubr.f32.mxu0 0.0
    %940 = vmatmul.mubr.f32.gmra.mrb[0].mxu0 %v548
    %v941 = vpop.f32.mrb[0].mxu0
    %v942 = vadd.f32 %v349, %v941
    %v943 = vpop.f32.mrb[0].mxu0
    %944 = vdwg.mxu0
    %v945 = vmax.f32 %v617, 0.0
    %v946 = vmax.f32 %v622, 0.0
    %v947 = vmax.f32 %v627, 0.0
    %v948 = vmax.f32 %v632, 0.0
    %v949 = vmax.f32 %v637, 0.0
    %v950 = vmax.f32 %v642, 0.0
    %v951 = vmax.f32 %v647, 0.0
    %v952 = vmax.f32 %v652, 0.0
    %v953 = vmax.f32 %v657, 0.0
    %v954 = vmax.f32 %v662, 0.0
    %v955 = vmax.f32 %v667, 0.0
    %v956 = vmax.f32 %v672, 0.0
    %v957 = vmax.f32 %v677, 0.0
    %v958 = vmax.f32 %v682, 0.0
    %v959 = vmax.f32 %v687, 0.0
    %v960 = vmax.f32 %v692, 0.0
    %v961 = vmax.f32 %v697, 0.0
    %v962 = vmax.f32 %v702, 0.0
    %v963 = vmax.f32 %v707, 0.0
    %v964 = vmax.f32 %v712, 0.0
    %v965 = vmax.f32 %v717, 0.0
    %v966 = vmax.f32 %v722, 0.0
    %v967 = vmax.f32 %v727, 0.0
    %v968 = vmax.f32 %v732, 0.0
    %v969 = vmax.f32 %v737, 0.0
    %v970 = vmax.f32 %v742, 0.0
    %v971 = vmax.f32 %v747, 0.0
    %v972 = vmax.f32 %v752, 0.0
    %v973 = vmax.f32 %v757, 0.0
    %v974 = vmax.f32 %v762, 0.0
    %v975 = vmax.f32 %v767, 0.0
    %v976 = vmax.f32 %v772, 0.0
    %v977 = vmax.f32 %v777, 0.0
    %v978 = vmax.f32 %v782, 0.0
    %v979 = vmax.f32 %v787, 0.0
    %v980 = vmax.f32 %v792, 0.0
    %v981 = vmax.f32 %v797, 0.0
    %v982 = vmax.f32 %v802, 0.0
    %v983 = vmax.f32 %v807, 0.0
    %v984 = vmax.f32 %v812, 0.0
    %v985 = vmax.f32 %v817, 0.0
    %v986 = vmax.f32 %v822, 0.0
    %v987 = vmax.f32 %v827, 0.0
    %v988 = vmax.f32 %v832, 0.0
    %v989 = vmax.f32 %v837, 0.0
    %v990 = vmax.f32 %v842, 0.0
    %v991 = vmax.f32 %v847, 0.0
    %v992 = vmax.f32 %v852, 0.0
    %v993 = vmax.f32 %v857, 0.0
    %v994 = vmax.f32 %v862, 0.0
    %v995 = vmax.f32 %v867, 0.0
    %v996 = vmax.f32 %v872, 0.0
    %v997 = vmax.f32 %v877, 0.0
    %v998 = vmax.f32 %v882, 0.0
    %v999 = vmax.f32 %v887, 0.0
    %v1000 = vmax.f32 %v892, 0.0
    %v1001 = vmax.f32 %v897, 0.0
    %v1002 = vmax.f32 %v902, 0.0
    %v1003 = vmax.f32 %v907, 0.0
    %v1004 = vmax.f32 %v912, 0.0
    %v1005 = vmax.f32 %v917, 0.0
    %v1006 = vmax.f32 %v922, 0.0
    %v1007 = vmax.f32 %v927, 0.0
    %v1008 = vmax.f32 %v932, 0.0
    %v1009 = vmax.f32 %v937, 0.0
    %v1010 = vmax.f32 %v942, 0.0
    %v1011 = vld [vmem:[#allocation8] sm:$0xff]
    %v1012 = vld [vmem:[#allocation8 + $0x8] sm:$0xff]
    %v1013 = vld [vmem:[#allocation8 + $0x10] sm:$0xff]
    %v1014 = vld [vmem:[#allocation8 + $0x18] sm:$0xff]
    %v1015 = vld [vmem:[#allocation8 + $0x20] sm:$0xff]
    %v1016 = vld [vmem:[#allocation8 + $0x28] sm:$0xff]
    %v1017 = vld [vmem:[#allocation8 + $0x30] sm:$0xff]
    %v1018 = vld [vmem:[#allocation8 + $0x38] sm:$0xff]
    %v1019 = vld [vmem:[#allocation9] sm:$0x1]
    %v1021 = vlaneseq
    %v1022 = vshrl.u32 %v1021, 7
    %v1023 = vsub.s32 0, %v1022
    %v1024 = vrot.slane %v1019, %v1023
    %vm1026 = vcmask 523264
    %v1028 = vsel %vm1026, %v945, 0
    %v1031 = vsel %vm1026, %v946, 0
    %v1034 = vsel %vm1026, %v947, 0
    %v1037 = vsel %vm1026, %v948, 0
    %v1040 = vsel %vm1026, %v949, 0
    %v1043 = vsel %vm1026, %v950, 0
    %v1046 = vsel %vm1026, %v951, 0
    %v1049 = vsel %vm1026, %v952, 0
    %v1052 = vsel %vm1026, %v953, 0
    %v1055 = vsel %vm1026, %v954, 0
    %v1058 = vsel %vm1026, %v955, 0
    %v1061 = vsel %vm1026, %v956, 0
    %v1064 = vsel %vm1026, %v957, 0
    %v1067 = vsel %vm1026, %v958, 0
    %v1070 = vsel %vm1026, %v959, 0
    %v1073 = vsel %vm1026, %v960, 0
    %v1076 = vsel %vm1026, %v961, 0
    %v1079 = vsel %vm1026, %v962, 0
    %v1082 = vsel %vm1026, %v963, 0
    %v1085 = vsel %vm1026, %v964, 0
    %v1088 = vsel %vm1026, %v965, 0
    %v1091 = vsel %vm1026, %v966, 0
    %v1094 = vsel %vm1026, %v967, 0
    %v1097 = vsel %vm1026, %v968, 0
    %v1100 = vsel %vm1026, %v969, 0
    %v1103 = vsel %vm1026, %v970, 0
    %v1106 = vsel %vm1026, %v971, 0
    %v1109 = vsel %vm1026, %v972, 0
    %v1112 = vsel %vm1026, %v973, 0
    %v1115 = vsel %vm1026, %v974, 0
    %v1118 = vsel %vm1026, %v975, 0
    %v1121 = vsel %vm1026, %v976, 0
    %v1124 = vsel %vm1026, %v977, 0
    %v1127 = vsel %vm1026, %v978, 0
    %v1130 = vsel %vm1026, %v979, 0
    %v1133 = vsel %vm1026, %v980, 0
    %v1136 = vsel %vm1026, %v981, 0
    %v1139 = vsel %vm1026, %v982, 0
    %v1142 = vsel %vm1026, %v983, 0
    %v1145 = vsel %vm1026, %v984, 0
    %v1148 = vsel %vm1026, %v985, 0
    %v1151 = vsel %vm1026, %v986, 0
    %v1154 = vsel %vm1026, %v987, 0
    %v1157 = vsel %vm1026, %v988, 0
    %v1160 = vsel %vm1026, %v989, 0
    %v1163 = vsel %vm1026, %v990, 0
    %v1166 = vsel %vm1026, %v991, 0
    %v1169 = vsel %vm1026, %v992, 0
    %v1172 = vsel %vm1026, %v993, 0
    %v1175 = vsel %vm1026, %v994, 0
    %v1178 = vsel %vm1026, %v995, 0
    %v1181 = vsel %vm1026, %v996, 0
    %v1184 = vsel %vm1026, %v997, 0
    %v1187 = vsel %vm1026, %v998, 0
    %v1190 = vsel %vm1026, %v999, 0
    %v1193 = vsel %vm1026, %v1000, 0
    %v1196 = vsel %vm1026, %v1001, 0
    %v1199 = vsel %vm1026, %v1002, 0
    %v1202 = vsel %vm1026, %v1003, 0
    %v1205 = vsel %vm1026, %v1004, 0
    %v1208 = vsel %vm1026, %v1005, 0
    %v1211 = vsel %vm1026, %v1006, 0
    %v1214 = vsel %vm1026, %v1007, 0
    %v1217 = vsel %vm1026, %v1008, 0
    %v1220 = vsel %vm1026, %v1009, 0
    %v1223 = vsel %vm1026, %v1010, 0
    %1225 = vmatprep.subr.mxu0 0.0
    %1226 = vmatpush1.msra.mxu0 %v1011
    %1227 = vmatprep.subr.mxu0 0.0
    %1228 = vmatpush1.msra.mxu0 %v1012
    %1229 = vmatprep.subr.mxu0 0.0
    %1230 = vmatpush1.msra.mxu0 %v1013
    %1231 = vmatprep.subr.mxu0 0.0
    %1232 = vmatpush1.msra.mxu0 %v1014
    %1233 = vmatprep.subr.mxu0 0.0
    %1234 = vmatpush1.msra.mxu0 %v1015
    %1235 = vmatprep.subr.mxu0 0.0
    %1236 = vmatpush1.msra.mxu0 %v1016
    %1237 = vmatprep.subr.mxu0 0.0
    %1238 = vmatpush1.msra.mxu0 %v1017
    %1239 = vmatprep.subr.mxu0 0.0
    %1240 = vmatpush1.msra.mxu0 %v1018
    %1241 = vmatprep.subr.mxu0 0.0
    %1242 = vmatpush1.msra.mxu0 0.0
    %1243 = vmatprep.subr.mxu0 0.0
    %1244 = vmatpush1.msra.mxu0 0.0
    %1245 = vmatprep.subr.mxu0 0.0
    %1246 = vmatpush1.msra.mxu0 0.0
    %1247 = vmatprep.subr.mxu0 0.0
    %1248 = vmatpush1.msra.mxu0 0.0
    %1249 = vmatprep.subr.mxu0 0.0
    %1250 = vmatpush1.msra.mxu0 0.0
    %1251 = vmatprep.subr.mxu0 0.0
    %1252 = vmatpush1.msra.mxu0 0.0
    %1253 = vmatprep.subr.mxu0 0.0
    %1254 = vmatpush1.msra.mxu0 0.0
    %1255 = vmatprep.subr.mxu0 0.0
    %1256 = vmatpush1.msra.mxu0 0.0
    %1257 = vmatprep.subr.mxu0 0.0
    %1258 = vmatpush1.msra.mxu0 0.0
    %1259 = vmatprep.subr.mxu0 0.0
    %1260 = vmatpush1.msra.mxu0 0.0
    %1261 = vmatprep.subr.mxu0 0.0
    %1262 = vmatpush1.msra.mxu0 0.0
    %1263 = vmatprep.subr.mxu0 0.0
    %1264 = vmatpush1.msra.mxu0 0.0
    %1265 = vmatprep.subr.mxu0 0.0
    %1266 = vmatpush1.msra.mxu0 0.0
    %1267 = vmatprep.subr.mxu0 0.0
    %1268 = vmatpush1.msra.mxu0 0.0
    %1269 = vmatprep.subr.mxu0 0.0
    %1270 = vmatpush1.msra.mxu0 0.0
    %1271 = vmatprep.subr.mxu0 0.0
    %1272 = vmatpush1.msra.mxu0 0.0
    %1273 = vmatprep.subr.mxu0 0.0
    %1274 = vmatpush1.msra.mxu0 0.0
    %1275 = vmatprep.subr.mxu0 0.0
    %1276 = vmatpush1.msra.mxu0 0.0
    %1277 = vmatprep.subr.mxu0 0.0
    %1278 = vmatpush1.msra.mxu0 0.0
    %1279 = vmatprep.subr.mxu0 0.0
    %1280 = vmatpush1.msra.mxu0 0.0
    %1281 = vmatprep.subr.mxu0 0.0
    %1282 = vmatpush1.msra.mxu0 0.0
    %1283 = vmatprep.subr.mxu0 0.0
    %1284 = vmatpush1.msra.mxu0 0.0
    %1285 = vmatprep.subr.mxu0 0.0
    %1286 = vmatpush1.msra.mxu0 0.0
    %1287 = vmatprep.subr.mxu0 0.0
    %1288 = vmatpush1.msra.mxu0 0.0
    %1289 = vmatprep.mubr.f32.mxu0 0.0
    %1290 = vmatmul.mubr.f32.gmra.mrb[0].mxu0 %v1028
    %v1291 = vpop.f32.mrb[0].mxu0
    %v1292 = vadd.f32 %v1024, %v1291
    %v1293 = vpop.f32.mrb[0].mxu0
    %1294 = vmatprep.mubr.f32.mxu0 0.0
    %1295 = vmatmul.mubr.f32.gmra.mrb[0].mxu0 %v1031
    %v1296 = vpop.f32.mrb[0].mxu0
    %v1297 = vadd.f32 %v1024, %v1296
    %v1298 = vpop.f32.mrb[0].mxu0
    %1299 = vmatprep.mubr.f32.mxu0 0.0
    %1300 = vmatmul.mubr.f32.gmra.mrb[0].mxu0 %v1034
    %v1301 = vpop.f32.mrb[0].mxu0
    %v1302 = vadd.f32 %v1024, %v1301
    %v1303 = vpop.f32.mrb[0].mxu0
    %1304 = vmatprep.mubr.f32.mxu0 0.0
    %1305 = vmatmul.mubr.f32.gmra.mrb[0].mxu0 %v1037
    %v1306 = vpop.f32.mrb[0].mxu0
    %v1307 = vadd.f32 %v1024, %v1306
    %v1308 = vpop.f32.mrb[0].mxu0
    %1309 = vmatprep.mubr.f32.mxu0 0.0
    %1310 = vmatmul.mubr.f32.gmra.mrb[0].mxu0 %v1040
    %v1311 = vpop.f32.mrb[0].mxu0
    %v1312 = vadd.f32 %v1024, %v1311
    %v1313 = vpop.f32.mrb[0].mxu0
    %1314 = vmatprep.mubr.f32.mxu0 0.0
    %1315 = vmatmul.mubr.f32.gmra.mrb[0].mxu0 %v1043
    %v1316 = vpop.f32.mrb[0].mxu0
    %v1317 = vadd.f32 %v1024, %v1316
    %v1318 = vpop.f32.mrb[0].mxu0
    %1319 = vmatprep.mubr.f32.mxu0 0.0
    %1320 = vmatmul.mubr.f32.gmra.mrb[0].mxu0 %v1046
    %v1321 = vpop.f32.mrb[0].mxu0
    %v1322 = vadd.f32 %v1024, %v1321
    %v1323 = vpop.f32.mrb[0].mxu0
    %1324 = vmatprep.mubr.f32.mxu0 0.0
    %1325 = vmatmul.mubr.f32.gmra.mrb[0].mxu0 %v1049
    %v1326 = vpop.f32.mrb[0].mxu0
    %v1327 = vadd.f32 %v1024, %v1326
    %v1328 = vpop.f32.mrb[0].mxu0
    %1329 = vmatprep.mubr.f32.mxu0 0.0
    %1330 = vmatmul.mubr.f32.gmra.mrb[0].mxu0 %v1052
    %v1331 = vpop.f32.mrb[0].mxu0
    %v1332 = vadd.f32 %v1024, %v1331
    %v1333 = vpop.f32.mrb[0].mxu0
    %1334 = vmatprep.mubr.f32.mxu0 0.0
    %1335 = vmatmul.mubr.f32.gmra.mrb[0].mxu0 %v1055
    %v1336 = vpop.f32.mrb[0].mxu0
    %v1337 = vadd.f32 %v1024, %v1336
    %v1338 = vpop.f32.mrb[0].mxu0
    %1339 = vmatprep.mubr.f32.mxu0 0.0
    %1340 = vmatmul.mubr.f32.gmra.mrb[0].mxu0 %v1058
    %v1341 = vpop.f32.mrb[0].mxu0
    %v1342 = vadd.f32 %v1024, %v1341
    %v1343 = vpop.f32.mrb[0].mxu0
    %1344 = vmatprep.mubr.f32.mxu0 0.0
    %1345 = vmatmul.mubr.f32.gmra.mrb[0].mxu0 %v1061
    %v1346 = vpop.f32.mrb[0].mxu0
    %v1347 = vadd.f32 %v1024, %v1346
    %v1348 = vpop.f32.mrb[0].mxu0
    %1349 = vmatprep.mubr.f32.mxu0 0.0
    %1350 = vmatmul.mubr.f32.gmra.mrb[0].mxu0 %v1064
    %v1351 = vpop.f32.mrb[0].mxu0
    %v1352 = vadd.f32 %v1024, %v1351
    %v1353 = vpop.f32.mrb[0].mxu0
    %1354 = vmatprep.mubr.f32.mxu0 0.0
    %1355 = vmatmul.mubr.f32.gmra.mrb[0].mxu0 %v1067
    %v1356 = vpop.f32.mrb[0].mxu0
    %v1357 = vadd.f32 %v1024, %v1356
    %v1358 = vpop.f32.mrb[0].mxu0
    %1359 = vmatprep.mubr.f32.mxu0 0.0
    %1360 = vmatmul.mubr.f32.gmra.mrb[0].mxu0 %v1070
    %v1361 = vpop.f32.mrb[0].mxu0
    %v1362 = vadd.f32 %v1024, %v1361
    %v1363 = vpop.f32.mrb[0].mxu0
    %1364 = vmatprep.mubr.f32.mxu0 0.0
    %1365 = vmatmul.mubr.f32.gmra.mrb[0].mxu0 %v1073
    %v1366 = vpop.f32.mrb[0].mxu0
    %v1367 = vadd.f32 %v1024, %v1366
    %v1368 = vpop.f32.mrb[0].mxu0
    %1369 = vmatprep.mubr.f32.mxu0 0.0
    %1370 = vmatmul.mubr.f32.gmra.mrb[0].mxu0 %v1076
    %v1371 = vpop.f32.mrb[0].mxu0
    %v1372 = vadd.f32 %v1024, %v1371
    %v1373 = vpop.f32.mrb[0].mxu0
    %1374 = vmatprep.mubr.f32.mxu0 0.0
    %1375 = vmatmul.mubr.f32.gmra.mrb[0].mxu0 %v1079
    %v1376 = vpop.f32.mrb[0].mxu0
    %v1377 = vadd.f32 %v1024, %v1376
    %v1378 = vpop.f32.mrb[0].mxu0
    %1379 = vmatprep.mubr.f32.mxu0 0.0
    %1380 = vmatmul.mubr.f32.gmra.mrb[0].mxu0 %v1082
    %v1381 = vpop.f32.mrb[0].mxu0
    %v1382 = vadd.f32 %v1024, %v1381
    %v1383 = vpop.f32.mrb[0].mxu0
    %1384 = vmatprep.mubr.f32.mxu0 0.0
    %1385 = vmatmul.mubr.f32.gmra.mrb[0].mxu0 %v1085
    %v1386 = vpop.f32.mrb[0].mxu0
    %v1387 = vadd.f32 %v1024, %v1386
    %v1388 = vpop.f32.mrb[0].mxu0
    %1389 = vmatprep.mubr.f32.mxu0 0.0
    %1390 = vmatmul.mubr.f32.gmra.mrb[0].mxu0 %v1088
    %v1391 = vpop.f32.mrb[0].mxu0
    %v1392 = vadd.f32 %v1024, %v1391
    %v1393 = vpop.f32.mrb[0].mxu0
    %1394 = vmatprep.mubr.f32.mxu0 0.0
    %1395 = vmatmul.mubr.f32.gmra.mrb[0].mxu0 %v1091
    %v1396 = vpop.f32.mrb[0].mxu0
    %v1397 = vadd.f32 %v1024, %v1396
    %v1398 = vpop.f32.mrb[0].mxu0
    %1399 = vmatprep.mubr.f32.mxu0 0.0
    %1400 = vmatmul.mubr.f32.gmra.mrb[0].mxu0 %v1094
    %v1401 = vpop.f32.mrb[0].mxu0
    %v1402 = vadd.f32 %v1024, %v1401
    %v1403 = vpop.f32.mrb[0].mxu0
    %1404 = vmatprep.mubr.f32.mxu0 0.0
    %1405 = vmatmul.mubr.f32.gmra.mrb[0].mxu0 %v1097
    %v1406 = vpop.f32.mrb[0].mxu0
    %v1407 = vadd.f32 %v1024, %v1406
    %v1408 = vpop.f32.mrb[0].mxu0
    %1409 = vmatprep.mubr.f32.mxu0 0.0
    %1410 = vmatmul.mubr.f32.gmra.mrb[0].mxu0 %v1100
    %v1411 = vpop.f32.mrb[0].mxu0
    %v1412 = vadd.f32 %v1024, %v1411
    %v1413 = vpop.f32.mrb[0].mxu0
    %1414 = vmatprep.mubr.f32.mxu0 0.0
    %1415 = vmatmul.mubr.f32.gmra.mrb[0].mxu0 %v1103
    %v1416 = vpop.f32.mrb[0].mxu0
    %v1417 = vadd.f32 %v1024, %v1416
    %v1418 = vpop.f32.mrb[0].mxu0
    %1419 = vmatprep.mubr.f32.mxu0 0.0
    %1420 = vmatmul.mubr.f32.gmra.mrb[0].mxu0 %v1106
    %v1421 = vpop.f32.mrb[0].mxu0
    %v1422 = vadd.f32 %v1024, %v1421
    %v1423 = vpop.f32.mrb[0].mxu0
    %1424 = vmatprep.mubr.f32.mxu0 0.0
    %1425 = vmatmul.mubr.f32.gmra.mrb[0].mxu0 %v1109
    %v1426 = vpop.f32.mrb[0].mxu0
    %v1427 = vadd.f32 %v1024, %v1426
    %v1428 = vpop.f32.mrb[0].mxu0
    %1429 = vmatprep.mubr.f32.mxu0 0.0
    %1430 = vmatmul.mubr.f32.gmra.mrb[0].mxu0 %v1112
    %v1431 = vpop.f32.mrb[0].mxu0
    %v1432 = vadd.f32 %v1024, %v1431
    %v1433 = vpop.f32.mrb[0].mxu0
    %1434 = vmatprep.mubr.f32.mxu0 0.0
    %1435 = vmatmul.mubr.f32.gmra.mrb[0].mxu0 %v1115
    %v1436 = vpop.f32.mrb[0].mxu0
    %v1437 = vadd.f32 %v1024, %v1436
    %v1438 = vpop.f32.mrb[0].mxu0
    %1439 = vmatprep.mubr.f32.mxu0 0.0
    %1440 = vmatmul.mubr.f32.gmra.mrb[0].mxu0 %v1118
    %v1441 = vpop.f32.mrb[0].mxu0
    %v1442 = vadd.f32 %v1024, %v1441
    %v1443 = vpop.f32.mrb[0].mxu0
    %1444 = vmatprep.mubr.f32.mxu0 0.0
    %1445 = vmatmul.mubr.f32.gmra.mrb[0].mxu0 %v1121
    %v1446 = vpop.f32.mrb[0].mxu0
    %v1447 = vadd.f32 %v1024, %v1446
    %v1448 = vpop.f32.mrb[0].mxu0
    %1449 = vmatprep.mubr.f32.mxu0 0.0
    %1450 = vmatmul.mubr.f32.gmra.mrb[0].mxu0 %v1124
    %v1451 = vpop.f32.mrb[0].mxu0
    %v1452 = vadd.f32 %v1024, %v1451
    %v1453 = vpop.f32.mrb[0].mxu0
    %1454 = vmatprep.mubr.f32.mxu0 0.0
    %1455 = vmatmul.mubr.f32.gmra.mrb[0].mxu0 %v1127
    %v1456 = vpop.f32.mrb[0].mxu0
    %v1457 = vadd.f32 %v1024, %v1456
    %v1458 = vpop.f32.mrb[0].mxu0
    %1459 = vmatprep.mubr.f32.mxu0 0.0
    %1460 = vmatmul.mubr.f32.gmra.mrb[0].mxu0 %v1130
    %v1461 = vpop.f32.mrb[0].mxu0
    %v1462 = vadd.f32 %v1024, %v1461
    %v1463 = vpop.f32.mrb[0].mxu0
    %1464 = vmatprep.mubr.f32.mxu0 0.0
    %1465 = vmatmul.mubr.f32.gmra.mrb[0].mxu0 %v1133
    %v1466 = vpop.f32.mrb[0].mxu0
    %v1467 = vadd.f32 %v1024, %v1466
    %v1468 = vpop.f32.mrb[0].mxu0
    %1469 = vmatprep.mubr.f32.mxu0 0.0
    %1470 = vmatmul.mubr.f32.gmra.mrb[0].mxu0 %v1136
    %v1471 = vpop.f32.mrb[0].mxu0
    %v1472 = vadd.f32 %v1024, %v1471
    %v1473 = vpop.f32.mrb[0].mxu0
    %1474 = vmatprep.mubr.f32.mxu0 0.0
    %1475 = vmatmul.mubr.f32.gmra.mrb[0].mxu0 %v1139
    %v1476 = vpop.f32.mrb[0].mxu0
    %v1477 = vadd.f32 %v1024, %v1476
    %v1478 = vpop.f32.mrb[0].mxu0
    %1479 = vmatprep.mubr.f32.mxu0 0.0
    %1480 = vmatmul.mubr.f32.gmra.mrb[0].mxu0 %v1142
    %v1481 = vpop.f32.mrb[0].mxu0
    %v1482 = vadd.f32 %v1024, %v1481
    %v1483 = vpop.f32.mrb[0].mxu0
    %1484 = vmatprep.mubr.f32.mxu0 0.0
    %1485 = vmatmul.mubr.f32.gmra.mrb[0].mxu0 %v1145
    %v1486 = vpop.f32.mrb[0].mxu0
    %v1487 = vadd.f32 %v1024, %v1486
    %v1488 = vpop.f32.mrb[0].mxu0
    %1489 = vmatprep.mubr.f32.mxu0 0.0
    %1490 = vmatmul.mubr.f32.gmra.mrb[0].mxu0 %v1148
    %v1491 = vpop.f32.mrb[0].mxu0
    %v1492 = vadd.f32 %v1024, %v1491
    %v1493 = vpop.f32.mrb[0].mxu0
    %1494 = vmatprep.mubr.f32.mxu0 0.0
    %1495 = vmatmul.mubr.f32.gmra.mrb[0].mxu0 %v1151
    %v1496 = vpop.f32.mrb[0].mxu0
    %v1497 = vadd.f32 %v1024, %v1496
    %v1498 = vpop.f32.mrb[0].mxu0
    %1499 = vmatprep.mubr.f32.mxu0 0.0
    %1500 = vmatmul.mubr.f32.gmra.mrb[0].mxu0 %v1154
    %v1501 = vpop.f32.mrb[0].mxu0
    %v1502 = vadd.f32 %v1024, %v1501
    %v1503 = vpop.f32.mrb[0].mxu0
    %1504 = vmatprep.mubr.f32.mxu0 0.0
    %1505 = vmatmul.mubr.f32.gmra.mrb[0].mxu0 %v1157
    %v1506 = vpop.f32.mrb[0].mxu0
    %v1507 = vadd.f32 %v1024, %v1506
    %v1508 = vpop.f32.mrb[0].mxu0
    %1509 = vmatprep.mubr.f32.mxu0 0.0
    %1510 = vmatmul.mubr.f32.gmra.mrb[0].mxu0 %v1160
    %v1511 = vpop.f32.mrb[0].mxu0
    %v1512 = vadd.f32 %v1024, %v1511
    %v1513 = vpop.f32.mrb[0].mxu0
    %1514 = vmatprep.mubr.f32.mxu0 0.0
    %1515 = vmatmul.mubr.f32.gmra.mrb[0].mxu0 %v1163
    %v1516 = vpop.f32.mrb[0].mxu0
    %v1517 = vadd.f32 %v1024, %v1516
    %v1518 = vpop.f32.mrb[0].mxu0
    %1519 = vmatprep.mubr.f32.mxu0 0.0
    %1520 = vmatmul.mubr.f32.gmra.mrb[0].mxu0 %v1166
    %v1521 = vpop.f32.mrb[0].mxu0
    %v1522 = vadd.f32 %v1024, %v1521
    %v1523 = vpop.f32.mrb[0].mxu0
    %1524 = vmatprep.mubr.f32.mxu0 0.0
    %1525 = vmatmul.mubr.f32.gmra.mrb[0].mxu0 %v1169
    %v1526 = vpop.f32.mrb[0].mxu0
    %v1527 = vadd.f32 %v1024, %v1526
    %v1528 = vpop.f32.mrb[0].mxu0
    %1529 = vmatprep.mubr.f32.mxu0 0.0
    %1530 = vmatmul.mubr.f32.gmra.mrb[0].mxu0 %v1172
    %v1531 = vpop.f32.mrb[0].mxu0
    %v1532 = vadd.f32 %v1024, %v1531
    %v1533 = vpop.f32.mrb[0].mxu0
    %1534 = vmatprep.mubr.f32.mxu0 0.0
    %1535 = vmatmul.mubr.f32.gmra.mrb[0].mxu0 %v1175
    %v1536 = vpop.f32.mrb[0].mxu0
    %v1537 = vadd.f32 %v1024, %v1536
    %v1538 = vpop.f32.mrb[0].mxu0
    %1539 = vmatprep.mubr.f32.mxu0 0.0
    %1540 = vmatmul.mubr.f32.gmra.mrb[0].mxu0 %v1178
    %v1541 = vpop.f32.mrb[0].mxu0
    %v1542 = vadd.f32 %v1024, %v1541
    %v1543 = vpop.f32.mrb[0].mxu0
    %1544 = vmatprep.mubr.f32.mxu0 0.0
    %1545 = vmatmul.mubr.f32.gmra.mrb[0].mxu0 %v1181
    %v1546 = vpop.f32.mrb[0].mxu0
    %v1547 = vadd.f32 %v1024, %v1546
    %v1548 = vpop.f32.mrb[0].mxu0
    %1549 = vmatprep.mubr.f32.mxu0 0.0
    %1550 = vmatmul.mubr.f32.gmra.mrb[0].mxu0 %v1184
    %v1551 = vpop.f32.mrb[0].mxu0
    %v1552 = vadd.f32 %v1024, %v1551
    %v1553 = vpop.f32.mrb[0].mxu0
    %1554 = vmatprep.mubr.f32.mxu0 0.0
    %1555 = vmatmul.mubr.f32.gmra.mrb[0].mxu0 %v1187
    %v1556 = vpop.f32.mrb[0].mxu0
    %v1557 = vadd.f32 %v1024, %v1556
    %v1558 = vpop.f32.mrb[0].mxu0
    %1559 = vmatprep.mubr.f32.mxu0 0.0
    %1560 = vmatmul.mubr.f32.gmra.mrb[0].mxu0 %v1190
    %v1561 = vpop.f32.mrb[0].mxu0
    %v1562 = vadd.f32 %v1024, %v1561
    %v1563 = vpop.f32.mrb[0].mxu0
    %1564 = vmatprep.mubr.f32.mxu0 0.0
    %1565 = vmatmul.mubr.f32.gmra.mrb[0].mxu0 %v1193
    %v1566 = vpop.f32.mrb[0].mxu0
    %v1567 = vadd.f32 %v1024, %v1566
    %v1568 = vpop.f32.mrb[0].mxu0
    %1569 = vmatprep.mubr.f32.mxu0 0.0
    %1570 = vmatmul.mubr.f32.gmra.mrb[0].mxu0 %v1196
    %v1571 = vpop.f32.mrb[0].mxu0
    %v1572 = vadd.f32 %v1024, %v1571
    %v1573 = vpop.f32.mrb[0].mxu0
    %1574 = vmatprep.mubr.f32.mxu0 0.0
    %1575 = vmatmul.mubr.f32.gmra.mrb[0].mxu0 %v1199
    %v1576 = vpop.f32.mrb[0].mxu0
    %v1577 = vadd.f32 %v1024, %v1576
    %v1578 = vpop.f32.mrb[0].mxu0
    %1579 = vmatprep.mubr.f32.mxu0 0.0
    %1580 = vmatmul.mubr.f32.gmra.mrb[0].mxu0 %v1202
    %v1581 = vpop.f32.mrb[0].mxu0
    %v1582 = vadd.f32 %v1024, %v1581
    %v1583 = vpop.f32.mrb[0].mxu0
    %1584 = vmatprep.mubr.f32.mxu0 0.0
    %1585 = vmatmul.mubr.f32.gmra.mrb[0].mxu0 %v1205
    %v1586 = vpop.f32.mrb[0].mxu0
    %v1587 = vadd.f32 %v1024, %v1586
    %v1588 = vpop.f32.mrb[0].mxu0
    %1589 = vmatprep.mubr.f32.mxu0 0.0
    %1590 = vmatmul.mubr.f32.gmra.mrb[0].mxu0 %v1208
    %v1591 = vpop.f32.mrb[0].mxu0
    %v1592 = vadd.f32 %v1024, %v1591
    %v1593 = vpop.f32.mrb[0].mxu0
    %1594 = vmatprep.mubr.f32.mxu0 0.0
    %1595 = vmatmul.mubr.f32.gmra.mrb[0].mxu0 %v1211
    %v1596 = vpop.f32.mrb[0].mxu0
    %v1597 = vadd.f32 %v1024, %v1596
    %v1598 = vpop.f32.mrb[0].mxu0
    %1599 = vmatprep.mubr.f32.mxu0 0.0
    %1600 = vmatmul.mubr.f32.gmra.mrb[0].mxu0 %v1214
    %v1601 = vpop.f32.mrb[0].mxu0
    %v1602 = vadd.f32 %v1024, %v1601
    %v1603 = vpop.f32.mrb[0].mxu0
    %1604 = vmatprep.mubr.f32.mxu0 0.0
    %1605 = vmatmul.mubr.f32.gmra.mrb[0].mxu0 %v1217
    %v1606 = vpop.f32.mrb[0].mxu0
    %v1607 = vadd.f32 %v1024, %v1606
    %v1608 = vpop.f32.mrb[0].mxu0
    %1609 = vmatprep.mubr.f32.mxu0 0.0
    %1610 = vmatmul.mubr.f32.gmra.mrb[0].mxu0 %v1220
    %v1611 = vpop.f32.mrb[0].mxu0
    %v1612 = vadd.f32 %v1024, %v1611
    %v1613 = vpop.f32.mrb[0].mxu0
    %1614 = vmatprep.mubr.f32.mxu0 0.0
    %1615 = vmatmul.mubr.f32.gmra.mrb[0].mxu0 %v1223
    %v1616 = vpop.f32.mrb[0].mxu0
    %v1617 = vadd.f32 %v1024, %v1616
    %v1618 = vpop.f32.mrb[0].mxu0
    %1619 = vdwg.mxu0
    %v1620 = vmax.f32 %v1292, 0.0
    %v1621 = vmax.f32 %v1297, 0.0
    %v1622 = vmax.f32 %v1302, 0.0
    %v1623 = vmax.f32 %v1307, 0.0
    %v1624 = vmax.f32 %v1312, 0.0
    %v1625 = vmax.f32 %v1317, 0.0
    %v1626 = vmax.f32 %v1322, 0.0
    %v1627 = vmax.f32 %v1327, 0.0
    %v1628 = vmax.f32 %v1332, 0.0
    %v1629 = vmax.f32 %v1337, 0.0
    %v1630 = vmax.f32 %v1342, 0.0
    %v1631 = vmax.f32 %v1347, 0.0
    %v1632 = vmax.f32 %v1352, 0.0
    %v1633 = vmax.f32 %v1357, 0.0
    %v1634 = vmax.f32 %v1362, 0.0
    %v1635 = vmax.f32 %v1367, 0.0
    %v1636 = vmax.f32 %v1372, 0.0
    %v1637 = vmax.f32 %v1377, 0.0
    %v1638 = vmax.f32 %v1382, 0.0
    %v1639 = vmax.f32 %v1387, 0.0
    %v1640 = vmax.f32 %v1392, 0.0
    %v1641 = vmax.f32 %v1397, 0.0
    %v1642 = vmax.f32 %v1402, 0.0
    %v1643 = vmax.f32 %v1407, 0.0
    %v1644 = vmax.f32 %v1412, 0.0
    %v1645 = vmax.f32 %v1417, 0.0
    %v1646 = vmax.f32 %v1422, 0.0
    %v1647 = vmax.f32 %v1427, 0.0
    %v1648 = vmax.f32 %v1432, 0.0
    %v1649 = vmax.f32 %v1437, 0.0
    %v1650 = vmax.f32 %v1442, 0.0
    %v1651 = vmax.f32 %v1447, 0.0
    %v1652 = vmax.f32 %v1452, 0.0
    %v1653 = vmax.f32 %v1457, 0.0
    %v1654 = vmax.f32 %v1462, 0.0
    %v1655 = vmax.f32 %v1467, 0.0
    %v1656 = vmax.f32 %v1472, 0.0
    %v1657 = vmax.f32 %v1477, 0.0
    %v1658 = vmax.f32 %v1482, 0.0
    %v1659 = vmax.f32 %v1487, 0.0
    %v1660 = vmax.f32 %v1492, 0.0
    %v1661 = vmax.f32 %v1497, 0.0
    %v1662 = vmax.f32 %v1502, 0.0
    %v1663 = vmax.f32 %v1507, 0.0
    %v1664 = vmax.f32 %v1512, 0.0
    %v1665 = vmax.f32 %v1517, 0.0
    %v1666 = vmax.f32 %v1522, 0.0
    %v1667 = vmax.f32 %v1527, 0.0
    %v1668 = vmax.f32 %v1532, 0.0
    %v1669 = vmax.f32 %v1537, 0.0
    %v1670 = vmax.f32 %v1542, 0.0
    %v1671 = vmax.f32 %v1547, 0.0
    %v1672 = vmax.f32 %v1552, 0.0
    %v1673 = vmax.f32 %v1557, 0.0
    %v1674 = vmax.f32 %v1562, 0.0
    %v1675 = vmax.f32 %v1567, 0.0
    %v1676 = vmax.f32 %v1572, 0.0
    %v1677 = vmax.f32 %v1577, 0.0
    %v1678 = vmax.f32 %v1582, 0.0
    %v1679 = vmax.f32 %v1587, 0.0
    %v1680 = vmax.f32 %v1592, 0.0
    %v1681 = vmax.f32 %v1597, 0.0
    %v1682 = vmax.f32 %v1602, 0.0
    %v1683 = vmax.f32 %v1607, 0.0
    %v1684 = vmax.f32 %v1612, 0.0
    %v1685 = vmax.f32 %v1617, 0.0
    %v1686 = vpack.c.bf16 %v1621, %v1620
    %v1687 = vpack.c.bf16 %v1623, %v1622
    %v1688 = vpack.c.bf16 %v1625, %v1624
    %v1689 = vpack.c.bf16 %v1627, %v1626
    %v1690 = vpack.c.bf16 %v1629, %v1628
    %v1691 = vpack.c.bf16 %v1631, %v1630
    %v1692 = vpack.c.bf16 %v1633, %v1632
    %v1693 = vpack.c.bf16 %v1635, %v1634
    %v1694 = vpack.c.bf16 %v1637, %v1636
    %v1695 = vpack.c.bf16 %v1639, %v1638
    %v1696 = vpack.c.bf16 %v1641, %v1640
    %v1697 = vpack.c.bf16 %v1643, %v1642
    %v1698 = vpack.c.bf16 %v1645, %v1644
    %v1699 = vpack.c.bf16 %v1647, %v1646
    %v1700 = vpack.c.bf16 %v1649, %v1648
    %v1701 = vpack.c.bf16 %v1651, %v1650
    %v1702 = vpack.c.bf16 %v1653, %v1652
    %v1703 = vpack.c.bf16 %v1655, %v1654
    %v1704 = vpack.c.bf16 %v1657, %v1656
    %v1705 = vpack.c.bf16 %v1659, %v1658
    %v1706 = vpack.c.bf16 %v1661, %v1660
    %v1707 = vpack.c.bf16 %v1663, %v1662
    %v1708 = vpack.c.bf16 %v1665, %v1664
    %v1709 = vpack.c.bf16 %v1667, %v1666
    %v1710 = vpack.c.bf16 %v1669, %v1668
    %v1711 = vpack.c.bf16 %v1671, %v1670
    %v1712 = vpack.c.bf16 %v1673, %v1672
    %v1713 = vpack.c.bf16 %v1675, %v1674
    %v1714 = vpack.c.bf16 %v1677, %v1676
    %v1715 = vpack.c.bf16 %v1679, %v1678
    %v1716 = vpack.c.bf16 %v1681, %v1680
    %v1717 = vpack.c.bf16 %v1683, %v1682
    %v1718 = vpack.c.bf16 %v1685, %v1684
    %v1719 = vld [vmem:[%s1] sm:$0xff]
    %v1720 = vld [vmem:[%s1 + $0x8] sm:$0xff]
    %v1721 = vld [vmem:[%s1 + $0x10] sm:$0xff]
    %v1722 = vld [vmem:[%s1 + $0x18] sm:$0xff]
    %v1723 = vld [vmem:[%s1 + $0x20] sm:$0xff]
    %v1724 = vld [vmem:[%s1 + $0x28] sm:$0xff]
    %v1725 = vld [vmem:[%s1 + $0x30] sm:$0xff]
    %v1726 = vld [vmem:[%s1 + $0x38] sm:$0xff]
    %v1727 = vld [vmem:[%s1 + $0x40] sm:$0xff]
    %v1728 = vld [vmem:[%s1 + $0x48] sm:$0xff]
    %v1729 = vld [vmem:[%s1 + $0x50] sm:$0xff]
    %v1730 = vld [vmem:[%s1 + $0x58] sm:$0xff]
    %v1731 = vld [vmem:[%s1 + $0x60] sm:$0xff]
    %v1732 = vld [vmem:[%s1 + $0x68] sm:$0xff]
    %v1733 = vld [vmem:[%s1 + $0x70] sm:$0xff]
    %v1734 = vld [vmem:[%s1 + $0x78] sm:$0xff]
    %v1735 = vld [vmem:[%s1 + $0x80] sm:$0xff]
    %v1736 = vld [vmem:[%s1 + $0x88] sm:$0xff]
    %v1737 = vld [vmem:[%s1 + $0x90] sm:$0xff]
    %v1738 = vld [vmem:[%s1 + $0x98] sm:$0xff]
    %v1739 = vld [vmem:[%s1 + $0xa0] sm:$0xff]
    %v1740 = vld [vmem:[%s1 + $0xa8] sm:$0xff]
    %v1741 = vld [vmem:[%s1 + $0xb0] sm:$0xff]
    %v1742 = vld [vmem:[%s1 + $0xb8] sm:$0xff]
    %v1743 = vld [vmem:[%s1 + $0xc0] sm:$0xff]
    %v1744 = vld [vmem:[%s1 + $0xc8] sm:$0xff]
    %v1745 = vld [vmem:[%s1 + $0xd0] sm:$0xff]
    %v1746 = vld [vmem:[%s1 + $0xd8] sm:$0xff]
    %v1747 = vld [vmem:[%s1 + $0xe0] sm:$0xff]
    %v1748 = vld [vmem:[%s1 + $0xe8] sm:$0xff]
    %v1749 = vld [vmem:[%s1 + $0xf0] sm:$0xff]
    %v1750 = vld [vmem:[%s1 + $0xf8] sm:$0xff]
    %v1751 = vld [vmem:[%s1 + $0x100] sm:$0xff]
    %v1752 = vld [vmem:[%s1 + $0x108] sm:$0xff]
    %v1753 = vld [vmem:[%s1 + $0x110] sm:$0xff]
    %v1754 = vld [vmem:[%s1 + $0x118] sm:$0xff]
    %v1755 = vld [vmem:[%s1 + $0x120] sm:$0xff]
    %v1756 = vld [vmem:[%s1 + $0x128] sm:$0xff]
    %v1757 = vld [vmem:[%s1 + $0x130] sm:$0xff]
    %v1758 = vld [vmem:[%s1 + $0x138] sm:$0xff]
    %v1759 = vld [vmem:[%s1 + $0x140] sm:$0xff]
    %v1760 = vld [vmem:[%s1 + $0x148] sm:$0xff]
    %v1761 = vld [vmem:[%s1 + $0x150] sm:$0xff]
    %v1762 = vld [vmem:[%s1 + $0x158] sm:$0xff]
    %v1763 = vld [vmem:[%s1 + $0x160] sm:$0xff]
    %v1764 = vld [vmem:[%s1 + $0x168] sm:$0xff]
    %v1765 = vld [vmem:[%s1 + $0x170] sm:$0xff]
    %v1766 = vld [vmem:[%s1 + $0x178] sm:$0xff]
    %v1767 = vld [vmem:[%s1 + $0x180] sm:$0xff]
    %v1768 = vld [vmem:[%s1 + $0x188] sm:$0xff]
    %v1769 = vld [vmem:[%s1 + $0x190] sm:$0xff]
    %v1770 = vld [vmem:[%s1 + $0x198] sm:$0xff]
    %v1771 = vld [vmem:[%s1 + $0x1a0] sm:$0xff]
    %v1772 = vld [vmem:[%s1 + $0x1a8] sm:$0xff]
    %v1773 = vld [vmem:[%s1 + $0x1b0] sm:$0xff]
    %v1774 = vld [vmem:[%s1 + $0x1b8] sm:$0xff]
    %v1775 = vld [vmem:[%s1 + $0x1c0] sm:$0xff]
    %v1776 = vld [vmem:[%s1 + $0x1c8] sm:$0xff]
    %v1777 = vld [vmem:[%s1 + $0x1d0] sm:$0xff]
    %v1778 = vld [vmem:[%s1 + $0x1d8] sm:$0xff]
    %v1779 = vld [vmem:[%s1 + $0x1e0] sm:$0xff]
    %v1780 = vld [vmem:[%s1 + $0x1e8] sm:$0xff]
    %v1781 = vld [vmem:[%s1 + $0x1f0] sm:$0xff]
    %v1782 = vld [vmem:[%s1 + $0x1f8] sm:$0xff]
    %v1783 = vld [vmem:[%s1 + $0x200] sm:$0xff]
    %v1784 = vld [vmem:[%s1 + $0x208] sm:$0xff]
    %v1785 = vld [vmem:[%s1 + $0x210] sm:$0xff]
    %v1786 = vld [vmem:[%s1 + $0x218] sm:$0xff]
    %v1787 = vld [vmem:[%s1 + $0x220] sm:$0xff]
    %v1788 = vld [vmem:[%s1 + $0x228] sm:$0xff]
    %v1789 = vld [vmem:[%s1 + $0x230] sm:$0xff]
    %v1790 = vld [vmem:[%s1 + $0x238] sm:$0xff]
    %v1791 = vld [vmem:[%s1 + $0x240] sm:$0xff]
    %v1792 = vld [vmem:[%s1 + $0x248] sm:$0xff]
    %v1793 = vld [vmem:[%s1 + $0x250] sm:$0xff]
    %v1794 = vld [vmem:[%s1 + $0x258] sm:$0xff]
    %v1795 = vld [vmem:[%s1 + $0x260] sm:$0xff]
    %v1796 = vld [vmem:[%s1 + $0x268] sm:$0xff]
    %v1797 = vld [vmem:[%s1 + $0x270] sm:$0xff]
    %v1798 = vld [vmem:[%s1 + $0x278] sm:$0xff]
    %v1799 = vld [vmem:[%s1 + $0x280] sm:$0xff]
    %v1800 = vld [vmem:[%s1 + $0x288] sm:$0xff]
    %v1801 = vld [vmem:[%s1 + $0x290] sm:$0xff]
    %v1802 = vld [vmem:[%s1 + $0x298] sm:$0xff]
    %v1803 = vld [vmem:[#allocation11] sm:$0xff]
    %v1804 = vld [vmem:[#allocation12] sm:$0x1]
    %v1806 = vlaneseq
    %v1807 = vshrl.u32 %v1806, 7
    %v1808 = vsub.s32 0, %v1807
    %v1809 = vrot.slane %v1804, %v1808
    %v1812 = vsel %vm351, %v1719, 0
    %v1815 = vsel %vm351, %v1720, 0
    %v1818 = vsel %vm351, %v1721, 0
    %v1821 = vsel %vm351, %v1722, 0
    %v1824 = vsel %vm351, %v1723, 0
    %v1827 = vsel %vm351, %v1724, 0
    %v1830 = vsel %vm351, %v1725, 0
    %v1833 = vsel %vm351, %v1726, 0
    %v1836 = vsel %vm351, %v1727, 0
    %v1839 = vsel %vm351, %v1728, 0
    %v1842 = vsel %vm351, %v1729, 0
    %v1845 = vsel %vm351, %v1730, 0
    %v1848 = vsel %vm351, %v1731, 0
    %v1851 = vsel %vm351, %v1732, 0
    %v1854 = vsel %vm351, %v1733, 0
    %v1857 = vsel %vm351, %v1734, 0
    %v1860 = vsel %vm351, %v1735, 0
    %v1863 = vsel %vm351, %v1736, 0
    %v1866 = vsel %vm351, %v1737, 0
    %v1869 = vsel %vm351, %v1738, 0
    %v1872 = vsel %vm351, %v1739, 0
    %v1875 = vsel %vm351, %v1740, 0
    %v1878 = vsel %vm351, %v1741, 0
    %v1881 = vsel %vm351, %v1742, 0
    %v1884 = vsel %vm351, %v1743, 0
    %v1887 = vsel %vm351, %v1744, 0
    %v1890 = vsel %vm351, %v1745, 0
    %v1893 = vsel %vm351, %v1746, 0
    %v1896 = vsel %vm351, %v1747, 0
    %v1899 = vsel %vm351, %v1748, 0
    %v1902 = vsel %vm351, %v1749, 0
    %v1905 = vsel %vm351, %v1750, 0
    %v1908 = vsel %vm351, %v1751, 0
    %v1911 = vsel %vm351, %v1752, 0
    %v1914 = vsel %vm351, %v1753, 0
    %v1917 = vsel %vm351, %v1754, 0
    %v1920 = vsel %vm351, %v1755, 0
    %v1923 = vsel %vm351, %v1756, 0
    %v1926 = vsel %vm351, %v1757, 0
    %v1929 = vsel %vm351, %v1758, 0
    %v1932 = vsel %vm351, %v1759, 0
    %v1935 = vsel %vm351, %v1760, 0
    %v1938 = vsel %vm351, %v1761, 0
    %v1941 = vsel %vm351, %v1762, 0
    %v1944 = vsel %vm351, %v1763, 0
    %v1947 = vsel %vm351, %v1764, 0
    %v1950 = vsel %vm351, %v1765, 0
    %v1953 = vsel %vm351, %v1766, 0
    %v1956 = vsel %vm351, %v1767, 0
    %v1959 = vsel %vm351, %v1768, 0
    %v1962 = vsel %vm351, %v1769, 0
    %v1965 = vsel %vm351, %v1770, 0
    %v1968 = vsel %vm351, %v1771, 0
    %v1971 = vsel %vm351, %v1772, 0
    %v1974 = vsel %vm351, %v1773, 0
    %v1977 = vsel %vm351, %v1774, 0
    %v1980 = vsel %vm351, %v1775, 0
    %v1983 = vsel %vm351, %v1776, 0
    %v1986 = vsel %vm351, %v1777, 0
    %v1989 = vsel %vm351, %v1778, 0
    %v1992 = vsel %vm351, %v1779, 0
    %v1995 = vsel %vm351, %v1780, 0
    %v1998 = vsel %vm351, %v1781, 0
    %v2001 = vsel %vm351, %v1782, 0
    %v2004 = vsel %vm351, %v1783, 0
    %v2007 = vsel %vm351, %v1784, 0
    %v2010 = vsel %vm351, %v1785, 0
    %v2013 = vsel %vm351, %v1786, 0
    %v2016 = vsel %vm351, %v1787, 0
    %v2019 = vsel %vm351, %v1788, 0
    %v2022 = vsel %vm351, %v1789, 0
    %v2025 = vsel %vm351, %v1790, 0
    %v2028 = vsel %vm351, %v1791, 0
    %v2031 = vsel %vm351, %v1792, 0
    %v2034 = vsel %vm351, %v1793, 0
    %v2037 = vsel %vm351, %v1794, 0
    %v2040 = vsel %vm351, %v1795, 0
    %v2043 = vsel %vm351, %v1796, 0
    %v2046 = vsel %vm351, %v1797, 0
    %v2049 = vsel %vm351, %v1798, 0
    %v2052 = vsel %vm351, %v1799, 0
    %v2055 = vsel %vm351, %v1800, 0
    %v2058 = vsel %vm351, %v1801, 0
    %v2061 = vsel %vm351, %v1802, 0
    %2063 = vmatprep.subr.mxu0 0.0
    %2064 = vmatpush1.msra.mxu0 %v1803
    %2065 = vmatprep.subr.mxu0 0.0
    %2066 = vmatpush1.msra.mxu0 0.0
    %2067 = vmatprep.subr.mxu0 0.0
    %2068 = vmatpush1.msra.mxu0 0.0
    %2069 = vmatprep.subr.mxu0 0.0
    %2070 = vmatpush1.msra.mxu0 0.0
    %2071 = vmatprep.subr.mxu0 0.0
    %2072 = vmatpush1.msra.mxu0 0.0
    %2073 = vmatprep.subr.mxu0 0.0
    %2074 = vmatpush1.msra.mxu0 0.0
    %2075 = vmatprep.subr.mxu0 0.0
    %2076 = vmatpush1.msra.mxu0 0.0
    %2077 = vmatprep.subr.mxu0 0.0
    %2078 = vmatpush1.msra.mxu0 0.0
    %2079 = vmatprep.subr.mxu0 0.0
    %2080 = vmatpush1.msra.mxu0 0.0
    %2081 = vmatprep.subr.mxu0 0.0
    %2082 = vmatpush1.msra.mxu0 0.0
    %2083 = vmatprep.subr.mxu0 0.0
    %2084 = vmatpush1.msra.mxu0 0.0
    %2085 = vmatprep.subr.mxu0 0.0
    %2086 = vmatpush1.msra.mxu0 0.0
    %2087 = vmatprep.subr.mxu0 0.0
    %2088 = vmatpush1.msra.mxu0 0.0
    %2089 = vmatprep.subr.mxu0 0.0
    %2090 = vmatpush1.msra.mxu0 0.0
    %2091 = vmatprep.subr.mxu0 0.0
    %2092 = vmatpush1.msra.mxu0 0.0
    %2093 = vmatprep.subr.mxu0 0.0
    %2094 = vmatpush1.msra.mxu0 0.0
    %2095 = vmatprep.subr.mxu0 0.0
    %2096 = vmatpush1.msra.mxu0 0.0
    %2097 = vmatprep.subr.mxu0 0.0
    %2098 = vmatpush1.msra.mxu0 0.0
    %2099 = vmatprep.subr.mxu0 0.0
    %2100 = vmatpush1.msra.mxu0 0.0
    %2101 = vmatprep.subr.mxu0 0.0
    %2102 = vmatpush1.msra.mxu0 0.0
    %2103 = vmatprep.subr.mxu0 0.0
    %2104 = vmatpush1.msra.mxu0 0.0
    %2105 = vmatprep.subr.mxu0 0.0
    %2106 = vmatpush1.msra.mxu0 0.0
    %2107 = vmatprep.subr.mxu0 0.0
    %2108 = vmatpush1.msra.mxu0 0.0
    %2109 = vmatprep.subr.mxu0 0.0
    %2110 = vmatpush1.msra.mxu0 0.0
    %2111 = vmatprep.subr.mxu0 0.0
    %2112 = vmatpush1.msra.mxu0 0.0
    %2113 = vmatprep.subr.mxu0 0.0
    %2114 = vmatpush1.msra.mxu0 0.0
    %2115 = vmatprep.subr.mxu0 0.0
    %2116 = vmatpush1.msra.mxu0 0.0
    %2117 = vmatprep.subr.mxu0 0.0
    %2118 = vmatpush1.msra.mxu0 0.0
    %2119 = vmatprep.subr.mxu0 0.0
    %2120 = vmatpush1.msra.mxu0 0.0
    %2121 = vmatprep.subr.mxu0 0.0
    %2122 = vmatpush1.msra.mxu0 0.0
    %2123 = vmatprep.subr.mxu0 0.0
    %2124 = vmatpush1.msra.mxu0 0.0
    %2125 = vmatprep.subr.mxu0 0.0
    %2126 = vmatpush1.msra.mxu0 0.0
    %2127 = vmatprep.mubr.f32.mxu0 0.0
    %2128 = vmatmul.mubr.f32.gmra.mrb[0].mxu0 %v1812
    %v2129 = vpop.f32.mrb[0].mxu0
    %v2130 = vadd.f32 %v1809, %v2129
    %v2131 = vpop.f32.mrb[0].mxu0
    %2132 = vmatprep.mubr.f32.mxu0 0.0
    %2133 = vmatmul.mubr.f32.gmra.mrb[0].mxu0 %v1815
    %v2134 = vpop.f32.mrb[0].mxu0
    %v2135 = vadd.f32 %v1809, %v2134
    %v2136 = vpop.f32.mrb[0].mxu0
    %2137 = vmatprep.mubr.f32.mxu0 0.0
    %2138 = vmatmul.mubr.f32.gmra.mrb[0].mxu0 %v1818
    %v2139 = vpop.f32.mrb[0].mxu0
    %v2140 = vadd.f32 %v1809, %v2139
    %v2141 = vpop.f32.mrb[0].mxu0
    %2142 = vmatprep.mubr.f32.mxu0 0.0
    %2143 = vmatmul.mubr.f32.gmra.mrb[0].mxu0 %v1821
    %v2144 = vpop.f32.mrb[0].mxu0
    %v2145 = vadd.f32 %v1809, %v2144
    %v2146 = vpop.f32.mrb[0].mxu0
    %2147 = vmatprep.mubr.f32.mxu0 0.0
    %2148 = vmatmul.mubr.f32.gmra.mrb[0].mxu0 %v1824
    %v2149 = vpop.f32.mrb[0].mxu0
    %v2150 = vadd.f32 %v1809, %v2149
    %v2151 = vpop.f32.mrb[0].mxu0
    %2152 = vmatprep.mubr.f32.mxu0 0.0
    %2153 = vmatmul.mubr.f32.gmra.mrb[0].mxu0 %v1827
    %v2154 = vpop.f32.mrb[0].mxu0
    %v2155 = vadd.f32 %v1809, %v2154
    %v2156 = vpop.f32.mrb[0].mxu0
    %2157 = vmatprep.mubr.f32.mxu0 0.0
    %2158 = vmatmul.mubr.f32.gmra.mrb[0].mxu0 %v1830
    %v2159 = vpop.f32.mrb[0].mxu0
    %v2160 = vadd.f32 %v1809, %v2159
    %v2161 = vpop.f32.mrb[0].mxu0
    %2162 = vmatprep.mubr.f32.mxu0 0.0
    %2163 = vmatmul.mubr.f32.gmra.mrb[0].mxu0 %v1833
    %v2164 = vpop.f32.mrb[0].mxu0
    %v2165 = vadd.f32 %v1809, %v2164
    %v2166 = vpop.f32.mrb[0].mxu0
    %2167 = vmatprep.mubr.f32.mxu0 0.0
    %2168 = vmatmul.mubr.f32.gmra.mrb[0].mxu0 %v1836
    %v2169 = vpop.f32.mrb[0].mxu0
    %v2170 = vadd.f32 %v1809, %v2169
    %v2171 = vpop.f32.mrb[0].mxu0
    %2172 = vmatprep.mubr.f32.mxu0 0.0
    %2173 = vmatmul.mubr.f32.gmra.mrb[0].mxu0 %v1839
    %v2174 = vpop.f32.mrb[0].mxu0
    %v2175 = vadd.f32 %v1809, %v2174
    %v2176 = vpop.f32.mrb[0].mxu0
    %2177 = vmatprep.mubr.f32.mxu0 0.0
    %2178 = vmatmul.mubr.f32.gmra.mrb[0].mxu0 %v1842
    %v2179 = vpop.f32.mrb[0].mxu0
    %v2180 = vadd.f32 %v1809, %v2179
    %v2181 = vpop.f32.mrb[0].mxu0
    %2182 = vmatprep.mubr.f32.mxu0 0.0
    %2183 = vmatmul.mubr.f32.gmra.mrb[0].mxu0 %v1845
    %v2184 = vpop.f32.mrb[0].mxu0
    %v2185 = vadd.f32 %v1809, %v2184
    %v2186 = vpop.f32.mrb[0].mxu0
    %2187 = vmatprep.mubr.f32.mxu0 0.0
    %2188 = vmatmul.mubr.f32.gmra.mrb[0].mxu0 %v1848
    %v2189 = vpop.f32.mrb[0].mxu0
    %v2190 = vadd.f32 %v1809, %v2189
    %v2191 = vpop.f32.mrb[0].mxu0
    %2192 = vmatprep.mubr.f32.mxu0 0.0
    %2193 = vmatmul.mubr.f32.gmra.mrb[0].mxu0 %v1851
    %v2194 = vpop.f32.mrb[0].mxu0
    %v2195 = vadd.f32 %v1809, %v2194
    %v2196 = vpop.f32.mrb[0].mxu0
    %2197 = vmatprep.mubr.f32.mxu0 0.0
    %2198 = vmatmul.mubr.f32.gmra.mrb[0].mxu0 %v1854
    %v2199 = vpop.f32.mrb[0].mxu0
    %v2200 = vadd.f32 %v1809, %v2199
    %v2201 = vpop.f32.mrb[0].mxu0
    %2202 = vmatprep.mubr.f32.mxu0 0.0
    %2203 = vmatmul.mubr.f32.gmra.mrb[0].mxu0 %v1857
    %v2204 = vpop.f32.mrb[0].mxu0
    %v2205 = vadd.f32 %v1809, %v2204
    %v2206 = vpop.f32.mrb[0].mxu0
    %2207 = vmatprep.mubr.f32.mxu0 0.0
    %2208 = vmatmul.mubr.f32.gmra.mrb[0].mxu0 %v1860
    %v2209 = vpop.f32.mrb[0].mxu0
    %v2210 = vadd.f32 %v1809, %v2209
    %v2211 = vpop.f32.mrb[0].mxu0
    %2212 = vmatprep.mubr.f32.mxu0 0.0
    %2213 = vmatmul.mubr.f32.gmra.mrb[0].mxu0 %v1863
    %v2214 = vpop.f32.mrb[0].mxu0
    %v2215 = vadd.f32 %v1809, %v2214
    %v2216 = vpop.f32.mrb[0].mxu0
    %2217 = vmatprep.mubr.f32.mxu0 0.0
    %2218 = vmatmul.mubr.f32.gmra.mrb[0].mxu0 %v1866
    %v2219 = vpop.f32.mrb[0].mxu0
    %v2220 = vadd.f32 %v1809, %v2219
    %v2221 = vpop.f32.mrb[0].mxu0
    %2222 = vmatprep.mubr.f32.mxu0 0.0
    %2223 = vmatmul.mubr.f32.gmra.mrb[0].mxu0 %v1869
    %v2224 = vpop.f32.mrb[0].mxu0
    %v2225 = vadd.f32 %v1809, %v2224
    %v2226 = vpop.f32.mrb[0].mxu0
    %2227 = vmatprep.mubr.f32.mxu0 0.0
    %2228 = vmatmul.mubr.f32.gmra.mrb[0].mxu0 %v1872
    %v2229 = vpop.f32.mrb[0].mxu0
    %v2230 = vadd.f32 %v1809, %v2229
    %v2231 = vpop.f32.mrb[0].mxu0
    %2232 = vmatprep.mubr.f32.mxu0 0.0
    %2233 = vmatmul.mubr.f32.gmra.mrb[0].mxu0 %v1875
    %v2234 = vpop.f32.mrb[0].mxu0
    %v2235 = vadd.f32 %v1809, %v2234
    %v2236 = vpop.f32.mrb[0].mxu0
    %2237 = vmatprep.mubr.f32.mxu0 0.0
    %2238 = vmatmul.mubr.f32.gmra.mrb[0].mxu0 %v1878
    %v2239 = vpop.f32.mrb[0].mxu0
    %v2240 = vadd.f32 %v1809, %v2239
    %v2241 = vpop.f32.mrb[0].mxu0
    %2242 = vmatprep.mubr.f32.mxu0 0.0
    %2243 = vmatmul.mubr.f32.gmra.mrb[0].mxu0 %v1881
    %v2244 = vpop.f32.mrb[0].mxu0
    %v2245 = vadd.f32 %v1809, %v2244
    %v2246 = vpop.f32.mrb[0].mxu0
    %2247 = vmatprep.mubr.f32.mxu0 0.0
    %2248 = vmatmul.mubr.f32.gmra.mrb[0].mxu0 %v1884
    %v2249 = vpop.f32.mrb[0].mxu0
    %v2250 = vadd.f32 %v1809, %v2249
    %v2251 = vpop.f32.mrb[0].mxu0
    %2252 = vmatprep.mubr.f32.mxu0 0.0
    %2253 = vmatmul.mubr.f32.gmra.mrb[0].mxu0 %v1887
    %v2254 = vpop.f32.mrb[0].mxu0
    %v2255 = vadd.f32 %v1809, %v2254
    %v2256 = vpop.f32.mrb[0].mxu0
    %2257 = vmatprep.mubr.f32.mxu0 0.0
    %2258 = vmatmul.mubr.f32.gmra.mrb[0].mxu0 %v1890
    %v2259 = vpop.f32.mrb[0].mxu0
    %v2260 = vadd.f32 %v1809, %v2259
    %v2261 = vpop.f32.mrb[0].mxu0
    %2262 = vmatprep.mubr.f32.mxu0 0.0
    %2263 = vmatmul.mubr.f32.gmra.mrb[0].mxu0 %v1893
    %v2264 = vpop.f32.mrb[0].mxu0
    %v2265 = vadd.f32 %v1809, %v2264
    %v2266 = vpop.f32.mrb[0].mxu0
    %2267 = vmatprep.mubr.f32.mxu0 0.0
    %2268 = vmatmul.mubr.f32.gmra.mrb[0].mxu0 %v1896
    %v2269 = vpop.f32.mrb[0].mxu0
    %v2270 = vadd.f32 %v1809, %v2269
    %v2271 = vpop.f32.mrb[0].mxu0
    %2272 = vmatprep.mubr.f32.mxu0 0.0
    %2273 = vmatmul.mubr.f32.gmra.mrb[0].mxu0 %v1899
    %v2274 = vpop.f32.mrb[0].mxu0
    %v2275 = vadd.f32 %v1809, %v2274
    %v2276 = vpop.f32.mrb[0].mxu0
    %2277 = vmatprep.mubr.f32.mxu0 0.0
    %2278 = vmatmul.mubr.f32.gmra.mrb[0].mxu0 %v1902
    %v2279 = vpop.f32.mrb[0].mxu0
    %v2280 = vadd.f32 %v1809, %v2279
    %v2281 = vpop.f32.mrb[0].mxu0
    %2282 = vmatprep.mubr.f32.mxu0 0.0
    %2283 = vmatmul.mubr.f32.gmra.mrb[0].mxu0 %v1905
    %v2284 = vpop.f32.mrb[0].mxu0
    %v2285 = vadd.f32 %v1809, %v2284
    %v2286 = vpop.f32.mrb[0].mxu0
    %2287 = vmatprep.mubr.f32.mxu0 0.0
    %2288 = vmatmul.mubr.f32.gmra.mrb[0].mxu0 %v1908
    %v2289 = vpop.f32.mrb[0].mxu0
    %v2290 = vadd.f32 %v1809, %v2289
    %v2291 = vpop.f32.mrb[0].mxu0
    %2292 = vmatprep.mubr.f32.mxu0 0.0
    %2293 = vmatmul.mubr.f32.gmra.mrb[0].mxu0 %v1911
    %v2294 = vpop.f32.mrb[0].mxu0
    %v2295 = vadd.f32 %v1809, %v2294
    %v2296 = vpop.f32.mrb[0].mxu0
    %2297 = vmatprep.mubr.f32.mxu0 0.0
    %2298 = vmatmul.mubr.f32.gmra.mrb[0].mxu0 %v1914
    %v2299 = vpop.f32.mrb[0].mxu0
    %v2300 = vadd.f32 %v1809, %v2299
    %v2301 = vpop.f32.mrb[0].mxu0
    %2302 = vmatprep.mubr.f32.mxu0 0.0
    %2303 = vmatmul.mubr.f32.gmra.mrb[0].mxu0 %v1917
    %v2304 = vpop.f32.mrb[0].mxu0
    %v2305 = vadd.f32 %v1809, %v2304
    %v2306 = vpop.f32.mrb[0].mxu0
    %2307 = vmatprep.mubr.f32.mxu0 0.0
    %2308 = vmatmul.mubr.f32.gmra.mrb[0].mxu0 %v1920
    %v2309 = vpop.f32.mrb[0].mxu0
    %v2310 = vadd.f32 %v1809, %v2309
    %v2311 = vpop.f32.mrb[0].mxu0
    %2312 = vmatprep.mubr.f32.mxu0 0.0
    %2313 = vmatmul.mubr.f32.gmra.mrb[0].mxu0 %v1923
    %v2314 = vpop.f32.mrb[0].mxu0
    %v2315 = vadd.f32 %v1809, %v2314
    %v2316 = vpop.f32.mrb[0].mxu0
    %2317 = vmatprep.mubr.f32.mxu0 0.0
    %2318 = vmatmul.mubr.f32.gmra.mrb[0].mxu0 %v1926
    %v2319 = vpop.f32.mrb[0].mxu0
    %v2320 = vadd.f32 %v1809, %v2319
    %v2321 = vpop.f32.mrb[0].mxu0
    %2322 = vmatprep.mubr.f32.mxu0 0.0
    %2323 = vmatmul.mubr.f32.gmra.mrb[0].mxu0 %v1929
    %v2324 = vpop.f32.mrb[0].mxu0
    %v2325 = vadd.f32 %v1809, %v2324
    %v2326 = vpop.f32.mrb[0].mxu0
    %2327 = vmatprep.mubr.f32.mxu0 0.0
    %2328 = vmatmul.mubr.f32.gmra.mrb[0].mxu0 %v1932
    %v2329 = vpop.f32.mrb[0].mxu0
    %v2330 = vadd.f32 %v1809, %v2329
    %v2331 = vpop.f32.mrb[0].mxu0
    %2332 = vmatprep.mubr.f32.mxu0 0.0
    %2333 = vmatmul.mubr.f32.gmra.mrb[0].mxu0 %v1935
    %v2334 = vpop.f32.mrb[0].mxu0
    %v2335 = vadd.f32 %v1809, %v2334
    %v2336 = vpop.f32.mrb[0].mxu0
    %2337 = vmatprep.mubr.f32.mxu0 0.0
    %2338 = vmatmul.mubr.f32.gmra.mrb[0].mxu0 %v1938
    %v2339 = vpop.f32.mrb[0].mxu0
    %v2340 = vadd.f32 %v1809, %v2339
    %v2341 = vpop.f32.mrb[0].mxu0
    %2342 = vmatprep.mubr.f32.mxu0 0.0
    %2343 = vmatmul.mubr.f32.gmra.mrb[0].mxu0 %v1941
    %v2344 = vpop.f32.mrb[0].mxu0
    %v2345 = vadd.f32 %v1809, %v2344
    %v2346 = vpop.f32.mrb[0].mxu0
    %2347 = vmatprep.mubr.f32.mxu0 0.0
    %2348 = vmatmul.mubr.f32.gmra.mrb[0].mxu0 %v1944
    %v2349 = vpop.f32.mrb[0].mxu0
    %v2350 = vadd.f32 %v1809, %v2349
    %v2351 = vpop.f32.mrb[0].mxu0
    %2352 = vmatprep.mubr.f32.mxu0 0.0
    %2353 = vmatmul.mubr.f32.gmra.mrb[0].mxu0 %v1947
    %v2354 = vpop.f32.mrb[0].mxu0
    %v2355 = vadd.f32 %v1809, %v2354
    %v2356 = vpop.f32.mrb[0].mxu0
    %2357 = vmatprep.mubr.f32.mxu0 0.0
    %2358 = vmatmul.mubr.f32.gmra.mrb[0].mxu0 %v1950
    %v2359 = vpop.f32.mrb[0].mxu0
    %v2360 = vadd.f32 %v1809, %v2359
    %v2361 = vpop.f32.mrb[0].mxu0
    %2362 = vmatprep.mubr.f32.mxu0 0.0
    %2363 = vmatmul.mubr.f32.gmra.mrb[0].mxu0 %v1953
    %v2364 = vpop.f32.mrb[0].mxu0
    %v2365 = vadd.f32 %v1809, %v2364
    %v2366 = vpop.f32.mrb[0].mxu0
    %2367 = vmatprep.mubr.f32.mxu0 0.0
    %2368 = vmatmul.mubr.f32.gmra.mrb[0].mxu0 %v1956
    %v2369 = vpop.f32.mrb[0].mxu0
    %v2370 = vadd.f32 %v1809, %v2369
    %v2371 = vpop.f32.mrb[0].mxu0
    %2372 = vmatprep.mubr.f32.mxu0 0.0
    %2373 = vmatmul.mubr.f32.gmra.mrb[0].mxu0 %v1959
    %v2374 = vpop.f32.mrb[0].mxu0
    %v2375 = vadd.f32 %v1809, %v2374
    %v2376 = vpop.f32.mrb[0].mxu0
    %2377 = vmatprep.mubr.f32.mxu0 0.0
    %2378 = vmatmul.mubr.f32.gmra.mrb[0].mxu0 %v1962
    %v2379 = vpop.f32.mrb[0].mxu0
    %v2380 = vadd.f32 %v1809, %v2379
    %v2381 = vpop.f32.mrb[0].mxu0
    %2382 = vmatprep.mubr.f32.mxu0 0.0
    %2383 = vmatmul.mubr.f32.gmra.mrb[0].mxu0 %v1965
    %v2384 = vpop.f32.mrb[0].mxu0
    %v2385 = vadd.f32 %v1809, %v2384
    %v2386 = vpop.f32.mrb[0].mxu0
    %2387 = vmatprep.mubr.f32.mxu0 0.0
    %2388 = vmatmul.mubr.f32.gmra.mrb[0].mxu0 %v1968
    %v2389 = vpop.f32.mrb[0].mxu0
    %v2390 = vadd.f32 %v1809, %v2389
    %v2391 = vpop.f32.mrb[0].mxu0
    %2392 = vmatprep.mubr.f32.mxu0 0.0
    %2393 = vmatmul.mubr.f32.gmra.mrb[0].mxu0 %v1971
    %v2394 = vpop.f32.mrb[0].mxu0
    %v2395 = vadd.f32 %v1809, %v2394
    %v2396 = vpop.f32.mrb[0].mxu0
    %2397 = vmatprep.mubr.f32.mxu0 0.0
    %2398 = vmatmul.mubr.f32.gmra.mrb[0].mxu0 %v1974
    %v2399 = vpop.f32.mrb[0].mxu0
    %v2400 = vadd.f32 %v1809, %v2399
    %v2401 = vpop.f32.mrb[0].mxu0
    %2402 = vmatprep.mubr.f32.mxu0 0.0
    %2403 = vmatmul.mubr.f32.gmra.mrb[0].mxu0 %v1977
    %v2404 = vpop.f32.mrb[0].mxu0
    %v2405 = vadd.f32 %v1809, %v2404
    %v2406 = vpop.f32.mrb[0].mxu0
    %2407 = vmatprep.mubr.f32.mxu0 0.0
    %2408 = vmatmul.mubr.f32.gmra.mrb[0].mxu0 %v1980
    %v2409 = vpop.f32.mrb[0].mxu0
    %v2410 = vadd.f32 %v1809, %v2409
    %v2411 = vpop.f32.mrb[0].mxu0
    %2412 = vmatprep.mubr.f32.mxu0 0.0
    %2413 = vmatmul.mubr.f32.gmra.mrb[0].mxu0 %v1983
    %v2414 = vpop.f32.mrb[0].mxu0
    %v2415 = vadd.f32 %v1809, %v2414
    %v2416 = vpop.f32.mrb[0].mxu0
    %2417 = vmatprep.mubr.f32.mxu0 0.0
    %2418 = vmatmul.mubr.f32.gmra.mrb[0].mxu0 %v1986
    %v2419 = vpop.f32.mrb[0].mxu0
    %v2420 = vadd.f32 %v1809, %v2419
    %v2421 = vpop.f32.mrb[0].mxu0
    %2422 = vmatprep.mubr.f32.mxu0 0.0
    %2423 = vmatmul.mubr.f32.gmra.mrb[0].mxu0 %v1989
    %v2424 = vpop.f32.mrb[0].mxu0
    %v2425 = vadd.f32 %v1809, %v2424
    %v2426 = vpop.f32.mrb[0].mxu0
    %2427 = vmatprep.mubr.f32.mxu0 0.0
    %2428 = vmatmul.mubr.f32.gmra.mrb[0].mxu0 %v1992
    %v2429 = vpop.f32.mrb[0].mxu0
    %v2430 = vadd.f32 %v1809, %v2429
    %v2431 = vpop.f32.mrb[0].mxu0
    %2432 = vmatprep.mubr.f32.mxu0 0.0
    %2433 = vmatmul.mubr.f32.gmra.mrb[0].mxu0 %v1995
    %v2434 = vpop.f32.mrb[0].mxu0
    %v2435 = vadd.f32 %v1809, %v2434
    %v2436 = vpop.f32.mrb[0].mxu0
    %2437 = vmatprep.mubr.f32.mxu0 0.0
    %2438 = vmatmul.mubr.f32.gmra.mrb[0].mxu0 %v1998
    %v2439 = vpop.f32.mrb[0].mxu0
    %v2440 = vadd.f32 %v1809, %v2439
    %v2441 = vpop.f32.mrb[0].mxu0
    %2442 = vmatprep.mubr.f32.mxu0 0.0
    %2443 = vmatmul.mubr.f32.gmra.mrb[0].mxu0 %v2001
    %v2444 = vpop.f32.mrb[0].mxu0
    %v2445 = vadd.f32 %v1809, %v2444
    %v2446 = vpop.f32.mrb[0].mxu0
    %2447 = vmatprep.mubr.f32.mxu0 0.0
    %2448 = vmatmul.mubr.f32.gmra.mrb[0].mxu0 %v2004
    %v2449 = vpop.f32.mrb[0].mxu0
    %v2450 = vadd.f32 %v1809, %v2449
    %v2451 = vpop.f32.mrb[0].mxu0
    %2452 = vmatprep.mubr.f32.mxu0 0.0
    %2453 = vmatmul.mubr.f32.gmra.mrb[0].mxu0 %v2007
    %v2454 = vpop.f32.mrb[0].mxu0
    %v2455 = vadd.f32 %v1809, %v2454
    %v2456 = vpop.f32.mrb[0].mxu0
    %2457 = vmatprep.mubr.f32.mxu0 0.0
    %2458 = vmatmul.mubr.f32.gmra.mrb[0].mxu0 %v2010
    %v2459 = vpop.f32.mrb[0].mxu0
    %v2460 = vadd.f32 %v1809, %v2459
    %v2461 = vpop.f32.mrb[0].mxu0
    %2462 = vmatprep.mubr.f32.mxu0 0.0
    %2463 = vmatmul.mubr.f32.gmra.mrb[0].mxu0 %v2013
    %v2464 = vpop.f32.mrb[0].mxu0
    %v2465 = vadd.f32 %v1809, %v2464
    %v2466 = vpop.f32.mrb[0].mxu0
    %2467 = vmatprep.mubr.f32.mxu0 0.0
    %2468 = vmatmul.mubr.f32.gmra.mrb[0].mxu0 %v2016
    %v2469 = vpop.f32.mrb[0].mxu0
    %v2470 = vadd.f32 %v1809, %v2469
    %v2471 = vpop.f32.mrb[0].mxu0
    %2472 = vmatprep.mubr.f32.mxu0 0.0
    %2473 = vmatmul.mubr.f32.gmra.mrb[0].mxu0 %v2019
    %v2474 = vpop.f32.mrb[0].mxu0
    %v2475 = vadd.f32 %v1809, %v2474
    %v2476 = vpop.f32.mrb[0].mxu0
    %2477 = vmatprep.mubr.f32.mxu0 0.0
    %2478 = vmatmul.mubr.f32.gmra.mrb[0].mxu0 %v2022
    %v2479 = vpop.f32.mrb[0].mxu0
    %v2480 = vadd.f32 %v1809, %v2479
    %v2481 = vpop.f32.mrb[0].mxu0
    %2482 = vmatprep.mubr.f32.mxu0 0.0
    %2483 = vmatmul.mubr.f32.gmra.mrb[0].mxu0 %v2025
    %v2484 = vpop.f32.mrb[0].mxu0
    %v2485 = vadd.f32 %v1809, %v2484
    %v2486 = vpop.f32.mrb[0].mxu0
    %2487 = vmatprep.mubr.f32.mxu0 0.0
    %2488 = vmatmul.mubr.f32.gmra.mrb[0].mxu0 %v2028
    %v2489 = vpop.f32.mrb[0].mxu0
    %v2490 = vadd.f32 %v1809, %v2489
    %v2491 = vpop.f32.mrb[0].mxu0
    %2492 = vmatprep.mubr.f32.mxu0 0.0
    %2493 = vmatmul.mubr.f32.gmra.mrb[0].mxu0 %v2031
    %v2494 = vpop.f32.mrb[0].mxu0
    %v2495 = vadd.f32 %v1809, %v2494
    %v2496 = vpop.f32.mrb[0].mxu0
    %2497 = vmatprep.mubr.f32.mxu0 0.0
    %2498 = vmatmul.mubr.f32.gmra.mrb[0].mxu0 %v2034
    %v2499 = vpop.f32.mrb[0].mxu0
    %v2500 = vadd.f32 %v1809, %v2499
    %v2501 = vpop.f32.mrb[0].mxu0
    %2502 = vmatprep.mubr.f32.mxu0 0.0
    %2503 = vmatmul.mubr.f32.gmra.mrb[0].mxu0 %v2037
    %v2504 = vpop.f32.mrb[0].mxu0
    %v2505 = vadd.f32 %v1809, %v2504
    %v2506 = vpop.f32.mrb[0].mxu0
    %2507 = vmatprep.mubr.f32.mxu0 0.0
    %2508 = vmatmul.mubr.f32.gmra.mrb[0].mxu0 %v2040
    %v2509 = vpop.f32.mrb[0].mxu0
    %v2510 = vadd.f32 %v1809, %v2509
    %v2511 = vpop.f32.mrb[0].mxu0
    %2512 = vmatprep.mubr.f32.mxu0 0.0
    %2513 = vmatmul.mubr.f32.gmra.mrb[0].mxu0 %v2043
    %v2514 = vpop.f32.mrb[0].mxu0
    %v2515 = vadd.f32 %v1809, %v2514
    %v2516 = vpop.f32.mrb[0].mxu0
    %2517 = vmatprep.mubr.f32.mxu0 0.0
    %2518 = vmatmul.mubr.f32.gmra.mrb[0].mxu0 %v2046
    %v2519 = vpop.f32.mrb[0].mxu0
    %v2520 = vadd.f32 %v1809, %v2519
    %v2521 = vpop.f32.mrb[0].mxu0
    %2522 = vmatprep.mubr.f32.mxu0 0.0
    %2523 = vmatmul.mubr.f32.gmra.mrb[0].mxu0 %v2049
    %v2524 = vpop.f32.mrb[0].mxu0
    %v2525 = vadd.f32 %v1809, %v2524
    %v2526 = vpop.f32.mrb[0].mxu0
    %2527 = vmatprep.mubr.f32.mxu0 0.0
    %2528 = vmatmul.mubr.f32.gmra.mrb[0].mxu0 %v2052
    %v2529 = vpop.f32.mrb[0].mxu0
    %v2530 = vadd.f32 %v1809, %v2529
    %v2531 = vpop.f32.mrb[0].mxu0
    %2532 = vmatprep.mubr.f32.mxu0 0.0
    %2533 = vmatmul.mubr.f32.gmra.mrb[0].mxu0 %v2055
    %v2534 = vpop.f32.mrb[0].mxu0
    %v2535 = vadd.f32 %v1809, %v2534
    %v2536 = vpop.f32.mrb[0].mxu0
    %2537 = vmatprep.mubr.f32.mxu0 0.0
    %2538 = vmatmul.mubr.f32.gmra.mrb[0].mxu0 %v2058
    %v2539 = vpop.f32.mrb[0].mxu0
    %v2540 = vadd.f32 %v1809, %v2539
    %v2541 = vpop.f32.mrb[0].mxu0
    %2542 = vmatprep.mubr.f32.mxu0 0.0
    %2543 = vmatmul.mubr.f32.gmra.mrb[0].mxu0 %v2061
    %v2544 = vpop.f32.mrb[0].mxu0
    %v2545 = vadd.f32 %v1809, %v2544
    %v2546 = vpop.f32.mrb[0].mxu0
    %2547 = vdwg.mxu0
    %v2548 = vmax.f32 %v2130, 0.0
    %v2549 = vmax.f32 %v2135, 0.0
    %v2550 = vmax.f32 %v2140, 0.0
    %v2551 = vmax.f32 %v2145, 0.0
    %v2552 = vmax.f32 %v2150, 0.0
    %v2553 = vmax.f32 %v2155, 0.0
    %v2554 = vmax.f32 %v2160, 0.0
    %v2555 = vmax.f32 %v2165, 0.0
    %v2556 = vmax.f32 %v2170, 0.0
    %v2557 = vmax.f32 %v2175, 0.0
    %v2558 = vmax.f32 %v2180, 0.0
    %v2559 = vmax.f32 %v2185, 0.0
    %v2560 = vmax.f32 %v2190, 0.0
    %v2561 = vmax.f32 %v2195, 0.0
    %v2562 = vmax.f32 %v2200, 0.0
    %v2563 = vmax.f32 %v2205, 0.0
    %v2564 = vmax.f32 %v2210, 0.0
    %v2565 = vmax.f32 %v2215, 0.0
    %v2566 = vmax.f32 %v2220, 0.0
    %v2567 = vmax.f32 %v2225, 0.0
    %v2568 = vmax.f32 %v2230, 0.0
    %v2569 = vmax.f32 %v2235, 0.0
    %v2570 = vmax.f32 %v2240, 0.0
    %v2571 = vmax.f32 %v2245, 0.0
    %v2572 = vmax.f32 %v2250, 0.0
    %v2573 = vmax.f32 %v2255, 0.0
    %v2574 = vmax.f32 %v2260, 0.0
    %v2575 = vmax.f32 %v2265, 0.0
    %v2576 = vmax.f32 %v2270, 0.0
    %v2577 = vmax.f32 %v2275, 0.0
    %v2578 = vmax.f32 %v2280, 0.0
    %v2579 = vmax.f32 %v2285, 0.0
    %v2580 = vmax.f32 %v2290, 0.0
    %v2581 = vmax.f32 %v2295, 0.0
    %v2582 = vmax.f32 %v2300, 0.0
    %v2583 = vmax.f32 %v2305, 0.0
    %v2584 = vmax.f32 %v2310, 0.0
    %v2585 = vmax.f32 %v2315, 0.0
    %v2586 = vmax.f32 %v2320, 0.0
    %v2587 = vmax.f32 %v2325, 0.0
    %v2588 = vmax.f32 %v2330, 0.0
    %v2589 = vmax.f32 %v2335, 0.0
    %v2590 = vmax.f32 %v2340, 0.0
    %v2591 = vmax.f32 %v2345, 0.0
    %v2592 = vmax.f32 %v2350, 0.0
    %v2593 = vmax.f32 %v2355, 0.0
    %v2594 = vmax.f32 %v2360, 0.0
    %v2595 = vmax.f32 %v2365, 0.0
    %v2596 = vmax.f32 %v2370, 0.0
    %v2597 = vmax.f32 %v2375, 0.0
    %v2598 = vmax.f32 %v2380, 0.0
    %v2599 = vmax.f32 %v2385, 0.0
    %v2600 = vmax.f32 %v2390, 0.0
    %v2601 = vmax.f32 %v2395, 0.0
    %v2602 = vmax.f32 %v2400, 0.0
    %v2603 = vmax.f32 %v2405, 0.0
    %v2604 = vmax.f32 %v2410, 0.0
    %v2605 = vmax.f32 %v2415, 0.0
    %v2606 = vmax.f32 %v2420, 0.0
    %v2607 = vmax.f32 %v2425, 0.0
    %v2608 = vmax.f32 %v2430, 0.0
    %v2609 = vmax.f32 %v2435, 0.0
    %v2610 = vmax.f32 %v2440, 0.0
    %v2611 = vmax.f32 %v2445, 0.0
    %v2612 = vmax.f32 %v2450, 0.0
    %v2613 = vmax.f32 %v2455, 0.0
    %v2614 = vmax.f32 %v2460, 0.0
    %v2615 = vmax.f32 %v2465, 0.0
    %v2616 = vmax.f32 %v2470, 0.0
    %v2617 = vmax.f32 %v2475, 0.0
    %v2618 = vmax.f32 %v2480, 0.0
    %v2619 = vmax.f32 %v2485, 0.0
    %v2620 = vmax.f32 %v2490, 0.0
    %v2621 = vmax.f32 %v2495, 0.0
    %v2622 = vmax.f32 %v2500, 0.0
    %v2623 = vmax.f32 %v2505, 0.0
    %v2624 = vmax.f32 %v2510, 0.0
    %v2625 = vmax.f32 %v2515, 0.0
    %v2626 = vmax.f32 %v2520, 0.0
    %v2627 = vmax.f32 %v2525, 0.0
    %v2628 = vmax.f32 %v2530, 0.0
    %v2629 = vmax.f32 %v2535, 0.0
    %v2630 = vmax.f32 %v2540, 0.0
    %v2631 = vmax.f32 %v2545, 0.0
    %v2632 = vld [vmem:[#allocation14] sm:$0xff]
    %v2633 = vld [vmem:[#allocation14 + $0x8] sm:$0xff]
    %v2634 = vld [vmem:[#allocation14 + $0x10] sm:$0xff]
    %v2635 = vld [vmem:[#allocation14 + $0x18] sm:$0xff]
    %v2636 = vld [vmem:[#allocation14 + $0x20] sm:$0xff]
    %v2637 = vld [vmem:[#allocation14 + $0x28] sm:$0xff]
    %v2638 = vld [vmem:[#allocation14 + $0x30] sm:$0xff]
    %v2639 = vld [vmem:[#allocation14 + $0x38] sm:$0xff]
    %v2640 = vld [vmem:[#allocation15] sm:$0x1]
    %v2642 = vlaneseq
    %v2643 = vshrl.u32 %v2642, 7
    %v2644 = vsub.s32 0, %v2643
    %v2645 = vrot.slane %v2640, %v2644
    %v2648 = vsel %vm1026, %v2548, 0
    %v2651 = vsel %vm1026, %v2549, 0
    %v2654 = vsel %vm1026, %v2550, 0
    %v2657 = vsel %vm1026, %v2551, 0
    %v2660 = vsel %vm1026, %v2552, 0
    %v2663 = vsel %vm1026, %v2553, 0
    %v2666 = vsel %vm1026, %v2554, 0
    %v2669 = vsel %vm1026, %v2555, 0
    %v2672 = vsel %vm1026, %v2556, 0
    %v2675 = vsel %vm1026, %v2557, 0
    %v2678 = vsel %vm1026, %v2558, 0
    %v2681 = vsel %vm1026, %v2559, 0
    %v2684 = vsel %vm1026, %v2560, 0
    %v2687 = vsel %vm1026, %v2561, 0
    %v2690 = vsel %vm1026, %v2562, 0
    %v2693 = vsel %vm1026, %v2563, 0
    %v2696 = vsel %vm1026, %v2564, 0
    %v2699 = vsel %vm1026, %v2565, 0
    %v2702 = vsel %vm1026, %v2566, 0
    %v2705 = vsel %vm1026, %v2567, 0
    %v2708 = vsel %vm1026, %v2568, 0
    %v2711 = vsel %vm1026, %v2569, 0
    %v2714 = vsel %vm1026, %v2570, 0
    %v2717 = vsel %vm1026, %v2571, 0
    %v2720 = vsel %vm1026, %v2572, 0
    %v2723 = vsel %vm1026, %v2573, 0
    %v2726 = vsel %vm1026, %v2574, 0
    %v2729 = vsel %vm1026, %v2575, 0
    %v2732 = vsel %vm1026, %v2576, 0
    %v2735 = vsel %vm1026, %v2577, 0
    %v2738 = vsel %vm1026, %v2578, 0
    %v2741 = vsel %vm1026, %v2579, 0
    %v2744 = vsel %vm1026, %v2580, 0
    %v2747 = vsel %vm1026, %v2581, 0
    %v2750 = vsel %vm1026, %v2582, 0
    %v2753 = vsel %vm1026, %v2583, 0
    %v2756 = vsel %vm1026, %v2584, 0
    %v2759 = vsel %vm1026, %v2585, 0
    %v2762 = vsel %vm1026, %v2586, 0
    %v2765 = vsel %vm1026, %v2587, 0
    %v2768 = vsel %vm1026, %v2588, 0
    %v2771 = vsel %vm1026, %v2589, 0
    %v2774 = vsel %vm1026, %v2590, 0
    %v2777 = vsel %vm1026, %v2591, 0
    %v2780 = vsel %vm1026, %v2592, 0
    %v2783 = vsel %vm1026, %v2593, 0
    %v2786 = vsel %vm1026, %v2594, 0
    %v2789 = vsel %vm1026, %v2595, 0
    %v2792 = vsel %vm1026, %v2596, 0
    %v2795 = vsel %vm1026, %v2597, 0
    %v2798 = vsel %vm1026, %v2598, 0
    %v2801 = vsel %vm1026, %v2599, 0
    %v2804 = vsel %vm1026, %v2600, 0
    %v2807 = vsel %vm1026, %v2601, 0
    %v2810 = vsel %vm1026, %v2602, 0
    %v2813 = vsel %vm1026, %v2603, 0
    %v2816 = vsel %vm1026, %v2604, 0
    %v2819 = vsel %vm1026, %v2605, 0
    %v2822 = vsel %vm1026, %v2606, 0
    %v2825 = vsel %vm1026, %v2607, 0
    %v2828 = vsel %vm1026, %v2608, 0
    %v2831 = vsel %vm1026, %v2609, 0
    %v2834 = vsel %vm1026, %v2610, 0
    %v2837 = vsel %vm1026, %v2611, 0
    %v2840 = vsel %vm1026, %v2612, 0
    %v2843 = vsel %vm1026, %v2613, 0
    %v2846 = vsel %vm1026, %v2614, 0
    %v2849 = vsel %vm1026, %v2615, 0
    %v2852 = vsel %vm1026, %v2616, 0
    %v2855 = vsel %vm1026, %v2617, 0
    %v2858 = vsel %vm1026, %v2618, 0
    %v2861 = vsel %vm1026, %v2619, 0
    %v2864 = vsel %vm1026, %v2620, 0
    %v2867 = vsel %vm1026, %v2621, 0
    %v2870 = vsel %vm1026, %v2622, 0
    %v2873 = vsel %vm1026, %v2623, 0
    %v2876 = vsel %vm1026, %v2624, 0
    %v2879 = vsel %vm1026, %v2625, 0
    %v2882 = vsel %vm1026, %v2626, 0
    %v2885 = vsel %vm1026, %v2627, 0
    %v2888 = vsel %vm1026, %v2628, 0
    %v2891 = vsel %vm1026, %v2629, 0
    %v2894 = vsel %vm1026, %v2630, 0
    %v2897 = vsel %vm1026, %v2631, 0
    %2899 = vmatprep.subr.mxu0 0.0
    %2900 = vmatpush1.msra.mxu0 %v2632
    %2901 = vmatprep.subr.mxu0 0.0
    %2902 = vmatpush1.msra.mxu0 %v2633
    %2903 = vmatprep.subr.mxu0 0.0
    %2904 = vmatpush1.msra.mxu0 %v2634
    %2905 = vmatprep.subr.mxu0 0.0
    %2906 = vmatpush1.msra.mxu0 %v2635
    %2907 = vmatprep.subr.mxu0 0.0
    %2908 = vmatpush1.msra.mxu0 %v2636
    %2909 = vmatprep.subr.mxu0 0.0
    %2910 = vmatpush1.msra.mxu0 %v2637
    %2911 = vmatprep.subr.mxu0 0.0
    %2912 = vmatpush1.msra.mxu0 %v2638
    %2913 = vmatprep.subr.mxu0 0.0
    %2914 = vmatpush1.msra.mxu0 %v2639
    %2915 = vmatprep.subr.mxu0 0.0
    %2916 = vmatpush1.msra.mxu0 0.0
    %2917 = vmatprep.subr.mxu0 0.0
    %2918 = vmatpush1.msra.mxu0 0.0
    %2919 = vmatprep.subr.mxu0 0.0
    %2920 = vmatpush1.msra.mxu0 0.0
    %2921 = vmatprep.subr.mxu0 0.0
    %2922 = vmatpush1.msra.mxu0 0.0
    %2923 = vmatprep.subr.mxu0 0.0
    %2924 = vmatpush1.msra.mxu0 0.0
    %2925 = vmatprep.subr.mxu0 0.0
    %2926 = vmatpush1.msra.mxu0 0.0
    %2927 = vmatprep.subr.mxu0 0.0
    %2928 = vmatpush1.msra.mxu0 0.0
    %2929 = vmatprep.subr.mxu0 0.0
    %2930 = vmatpush1.msra.mxu0 0.0
    %2931 = vmatprep.subr.mxu0 0.0
    %2932 = vmatpush1.msra.mxu0 0.0
    %2933 = vmatprep.subr.mxu0 0.0
    %2934 = vmatpush1.msra.mxu0 0.0
    %2935 = vmatprep.subr.mxu0 0.0
    %2936 = vmatpush1.msra.mxu0 0.0
    %2937 = vmatprep.subr.mxu0 0.0
    %2938 = vmatpush1.msra.mxu0 0.0
    %2939 = vmatprep.subr.mxu0 0.0
    %2940 = vmatpush1.msra.mxu0 0.0
    %2941 = vmatprep.subr.mxu0 0.0
    %2942 = vmatpush1.msra.mxu0 0.0
    %2943 = vmatprep.subr.mxu0 0.0
    %2944 = vmatpush1.msra.mxu0 0.0
    %2945 = vmatprep.subr.mxu0 0.0
    %2946 = vmatpush1.msra.mxu0 0.0
    %2947 = vmatprep.subr.mxu0 0.0
    %2948 = vmatpush1.msra.mxu0 0.0
    %2949 = vmatprep.subr.mxu0 0.0
    %2950 = vmatpush1.msra.mxu0 0.0
    %2951 = vmatprep.subr.mxu0 0.0
    %2952 = vmatpush1.msra.mxu0 0.0
    %2953 = vmatprep.subr.mxu0 0.0
    %2954 = vmatpush1.msra.mxu0 0.0
    %2955 = vmatprep.subr.mxu0 0.0
    %2956 = vmatpush1.msra.mxu0 0.0
    %2957 = vmatprep.subr.mxu0 0.0
    %2958 = vmatpush1.msra.mxu0 0.0
    %2959 = vmatprep.subr.mxu0 0.0
    %2960 = vmatpush1.msra.mxu0 0.0
    %2961 = vmatprep.subr.mxu0 0.0
    %2962 = vmatpush1.msra.mxu0 0.0
    %2963 = vmatprep.mubr.f32.mxu0 0.0
    %2964 = vmatmul.mubr.f32.gmra.mrb[0].mxu0 %v2648
    %v2965 = vpop.f32.mrb[0].mxu0
    %v2966 = vadd.f32 %v2645, %v2965
    %v2967 = vpop.f32.mrb[0].mxu0
    %2968 = vmatprep.mubr.f32.mxu0 0.0
    %2969 = vmatmul.mubr.f32.gmra.mrb[0].mxu0 %v2651
    %v2970 = vpop.f32.mrb[0].mxu0
    %v2971 = vadd.f32 %v2645, %v2970
    %v2972 = vpop.f32.mrb[0].mxu0
    %2973 = vmatprep.mubr.f32.mxu0 0.0
    %2974 = vmatmul.mubr.f32.gmra.mrb[0].mxu0 %v2654
    %v2975 = vpop.f32.mrb[0].mxu0
    %v2976 = vadd.f32 %v2645, %v2975
    %v2977 = vpop.f32.mrb[0].mxu0
    %2978 = vmatprep.mubr.f32.mxu0 0.0
    %2979 = vmatmul.mubr.f32.gmra.mrb[0].mxu0 %v2657
    %v2980 = vpop.f32.mrb[0].mxu0
    %v2981 = vadd.f32 %v2645, %v2980
    %v2982 = vpop.f32.mrb[0].mxu0
    %2983 = vmatprep.mubr.f32.mxu0 0.0
    %2984 = vmatmul.mubr.f32.gmra.mrb[0].mxu0 %v2660
    %v2985 = vpop.f32.mrb[0].mxu0
    %v2986 = vadd.f32 %v2645, %v2985
    %v2987 = vpop.f32.mrb[0].mxu0
    %2988 = vmatprep.mubr.f32.mxu0 0.0
    %2989 = vmatmul.mubr.f32.gmra.mrb[0].mxu0 %v2663
    %v2990 = vpop.f32.mrb[0].mxu0
    %v2991 = vadd.f32 %v2645, %v2990
    %v2992 = vpop.f32.mrb[0].mxu0
    %2993 = vmatprep.mubr.f32.mxu0 0.0
    %2994 = vmatmul.mubr.f32.gmra.mrb[0].mxu0 %v2666
    %v2995 = vpop.f32.mrb[0].mxu0
    %v2996 = vadd.f32 %v2645, %v2995
    %v2997 = vpop.f32.mrb[0].mxu0
    %2998 = vmatprep.mubr.f32.mxu0 0.0
    %2999 = vmatmul.mubr.f32.gmra.mrb[0].mxu0 %v2669
    %v3000 = vpop.f32.mrb[0].mxu0
    %v3001 = vadd.f32 %v2645, %v3000
    %v3002 = vpop.f32.mrb[0].mxu0
    %3003 = vmatprep.mubr.f32.mxu0 0.0
    %3004 = vmatmul.mubr.f32.gmra.mrb[0].mxu0 %v2672
    %v3005 = vpop.f32.mrb[0].mxu0
    %v3006 = vadd.f32 %v2645, %v3005
    %v3007 = vpop.f32.mrb[0].mxu0
    %3008 = vmatprep.mubr.f32.mxu0 0.0
    %3009 = vmatmul.mubr.f32.gmra.mrb[0].mxu0 %v2675
    %v3010 = vpop.f32.mrb[0].mxu0
    %v3011 = vadd.f32 %v2645, %v3010
    %v3012 = vpop.f32.mrb[0].mxu0
    %3013 = vmatprep.mubr.f32.mxu0 0.0
    %3014 = vmatmul.mubr.f32.gmra.mrb[0].mxu0 %v2678
    %v3015 = vpop.f32.mrb[0].mxu0
    %v3016 = vadd.f32 %v2645, %v3015
    %v3017 = vpop.f32.mrb[0].mxu0
    %3018 = vmatprep.mubr.f32.mxu0 0.0
    %3019 = vmatmul.mubr.f32.gmra.mrb[0].mxu0 %v2681
    %v3020 = vpop.f32.mrb[0].mxu0
    %v3021 = vadd.f32 %v2645, %v3020
    %v3022 = vpop.f32.mrb[0].mxu0
    %3023 = vmatprep.mubr.f32.mxu0 0.0
    %3024 = vmatmul.mubr.f32.gmra.mrb[0].mxu0 %v2684
    %v3025 = vpop.f32.mrb[0].mxu0
    %v3026 = vadd.f32 %v2645, %v3025
    %v3027 = vpop.f32.mrb[0].mxu0
    %3028 = vmatprep.mubr.f32.mxu0 0.0
    %3029 = vmatmul.mubr.f32.gmra.mrb[0].mxu0 %v2687
    %v3030 = vpop.f32.mrb[0].mxu0
    %v3031 = vadd.f32 %v2645, %v3030
    %v3032 = vpop.f32.mrb[0].mxu0
    %3033 = vmatprep.mubr.f32.mxu0 0.0
    %3034 = vmatmul.mubr.f32.gmra.mrb[0].mxu0 %v2690
    %v3035 = vpop.f32.mrb[0].mxu0
    %v3036 = vadd.f32 %v2645, %v3035
    %v3037 = vpop.f32.mrb[0].mxu0
    %3038 = vmatprep.mubr.f32.mxu0 0.0
    %3039 = vmatmul.mubr.f32.gmra.mrb[0].mxu0 %v2693
    %v3040 = vpop.f32.mrb[0].mxu0
    %v3041 = vadd.f32 %v2645, %v3040
    %v3042 = vpop.f32.mrb[0].mxu0
    %3043 = vmatprep.mubr.f32.mxu0 0.0
    %3044 = vmatmul.mubr.f32.gmra.mrb[0].mxu0 %v2696
    %v3045 = vpop.f32.mrb[0].mxu0
    %v3046 = vadd.f32 %v2645, %v3045
    %v3047 = vpop.f32.mrb[0].mxu0
    %3048 = vmatprep.mubr.f32.mxu0 0.0
    %3049 = vmatmul.mubr.f32.gmra.mrb[0].mxu0 %v2699
    %v3050 = vpop.f32.mrb[0].mxu0
    %v3051 = vadd.f32 %v2645, %v3050
    %v3052 = vpop.f32.mrb[0].mxu0
    %3053 = vmatprep.mubr.f32.mxu0 0.0
    %3054 = vmatmul.mubr.f32.gmra.mrb[0].mxu0 %v2702
    %v3055 = vpop.f32.mrb[0].mxu0
    %v3056 = vadd.f32 %v2645, %v3055
    %v3057 = vpop.f32.mrb[0].mxu0
    %3058 = vmatprep.mubr.f32.mxu0 0.0
    %3059 = vmatmul.mubr.f32.gmra.mrb[0].mxu0 %v2705
    %v3060 = vpop.f32.mrb[0].mxu0
    %v3061 = vadd.f32 %v2645, %v3060
    %v3062 = vpop.f32.mrb[0].mxu0
    %3063 = vmatprep.mubr.f32.mxu0 0.0
    %3064 = vmatmul.mubr.f32.gmra.mrb[0].mxu0 %v2708
    %v3065 = vpop.f32.mrb[0].mxu0
    %v3066 = vadd.f32 %v2645, %v3065
    %v3067 = vpop.f32.mrb[0].mxu0
    %3068 = vmatprep.mubr.f32.mxu0 0.0
    %3069 = vmatmul.mubr.f32.gmra.mrb[0].mxu0 %v2711
    %v3070 = vpop.f32.mrb[0].mxu0
    %v3071 = vadd.f32 %v2645, %v3070
    %v3072 = vpop.f32.mrb[0].mxu0
    %3073 = vmatprep.mubr.f32.mxu0 0.0
    %3074 = vmatmul.mubr.f32.gmra.mrb[0].mxu0 %v2714
    %v3075 = vpop.f32.mrb[0].mxu0
    %v3076 = vadd.f32 %v2645, %v3075
    %v3077 = vpop.f32.mrb[0].mxu0
    %3078 = vmatprep.mubr.f32.mxu0 0.0
    %3079 = vmatmul.mubr.f32.gmra.mrb[0].mxu0 %v2717
    %v3080 = vpop.f32.mrb[0].mxu0
    %v3081 = vadd.f32 %v2645, %v3080
    %v3082 = vpop.f32.mrb[0].mxu0
    %3083 = vmatprep.mubr.f32.mxu0 0.0
    %3084 = vmatmul.mubr.f32.gmra.mrb[0].mxu0 %v2720
    %v3085 = vpop.f32.mrb[0].mxu0
    %v3086 = vadd.f32 %v2645, %v3085
    %v3087 = vpop.f32.mrb[0].mxu0
    %3088 = vmatprep.mubr.f32.mxu0 0.0
    %3089 = vmatmul.mubr.f32.gmra.mrb[0].mxu0 %v2723
    %v3090 = vpop.f32.mrb[0].mxu0
    %v3091 = vadd.f32 %v2645, %v3090
    %v3092 = vpop.f32.mrb[0].mxu0
    %3093 = vmatprep.mubr.f32.mxu0 0.0
    %3094 = vmatmul.mubr.f32.gmra.mrb[0].mxu0 %v2726
    %v3095 = vpop.f32.mrb[0].mxu0
    %v3096 = vadd.f32 %v2645, %v3095
    %v3097 = vpop.f32.mrb[0].mxu0
    %3098 = vmatprep.mubr.f32.mxu0 0.0
    %3099 = vmatmul.mubr.f32.gmra.mrb[0].mxu0 %v2729
    %v3100 = vpop.f32.mrb[0].mxu0
    %v3101 = vadd.f32 %v2645, %v3100
    %v3102 = vpop.f32.mrb[0].mxu0
    %3103 = vmatprep.mubr.f32.mxu0 0.0
    %3104 = vmatmul.mubr.f32.gmra.mrb[0].mxu0 %v2732
    %v3105 = vpop.f32.mrb[0].mxu0
    %v3106 = vadd.f32 %v2645, %v3105
    %v3107 = vpop.f32.mrb[0].mxu0
    %3108 = vmatprep.mubr.f32.mxu0 0.0
    %3109 = vmatmul.mubr.f32.gmra.mrb[0].mxu0 %v2735
    %v3110 = vpop.f32.mrb[0].mxu0
    %v3111 = vadd.f32 %v2645, %v3110
    %v3112 = vpop.f32.mrb[0].mxu0
    %3113 = vmatprep.mubr.f32.mxu0 0.0
    %3114 = vmatmul.mubr.f32.gmra.mrb[0].mxu0 %v2738
    %v3115 = vpop.f32.mrb[0].mxu0
    %v3116 = vadd.f32 %v2645, %v3115
    %v3117 = vpop.f32.mrb[0].mxu0
    %3118 = vmatprep.mubr.f32.mxu0 0.0
    %3119 = vmatmul.mubr.f32.gmra.mrb[0].mxu0 %v2741
    %v3120 = vpop.f32.mrb[0].mxu0
    %v3121 = vadd.f32 %v2645, %v3120
    %v3122 = vpop.f32.mrb[0].mxu0
    %3123 = vmatprep.mubr.f32.mxu0 0.0
    %3124 = vmatmul.mubr.f32.gmra.mrb[0].mxu0 %v2744
    %v3125 = vpop.f32.mrb[0].mxu0
    %v3126 = vadd.f32 %v2645, %v3125
    %v3127 = vpop.f32.mrb[0].mxu0
    %3128 = vmatprep.mubr.f32.mxu0 0.0
    %3129 = vmatmul.mubr.f32.gmra.mrb[0].mxu0 %v2747
    %v3130 = vpop.f32.mrb[0].mxu0
    %v3131 = vadd.f32 %v2645, %v3130
    %v3132 = vpop.f32.mrb[0].mxu0
    %3133 = vmatprep.mubr.f32.mxu0 0.0
    %3134 = vmatmul.mubr.f32.gmra.mrb[0].mxu0 %v2750
    %v3135 = vpop.f32.mrb[0].mxu0
    %v3136 = vadd.f32 %v2645, %v3135
    %v3137 = vpop.f32.mrb[0].mxu0
    %3138 = vmatprep.mubr.f32.mxu0 0.0
    %3139 = vmatmul.mubr.f32.gmra.mrb[0].mxu0 %v2753
    %v3140 = vpop.f32.mrb[0].mxu0
    %v3141 = vadd.f32 %v2645, %v3140
    %v3142 = vpop.f32.mrb[0].mxu0
    %3143 = vmatprep.mubr.f32.mxu0 0.0
    %3144 = vmatmul.mubr.f32.gmra.mrb[0].mxu0 %v2756
    %v3145 = vpop.f32.mrb[0].mxu0
    %v3146 = vadd.f32 %v2645, %v3145
    %v3147 = vpop.f32.mrb[0].mxu0
    %3148 = vmatprep.mubr.f32.mxu0 0.0
    %3149 = vmatmul.mubr.f32.gmra.mrb[0].mxu0 %v2759
    %v3150 = vpop.f32.mrb[0].mxu0
    %v3151 = vadd.f32 %v2645, %v3150
    %v3152 = vpop.f32.mrb[0].mxu0
    %3153 = vmatprep.mubr.f32.mxu0 0.0
    %3154 = vmatmul.mubr.f32.gmra.mrb[0].mxu0 %v2762
    %v3155 = vpop.f32.mrb[0].mxu0
    %v3156 = vadd.f32 %v2645, %v3155
    %v3157 = vpop.f32.mrb[0].mxu0
    %3158 = vmatprep.mubr.f32.mxu0 0.0
    %3159 = vmatmul.mubr.f32.gmra.mrb[0].mxu0 %v2765
    %v3160 = vpop.f32.mrb[0].mxu0
    %v3161 = vadd.f32 %v2645, %v3160
    %v3162 = vpop.f32.mrb[0].mxu0
    %3163 = vmatprep.mubr.f32.mxu0 0.0
    %3164 = vmatmul.mubr.f32.gmra.mrb[0].mxu0 %v2768
    %v3165 = vpop.f32.mrb[0].mxu0
    %v3166 = vadd.f32 %v2645, %v3165
    %v3167 = vpop.f32.mrb[0].mxu0
    %3168 = vmatprep.mubr.f32.mxu0 0.0
    %3169 = vmatmul.mubr.f32.gmra.mrb[0].mxu0 %v2771
    %v3170 = vpop.f32.mrb[0].mxu0
    %v3171 = vadd.f32 %v2645, %v3170
    %v3172 = vpop.f32.mrb[0].mxu0
    %3173 = vmatprep.mubr.f32.mxu0 0.0
    %3174 = vmatmul.mubr.f32.gmra.mrb[0].mxu0 %v2774
    %v3175 = vpop.f32.mrb[0].mxu0
    %v3176 = vadd.f32 %v2645, %v3175
    %v3177 = vpop.f32.mrb[0].mxu0
    %3178 = vmatprep.mubr.f32.mxu0 0.0
    %3179 = vmatmul.mubr.f32.gmra.mrb[0].mxu0 %v2777
    %v3180 = vpop.f32.mrb[0].mxu0
    %v3181 = vadd.f32 %v2645, %v3180
    %v3182 = vpop.f32.mrb[0].mxu0
    %3183 = vmatprep.mubr.f32.mxu0 0.0
    %3184 = vmatmul.mubr.f32.gmra.mrb[0].mxu0 %v2780
    %v3185 = vpop.f32.mrb[0].mxu0
    %v3186 = vadd.f32 %v2645, %v3185
    %v3187 = vpop.f32.mrb[0].mxu0
    %3188 = vmatprep.mubr.f32.mxu0 0.0
    %3189 = vmatmul.mubr.f32.gmra.mrb[0].mxu0 %v2783
    %v3190 = vpop.f32.mrb[0].mxu0
    %v3191 = vadd.f32 %v2645, %v3190
    %v3192 = vpop.f32.mrb[0].mxu0
    %3193 = vmatprep.mubr.f32.mxu0 0.0
    %3194 = vmatmul.mubr.f32.gmra.mrb[0].mxu0 %v2786
    %v3195 = vpop.f32.mrb[0].mxu0
    %v3196 = vadd.f32 %v2645, %v3195
    %v3197 = vpop.f32.mrb[0].mxu0
    %3198 = vmatprep.mubr.f32.mxu0 0.0
    %3199 = vmatmul.mubr.f32.gmra.mrb[0].mxu0 %v2789
    %v3200 = vpop.f32.mrb[0].mxu0
    %v3201 = vadd.f32 %v2645, %v3200
    %v3202 = vpop.f32.mrb[0].mxu0
    %3203 = vmatprep.mubr.f32.mxu0 0.0
    %3204 = vmatmul.mubr.f32.gmra.mrb[0].mxu0 %v2792
    %v3205 = vpop.f32.mrb[0].mxu0
    %v3206 = vadd.f32 %v2645, %v3205
    %v3207 = vpop.f32.mrb[0].mxu0
    %3208 = vmatprep.mubr.f32.mxu0 0.0
    %3209 = vmatmul.mubr.f32.gmra.mrb[0].mxu0 %v2795
    %v3210 = vpop.f32.mrb[0].mxu0
    %v3211 = vadd.f32 %v2645, %v3210
    %v3212 = vpop.f32.mrb[0].mxu0
    %3213 = vmatprep.mubr.f32.mxu0 0.0
    %3214 = vmatmul.mubr.f32.gmra.mrb[0].mxu0 %v2798
    %v3215 = vpop.f32.mrb[0].mxu0
    %v3216 = vadd.f32 %v2645, %v3215
    %v3217 = vpop.f32.mrb[0].mxu0
    %3218 = vmatprep.mubr.f32.mxu0 0.0
    %3219 = vmatmul.mubr.f32.gmra.mrb[0].mxu0 %v2801
    %v3220 = vpop.f32.mrb[0].mxu0
    %v3221 = vadd.f32 %v2645, %v3220
    %v3222 = vpop.f32.mrb[0].mxu0
    %3223 = vmatprep.mubr.f32.mxu0 0.0
    %3224 = vmatmul.mubr.f32.gmra.mrb[0].mxu0 %v2804
    %v3225 = vpop.f32.mrb[0].mxu0
    %v3226 = vadd.f32 %v2645, %v3225
    %v3227 = vpop.f32.mrb[0].mxu0
    %3228 = vmatprep.mubr.f32.mxu0 0.0
    %3229 = vmatmul.mubr.f32.gmra.mrb[0].mxu0 %v2807
    %v3230 = vpop.f32.mrb[0].mxu0
    %v3231 = vadd.f32 %v2645, %v3230
    %v3232 = vpop.f32.mrb[0].mxu0
    %3233 = vmatprep.mubr.f32.mxu0 0.0
    %3234 = vmatmul.mubr.f32.gmra.mrb[0].mxu0 %v2810
    %v3235 = vpop.f32.mrb[0].mxu0
    %v3236 = vadd.f32 %v2645, %v3235
    %v3237 = vpop.f32.mrb[0].mxu0
    %3238 = vmatprep.mubr.f32.mxu0 0.0
    %3239 = vmatmul.mubr.f32.gmra.mrb[0].mxu0 %v2813
    %v3240 = vpop.f32.mrb[0].mxu0
    %v3241 = vadd.f32 %v2645, %v3240
    %v3242 = vpop.f32.mrb[0].mxu0
    %3243 = vmatprep.mubr.f32.mxu0 0.0
    %3244 = vmatmul.mubr.f32.gmra.mrb[0].mxu0 %v2816
    %v3245 = vpop.f32.mrb[0].mxu0
    %v3246 = vadd.f32 %v2645, %v3245
    %v3247 = vpop.f32.mrb[0].mxu0
    %3248 = vmatprep.mubr.f32.mxu0 0.0
    %3249 = vmatmul.mubr.f32.gmra.mrb[0].mxu0 %v2819
    %v3250 = vpop.f32.mrb[0].mxu0
    %v3251 = vadd.f32 %v2645, %v3250
    %v3252 = vpop.f32.mrb[0].mxu0
    %3253 = vmatprep.mubr.f32.mxu0 0.0
    %3254 = vmatmul.mubr.f32.gmra.mrb[0].mxu0 %v2822
    %v3255 = vpop.f32.mrb[0].mxu0
    %v3256 = vadd.f32 %v2645, %v3255
    %v3257 = vpop.f32.mrb[0].mxu0
    %3258 = vmatprep.mubr.f32.mxu0 0.0
    %3259 = vmatmul.mubr.f32.gmra.mrb[0].mxu0 %v2825
    %v3260 = vpop.f32.mrb[0].mxu0
    %v3261 = vadd.f32 %v2645, %v3260
    %v3262 = vpop.f32.mrb[0].mxu0
    %3263 = vmatprep.mubr.f32.mxu0 0.0
    %3264 = vmatmul.mubr.f32.gmra.mrb[0].mxu0 %v2828
    %v3265 = vpop.f32.mrb[0].mxu0
    %v3266 = vadd.f32 %v2645, %v3265
    %v3267 = vpop.f32.mrb[0].mxu0
    %3268 = vmatprep.mubr.f32.mxu0 0.0
    %3269 = vmatmul.mubr.f32.gmra.mrb[0].mxu0 %v2831
    %v3270 = vpop.f32.mrb[0].mxu0
    %v3271 = vadd.f32 %v2645, %v3270
    %v3272 = vpop.f32.mrb[0].mxu0
    %3273 = vmatprep.mubr.f32.mxu0 0.0
    %3274 = vmatmul.mubr.f32.gmra.mrb[0].mxu0 %v2834
    %v3275 = vpop.f32.mrb[0].mxu0
    %v3276 = vadd.f32 %v2645, %v3275
    %v3277 = vpop.f32.mrb[0].mxu0
    %3278 = vmatprep.mubr.f32.mxu0 0.0
    %3279 = vmatmul.mubr.f32.gmra.mrb[0].mxu0 %v2837
    %v3280 = vpop.f32.mrb[0].mxu0
    %v3281 = vadd.f32 %v2645, %v3280
    %v3282 = vpop.f32.mrb[0].mxu0
    %3283 = vmatprep.mubr.f32.mxu0 0.0
    %3284 = vmatmul.mubr.f32.gmra.mrb[0].mxu0 %v2840
    %v3285 = vpop.f32.mrb[0].mxu0
    %v3286 = vadd.f32 %v2645, %v3285
    %v3287 = vpop.f32.mrb[0].mxu0
    %3288 = vmatprep.mubr.f32.mxu0 0.0
    %3289 = vmatmul.mubr.f32.gmra.mrb[0].mxu0 %v2843
    %v3290 = vpop.f32.mrb[0].mxu0
    %v3291 = vadd.f32 %v2645, %v3290
    %v3292 = vpop.f32.mrb[0].mxu0
    %3293 = vmatprep.mubr.f32.mxu0 0.0
    %3294 = vmatmul.mubr.f32.gmra.mrb[0].mxu0 %v2846
    %v3295 = vpop.f32.mrb[0].mxu0
    %v3296 = vadd.f32 %v2645, %v3295
    %v3297 = vpop.f32.mrb[0].mxu0
    %3298 = vmatprep.mubr.f32.mxu0 0.0
    %3299 = vmatmul.mubr.f32.gmra.mrb[0].mxu0 %v2849
    %v3300 = vpop.f32.mrb[0].mxu0
    %v3301 = vadd.f32 %v2645, %v3300
    %v3302 = vpop.f32.mrb[0].mxu0
    %3303 = vmatprep.mubr.f32.mxu0 0.0
    %3304 = vmatmul.mubr.f32.gmra.mrb[0].mxu0 %v2852
    %v3305 = vpop.f32.mrb[0].mxu0
    %v3306 = vadd.f32 %v2645, %v3305
    %v3307 = vpop.f32.mrb[0].mxu0
    %3308 = vmatprep.mubr.f32.mxu0 0.0
    %3309 = vmatmul.mubr.f32.gmra.mrb[0].mxu0 %v2855
    %v3310 = vpop.f32.mrb[0].mxu0
    %v3311 = vadd.f32 %v2645, %v3310
    %v3312 = vpop.f32.mrb[0].mxu0
    %3313 = vmatprep.mubr.f32.mxu0 0.0
    %3314 = vmatmul.mubr.f32.gmra.mrb[0].mxu0 %v2858
    %v3315 = vpop.f32.mrb[0].mxu0
    %v3316 = vadd.f32 %v2645, %v3315
    %v3317 = vpop.f32.mrb[0].mxu0
    %3318 = vmatprep.mubr.f32.mxu0 0.0
    %3319 = vmatmul.mubr.f32.gmra.mrb[0].mxu0 %v2861
    %v3320 = vpop.f32.mrb[0].mxu0
    %v3321 = vadd.f32 %v2645, %v3320
    %v3322 = vpop.f32.mrb[0].mxu0
    %3323 = vmatprep.mubr.f32.mxu0 0.0
    %3324 = vmatmul.mubr.f32.gmra.mrb[0].mxu0 %v2864
    %v3325 = vpop.f32.mrb[0].mxu0
    %v3326 = vadd.f32 %v2645, %v3325
    %v3327 = vpop.f32.mrb[0].mxu0
    %3328 = vmatprep.mubr.f32.mxu0 0.0
    %3329 = vmatmul.mubr.f32.gmra.mrb[0].mxu0 %v2867
    %v3330 = vpop.f32.mrb[0].mxu0
    %v3331 = vadd.f32 %v2645, %v3330
    %v3332 = vpop.f32.mrb[0].mxu0
    %3333 = vmatprep.mubr.f32.mxu0 0.0
    %3334 = vmatmul.mubr.f32.gmra.mrb[0].mxu0 %v2870
    %v3335 = vpop.f32.mrb[0].mxu0
    %v3336 = vadd.f32 %v2645, %v3335
    %v3337 = vpop.f32.mrb[0].mxu0
    %3338 = vmatprep.mubr.f32.mxu0 0.0
    %3339 = vmatmul.mubr.f32.gmra.mrb[0].mxu0 %v2873
    %v3340 = vpop.f32.mrb[0].mxu0
    %v3341 = vadd.f32 %v2645, %v3340
    %v3342 = vpop.f32.mrb[0].mxu0
    %3343 = vmatprep.mubr.f32.mxu0 0.0
    %3344 = vmatmul.mubr.f32.gmra.mrb[0].mxu0 %v2876
    %v3345 = vpop.f32.mrb[0].mxu0
    %v3346 = vadd.f32 %v2645, %v3345
    %v3347 = vpop.f32.mrb[0].mxu0
    %3348 = vmatprep.mubr.f32.mxu0 0.0
    %3349 = vmatmul.mubr.f32.gmra.mrb[0].mxu0 %v2879
    %v3350 = vpop.f32.mrb[0].mxu0
    %v3351 = vadd.f32 %v2645, %v3350
    %v3352 = vpop.f32.mrb[0].mxu0
    %3353 = vmatprep.mubr.f32.mxu0 0.0
    %3354 = vmatmul.mubr.f32.gmra.mrb[0].mxu0 %v2882
    %v3355 = vpop.f32.mrb[0].mxu0
    %v3356 = vadd.f32 %v2645, %v3355
    %v3357 = vpop.f32.mrb[0].mxu0
    %3358 = vmatprep.mubr.f32.mxu0 0.0
    %3359 = vmatmul.mubr.f32.gmra.mrb[0].mxu0 %v2885
    %v3360 = vpop.f32.mrb[0].mxu0
    %v3361 = vadd.f32 %v2645, %v3360
    %v3362 = vpop.f32.mrb[0].mxu0
    %3363 = vmatprep.mubr.f32.mxu0 0.0
    %3364 = vmatmul.mubr.f32.gmra.mrb[0].mxu0 %v2888
    %v3365 = vpop.f32.mrb[0].mxu0
    %v3366 = vadd.f32 %v2645, %v3365
    %v3367 = vpop.f32.mrb[0].mxu0
    %3368 = vmatprep.mubr.f32.mxu0 0.0
    %3369 = vmatmul.mubr.f32.gmra.mrb[0].mxu0 %v2891
    %v3370 = vpop.f32.mrb[0].mxu0
    %v3371 = vadd.f32 %v2645, %v3370
    %v3372 = vpop.f32.mrb[0].mxu0
    %3373 = vmatprep.mubr.f32.mxu0 0.0
    %3374 = vmatmul.mubr.f32.gmra.mrb[0].mxu0 %v2894
    %v3375 = vpop.f32.mrb[0].mxu0
    %v3376 = vadd.f32 %v2645, %v3375
    %v3377 = vpop.f32.mrb[0].mxu0
    %3378 = vmatprep.mubr.f32.mxu0 0.0
    %3379 = vmatmul.mubr.f32.gmra.mrb[0].mxu0 %v2897
    %v3380 = vpop.f32.mrb[0].mxu0
    %v3381 = vadd.f32 %v2645, %v3380
    %v3382 = vpop.f32.mrb[0].mxu0
    %3383 = vdwg.mxu0
    %v3384 = vmax.f32 %v2966, 0.0
    %v3385 = vmax.f32 %v2971, 0.0
    %v3386 = vmax.f32 %v2976, 0.0
    %v3387 = vmax.f32 %v2981, 0.0
    %v3388 = vmax.f32 %v2986, 0.0
    %v3389 = vmax.f32 %v2991, 0.0
    %v3390 = vmax.f32 %v2996, 0.0
    %v3391 = vmax.f32 %v3001, 0.0
    %v3392 = vmax.f32 %v3006, 0.0
    %v3393 = vmax.f32 %v3011, 0.0
    %v3394 = vmax.f32 %v3016, 0.0
    %v3395 = vmax.f32 %v3021, 0.0
    %v3396 = vmax.f32 %v3026, 0.0
    %v3397 = vmax.f32 %v3031, 0.0
    %v3398 = vmax.f32 %v3036, 0.0
    %v3399 = vmax.f32 %v3041, 0.0
    %v3400 = vmax.f32 %v3046, 0.0
    %v3401 = vmax.f32 %v3051, 0.0
    %v3402 = vmax.f32 %v3056, 0.0
    %v3403 = vmax.f32 %v3061, 0.0
    %v3404 = vmax.f32 %v3066, 0.0
    %v3405 = vmax.f32 %v3071, 0.0
    %v3406 = vmax.f32 %v3076, 0.0
    %v3407 = vmax.f32 %v3081, 0.0
    %v3408 = vmax.f32 %v3086, 0.0
    %v3409 = vmax.f32 %v3091, 0.0
    %v3410 = vmax.f32 %v3096, 0.0
    %v3411 = vmax.f32 %v3101, 0.0
    %v3412 = vmax.f32 %v3106, 0.0
    %v3413 = vmax.f32 %v3111, 0.0
    %v3414 = vmax.f32 %v3116, 0.0
    %v3415 = vmax.f32 %v3121, 0.0
    %v3416 = vmax.f32 %v3126, 0.0
    %v3417 = vmax.f32 %v3131, 0.0
    %v3418 = vmax.f32 %v3136, 0.0
    %v3419 = vmax.f32 %v3141, 0.0
    %v3420 = vmax.f32 %v3146, 0.0
    %v3421 = vmax.f32 %v3151, 0.0
    %v3422 = vmax.f32 %v3156, 0.0
    %v3423 = vmax.f32 %v3161, 0.0
    %v3424 = vmax.f32 %v3166, 0.0
    %v3425 = vmax.f32 %v3171, 0.0
    %v3426 = vmax.f32 %v3176, 0.0
    %v3427 = vmax.f32 %v3181, 0.0
    %v3428 = vmax.f32 %v3186, 0.0
    %v3429 = vmax.f32 %v3191, 0.0
    %v3430 = vmax.f32 %v3196, 0.0
    %v3431 = vmax.f32 %v3201, 0.0
    %v3432 = vmax.f32 %v3206, 0.0
    %v3433 = vmax.f32 %v3211, 0.0
    %v3434 = vmax.f32 %v3216, 0.0
    %v3435 = vmax.f32 %v3221, 0.0
    %v3436 = vmax.f32 %v3226, 0.0
    %v3437 = vmax.f32 %v3231, 0.0
    %v3438 = vmax.f32 %v3236, 0.0
    %v3439 = vmax.f32 %v3241, 0.0
    %v3440 = vmax.f32 %v3246, 0.0
    %v3441 = vmax.f32 %v3251, 0.0
    %v3442 = vmax.f32 %v3256, 0.0
    %v3443 = vmax.f32 %v3261, 0.0
    %v3444 = vmax.f32 %v3266, 0.0
    %v3445 = vmax.f32 %v3271, 0.0
    %v3446 = vmax.f32 %v3276, 0.0
    %v3447 = vmax.f32 %v3281, 0.0
    %v3448 = vmax.f32 %v3286, 0.0
    %v3449 = vmax.f32 %v3291, 0.0
    %v3450 = vmax.f32 %v3296, 0.0
    %v3451 = vmax.f32 %v3301, 0.0
    %v3452 = vmax.f32 %v3306, 0.0
    %v3453 = vmax.f32 %v3311, 0.0
    %v3454 = vmax.f32 %v3316, 0.0
    %v3455 = vmax.f32 %v3321, 0.0
    %v3456 = vmax.f32 %v3326, 0.0
    %v3457 = vmax.f32 %v3331, 0.0
    %v3458 = vmax.f32 %v3336, 0.0
    %v3459 = vmax.f32 %v3341, 0.0
    %v3460 = vmax.f32 %v3346, 0.0
    %v3461 = vmax.f32 %v3351, 0.0
    %v3462 = vmax.f32 %v3356, 0.0
    %v3463 = vmax.f32 %v3361, 0.0
    %v3464 = vmax.f32 %v3366, 0.0
    %v3465 = vmax.f32 %v3371, 0.0
    %v3466 = vmax.f32 %v3376, 0.0
    %v3467 = vmax.f32 %v3381, 0.0
    %v3468 = vpack.c.bf16 %v3385, %v3384
    %v3469 = vpack.c.bf16 %v3387, %v3386
    %v3470 = vpack.c.bf16 %v3389, %v3388
    %v3471 = vpack.c.bf16 %v3391, %v3390
    %v3472 = vpack.c.bf16 %v3393, %v3392
    %v3473 = vpack.c.bf16 %v3395, %v3394
    %v3474 = vpack.c.bf16 %v3397, %v3396
    %v3475 = vpack.c.bf16 %v3399, %v3398
    %v3476 = vpack.c.bf16 %v3401, %v3400
    %v3477 = vpack.c.bf16 %v3403, %v3402
    %v3478 = vpack.c.bf16 %v3405, %v3404
    %v3479 = vpack.c.bf16 %v3407, %v3406
    %v3480 = vpack.c.bf16 %v3409, %v3408
    %v3481 = vpack.c.bf16 %v3411, %v3410
    %v3482 = vpack.c.bf16 %v3413, %v3412
    %v3483 = vpack.c.bf16 %v3415, %v3414
    %v3484 = vpack.c.bf16 %v3417, %v3416
    %v3485 = vpack.c.bf16 %v3419, %v3418
    %v3486 = vpack.c.bf16 %v3421, %v3420
    %v3487 = vpack.c.bf16 %v3423, %v3422
    %v3488 = vpack.c.bf16 %v3425, %v3424
    %v3489 = vpack.c.bf16 %v3427, %v3426
    %v3490 = vpack.c.bf16 %v3429, %v3428
    %v3491 = vpack.c.bf16 %v3431, %v3430
    %v3492 = vpack.c.bf16 %v3433, %v3432
    %v3493 = vpack.c.bf16 %v3435, %v3434
    %v3494 = vpack.c.bf16 %v3437, %v3436
    %v3495 = vpack.c.bf16 %v3439, %v3438
    %v3496 = vpack.c.bf16 %v3441, %v3440
    %v3497 = vpack.c.bf16 %v3443, %v3442
    %v3498 = vpack.c.bf16 %v3445, %v3444
    %v3499 = vpack.c.bf16 %v3447, %v3446
    %v3500 = vpack.c.bf16 %v3449, %v3448
    %v3501 = vpack.c.bf16 %v3451, %v3450
    %v3502 = vpack.c.bf16 %v3453, %v3452
    %v3503 = vpack.c.bf16 %v3455, %v3454
    %v3504 = vpack.c.bf16 %v3457, %v3456
    %v3505 = vpack.c.bf16 %v3459, %v3458
    %v3506 = vpack.c.bf16 %v3461, %v3460
    %v3507 = vpack.c.bf16 %v3463, %v3462
    %v3508 = vpack.c.bf16 %v3465, %v3464
    %v3509 = vpack.c.bf16 %v3467, %v3466
    %v3510 = vld [vmem:[#allocation17] sm:$0xf]
    %v3511 = vld [vmem:[#allocation17 + $0x4] sm:$0xf]
    %v3512 = vld [vmem:[#allocation17 + $0x8] sm:$0xf]
    %v3513 = vld [vmem:[#allocation17 + $0xc] sm:$0xf]
    %v3514 = vld [vmem:[#allocation17 + $0x10] sm:$0xf]
    %v3515 = vld [vmem:[#allocation17 + $0x14] sm:$0xf]
    %v3516 = vld [vmem:[#allocation17 + $0x18] sm:$0xf]
    %v3517 = vld [vmem:[#allocation17 + $0x1c] sm:$0xf]
    %v3518 = vld [vmem:[#allocation17 + $0x20] sm:$0xf]
    %v3519 = vld [vmem:[#allocation17 + $0x24] sm:$0xf]
    %v3520 = vld [vmem:[#allocation17 + $0x28] sm:$0xf]
    %v3521 = vld [vmem:[#allocation17 + $0x2c] sm:$0xf]
    %v3522 = vld [vmem:[#allocation17 + $0x30] sm:$0xf]
    %v3523 = vld [vmem:[#allocation17 + $0x34] sm:$0xf]
    %v3524 = vld [vmem:[#allocation17 + $0x38] sm:$0xf]
    %v3525 = vld [vmem:[#allocation17 + $0x3c] sm:$0xf]
    %v3526 = vld [vmem:[#allocation17 + $0x40] sm:$0xf]
    %v3527 = vld [vmem:[#allocation17 + $0x44] sm:$0xf]
    %v3528 = vld [vmem:[#allocation17 + $0x48] sm:$0xf]
    %v3529 = vld [vmem:[#allocation17 + $0x4c] sm:$0xf]
    %v3530 = vld [vmem:[#allocation17 + $0x50] sm:$0xf]
    %v3531 = vld [vmem:[#allocation17 + $0x54] sm:$0xf]
    %v3532 = vld [vmem:[#allocation17 + $0x58] sm:$0xf]
    %v3533 = vld [vmem:[#allocation17 + $0x5c] sm:$0xf]
    %v3534 = vld [vmem:[#allocation17 + $0x60] sm:$0xf]
    %v3535 = vld [vmem:[#allocation17 + $0x64] sm:$0xf]
    %v3536 = vld [vmem:[#allocation17 + $0x68] sm:$0xf]
    %v3537 = vld [vmem:[#allocation17 + $0x6c] sm:$0xf]
    %v3538 = vld [vmem:[#allocation17 + $0x70] sm:$0xf]
    %v3539 = vld [vmem:[#allocation17 + $0x74] sm:$0xf]
    %v3540 = vld [vmem:[#allocation17 + $0x78] sm:$0xf]
    %v3541 = vld [vmem:[#allocation17 + $0x7c] sm:$0xf]
    %v3542 = vld [vmem:[#allocation17 + $0x80] sm:$0xf]
    %v3543 = vld [vmem:[#allocation17 + $0x84] sm:$0xf]
    %v3544 = vld [vmem:[#allocation17 + $0x88] sm:$0xf]
    %v3545 = vld [vmem:[#allocation17 + $0x8c] sm:$0xf]
    %v3546 = vld [vmem:[#allocation17 + $0x90] sm:$0xf]
    %v3547 = vld [vmem:[#allocation17 + $0x94] sm:$0xf]
    %v3548 = vld [vmem:[#allocation17 + $0x98] sm:$0xf]
    %v3549 = vld [vmem:[#allocation17 + $0x9c] sm:$0xf]
    %v3550 = vld [vmem:[#allocation17 + $0xa0] sm:$0xf]
    %v3551 = vld [vmem:[#allocation17 + $0xa4] sm:$0xf]
    %v3552 = vld [vmem:[#allocation17 + $0xa8] sm:$0xf]
    %v3553 = vld [vmem:[#allocation17 + $0xac] sm:$0xf]
    %v3554 = vld [vmem:[#allocation17 + $0xb0] sm:$0xf]
    %v3555 = vld [vmem:[#allocation17 + $0xb4] sm:$0xf]
    %v3556 = vld [vmem:[#allocation17 + $0xb8] sm:$0xf]
    %v3557 = vld [vmem:[#allocation17 + $0xbc] sm:$0xf]
    %v3558 = vld [vmem:[#allocation17 + $0xc0] sm:$0xf]
    %v3559 = vld [vmem:[#allocation17 + $0xc4] sm:$0xf]
    %v3560 = vld [vmem:[#allocation17 + $0xc8] sm:$0xf]
    %v3561 = vld [vmem:[#allocation17 + $0xcc] sm:$0xf]
    %v3562 = vld [vmem:[#allocation17 + $0xd0] sm:$0xf]
    %v3563 = vld [vmem:[#allocation17 + $0xd4] sm:$0xf]
    %v3564 = vld [vmem:[#allocation17 + $0xd8] sm:$0xf]
    %v3565 = vld [vmem:[#allocation17 + $0xdc] sm:$0xf]
    %v3566 = vld [vmem:[#allocation17 + $0xe0] sm:$0xf]
    %v3567 = vld [vmem:[#allocation17 + $0xe4] sm:$0xf]
    %v3568 = vld [vmem:[#allocation17 + $0xe8] sm:$0xf]
    %v3569 = vld [vmem:[#allocation17 + $0xec] sm:$0xf]
    %v3570 = vld [vmem:[#allocation17 + $0xf0] sm:$0xf]
    %v3571 = vld [vmem:[#allocation17 + $0xf4] sm:$0xf]
    %v3572 = vld [vmem:[#allocation17 + $0xf8] sm:$0xf]
    %v3573 = vld [vmem:[#allocation17 + $0xfc] sm:$0xf]
    %v3574 = vld [vmem:[#allocation17 + $0x100] sm:$0xf]
    %v3575 = vld [vmem:[#allocation17 + $0x104] sm:$0xf]
    %v3576 = vld [vmem:[#allocation17 + $0x108] sm:$0xf]
    %v3577 = vld [vmem:[#allocation17 + $0x10c] sm:$0xf]
    %v3578 = vld [vmem:[#allocation17 + $0x110] sm:$0xf]
    %v3579 = vld [vmem:[#allocation17 + $0x114] sm:$0xf]
    %v3580 = vld [vmem:[#allocation17 + $0x118] sm:$0xf]
    %v3581 = vld [vmem:[#allocation17 + $0x11c] sm:$0xf]
    %v3582 = vld [vmem:[#allocation17 + $0x120] sm:$0xf]
    %v3583 = vld [vmem:[#allocation17 + $0x124] sm:$0xf]
    %v3584 = vld [vmem:[#allocation17 + $0x128] sm:$0xf]
    %v3585 = vld [vmem:[#allocation17 + $0x12c] sm:$0xf]
    %v3586 = vld [vmem:[#allocation17 + $0x130] sm:$0xf]
    %v3587 = vld [vmem:[#allocation17 + $0x134] sm:$0xf]
    %v3588 = vld [vmem:[#allocation17 + $0x138] sm:$0xf]
    %v3589 = vld [vmem:[#allocation17 + $0x13c] sm:$0xf]
    %v3590 = vld [vmem:[#allocation17 + $0x140] sm:$0xf]
    %v3591 = vld [vmem:[#allocation17 + $0x144] sm:$0xf]
    %v3592 = vld [vmem:[#allocation17 + $0x148] sm:$0xf]
    %v3593 = vld [vmem:[#allocation17 + $0x14c] sm:$0xf]
    %v3594 = vld [vmem:[#allocation17 + $0x150] sm:$0xf]
    %v3595 = vld [vmem:[#allocation17 + $0x154] sm:$0xf]
    %v3596 = vld [vmem:[#allocation17 + $0x158] sm:$0xf]
    %v3597 = vld [vmem:[#allocation17 + $0x15c] sm:$0xf]
    %v3598 = vld [vmem:[#allocation17 + $0x160] sm:$0xf]
    %v3599 = vld [vmem:[#allocation17 + $0x164] sm:$0xf]
    %v3600 = vld [vmem:[#allocation17 + $0x168] sm:$0xf]
    %v3601 = vld [vmem:[#allocation17 + $0x16c] sm:$0xf]
    %v3602 = vld [vmem:[#allocation17 + $0x170] sm:$0xf]
    %v3603 = vld [vmem:[#allocation17 + $0x174] sm:$0xf]
    %v3604 = vld [vmem:[#allocation17 + $0x178] sm:$0xf]
    %v3605 = vld [vmem:[#allocation17 + $0x17c] sm:$0xf]
    %v3606 = vld [vmem:[#allocation17 + $0x180] sm:$0xf]
    %v3607 = vld [vmem:[#allocation17 + $0x184] sm:$0xf]
    %v3608 = vld [vmem:[#allocation17 + $0x188] sm:$0xf]
    %v3609 = vld [vmem:[#allocation17 + $0x18c] sm:$0xf]
    %v3610 = vld [vmem:[#allocation17 + $0x190] sm:$0xf]
    %v3611 = vld [vmem:[#allocation17 + $0x194] sm:$0xf]
    %v3612 = vld [vmem:[#allocation17 + $0x198] sm:$0xf]
    %v3613 = vld [vmem:[#allocation17 + $0x19c] sm:$0xf]
    %v3614 = vld [vmem:[#allocation17 + $0x1a0] sm:$0xf]
    %v3615 = vld [vmem:[#allocation17 + $0x1a4] sm:$0xf]
    %v3616 = vld [vmem:[#allocation17 + $0x1a8] sm:$0xf]
    %v3617 = vld [vmem:[#allocation17 + $0x1ac] sm:$0xf]
    %v3618 = vld [vmem:[#allocation17 + $0x1b0] sm:$0xf]
    %v3619 = vld [vmem:[#allocation17 + $0x1b4] sm:$0xf]
    %v3620 = vld [vmem:[#allocation17 + $0x1b8] sm:$0xf]
    %v3621 = vld [vmem:[#allocation17 + $0x1bc] sm:$0xf]
    %v3622 = vld [vmem:[#allocation17 + $0x1c0] sm:$0xf]
    %v3623 = vld [vmem:[#allocation17 + $0x1c4] sm:$0xf]
    %v3624 = vld [vmem:[#allocation17 + $0x1c8] sm:$0xf]
    %v3625 = vld [vmem:[#allocation17 + $0x1cc] sm:$0xf]
    %v3626 = vld [vmem:[#allocation17 + $0x1d0] sm:$0xf]
    %v3627 = vld [vmem:[#allocation17 + $0x1d4] sm:$0xf]
    %v3628 = vld [vmem:[#allocation17 + $0x1d8] sm:$0xf]
    %v3629 = vld [vmem:[#allocation17 + $0x1dc] sm:$0xf]
    %v3630 = vld [vmem:[#allocation17 + $0x1e0] sm:$0xf]
    %v3631 = vld [vmem:[#allocation17 + $0x1e4] sm:$0xf]
    %v3632 = vld [vmem:[#allocation17 + $0x1e8] sm:$0xf]
    %v3633 = vld [vmem:[#allocation17 + $0x1ec] sm:$0xf]
    %v3634 = vld [vmem:[#allocation17 + $0x1f0] sm:$0xf]
    %v3635 = vld [vmem:[#allocation17 + $0x1f4] sm:$0xf]
    %v3636 = vld [vmem:[#allocation17 + $0x1f8] sm:$0xf]
    %v3637 = vld [vmem:[#allocation17 + $0x1fc] sm:$0xf]
    %v3638 = vld [vmem:[#allocation17 + $0x200] sm:$0xf]
    %v3639 = vld [vmem:[#allocation17 + $0x204] sm:$0xf]
    %v3640 = vld [vmem:[#allocation17 + $0x208] sm:$0xf]
    %v3641 = vld [vmem:[#allocation17 + $0x20c] sm:$0xf]
    %v3642 = vld [vmem:[#allocation17 + $0x210] sm:$0xf]
    %v3643 = vld [vmem:[#allocation17 + $0x214] sm:$0xf]
    %v3644 = vld [vmem:[#allocation17 + $0x218] sm:$0xf]
    %v3645 = vld [vmem:[#allocation17 + $0x21c] sm:$0xf]
    %v3646 = vld [vmem:[#allocation17 + $0x220] sm:$0xf]
    %v3647 = vld [vmem:[#allocation17 + $0x224] sm:$0xf]
    %v3648 = vld [vmem:[#allocation17 + $0x228] sm:$0xf]
    %v3649 = vld [vmem:[#allocation17 + $0x22c] sm:$0xf]
    %v3650 = vld [vmem:[#allocation17 + $0x230] sm:$0xf]
    %v3651 = vld [vmem:[#allocation17 + $0x234] sm:$0xf]
    %v3652 = vld [vmem:[#allocation17 + $0x238] sm:$0xf]
    %v3653 = vld [vmem:[#allocation17 + $0x23c] sm:$0xf]
    %v3654 = vld [vmem:[#allocation17 + $0x240] sm:$0xf]
    %v3655 = vld [vmem:[#allocation17 + $0x244] sm:$0xf]
    %v3656 = vld [vmem:[#allocation17 + $0x248] sm:$0xf]
    %v3657 = vld [vmem:[#allocation17 + $0x24c] sm:$0xf]
    %v3658 = vld [vmem:[#allocation17 + $0x250] sm:$0xf]
    %v3659 = vld [vmem:[#allocation17 + $0x254] sm:$0xf]
    %v3660 = vld [vmem:[#allocation17 + $0x258] sm:$0xf]
    %v3661 = vld [vmem:[#allocation17 + $0x25c] sm:$0xf]
    %v3662 = vld [vmem:[#allocation17 + $0x260] sm:$0xf]
    %v3663 = vld [vmem:[#allocation17 + $0x264] sm:$0xf]
    %v3664 = vld [vmem:[#allocation17 + $0x268] sm:$0xf]
    %v3665 = vld [vmem:[#allocation17 + $0x26c] sm:$0xf]
    %v3666 = vld [vmem:[#allocation17 + $0x270] sm:$0xf]
    %v3667 = vld [vmem:[#allocation17 + $0x274] sm:$0xf]
    %v3668 = vld [vmem:[#allocation17 + $0x278] sm:$0xf]
    %v3669 = vld [vmem:[#allocation17 + $0x27c] sm:$0xf]
    %v3670 = vld [vmem:[#allocation17 + $0x280] sm:$0xf]
    %v3671 = vld [vmem:[#allocation17 + $0x284] sm:$0xf]
    %v3672 = vld [vmem:[#allocation17 + $0x288] sm:$0xf]
    %v3673 = vld [vmem:[#allocation17 + $0x28c] sm:$0xf]
    %v3674 = vld [vmem:[#allocation17 + $0x290] sm:$0xf]
    %v3675 = vld [vmem:[#allocation17 + $0x294] sm:$0xf]
    %v3676 = vld [vmem:[#allocation17 + $0x298] sm:$0xf]
    %v3677 = vld [vmem:[#allocation17 + $0x29c] sm:$0xf]
    %v3678 = vld [vmem:[#allocation17 + $0x2a0] sm:$0xf]
    %v3679 = vld [vmem:[#allocation17 + $0x2a4] sm:$0xf]
    %v3680 = vld [vmem:[#allocation17 + $0x2a8] sm:$0xf]
    %v3681 = vld [vmem:[#allocation17 + $0x2ac] sm:$0xf]
    %v3682 = vld [vmem:[#allocation17 + $0x2b0] sm:$0xf]
    %v3683 = vld [vmem:[#allocation17 + $0x2b4] sm:$0xf]
    %v3684 = vld [vmem:[#allocation17 + $0x2b8] sm:$0xf]
    %v3685 = vld [vmem:[#allocation17 + $0x2bc] sm:$0xf]
    %v3686 = vld [vmem:[#allocation17 + $0x2c0] sm:$0xf]
    %v3687 = vld [vmem:[#allocation17 + $0x2c4] sm:$0xf]
    %v3688 = vld [vmem:[#allocation17 + $0x2c8] sm:$0xf]
    %v3689 = vld [vmem:[#allocation17 + $0x2cc] sm:$0xf]
    %v3690 = vld [vmem:[#allocation17 + $0x2d0] sm:$0xf]
    %v3691 = vld [vmem:[#allocation17 + $0x2d4] sm:$0xf]
    %v3692 = vld [vmem:[#allocation17 + $0x2d8] sm:$0xf]
    %v3693 = vld [vmem:[#allocation17 + $0x2dc] sm:$0xf]
    %v3694 = vld [vmem:[#allocation17 + $0x2e0] sm:$0xf]
    %v3695 = vld [vmem:[#allocation17 + $0x2e4] sm:$0xf]
    %v3696 = vld [vmem:[#allocation17 + $0x2e8] sm:$0xf]
    %v3697 = vld [vmem:[#allocation17 + $0x2ec] sm:$0xf]
    %v3698 = vld [vmem:[#allocation17 + $0x2f0] sm:$0xf]
    %v3699 = vld [vmem:[#allocation17 + $0x2f4] sm:$0xf]
    %v3700 = vld [vmem:[#allocation17 + $0x2f8] sm:$0xf]
    %v3701 = vld [vmem:[#allocation17 + $0x2fc] sm:$0xf]
    %v3702 = vld [vmem:[#allocation17 + $0x300] sm:$0xf]
    %v3703 = vld [vmem:[#allocation17 + $0x304] sm:$0xf]
    %v3704 = vld [vmem:[#allocation17 + $0x308] sm:$0xf]
    %v3705 = vld [vmem:[#allocation17 + $0x30c] sm:$0xf]
    %v3706 = vld [vmem:[#allocation17 + $0x310] sm:$0xf]
    %v3707 = vld [vmem:[#allocation17 + $0x314] sm:$0xf]
    %v3708 = vld [vmem:[#allocation17 + $0x318] sm:$0xf]
    %v3709 = vld [vmem:[#allocation17 + $0x31c] sm:$0xf]
    %v3710 = vld [vmem:[#allocation17 + $0x320] sm:$0xf]
    %v3711 = vld [vmem:[#allocation17 + $0x324] sm:$0xf]
    %v3712 = vld [vmem:[#allocation17 + $0x328] sm:$0xf]
    %v3713 = vld [vmem:[#allocation17 + $0x32c] sm:$0xf]
    %v3714 = vld [vmem:[#allocation17 + $0x330] sm:$0xf]
    %v3715 = vld [vmem:[#allocation17 + $0x334] sm:$0xf]
    %v3716 = vld [vmem:[#allocation17 + $0x338] sm:$0xf]
    %v3717 = vld [vmem:[#allocation17 + $0x33c] sm:$0xf]
    %v3718 = vld [vmem:[#allocation17 + $0x340] sm:$0xf]
    %v3719 = vld [vmem:[#allocation17 + $0x344] sm:$0xf]
    %v3720 = vld [vmem:[#allocation17 + $0x348] sm:$0xf]
    %v3721 = vld [vmem:[#allocation17 + $0x34c] sm:$0xf]
    %v3722 = vld [vmem:[#allocation17 + $0x350] sm:$0xf]
    %v3723 = vld [vmem:[#allocation17 + $0x354] sm:$0xf]
    %v3724 = vld [vmem:[#allocation17 + $0x358] sm:$0xf]
    %v3725 = vld [vmem:[#allocation17 + $0x35c] sm:$0xf]
    %v3726 = vld [vmem:[#allocation17 + $0x360] sm:$0xf]
    %v3727 = vld [vmem:[#allocation17 + $0x364] sm:$0xf]
    %v3728 = vld [vmem:[#allocation17 + $0x368] sm:$0xf]
    %v3729 = vld [vmem:[#allocation17 + $0x36c] sm:$0xf]
    %v3730 = vld [vmem:[#allocation17 + $0x370] sm:$0xf]
    %v3731 = vld [vmem:[#allocation17 + $0x374] sm:$0xf]
    %v3732 = vld [vmem:[#allocation17 + $0x378] sm:$0xf]
    %v3733 = vld [vmem:[#allocation17 + $0x37c] sm:$0xf]
    %v3734 = vld [vmem:[#allocation17 + $0x380] sm:$0xf]
    %v3735 = vld [vmem:[#allocation17 + $0x384] sm:$0xf]
    %v3736 = vld [vmem:[#allocation17 + $0x388] sm:$0xf]
    %v3737 = vld [vmem:[#allocation17 + $0x38c] sm:$0xf]
    %v3738 = vld [vmem:[#allocation17 + $0x390] sm:$0xf]
    %v3739 = vld [vmem:[#allocation17 + $0x394] sm:$0xf]
    %v3740 = vld [vmem:[#allocation17 + $0x398] sm:$0xf]
    %v3741 = vld [vmem:[#allocation17 + $0x39c] sm:$0xf]
    %v3742 = vld [vmem:[#allocation17 + $0x3a0] sm:$0xf]
    %v3743 = vld [vmem:[#allocation17 + $0x3a4] sm:$0xf]
    %v3744 = vld [vmem:[#allocation17 + $0x3a8] sm:$0xf]
    %v3745 = vld [vmem:[#allocation17 + $0x3ac] sm:$0xf]
    %v3746 = vld [vmem:[#allocation17 + $0x3b0] sm:$0xf]
    %v3747 = vld [vmem:[#allocation17 + $0x3b4] sm:$0xf]
    %v3748 = vld [vmem:[#allocation17 + $0x3b8] sm:$0xf]
    %v3749 = vld [vmem:[#allocation17 + $0x3bc] sm:$0xf]
    %v3750 = vld [vmem:[#allocation17 + $0x3c0] sm:$0xf]
    %v3751 = vld [vmem:[#allocation17 + $0x3c4] sm:$0xf]
    %v3752 = vld [vmem:[#allocation17 + $0x3c8] sm:$0xf]
    %v3753 = vld [vmem:[#allocation17 + $0x3cc] sm:$0xf]
    %v3754 = vld [vmem:[#allocation17 + $0x3d0] sm:$0xf]
    %v3755 = vld [vmem:[#allocation17 + $0x3d4] sm:$0xf]
    %v3756 = vld [vmem:[#allocation17 + $0x3d8] sm:$0xf]
    %v3757 = vld [vmem:[#allocation17 + $0x3dc] sm:$0xf]
    %v3758 = vld [vmem:[#allocation17 + $0x3e0] sm:$0xf]
    %v3759 = vld [vmem:[#allocation17 + $0x3e4] sm:$0xf]
    %v3760 = vld [vmem:[#allocation17 + $0x3e8] sm:$0xf]
    %v3761 = vld [vmem:[#allocation17 + $0x3ec] sm:$0xf]
    %v3762 = vld [vmem:[#allocation17 + $0x3f0] sm:$0xf]
    %v3763 = vld [vmem:[#allocation17 + $0x3f4] sm:$0xf]
    %v3764 = vld [vmem:[#allocation17 + $0x3f8] sm:$0xf]
    %v3765 = vld [vmem:[#allocation17 + $0x3fc] sm:$0xf]
    %v3766 = vld [vmem:[#allocation17 + $0x400] sm:$0xf]
    %v3767 = vld [vmem:[#allocation17 + $0x404] sm:$0xf]
    %v3768 = vld [vmem:[#allocation17 + $0x408] sm:$0xf]
    %v3769 = vld [vmem:[#allocation17 + $0x40c] sm:$0xf]
    %v3770 = vld [vmem:[#allocation17 + $0x410] sm:$0xf]
    %v3771 = vld [vmem:[#allocation17 + $0x414] sm:$0xf]
    %v3772 = vld [vmem:[#allocation17 + $0x418] sm:$0xf]
    %v3773 = vld [vmem:[#allocation17 + $0x41c] sm:$0xf]
    %v3774 = vld [vmem:[#allocation17 + $0x420] sm:$0xf]
    %v3775 = vld [vmem:[#allocation17 + $0x424] sm:$0xf]
    %v3776 = vld [vmem:[#allocation17 + $0x428] sm:$0xf]
    %v3777 = vld [vmem:[#allocation17 + $0x42c] sm:$0xf]
    %v3778 = vld [vmem:[#allocation17 + $0x430] sm:$0xf]
    %v3779 = vld [vmem:[#allocation17 + $0x434] sm:$0xf]
    %v3780 = vld [vmem:[#allocation17 + $0x438] sm:$0xf]
    %v3781 = vld [vmem:[#allocation17 + $0x43c] sm:$0xf]
    %v3782 = vld [vmem:[#allocation17 + $0x440] sm:$0xf]
    %v3783 = vld [vmem:[#allocation17 + $0x444] sm:$0xf]
    %v3784 = vld [vmem:[#allocation17 + $0x448] sm:$0xf]
    %v3785 = vld [vmem:[#allocation17 + $0x44c] sm:$0xf]
    %v3786 = vld [vmem:[#allocation17 + $0x450] sm:$0xf]
    %v3787 = vld [vmem:[#allocation17 + $0x454] sm:$0xf]
    %v3788 = vld [vmem:[#allocation17 + $0x458] sm:$0xf]
    %v3789 = vld [vmem:[#allocation17 + $0x45c] sm:$0xf]
    %v3790 = vld [vmem:[#allocation17 + $0x460] sm:$0xf]
    %v3791 = vld [vmem:[#allocation17 + $0x464] sm:$0xf]
    %v3792 = vld [vmem:[#allocation17 + $0x468] sm:$0xf]
    %v3793 = vld [vmem:[#allocation17 + $0x46c] sm:$0xf]
    %v3794 = vld [vmem:[#allocation17 + $0x470] sm:$0xf]
    %v3795 = vld [vmem:[#allocation17 + $0x474] sm:$0xf]
    %v3796 = vld [vmem:[#allocation17 + $0x478] sm:$0xf]
    %v3797 = vld [vmem:[#allocation17 + $0x47c] sm:$0xf]
    %v3798 = vld [vmem:[#allocation17 + $0x480] sm:$0xf]
    %v3799 = vld [vmem:[#allocation17 + $0x484] sm:$0xf]
    %v3800 = vld [vmem:[#allocation17 + $0x488] sm:$0xf]
    %v3801 = vld [vmem:[#allocation17 + $0x48c] sm:$0xf]
    %v3802 = vld [vmem:[#allocation17 + $0x490] sm:$0xf]
    %v3803 = vld [vmem:[#allocation17 + $0x494] sm:$0xf]
    %v3804 = vld [vmem:[#allocation17 + $0x498] sm:$0xf]
    %v3805 = vld [vmem:[#allocation17 + $0x49c] sm:$0xf]
    %v3806 = vld [vmem:[#allocation17 + $0x4a0] sm:$0xf]
    %v3807 = vld [vmem:[#allocation17 + $0x4a4] sm:$0xf]
    %v3808 = vld [vmem:[#allocation17 + $0x4a8] sm:$0xf]
    %v3809 = vld [vmem:[#allocation17 + $0x4ac] sm:$0xf]
    %v3810 = vld [vmem:[#allocation17 + $0x4b0] sm:$0xf]
    %v3811 = vld [vmem:[#allocation17 + $0x4b4] sm:$0xf]
    %v3812 = vld [vmem:[#allocation17 + $0x4b8] sm:$0xf]
    %v3813 = vld [vmem:[#allocation17 + $0x4bc] sm:$0xf]
    %v3814 = vld [vmem:[#allocation17 + $0x4c0] sm:$0xf]
    %v3815 = vld [vmem:[#allocation17 + $0x4c4] sm:$0xf]
    %v3816 = vld [vmem:[#allocation17 + $0x4c8] sm:$0xf]
    %v3817 = vld [vmem:[#allocation17 + $0x4cc] sm:$0xf]
    %v3818 = vld [vmem:[#allocation17 + $0x4d0] sm:$0xf]
    %v3819 = vld [vmem:[#allocation17 + $0x4d4] sm:$0xf]
    %v3820 = vld [vmem:[#allocation17 + $0x4d8] sm:$0xf]
    %v3821 = vld [vmem:[#allocation17 + $0x4dc] sm:$0xf]
    %v3822 = vld [vmem:[#allocation17 + $0x4e0] sm:$0xf]
    %v3823 = vld [vmem:[#allocation17 + $0x4e4] sm:$0xf]
    %v3824 = vld [vmem:[#allocation17 + $0x4e8] sm:$0xf]
    %v3825 = vld [vmem:[#allocation17 + $0x4ec] sm:$0xf]
    %v3826 = vld [vmem:[#allocation17 + $0x4f0] sm:$0xf]
    %v3827 = vld [vmem:[#allocation17 + $0x4f4] sm:$0xf]
    %v3828 = vld [vmem:[#allocation17 + $0x4f8] sm:$0xf]
    %v3829 = vld [vmem:[#allocation17 + $0x4fc] sm:$0xf]
    %v3830 = vld [vmem:[#allocation17 + $0x500] sm:$0xf]
    %v3831 = vld [vmem:[#allocation17 + $0x504] sm:$0xf]
    %v3832 = vld [vmem:[#allocation17 + $0x508] sm:$0xf]
    %v3833 = vld [vmem:[#allocation17 + $0x50c] sm:$0xf]
    %v3834 = vld [vmem:[#allocation17 + $0x510] sm:$0xf]
    %v3835 = vld [vmem:[#allocation17 + $0x514] sm:$0xf]
    %v3836 = vld [vmem:[#allocation17 + $0x518] sm:$0xf]
    %v3837 = vld [vmem:[#allocation17 + $0x51c] sm:$0xf]
    %v3838 = vld [vmem:[#allocation17 + $0x520] sm:$0xf]
    %v3839 = vld [vmem:[#allocation17 + $0x524] sm:$0xf]
    %v3840 = vld [vmem:[#allocation17 + $0x528] sm:$0xf]
    %v3841 = vld [vmem:[#allocation17 + $0x52c] sm:$0xf]
    %v3842 = vld [vmem:[#allocation17 + $0x530] sm:$0xf]
    %v3843 = vld [vmem:[#allocation17 + $0x534] sm:$0xf]
    %v3844 = vld [vmem:[#allocation17 + $0x538] sm:$0xf]
    %v3845 = vld [vmem:[#allocation17 + $0x53c] sm:$0xf]
    %v3846 = vld [vmem:[#allocation17 + $0x540] sm:$0xf]
    %v3847 = vld [vmem:[#allocation17 + $0x544] sm:$0xf]
    %v3848 = vld [vmem:[#allocation17 + $0x548] sm:$0xf]
    %v3849 = vld [vmem:[#allocation17 + $0x54c] sm:$0xf]
    %v3850 = vld [vmem:[#allocation17 + $0x550] sm:$0xf]
    %v3851 = vld [vmem:[#allocation17 + $0x554] sm:$0xf]
    %v3852 = vld [vmem:[#allocation17 + $0x558] sm:$0xf]
    %v3853 = vld [vmem:[#allocation17 + $0x55c] sm:$0xf]
    %v3854 = vld [vmem:[#allocation17 + $0x560] sm:$0xf]
    %v3855 = vld [vmem:[#allocation17 + $0x564] sm:$0xf]
    %v3856 = vld [vmem:[#allocation17 + $0x568] sm:$0xf]
    %v3857 = vld [vmem:[#allocation17 + $0x56c] sm:$0xf]
    %v3858 = vld [vmem:[#allocation17 + $0x570] sm:$0xf]
    %v3859 = vld [vmem:[#allocation17 + $0x574] sm:$0xf]
    %v3860 = vld [vmem:[#allocation17 + $0x578] sm:$0xf]
    %v3861 = vld [vmem:[#allocation17 + $0x57c] sm:$0xf]
    %v3862 = vld [vmem:[#allocation17 + $0x580] sm:$0xf]
    %v3863 = vld [vmem:[#allocation17 + $0x584] sm:$0xf]
    %v3864 = vld [vmem:[#allocation17 + $0x588] sm:$0xf]
    %v3865 = vld [vmem:[#allocation17 + $0x58c] sm:$0xf]
    %v3866 = vld [vmem:[#allocation17 + $0x590] sm:$0xf]
    %v3867 = vld [vmem:[#allocation17 + $0x594] sm:$0xf]
    %v3868 = vld [vmem:[#allocation17 + $0x598] sm:$0xf]
    %v3869 = vld [vmem:[#allocation17 + $0x59c] sm:$0xf]
    %v3870 = vld [vmem:[#allocation17 + $0x5a0] sm:$0xf]
    %v3871 = vld [vmem:[#allocation17 + $0x5a4] sm:$0xf]
    %v3872 = vld [vmem:[#allocation17 + $0x5a8] sm:$0xf]
    %v3873 = vld [vmem:[#allocation17 + $0x5ac] sm:$0xf]
    %v3874 = vld [vmem:[#allocation17 + $0x5b0] sm:$0xf]
    %v3875 = vld [vmem:[#allocation17 + $0x5b4] sm:$0xf]
    %v3876 = vld [vmem:[#allocation17 + $0x5b8] sm:$0xf]
    %v3877 = vld [vmem:[#allocation17 + $0x5bc] sm:$0xf]
    %v3878 = vld [vmem:[#allocation17 + $0x5c0] sm:$0xf]
    %v3879 = vld [vmem:[#allocation17 + $0x5c4] sm:$0xf]
    %v3880 = vld [vmem:[#allocation17 + $0x5c8] sm:$0xf]
    %v3881 = vld [vmem:[#allocation17 + $0x5cc] sm:$0xf]
    %v3882 = vld [vmem:[#allocation17 + $0x5d0] sm:$0xf]
    %v3883 = vld [vmem:[#allocation17 + $0x5d4] sm:$0xf]
    %v3884 = vld [vmem:[#allocation17 + $0x5d8] sm:$0xf]
    %v3885 = vld [vmem:[#allocation17 + $0x5dc] sm:$0xf]
    %v3886 = vld [vmem:[#allocation17 + $0x5e0] sm:$0xf]
    %v3887 = vld [vmem:[#allocation17 + $0x5e4] sm:$0xf]
    %v3888 = vld [vmem:[#allocation17 + $0x5e8] sm:$0xf]
    %v3889 = vld [vmem:[#allocation17 + $0x5ec] sm:$0xf]
    %v3890 = vld [vmem:[#allocation17 + $0x5f0] sm:$0xf]
    %v3891 = vld [vmem:[#allocation17 + $0x5f4] sm:$0xf]
    %v3892 = vld [vmem:[#allocation17 + $0x5f8] sm:$0xf]
    %v3893 = vld [vmem:[#allocation17 + $0x5fc] sm:$0xf]
    %v3894 = vld [vmem:[#allocation17 + $0x600] sm:$0xf]
    %v3895 = vld [vmem:[#allocation17 + $0x604] sm:$0xf]
    %v3896 = vld [vmem:[#allocation17 + $0x608] sm:$0xf]
    %v3897 = vld [vmem:[#allocation17 + $0x60c] sm:$0xf]
    %v3898 = vld [vmem:[#allocation17 + $0x610] sm:$0xf]
    %v3899 = vld [vmem:[#allocation17 + $0x614] sm:$0xf]
    %v3900 = vld [vmem:[#allocation17 + $0x618] sm:$0xf]
    %v3901 = vld [vmem:[#allocation17 + $0x61c] sm:$0xf]
    %v3902 = vld [vmem:[#allocation17 + $0x620] sm:$0xf]
    %v3903 = vld [vmem:[#allocation17 + $0x624] sm:$0xf]
    %v3904 = vld [vmem:[#allocation17 + $0x628] sm:$0xf]
    %v3905 = vld [vmem:[#allocation17 + $0x62c] sm:$0xf]
    %v3906 = vld [vmem:[#allocation17 + $0x630] sm:$0xf]
    %v3907 = vld [vmem:[#allocation17 + $0x634] sm:$0xf]
    %v3908 = vld [vmem:[#allocation17 + $0x638] sm:$0xf]
    %v3909 = vld [vmem:[#allocation17 + $0x63c] sm:$0xf]
    %v3910 = vld [vmem:[#allocation17 + $0x640] sm:$0xf]
    %v3911 = vld [vmem:[#allocation17 + $0x644] sm:$0xf]
    %v3912 = vld [vmem:[#allocation17 + $0x648] sm:$0xf]
    %v3913 = vld [vmem:[#allocation17 + $0x64c] sm:$0xf]
    %v3914 = vld [vmem:[#allocation17 + $0x650] sm:$0xf]
    %v3915 = vld [vmem:[#allocation17 + $0x654] sm:$0xf]
    %v3916 = vld [vmem:[#allocation17 + $0x658] sm:$0xf]
    %v3917 = vld [vmem:[#allocation17 + $0x65c] sm:$0xf]
    %v3918 = vld [vmem:[#allocation17 + $0x660] sm:$0xf]
    %v3919 = vld [vmem:[#allocation17 + $0x664] sm:$0xf]
    %v3920 = vld [vmem:[#allocation17 + $0x668] sm:$0xf]
    %v3921 = vld [vmem:[#allocation17 + $0x66c] sm:$0xf]
    %v3922 = vld [vmem:[#allocation17 + $0x670] sm:$0xf]
    %v3923 = vld [vmem:[#allocation17 + $0x674] sm:$0xf]
    %v3924 = vld [vmem:[#allocation17 + $0x678] sm:$0xf]
    %v3925 = vld [vmem:[#allocation17 + $0x67c] sm:$0xf]
    %v3926 = vld [vmem:[#allocation17 + $0x680] sm:$0xf]
    %v3927 = vld [vmem:[#allocation17 + $0x684] sm:$0xf]
    %v3928 = vld [vmem:[#allocation17 + $0x688] sm:$0xf]
    %v3929 = vld [vmem:[#allocation17 + $0x68c] sm:$0xf]
    %v3930 = vld [vmem:[#allocation17 + $0x690] sm:$0xf]
    %v3931 = vld [vmem:[#allocation17 + $0x694] sm:$0xf]
    %v3932 = vld [vmem:[#allocation17 + $0x698] sm:$0xf]
    %v3933 = vld [vmem:[#allocation17 + $0x69c] sm:$0xf]
    %v3934 = vld [vmem:[#allocation17 + $0x6a0] sm:$0xf]
    %v3935 = vld [vmem:[#allocation17 + $0x6a4] sm:$0xf]
    %v3936 = vld [vmem:[#allocation17 + $0x6a8] sm:$0xf]
    %v3937 = vld [vmem:[#allocation17 + $0x6ac] sm:$0xf]
    %v3938 = vld [vmem:[#allocation17 + $0x6b0] sm:$0xf]
    %v3939 = vld [vmem:[#allocation17 + $0x6b4] sm:$0xf]
    %v3940 = vld [vmem:[#allocation17 + $0x6b8] sm:$0xf]
    %v3941 = vld [vmem:[#allocation17 + $0x6bc] sm:$0xf]
    %v3942 = vld [vmem:[#allocation17 + $0x6c0] sm:$0xf]
    %v3943 = vld [vmem:[#allocation17 + $0x6c4] sm:$0xf]
    %v3944 = vld [vmem:[#allocation17 + $0x6c8] sm:$0xf]
    %v3945 = vld [vmem:[#allocation17 + $0x6cc] sm:$0xf]
    %v3946 = vld [vmem:[#allocation17 + $0x6d0] sm:$0xf]
    %v3947 = vld [vmem:[#allocation17 + $0x6d4] sm:$0xf]
    %v3948 = vld [vmem:[#allocation17 + $0x6d8] sm:$0xf]
    %v3949 = vld [vmem:[#allocation17 + $0x6dc] sm:$0xf]
    %v3950 = vld [vmem:[#allocation17 + $0x6e0] sm:$0xf]
    %v3951 = vld [vmem:[#allocation17 + $0x6e4] sm:$0xf]
    %v3952 = vld [vmem:[#allocation17 + $0x6e8] sm:$0xf]
    %v3953 = vld [vmem:[#allocation17 + $0x6ec] sm:$0xf]
    %v3954 = vld [vmem:[#allocation17 + $0x6f0] sm:$0xf]
    %v3955 = vld [vmem:[#allocation17 + $0x6f4] sm:$0xf]
    %v3956 = vld [vmem:[#allocation17 + $0x6f8] sm:$0xf]
    %v3957 = vld [vmem:[#allocation17 + $0x6fc] sm:$0xf]
    %v3958 = vld [vmem:[#allocation17 + $0x700] sm:$0xf]
    %v3959 = vld [vmem:[#allocation17 + $0x704] sm:$0xf]
    %v3960 = vld [vmem:[#allocation17 + $0x708] sm:$0xf]
    %v3961 = vld [vmem:[#allocation17 + $0x70c] sm:$0xf]
    %v3962 = vld [vmem:[#allocation17 + $0x710] sm:$0xf]
    %v3963 = vld [vmem:[#allocation17 + $0x714] sm:$0xf]
    %v3964 = vld [vmem:[#allocation17 + $0x718] sm:$0xf]
    %v3965 = vld [vmem:[#allocation17 + $0x71c] sm:$0xf]
    %v3966 = vld [vmem:[#allocation17 + $0x720] sm:$0xf]
    %v3967 = vld [vmem:[#allocation17 + $0x724] sm:$0xf]
    %v3968 = vld [vmem:[#allocation17 + $0x728] sm:$0xf]
    %v3969 = vld [vmem:[#allocation17 + $0x72c] sm:$0xf]
    %v3970 = vld [vmem:[#allocation17 + $0x730] sm:$0xf]
    %v3971 = vld [vmem:[#allocation17 + $0x734] sm:$0xf]
    %v3972 = vld [vmem:[#allocation17 + $0x738] sm:$0xf]
    %v3973 = vld [vmem:[#allocation17 + $0x73c] sm:$0xf]
    %v3974 = vld [vmem:[#allocation17 + $0x740] sm:$0xf]
    %v3975 = vld [vmem:[#allocation17 + $0x744] sm:$0xf]
    %v3976 = vld [vmem:[#allocation17 + $0x748] sm:$0xf]
    %v3977 = vld [vmem:[#allocation17 + $0x74c] sm:$0xf]
    %v3978 = vld [vmem:[#allocation17 + $0x750] sm:$0xf]
    %v3979 = vld [vmem:[#allocation17 + $0x754] sm:$0xf]
    %v3980 = vld [vmem:[#allocation17 + $0x758] sm:$0xf]
    %v3981 = vld [vmem:[#allocation17 + $0x75c] sm:$0xf]
    %v3982 = vld [vmem:[#allocation17 + $0x760] sm:$0xf]
    %v3983 = vld [vmem:[#allocation17 + $0x764] sm:$0xf]
    %v3984 = vld [vmem:[#allocation17 + $0x768] sm:$0xf]
    %v3985 = vld [vmem:[#allocation17 + $0x76c] sm:$0xf]
    %v3986 = vld [vmem:[#allocation17 + $0x770] sm:$0xf]
    %v3987 = vld [vmem:[#allocation17 + $0x774] sm:$0xf]
    %v3988 = vld [vmem:[#allocation17 + $0x778] sm:$0xf]
    %v3989 = vld [vmem:[#allocation17 + $0x77c] sm:$0xf]
    %v3990 = vld [vmem:[#allocation17 + $0x780] sm:$0xf]
    %v3991 = vld [vmem:[#allocation17 + $0x784] sm:$0xf]
    %v3992 = vld [vmem:[#allocation17 + $0x788] sm:$0xf]
    %v3993 = vld [vmem:[#allocation17 + $0x78c] sm:$0xf]
    %v3994 = vld [vmem:[#allocation17 + $0x790] sm:$0xf]
    %v3995 = vld [vmem:[#allocation17 + $0x794] sm:$0xf]
    %v3996 = vld [vmem:[#allocation17 + $0x798] sm:$0xf]
    %v3997 = vld [vmem:[#allocation17 + $0x79c] sm:$0xf]
    %v3998 = vld [vmem:[#allocation17 + $0x7a0] sm:$0xf]
    %v3999 = vld [vmem:[#allocation17 + $0x7a4] sm:$0xf]
    %v4000 = vld [vmem:[#allocation17 + $0x7a8] sm:$0xf]
    %v4001 = vld [vmem:[#allocation17 + $0x7ac] sm:$0xf]
    %v4002 = vld [vmem:[#allocation17 + $0x7b0] sm:$0xf]
    %v4003 = vld [vmem:[#allocation17 + $0x7b4] sm:$0xf]
    %v4004 = vld [vmem:[#allocation17 + $0x7b8] sm:$0xf]
    %v4005 = vld [vmem:[#allocation17 + $0x7bc] sm:$0xf]
    %v4006 = vld [vmem:[#allocation17 + $0x7c0] sm:$0xf]
    %v4007 = vld [vmem:[#allocation17 + $0x7c4] sm:$0xf]
    %v4008 = vld [vmem:[#allocation17 + $0x7c8] sm:$0xf]
    %v4009 = vld [vmem:[#allocation17 + $0x7cc] sm:$0xf]
    %v4010 = vld [vmem:[#allocation17 + $0x7d0] sm:$0xf]
    %v4011 = vld [vmem:[#allocation17 + $0x7d4] sm:$0xf]
    %v4012 = vld [vmem:[#allocation17 + $0x7d8] sm:$0xf]
    %v4013 = vld [vmem:[#allocation17 + $0x7dc] sm:$0xf]
    %v4014 = vld [vmem:[#allocation17 + $0x7e0] sm:$0xf]
    %v4015 = vld [vmem:[#allocation17 + $0x7e4] sm:$0xf]
    %v4016 = vld [vmem:[#allocation17 + $0x7e8] sm:$0xf]
    %v4017 = vld [vmem:[#allocation17 + $0x7ec] sm:$0xf]
    %v4018 = vld [vmem:[#allocation17 + $0x7f0] sm:$0xf]
    %v4019 = vld [vmem:[#allocation17 + $0x7f4] sm:$0xf]
    %v4020 = vld [vmem:[#allocation17 + $0x7f8] sm:$0xf]
    %v4021 = vld [vmem:[#allocation17 + $0x7fc] sm:$0xf]
    %v4022 = vld [vmem:[#allocation17 + $0x800] sm:$0xf]
    %v4023 = vld [vmem:[#allocation17 + $0x804] sm:$0xf]
    %v4024 = vld [vmem:[#allocation17 + $0x808] sm:$0xf]
    %v4025 = vld [vmem:[#allocation17 + $0x80c] sm:$0xf]
    %v4026 = vld [vmem:[#allocation17 + $0x810] sm:$0xf]
    %v4027 = vld [vmem:[#allocation17 + $0x814] sm:$0xf]
    %v4028 = vld [vmem:[#allocation17 + $0x818] sm:$0xf]
    %v4029 = vld [vmem:[#allocation17 + $0x81c] sm:$0xf]
    %v4030 = vld [vmem:[#allocation17 + $0x820] sm:$0xf]
    %v4031 = vld [vmem:[#allocation17 + $0x824] sm:$0xf]
    %v4032 = vld [vmem:[#allocation17 + $0x828] sm:$0xf]
    %v4033 = vld [vmem:[#allocation17 + $0x82c] sm:$0xf]
    %v4034 = vld [vmem:[#allocation17 + $0x830] sm:$0xf]
    %v4035 = vld [vmem:[#allocation17 + $0x834] sm:$0xf]
    %v4036 = vld [vmem:[#allocation17 + $0x838] sm:$0xf]
    %v4037 = vld [vmem:[#allocation17 + $0x83c] sm:$0xf]
    %v4038 = vld [vmem:[#allocation17 + $0x840] sm:$0xf]
    %v4039 = vld [vmem:[#allocation17 + $0x844] sm:$0xf]
    %v4040 = vld [vmem:[#allocation17 + $0x848] sm:$0xf]
    %v4041 = vld [vmem:[#allocation17 + $0x84c] sm:$0xf]
    %v4042 = vld [vmem:[#allocation17 + $0x850] sm:$0xf]
    %v4043 = vld [vmem:[#allocation17 + $0x854] sm:$0xf]
    %v4044 = vld [vmem:[#allocation17 + $0x858] sm:$0xf]
    %v4045 = vld [vmem:[#allocation17 + $0x85c] sm:$0xf]
    %v4046 = vld [vmem:[#allocation17 + $0x860] sm:$0xf]
    %v4047 = vld [vmem:[#allocation17 + $0x864] sm:$0xf]
    %v4048 = vld [vmem:[#allocation17 + $0x868] sm:$0xf]
    %v4049 = vld [vmem:[#allocation17 + $0x86c] sm:$0xf]
    %v4050 = vld [vmem:[#allocation17 + $0x870] sm:$0xf]
    %v4051 = vld [vmem:[#allocation17 + $0x874] sm:$0xf]
    %v4052 = vld [vmem:[#allocation17 + $0x878] sm:$0xf]
    %v4053 = vld [vmem:[#allocation17 + $0x87c] sm:$0xf]
    %v4054 = vld [vmem:[#allocation17 + $0x880] sm:$0xf]
    %v4055 = vld [vmem:[#allocation17 + $0x884] sm:$0xf]
    %v4056 = vld [vmem:[#allocation17 + $0x888] sm:$0xf]
    %v4057 = vld [vmem:[#allocation17 + $0x88c] sm:$0xf]
    %v4058 = vld [vmem:[#allocation17 + $0x890] sm:$0xf]
    %v4059 = vld [vmem:[#allocation17 + $0x894] sm:$0xf]
    %v4060 = vld [vmem:[#allocation17 + $0x898] sm:$0xf]
    %v4061 = vld [vmem:[#allocation17 + $0x89c] sm:$0xf]
    %v4062 = vld [vmem:[#allocation17 + $0x8a0] sm:$0xf]
    %v4063 = vld [vmem:[#allocation17 + $0x8a4] sm:$0xf]
    %v4064 = vld [vmem:[#allocation17 + $0x8a8] sm:$0xf]
    %v4065 = vld [vmem:[#allocation17 + $0x8ac] sm:$0xf]
    %v4066 = vld [vmem:[#allocation17 + $0x8b0] sm:$0xf]
    %v4067 = vld [vmem:[#allocation17 + $0x8b4] sm:$0xf]
    %v4068 = vld [vmem:[#allocation17 + $0x8b8] sm:$0xf]
    %v4069 = vld [vmem:[#allocation17 + $0x8bc] sm:$0xf]
    %v4070 = vld [vmem:[#allocation17 + $0x8c0] sm:$0xf]
    %v4071 = vld [vmem:[#allocation17 + $0x8c4] sm:$0xf]
    %v4072 = vld [vmem:[#allocation17 + $0x8c8] sm:$0xf]
    %v4073 = vld [vmem:[#allocation17 + $0x8cc] sm:$0xf]
    %v4074 = vld [vmem:[#allocation17 + $0x8d0] sm:$0xf]
    %v4075 = vld [vmem:[#allocation17 + $0x8d4] sm:$0xf]
    %v4076 = vld [vmem:[#allocation17 + $0x8d8] sm:$0xf]
    %v4077 = vld [vmem:[#allocation17 + $0x8dc] sm:$0xf]
    %v4078 = vld [vmem:[#allocation17 + $0x8e0] sm:$0xf]
    %v4079 = vld [vmem:[#allocation17 + $0x8e4] sm:$0xf]
    %v4080 = vld [vmem:[#allocation17 + $0x8e8] sm:$0xf]
    %v4081 = vld [vmem:[#allocation17 + $0x8ec] sm:$0xf]
    %v4082 = vld [vmem:[#allocation17 + $0x8f0] sm:$0xf]
    %v4083 = vld [vmem:[#allocation17 + $0x8f4] sm:$0xf]
    %v4084 = vld [vmem:[#allocation17 + $0x8f8] sm:$0xf]
    %v4085 = vld [vmem:[#allocation17 + $0x8fc] sm:$0xf]
    %v4086 = vld [vmem:[#allocation17 + $0x900] sm:$0xf]
    %v4087 = vld [vmem:[#allocation17 + $0x904] sm:$0xf]
    %v4088 = vld [vmem:[#allocation17 + $0x908] sm:$0xf]
    %v4089 = vld [vmem:[#allocation17 + $0x90c] sm:$0xf]
    %v4090 = vld [vmem:[#allocation17 + $0x910] sm:$0xf]
    %v4091 = vld [vmem:[#allocation17 + $0x914] sm:$0xf]
    %v4092 = vld [vmem:[#allocation17 + $0x918] sm:$0xf]
    %v4093 = vld [vmem:[#allocation17 + $0x91c] sm:$0xf]
    %v4094 = vld [vmem:[#allocation17 + $0x920] sm:$0xf]
    %v4095 = vld [vmem:[#allocation17 + $0x924] sm:$0xf]
    %v4096 = vld [vmem:[#allocation17 + $0x928] sm:$0xf]
    %v4097 = vld [vmem:[#allocation17 + $0x92c] sm:$0xf]
    %v4098 = vld [vmem:[#allocation17 + $0x930] sm:$0xf]
    %v4099 = vld [vmem:[#allocation17 + $0x934] sm:$0xf]
    %v4100 = vld [vmem:[#allocation17 + $0x938] sm:$0xf]
    %v4101 = vld [vmem:[#allocation17 + $0x93c] sm:$0xf]
    %v4102 = vld [vmem:[#allocation17 + $0x940] sm:$0xf]
    %v4103 = vld [vmem:[#allocation17 + $0x944] sm:$0xf]
    %v4104 = vld [vmem:[#allocation17 + $0x948] sm:$0xf]
    %v4105 = vld [vmem:[#allocation17 + $0x94c] sm:$0xf]
    %v4106 = vld [vmem:[#allocation17 + $0x950] sm:$0xf]
    %v4107 = vld [vmem:[#allocation17 + $0x954] sm:$0xf]
    %v4108 = vld [vmem:[#allocation17 + $0x958] sm:$0xf]
    %v4109 = vld [vmem:[#allocation17 + $0x95c] sm:$0xf]
    %v4110 = vld [vmem:[#allocation17 + $0x960] sm:$0xf]
    %v4111 = vld [vmem:[#allocation17 + $0x964] sm:$0xf]
    %v4112 = vld [vmem:[#allocation17 + $0x968] sm:$0xf]
    %v4113 = vld [vmem:[#allocation17 + $0x96c] sm:$0xf]
    %v4114 = vld [vmem:[#allocation17 + $0x970] sm:$0xf]
    %v4115 = vld [vmem:[#allocation17 + $0x974] sm:$0xf]
    %v4116 = vld [vmem:[#allocation17 + $0x978] sm:$0xf]
    %v4117 = vld [vmem:[#allocation17 + $0x97c] sm:$0xf]
    %v4118 = vld [vmem:[#allocation17 + $0x980] sm:$0xf]
    %v4119 = vld [vmem:[#allocation17 + $0x984] sm:$0xf]
    %v4120 = vld [vmem:[#allocation17 + $0x988] sm:$0xf]
    %v4121 = vld [vmem:[#allocation17 + $0x98c] sm:$0xf]
    %v4122 = vld [vmem:[#allocation17 + $0x990] sm:$0xf]
    %v4123 = vld [vmem:[#allocation17 + $0x994] sm:$0xf]
    %v4124 = vld [vmem:[#allocation17 + $0x998] sm:$0xf]
    %v4125 = vld [vmem:[#allocation17 + $0x99c] sm:$0xf]
    %v4126 = vld [vmem:[#allocation17 + $0x9a0] sm:$0xf]
    %v4127 = vld [vmem:[#allocation17 + $0x9a4] sm:$0xf]
    %v4128 = vld [vmem:[#allocation17 + $0x9a8] sm:$0xf]
    %v4129 = vld [vmem:[#allocation17 + $0x9ac] sm:$0xf]
    %v4130 = vld [vmem:[#allocation17 + $0x9b0] sm:$0xf]
    %v4131 = vld [vmem:[#allocation17 + $0x9b4] sm:$0xf]
    %v4132 = vld [vmem:[#allocation17 + $0x9b8] sm:$0xf]
    %v4133 = vld [vmem:[#allocation17 + $0x9bc] sm:$0xf]
    %v4134 = vld [vmem:[#allocation17 + $0x9c0] sm:$0xf]
    %v4135 = vld [vmem:[#allocation17 + $0x9c4] sm:$0xf]
    %v4136 = vld [vmem:[#allocation17 + $0x9c8] sm:$0xf]
    %v4137 = vld [vmem:[#allocation17 + $0x9cc] sm:$0xf]
    %v4138 = vld [vmem:[#allocation17 + $0x9d0] sm:$0xf]
    %v4139 = vld [vmem:[#allocation17 + $0x9d4] sm:$0xf]
    %v4140 = vld [vmem:[#allocation17 + $0x9d8] sm:$0xf]
    %v4141 = vld [vmem:[#allocation17 + $0x9dc] sm:$0xf]
    %v4142 = vld [vmem:[#allocation17 + $0x9e0] sm:$0xf]
    %v4143 = vld [vmem:[#allocation17 + $0x9e4] sm:$0xf]
    %v4144 = vld [vmem:[#allocation17 + $0x9e8] sm:$0xf]
    %v4145 = vld [vmem:[#allocation17 + $0x9ec] sm:$0xf]
    %v4146 = vld [vmem:[#allocation17 + $0x9f0] sm:$0xf]
    %v4147 = vld [vmem:[#allocation17 + $0x9f4] sm:$0xf]
    %v4148 = vld [vmem:[#allocation17 + $0x9f8] sm:$0xf]
    %v4149 = vld [vmem:[#allocation17 + $0x9fc] sm:$0xf]
    %v4150 = vld [vmem:[#allocation17 + $0xa00] sm:$0xf]
    %v4151 = vld [vmem:[#allocation17 + $0xa04] sm:$0xf]
    %v4152 = vld [vmem:[#allocation17 + $0xa08] sm:$0xf]
    %v4153 = vld [vmem:[#allocation17 + $0xa0c] sm:$0xf]
    %v4154 = vld [vmem:[#allocation17 + $0xa10] sm:$0xf]
    %v4155 = vld [vmem:[#allocation17 + $0xa14] sm:$0xf]
    %v4156 = vld [vmem:[#allocation17 + $0xa18] sm:$0xf]
    %v4157 = vld [vmem:[#allocation17 + $0xa1c] sm:$0xf]
    %v4158 = vld [vmem:[#allocation17 + $0xa20] sm:$0xf]
    %v4159 = vld [vmem:[#allocation17 + $0xa24] sm:$0xf]
    %v4160 = vld [vmem:[#allocation17 + $0xa28] sm:$0xf]
    %v4161 = vld [vmem:[#allocation17 + $0xa2c] sm:$0xf]
    %v4162 = vld [vmem:[#allocation17 + $0xa30] sm:$0xf]
    %v4163 = vld [vmem:[#allocation17 + $0xa34] sm:$0xf]
    %v4164 = vld [vmem:[#allocation17 + $0xa38] sm:$0xf]
    %v4165 = vld [vmem:[#allocation17 + $0xa3c] sm:$0xf]
    %v4166 = vld [vmem:[#allocation17 + $0xa40] sm:$0xf]
    %v4167 = vld [vmem:[#allocation17 + $0xa44] sm:$0xf]
    %v4168 = vld [vmem:[#allocation17 + $0xa48] sm:$0xf]
    %v4169 = vld [vmem:[#allocation17 + $0xa4c] sm:$0xf]
    %v4170 = vld [vmem:[#allocation17 + $0xa50] sm:$0xf]
    %v4171 = vld [vmem:[#allocation17 + $0xa54] sm:$0xf]
    %v4172 = vld [vmem:[#allocation17 + $0xa58] sm:$0xf]
    %v4173 = vld [vmem:[#allocation17 + $0xa5c] sm:$0xf]
    %v4174 = vld [vmem:[#allocation17 + $0xa60] sm:$0xf]
    %v4175 = vld [vmem:[#allocation17 + $0xa64] sm:$0xf]
    %v4176 = vld [vmem:[#allocation17 + $0xa68] sm:$0xf]
    %v4177 = vld [vmem:[#allocation17 + $0xa6c] sm:$0xf]
    %v4178 = vld [vmem:[#allocation17 + $0xa70] sm:$0xf]
    %v4179 = vld [vmem:[#allocation17 + $0xa74] sm:$0xf]
    %v4180 = vld [vmem:[#allocation17 + $0xa78] sm:$0xf]
    %v4181 = vld [vmem:[#allocation17 + $0xa7c] sm:$0xf]
    %v4182 = vld [vmem:[#allocation17 + $0xa80] sm:$0xf]
    %v4183 = vld [vmem:[#allocation17 + $0xa84] sm:$0xf]
    %v4184 = vld [vmem:[#allocation17 + $0xa88] sm:$0xf]
    %v4185 = vld [vmem:[#allocation17 + $0xa8c] sm:$0xf]
    %v4186 = vld [vmem:[#allocation17 + $0xa90] sm:$0xf]
    %v4187 = vld [vmem:[#allocation17 + $0xa94] sm:$0xf]
    %v4188 = vld [vmem:[#allocation17 + $0xa98] sm:$0xf]
    %v4189 = vld [vmem:[#allocation17 + $0xa9c] sm:$0xf]
    %v4190 = vld [vmem:[#allocation17 + $0xaa0] sm:$0xf]
    %v4191 = vld [vmem:[#allocation17 + $0xaa4] sm:$0xf]
    %v4192 = vld [vmem:[#allocation17 + $0xaa8] sm:$0xf]
    %v4193 = vld [vmem:[#allocation17 + $0xaac] sm:$0xf]
    %v4194 = vld [vmem:[#allocation17 + $0xab0] sm:$0xf]
    %v4195 = vld [vmem:[#allocation17 + $0xab4] sm:$0xf]
    %v4196 = vld [vmem:[#allocation17 + $0xab8] sm:$0xf]
    %v4197 = vld [vmem:[#allocation17 + $0xabc] sm:$0xf]
    %v4198 = vld [vmem:[#allocation17 + $0xac0] sm:$0xf]
    %v4199 = vld [vmem:[#allocation17 + $0xac4] sm:$0xf]
    %v4200 = vld [vmem:[#allocation17 + $0xac8] sm:$0xf]
    %v4201 = vld [vmem:[#allocation17 + $0xacc] sm:$0xf]
    %v4202 = vld [vmem:[#allocation17 + $0xad0] sm:$0xf]
    %v4203 = vld [vmem:[#allocation17 + $0xad4] sm:$0xf]
    %v4204 = vld [vmem:[#allocation17 + $0xad8] sm:$0xf]
    %v4205 = vld [vmem:[#allocation17 + $0xadc] sm:$0xf]
    %v4206 = vld [vmem:[#allocation17 + $0xae0] sm:$0xf]
    %v4207 = vld [vmem:[#allocation17 + $0xae4] sm:$0xf]
    %v4208 = vld [vmem:[#allocation17 + $0xae8] sm:$0xf]
    %v4209 = vld [vmem:[#allocation17 + $0xaec] sm:$0xf]
    %v4210 = vld [vmem:[#allocation17 + $0xaf0] sm:$0xf]
    %v4211 = vld [vmem:[#allocation17 + $0xaf4] sm:$0xf]
    %v4212 = vld [vmem:[#allocation17 + $0xaf8] sm:$0xf]
    %v4213 = vld [vmem:[#allocation17 + $0xafc] sm:$0xf]
    %v4214 = vld [vmem:[#allocation17 + $0xb00] sm:$0xf]
    %v4215 = vld [vmem:[#allocation17 + $0xb04] sm:$0xf]
    %v4216 = vld [vmem:[#allocation17 + $0xb08] sm:$0xf]
    %v4217 = vld [vmem:[#allocation17 + $0xb0c] sm:$0xf]
    %v4218 = vld [vmem:[#allocation17 + $0xb10] sm:$0xf]
    %v4219 = vld [vmem:[#allocation17 + $0xb14] sm:$0xf]
    %v4220 = vld [vmem:[#allocation17 + $0xb18] sm:$0xf]
    %v4221 = vld [vmem:[#allocation17 + $0xb1c] sm:$0xf]
    %v4222 = vld [vmem:[#allocation17 + $0xb20] sm:$0xf]
    %v4223 = vld [vmem:[#allocation17 + $0xb24] sm:$0xf]
    %v4224 = vld [vmem:[#allocation17 + $0xb28] sm:$0xf]
    %v4225 = vld [vmem:[#allocation17 + $0xb2c] sm:$0xf]
    %v4226 = vld [vmem:[#allocation17 + $0xb30] sm:$0xf]
    %v4227 = vld [vmem:[#allocation17 + $0xb34] sm:$0xf]
    %v4228 = vld [vmem:[#allocation17 + $0xb38] sm:$0xf]
    %v4229 = vld [vmem:[#allocation17 + $0xb3c] sm:$0xf]
    %v4230 = vld [vmem:[#allocation17 + $0xb40] sm:$0xf]
    %v4231 = vld [vmem:[#allocation17 + $0xb44] sm:$0xf]
    %v4232 = vld [vmem:[#allocation17 + $0xb48] sm:$0xf]
    %v4233 = vld [vmem:[#allocation17 + $0xb4c] sm:$0xf]
    %v4234 = vld [vmem:[#allocation17 + $0xb50] sm:$0xf]
    %v4235 = vld [vmem:[#allocation17 + $0xb54] sm:$0xf]
    %v4236 = vld [vmem:[#allocation17 + $0xb58] sm:$0xf]
    %v4237 = vld [vmem:[#allocation17 + $0xb5c] sm:$0xf]
    %v4238 = vld [vmem:[#allocation17 + $0xb60] sm:$0xf]
    %v4239 = vld [vmem:[#allocation17 + $0xb64] sm:$0xf]
    %v4240 = vld [vmem:[#allocation17 + $0xb68] sm:$0xf]
    %v4241 = vld [vmem:[#allocation17 + $0xb6c] sm:$0xf]
    %v4242 = vld [vmem:[#allocation17 + $0xb70] sm:$0xf]
    %v4243 = vld [vmem:[#allocation17 + $0xb74] sm:$0xf]
    %v4244 = vld [vmem:[#allocation17 + $0xb78] sm:$0xf]
    %v4245 = vld [vmem:[#allocation17 + $0xb7c] sm:$0xf]
    %v4246 = vld [vmem:[#allocation17 + $0xb80] sm:$0xf]
    %v4247 = vld [vmem:[#allocation17 + $0xb84] sm:$0xf]
    %v4248 = vld [vmem:[#allocation17 + $0xb88] sm:$0xf]
    %v4249 = vld [vmem:[#allocation17 + $0xb8c] sm:$0xf]
    %v4250 = vld [vmem:[#allocation17 + $0xb90] sm:$0xf]
    %v4251 = vld [vmem:[#allocation17 + $0xb94] sm:$0xf]
    %v4252 = vld [vmem:[#allocation17 + $0xb98] sm:$0xf]
    %v4253 = vld [vmem:[#allocation17 + $0xb9c] sm:$0xf]
    %v4254 = vld [vmem:[#allocation17 + $0xba0] sm:$0xf]
    %v4255 = vld [vmem:[#allocation17 + $0xba4] sm:$0xf]
    %v4256 = vld [vmem:[#allocation17 + $0xba8] sm:$0xf]
    %v4257 = vld [vmem:[#allocation17 + $0xbac] sm:$0xf]
    %v4258 = vld [vmem:[#allocation17 + $0xbb0] sm:$0xf]
    %v4259 = vld [vmem:[#allocation17 + $0xbb4] sm:$0xf]
    %v4260 = vld [vmem:[#allocation17 + $0xbb8] sm:$0xf]
    %v4261 = vld [vmem:[#allocation17 + $0xbbc] sm:$0xf]
    %v4262 = vld [vmem:[#allocation17 + $0xbc0] sm:$0xf]
    %v4263 = vld [vmem:[#allocation17 + $0xbc4] sm:$0xf]
    %v4264 = vld [vmem:[#allocation17 + $0xbc8] sm:$0xf]
    %v4265 = vld [vmem:[#allocation17 + $0xbcc] sm:$0xf]
    %v4266 = vld [vmem:[#allocation17 + $0xbd0] sm:$0xf]
    %v4267 = vld [vmem:[#allocation17 + $0xbd4] sm:$0xf]
    %v4268 = vld [vmem:[#allocation17 + $0xbd8] sm:$0xf]
    %v4269 = vld [vmem:[#allocation17 + $0xbdc] sm:$0xf]
    %v4270 = vld [vmem:[#allocation17 + $0xbe0] sm:$0xf]
    %v4271 = vld [vmem:[#allocation17 + $0xbe4] sm:$0xf]
    %v4272 = vld [vmem:[#allocation17 + $0xbe8] sm:$0xf]
    %v4273 = vld [vmem:[#allocation17 + $0xbec] sm:$0xf]
    %v4274 = vld [vmem:[#allocation17 + $0xbf0] sm:$0xf]
    %v4275 = vld [vmem:[#allocation17 + $0xbf4] sm:$0xf]
    %v4276 = vld [vmem:[#allocation17 + $0xbf8] sm:$0xf]
    %v4277 = vld [vmem:[#allocation17 + $0xbfc] sm:$0xf]
    %v4278 = vld [vmem:[#allocation17 + $0xc00] sm:$0xf]
    %v4279 = vld [vmem:[#allocation17 + $0xc04] sm:$0xf]
    %v4280 = vld [vmem:[#allocation17 + $0xc08] sm:$0xf]
    %v4281 = vld [vmem:[#allocation17 + $0xc0c] sm:$0xf]
    %v4282 = vld [vmem:[#allocation17 + $0xc10] sm:$0xf]
    %v4283 = vld [vmem:[#allocation17 + $0xc14] sm:$0xf]
    %v4284 = vld [vmem:[#allocation17 + $0xc18] sm:$0xf]
    %v4285 = vld [vmem:[#allocation17 + $0xc1c] sm:$0xf]
    %v4286 = vld [vmem:[#allocation17 + $0xc20] sm:$0xf]
    %v4287 = vld [vmem:[#allocation17 + $0xc24] sm:$0xf]
    %v4288 = vld [vmem:[#allocation17 + $0xc28] sm:$0xf]
    %v4289 = vld [vmem:[#allocation17 + $0xc2c] sm:$0xf]
    %v4290 = vld [vmem:[#allocation17 + $0xc30] sm:$0xf]
    %v4291 = vld [vmem:[#allocation17 + $0xc34] sm:$0xf]
    %v4292 = vld [vmem:[#allocation17 + $0xc38] sm:$0xf]
    %v4293 = vld [vmem:[#allocation17 + $0xc3c] sm:$0xf]
    %v4294 = vld [vmem:[#allocation17 + $0xc40] sm:$0xf]
    %v4295 = vld [vmem:[#allocation17 + $0xc44] sm:$0xf]
    %v4296 = vld [vmem:[#allocation17 + $0xc48] sm:$0xf]
    %v4297 = vld [vmem:[#allocation17 + $0xc4c] sm:$0xf]
    %v4298 = vld [vmem:[#allocation17 + $0xc50] sm:$0xf]
    %v4299 = vld [vmem:[#allocation17 + $0xc54] sm:$0xf]
    %v4300 = vld [vmem:[#allocation17 + $0xc58] sm:$0xf]
    %v4301 = vld [vmem:[#allocation17 + $0xc5c] sm:$0xf]
    %v4302 = vld [vmem:[#allocation17 + $0xc60] sm:$0xf]
    %v4303 = vld [vmem:[#allocation17 + $0xc64] sm:$0xf]
    %v4304 = vld [vmem:[#allocation17 + $0xc68] sm:$0xf]
    %v4305 = vld [vmem:[#allocation17 + $0xc6c] sm:$0xf]
    %v4306 = vld [vmem:[#allocation17 + $0xc70] sm:$0xf]
    %v4307 = vld [vmem:[#allocation17 + $0xc74] sm:$0xf]
    %v4308 = vld [vmem:[#allocation17 + $0xc78] sm:$0xf]
    %v4309 = vld [vmem:[#allocation17 + $0xc7c] sm:$0xf]
    %v4310 = vld [vmem:[#allocation17 + $0xc80] sm:$0xf]
    %v4311 = vld [vmem:[#allocation17 + $0xc84] sm:$0xf]
    %v4312 = vld [vmem:[#allocation17 + $0xc88] sm:$0xf]
    %v4313 = vld [vmem:[#allocation17 + $0xc8c] sm:$0xf]
    %v4314 = vld [vmem:[#allocation17 + $0xc90] sm:$0xf]
    %v4315 = vld [vmem:[#allocation17 + $0xc94] sm:$0xf]
    %v4316 = vld [vmem:[#allocation17 + $0xc98] sm:$0xf]
    %v4317 = vld [vmem:[#allocation17 + $0xc9c] sm:$0xf]
    %v4318 = vld [vmem:[#allocation17 + $0xca0] sm:$0xf]
    %v4319 = vld [vmem:[#allocation17 + $0xca4] sm:$0xf]
    %v4320 = vld [vmem:[#allocation17 + $0xca8] sm:$0xf]
    %v4321 = vld [vmem:[#allocation17 + $0xcac] sm:$0xf]
    %v4322 = vld [vmem:[#allocation17 + $0xcb0] sm:$0xf]
    %v4323 = vld [vmem:[#allocation17 + $0xcb4] sm:$0xf]
    %v4324 = vld [vmem:[#allocation17 + $0xcb8] sm:$0xf]
    %v4325 = vld [vmem:[#allocation17 + $0xcbc] sm:$0xf]
    %v4326 = vld [vmem:[#allocation17 + $0xcc0] sm:$0xf]
    %v4327 = vld [vmem:[#allocation17 + $0xcc4] sm:$0xf]
    %v4328 = vld [vmem:[#allocation17 + $0xcc8] sm:$0xf]
    %v4329 = vld [vmem:[#allocation17 + $0xccc] sm:$0xf]
    %v4330 = vld [vmem:[#allocation17 + $0xcd0] sm:$0xf]
    %v4331 = vld [vmem:[#allocation17 + $0xcd4] sm:$0xf]
    %v4332 = vld [vmem:[#allocation17 + $0xcd8] sm:$0xf]
    %v4333 = vld [vmem:[#allocation17 + $0xcdc] sm:$0xf]
    %v4334 = vld [vmem:[#allocation17 + $0xce0] sm:$0xf]
    %v4335 = vld [vmem:[#allocation17 + $0xce4] sm:$0xf]
    %v4336 = vld [vmem:[#allocation17 + $0xce8] sm:$0xf]
    %v4337 = vld [vmem:[#allocation17 + $0xcec] sm:$0xf]
    %v4338 = vld [vmem:[#allocation17 + $0xcf0] sm:$0xf]
    %v4339 = vld [vmem:[#allocation17 + $0xcf4] sm:$0xf]
    %v4340 = vld [vmem:[#allocation17 + $0xcf8] sm:$0xf]
    %v4341 = vld [vmem:[#allocation17 + $0xcfc] sm:$0xf]
    %v4342 = vld [vmem:[#allocation17 + $0xd00] sm:$0xf]
    %v4343 = vld [vmem:[#allocation17 + $0xd04] sm:$0xf]
    %v4344 = vld [vmem:[#allocation17 + $0xd08] sm:$0xf]
    %v4345 = vld [vmem:[#allocation17 + $0xd0c] sm:$0xf]
    %v4346 = vld [vmem:[#allocation17 + $0xd10] sm:$0xf]
    %v4347 = vld [vmem:[#allocation17 + $0xd14] sm:$0xf]
    %v4348 = vld [vmem:[#allocation17 + $0xd18] sm:$0xf]
    %v4349 = vld [vmem:[#allocation17 + $0xd1c] sm:$0xf]
    %v4350 = vld [vmem:[#allocation17 + $0xd20] sm:$0xf]
    %v4351 = vld [vmem:[#allocation17 + $0xd24] sm:$0xf]
    %v4352 = vld [vmem:[#allocation17 + $0xd28] sm:$0xf]
    %v4353 = vld [vmem:[#allocation17 + $0xd2c] sm:$0xf]
    %v4354 = vld [vmem:[#allocation17 + $0xd30] sm:$0xf]
    %v4355 = vld [vmem:[#allocation17 + $0xd34] sm:$0xf]
    %v4356 = vld [vmem:[#allocation17 + $0xd38] sm:$0xf]
    %v4357 = vld [vmem:[#allocation17 + $0xd3c] sm:$0xf]
    %v4358 = vld [vmem:[#allocation17 + $0xd40] sm:$0xf]
    %v4359 = vld [vmem:[#allocation17 + $0xd44] sm:$0xf]
    %v4360 = vld [vmem:[#allocation17 + $0xd48] sm:$0xf]
    %v4361 = vld [vmem:[#allocation17 + $0xd4c] sm:$0xf]
    %v4362 = vld [vmem:[#allocation17 + $0xd50] sm:$0xf]
    %v4363 = vld [vmem:[#allocation17 + $0xd54] sm:$0xf]
    %v4364 = vld [vmem:[#allocation17 + $0xd58] sm:$0xf]
    %v4365 = vld [vmem:[#allocation17 + $0xd5c] sm:$0xf]
    %v4366 = vld [vmem:[#allocation17 + $0xd60] sm:$0xf]
    %v4367 = vld [vmem:[#allocation17 + $0xd64] sm:$0xf]
    %v4368 = vld [vmem:[#allocation17 + $0xd68] sm:$0xf]
    %v4369 = vld [vmem:[#allocation17 + $0xd6c] sm:$0xf]
    %v4370 = vld [vmem:[#allocation17 + $0xd70] sm:$0xf]
    %v4371 = vld [vmem:[#allocation17 + $0xd74] sm:$0xf]
    %v4372 = vld [vmem:[#allocation17 + $0xd78] sm:$0xf]
    %v4373 = vld [vmem:[#allocation17 + $0xd7c] sm:$0xf]
    %v4374 = vld [vmem:[#allocation17 + $0xd80] sm:$0xf]
    %v4375 = vld [vmem:[#allocation17 + $0xd84] sm:$0xf]
    %v4376 = vld [vmem:[#allocation17 + $0xd88] sm:$0xf]
    %v4377 = vld [vmem:[#allocation17 + $0xd8c] sm:$0xf]
    %v4378 = vld [vmem:[#allocation17 + $0xd90] sm:$0xf]
    %v4379 = vld [vmem:[#allocation17 + $0xd94] sm:$0xf]
    %v4380 = vld [vmem:[#allocation17 + $0xd98] sm:$0xf]
    %v4381 = vld [vmem:[#allocation17 + $0xd9c] sm:$0xf]
    %v4382 = vld [vmem:[#allocation17 + $0xda0] sm:$0xf]
    %v4383 = vld [vmem:[#allocation17 + $0xda4] sm:$0xf]
    %v4384 = vld [vmem:[#allocation17 + $0xda8] sm:$0xf]
    %v4385 = vld [vmem:[#allocation17 + $0xdac] sm:$0xf]
    %v4386 = vld [vmem:[#allocation17 + $0xdb0] sm:$0xf]
    %v4387 = vld [vmem:[#allocation17 + $0xdb4] sm:$0xf]
    %v4388 = vld [vmem:[#allocation17 + $0xdb8] sm:$0xf]
    %v4389 = vld [vmem:[#allocation17 + $0xdbc] sm:$0xf]
    %v4390 = vld [vmem:[#allocation17 + $0xdc0] sm:$0xf]
    %v4391 = vld [vmem:[#allocation17 + $0xdc4] sm:$0xf]
    %v4392 = vld [vmem:[#allocation17 + $0xdc8] sm:$0xf]
    %v4393 = vld [vmem:[#allocation17 + $0xdcc] sm:$0xf]
    %v4394 = vld [vmem:[#allocation17 + $0xdd0] sm:$0xf]
    %v4395 = vld [vmem:[#allocation17 + $0xdd4] sm:$0xf]
    %v4396 = vld [vmem:[#allocation17 + $0xdd8] sm:$0xf]
    %v4397 = vld [vmem:[#allocation17 + $0xddc] sm:$0xf]
    %v4398 = vld [vmem:[#allocation17 + $0xde0] sm:$0xf]
    %v4399 = vld [vmem:[#allocation17 + $0xde4] sm:$0xf]
    %v4400 = vld [vmem:[#allocation17 + $0xde8] sm:$0xf]
    %v4401 = vld [vmem:[#allocation17 + $0xdec] sm:$0xf]
    %v4402 = vld [vmem:[#allocation17 + $0xdf0] sm:$0xf]
    %v4403 = vld [vmem:[#allocation17 + $0xdf4] sm:$0xf]
    %v4404 = vld [vmem:[#allocation17 + $0xdf8] sm:$0xf]
    %v4405 = vld [vmem:[#allocation17 + $0xdfc] sm:$0xf]
    %v4406 = vld [vmem:[#allocation17 + $0xe00] sm:$0xf]
    %v4407 = vld [vmem:[#allocation17 + $0xe04] sm:$0xf]
    %v4408 = vld [vmem:[#allocation17 + $0xe08] sm:$0xf]
    %v4409 = vld [vmem:[#allocation17 + $0xe0c] sm:$0xf]
    %v4410 = vld [vmem:[#allocation17 + $0xe10] sm:$0xf]
    %v4411 = vld [vmem:[#allocation17 + $0xe14] sm:$0xf]
    %v4412 = vld [vmem:[#allocation17 + $0xe18] sm:$0xf]
    %v4413 = vld [vmem:[#allocation17 + $0xe1c] sm:$0xf]
    %v4414 = vld [vmem:[#allocation17 + $0xe20] sm:$0xf]
    %v4415 = vld [vmem:[#allocation17 + $0xe24] sm:$0xf]
    %v4416 = vld [vmem:[#allocation17 + $0xe28] sm:$0xf]
    %v4417 = vld [vmem:[#allocation17 + $0xe2c] sm:$0xf]
    %v4418 = vld [vmem:[#allocation17 + $0xe30] sm:$0xf]
    %v4419 = vld [vmem:[#allocation17 + $0xe34] sm:$0xf]
    %v4420 = vld [vmem:[#allocation17 + $0xe38] sm:$0xf]
    %v4421 = vld [vmem:[#allocation17 + $0xe3c] sm:$0xf]
    %v4422 = vld [vmem:[#allocation17 + $0xe40] sm:$0xf]
    %v4423 = vld [vmem:[#allocation17 + $0xe44] sm:$0xf]
    %v4424 = vld [vmem:[#allocation17 + $0xe48] sm:$0xf]
    %v4425 = vld [vmem:[#allocation17 + $0xe4c] sm:$0xf]
    %v4426 = vld [vmem:[#allocation17 + $0xe50] sm:$0xf]
    %v4427 = vld [vmem:[#allocation17 + $0xe54] sm:$0xf]
    %v4428 = vld [vmem:[#allocation17 + $0xe58] sm:$0xf]
    %v4429 = vld [vmem:[#allocation17 + $0xe5c] sm:$0xf]
    %v4430 = vld [vmem:[#allocation17 + $0xe60] sm:$0xf]
    %v4431 = vld [vmem:[#allocation17 + $0xe64] sm:$0xf]
    %v4432 = vld [vmem:[#allocation17 + $0xe68] sm:$0xf]
    %v4433 = vld [vmem:[#allocation17 + $0xe6c] sm:$0xf]
    %v4434 = vld [vmem:[#allocation17 + $0xe70] sm:$0xf]
    %v4435 = vld [vmem:[#allocation17 + $0xe74] sm:$0xf]
    %v4436 = vld [vmem:[#allocation17 + $0xe78] sm:$0xf]
    %v4437 = vld [vmem:[#allocation17 + $0xe7c] sm:$0xf]
    %v4438 = vld [vmem:[#allocation17 + $0xe80] sm:$0xf]
    %v4439 = vld [vmem:[#allocation17 + $0xe84] sm:$0xf]
    %v4440 = vld [vmem:[#allocation17 + $0xe88] sm:$0xf]
    %v4441 = vld [vmem:[#allocation17 + $0xe8c] sm:$0xf]
    %v4442 = vld [vmem:[#allocation17 + $0xe90] sm:$0xf]
    %v4443 = vld [vmem:[#allocation17 + $0xe94] sm:$0xf]
    %v4444 = vld [vmem:[#allocation17 + $0xe98] sm:$0xf]
    %v4445 = vld [vmem:[#allocation17 + $0xe9c] sm:$0xf]
    %v4446 = vld [vmem:[#allocation17 + $0xea0] sm:$0xf]
    %v4447 = vld [vmem:[#allocation17 + $0xea4] sm:$0xf]
    %v4448 = vld [vmem:[#allocation17 + $0xea8] sm:$0xf]
    %v4449 = vld [vmem:[#allocation17 + $0xeac] sm:$0xf]
    %v4450 = vld [vmem:[#allocation17 + $0xeb0] sm:$0xf]
    %v4451 = vld [vmem:[#allocation17 + $0xeb4] sm:$0xf]
    %v4452 = vld [vmem:[#allocation17 + $0xeb8] sm:$0xf]
    %v4453 = vld [vmem:[#allocation17 + $0xebc] sm:$0xf]
    %v4454 = vld [vmem:[#allocation17 + $0xec0] sm:$0xf]
    %v4455 = vld [vmem:[#allocation17 + $0xec4] sm:$0xf]
    %v4456 = vld [vmem:[#allocation17 + $0xec8] sm:$0xf]
    %v4457 = vld [vmem:[#allocation17 + $0xecc] sm:$0xf]
    %v4458 = vld [vmem:[#allocation17 + $0xed0] sm:$0xf]
    %v4459 = vld [vmem:[#allocation17 + $0xed4] sm:$0xf]
    %v4460 = vld [vmem:[#allocation17 + $0xed8] sm:$0xf]
    %v4461 = vld [vmem:[#allocation17 + $0xedc] sm:$0xf]
    %v4462 = vld [vmem:[#allocation17 + $0xee0] sm:$0xf]
    %v4463 = vld [vmem:[#allocation17 + $0xee4] sm:$0xf]
    %v4464 = vld [vmem:[#allocation17 + $0xee8] sm:$0xf]
    %v4465 = vld [vmem:[#allocation17 + $0xeec] sm:$0xf]
    %v4466 = vld [vmem:[#allocation17 + $0xef0] sm:$0xf]
    %v4467 = vld [vmem:[#allocation17 + $0xef4] sm:$0xf]
    %v4468 = vld [vmem:[#allocation17 + $0xef8] sm:$0xf]
    %v4469 = vld [vmem:[#allocation17 + $0xefc] sm:$0xf]
    %v4470 = vld [vmem:[#allocation17 + $0xf00] sm:$0xf]
    %v4471 = vld [vmem:[#allocation17 + $0xf04] sm:$0xf]
    %v4472 = vld [vmem:[#allocation17 + $0xf08] sm:$0xf]
    %v4473 = vld [vmem:[#allocation17 + $0xf0c] sm:$0xf]
    %v4474 = vld [vmem:[#allocation17 + $0xf10] sm:$0xf]
    %v4475 = vld [vmem:[#allocation17 + $0xf14] sm:$0xf]
    %v4476 = vld [vmem:[#allocation17 + $0xf18] sm:$0xf]
    %v4477 = vld [vmem:[#allocation17 + $0xf1c] sm:$0xf]
    %v4478 = vld [vmem:[#allocation17 + $0xf20] sm:$0xf]
    %v4479 = vld [vmem:[#allocation17 + $0xf24] sm:$0xf]
    %v4480 = vld [vmem:[#allocation17 + $0xf28] sm:$0xf]
    %v4481 = vld [vmem:[#allocation17 + $0xf2c] sm:$0xf]
    %v4482 = vld [vmem:[#allocation17 + $0xf30] sm:$0xf]
    %v4483 = vld [vmem:[#allocation17 + $0xf34] sm:$0xf]
    %v4484 = vld [vmem:[#allocation17 + $0xf38] sm:$0xf]
    %v4485 = vld [vmem:[#allocation17 + $0xf3c] sm:$0xf]
    %v4486 = vld [vmem:[#allocation17 + $0xf40] sm:$0xf]
    %v4487 = vld [vmem:[#allocation17 + $0xf44] sm:$0xf]
    %v4488 = vld [vmem:[#allocation17 + $0xf48] sm:$0xf]
    %v4489 = vld [vmem:[#allocation17 + $0xf4c] sm:$0xf]
    %v4490 = vld [vmem:[#allocation17 + $0xf50] sm:$0xf]
    %v4491 = vld [vmem:[#allocation17 + $0xf54] sm:$0xf]
    %v4492 = vld [vmem:[#allocation17 + $0xf58] sm:$0xf]
    %v4493 = vld [vmem:[#allocation17 + $0xf5c] sm:$0xf]
    %v4494 = vld [vmem:[#allocation17 + $0xf60] sm:$0xf]
    %v4495 = vld [vmem:[#allocation17 + $0xf64] sm:$0xf]
    %v4496 = vld [vmem:[#allocation17 + $0xf68] sm:$0xf]
    %v4497 = vld [vmem:[#allocation17 + $0xf6c] sm:$0xf]
    %v4498 = vld [vmem:[#allocation17 + $0xf70] sm:$0xf]
    %v4499 = vld [vmem:[#allocation17 + $0xf74] sm:$0xf]
    %v4500 = vld [vmem:[#allocation17 + $0xf78] sm:$0xf]
    %v4501 = vld [vmem:[#allocation17 + $0xf7c] sm:$0xf]
    %v4502 = vld [vmem:[#allocation17 + $0xf80] sm:$0xf]
    %v4503 = vld [vmem:[#allocation17 + $0xf84] sm:$0xf]
    %v4504 = vld [vmem:[#allocation17 + $0xf88] sm:$0xf]
    %v4505 = vld [vmem:[#allocation17 + $0xf8c] sm:$0xf]
    %v4506 = vld [vmem:[#allocation17 + $0xf90] sm:$0xf]
    %v4507 = vld [vmem:[#allocation17 + $0xf94] sm:$0xf]
    %v4508 = vld [vmem:[#allocation17 + $0xf98] sm:$0xf]
    %v4509 = vld [vmem:[#allocation17 + $0xf9c] sm:$0xf]
    %v4510 = vld [vmem:[#allocation17 + $0xfa0] sm:$0xf]
    %v4511 = vld [vmem:[#allocation17 + $0xfa4] sm:$0xf]
    %v4512 = vld [vmem:[#allocation17 + $0xfa8] sm:$0xf]
    %v4513 = vld [vmem:[#allocation17 + $0xfac] sm:$0xf]
    %v4514 = vld [vmem:[#allocation17 + $0xfb0] sm:$0xf]
    %v4515 = vld [vmem:[#allocation17 + $0xfb4] sm:$0xf]
    %v4516 = vld [vmem:[#allocation17 + $0xfb8] sm:$0xf]
    %v4517 = vld [vmem:[#allocation17 + $0xfbc] sm:$0xf]
    %v4518 = vld [vmem:[#allocation17 + $0xfc0] sm:$0xf]
    %v4519 = vld [vmem:[#allocation17 + $0xfc4] sm:$0xf]
    %v4520 = vld [vmem:[#allocation17 + $0xfc8] sm:$0xf]
    %v4521 = vld [vmem:[#allocation17 + $0xfcc] sm:$0xf]
    %v4522 = vld [vmem:[#allocation17 + $0xfd0] sm:$0xf]
    %v4523 = vld [vmem:[#allocation17 + $0xfd4] sm:$0xf]
    %v4524 = vld [vmem:[#allocation17 + $0xfd8] sm:$0xf]
    %v4525 = vld [vmem:[#allocation17 + $0xfdc] sm:$0xf]
    %v4526 = vld [vmem:[#allocation17 + $0xfe0] sm:$0xf]
    %v4527 = vld [vmem:[#allocation17 + $0xfe4] sm:$0xf]
    %v4528 = vld [vmem:[#allocation17 + $0xfe8] sm:$0xf]
    %v4529 = vld [vmem:[#allocation17 + $0xfec] sm:$0xf]
    %v4530 = vld [vmem:[#allocation17 + $0xff0] sm:$0xf]
    %v4531 = vld [vmem:[#allocation17 + $0xff4] sm:$0xf]
    %v4532 = vld [vmem:[#allocation17 + $0xff8] sm:$0xf]
    %v4533 = vld [vmem:[#allocation17 + $0xffc] sm:$0xf]
    %v4534 = vld [vmem:[#allocation17 + $0x1000] sm:$0xf]
    %v4535 = vld [vmem:[#allocation17 + $0x1004] sm:$0xf]
    %v4536 = vld [vmem:[#allocation17 + $0x1008] sm:$0xf]
    %v4537 = vld [vmem:[#allocation17 + $0x100c] sm:$0xf]
    %v4538 = vld [vmem:[#allocation17 + $0x1010] sm:$0xf]
    %v4539 = vld [vmem:[#allocation17 + $0x1014] sm:$0xf]
    %v4540 = vld [vmem:[#allocation17 + $0x1018] sm:$0xf]
    %v4541 = vld [vmem:[#allocation17 + $0x101c] sm:$0xf]
    %v4542 = vld [vmem:[#allocation17 + $0x1020] sm:$0xf]
    %v4543 = vld [vmem:[#allocation17 + $0x1024] sm:$0xf]
    %v4544 = vld [vmem:[#allocation17 + $0x1028] sm:$0xf]
    %v4545 = vld [vmem:[#allocation17 + $0x102c] sm:$0xf]
    %v4546 = vld [vmem:[#allocation17 + $0x1030] sm:$0xf]
    %v4547 = vld [vmem:[#allocation17 + $0x1034] sm:$0xf]
    %v4548 = vld [vmem:[#allocation17 + $0x1038] sm:$0xf]
    %v4549 = vld [vmem:[#allocation17 + $0x103c] sm:$0xf]
    %v4550 = vld [vmem:[#allocation17 + $0x1040] sm:$0xf]
    %v4551 = vld [vmem:[#allocation17 + $0x1044] sm:$0xf]
    %v4552 = vld [vmem:[#allocation17 + $0x1048] sm:$0xf]
    %v4553 = vld [vmem:[#allocation17 + $0x104c] sm:$0xf]
    %v4554 = vld [vmem:[#allocation17 + $0x1050] sm:$0xf]
    %v4555 = vld [vmem:[#allocation17 + $0x1054] sm:$0xf]
    %v4556 = vld [vmem:[#allocation17 + $0x1058] sm:$0xf]
    %v4557 = vld [vmem:[#allocation17 + $0x105c] sm:$0xf]
    %v4558 = vld [vmem:[#allocation17 + $0x1060] sm:$0xf]
    %v4559 = vld [vmem:[#allocation17 + $0x1064] sm:$0xf]
    %v4560 = vld [vmem:[#allocation17 + $0x1068] sm:$0xf]
    %v4561 = vld [vmem:[#allocation17 + $0x106c] sm:$0xf]
    %v4562 = vld [vmem:[#allocation17 + $0x1070] sm:$0xf]
    %v4563 = vld [vmem:[#allocation17 + $0x1074] sm:$0xf]
    %v4564 = vld [vmem:[#allocation17 + $0x1078] sm:$0xf]
    %v4565 = vld [vmem:[#allocation17 + $0x107c] sm:$0xf]
    %v4566 = vld [vmem:[#allocation17 + $0x1080] sm:$0xf]
    %v4567 = vld [vmem:[#allocation17 + $0x1084] sm:$0xf]
    %v4568 = vld [vmem:[#allocation17 + $0x1088] sm:$0xf]
    %v4569 = vld [vmem:[#allocation17 + $0x108c] sm:$0xf]
    %v4570 = vld [vmem:[#allocation17 + $0x1090] sm:$0xf]
    %v4571 = vld [vmem:[#allocation17 + $0x1094] sm:$0xf]
    %v4572 = vld [vmem:[#allocation17 + $0x1098] sm:$0xf]
    %v4573 = vld [vmem:[#allocation17 + $0x109c] sm:$0xf]
    %v4574 = vld [vmem:[#allocation17 + $0x10a0] sm:$0xf]
    %v4575 = vld [vmem:[#allocation17 + $0x10a4] sm:$0xf]
    %v4576 = vld [vmem:[#allocation17 + $0x10a8] sm:$0xf]
    %v4577 = vld [vmem:[#allocation17 + $0x10ac] sm:$0xf]
    %v4578 = vld [vmem:[#allocation17 + $0x10b0] sm:$0xf]
    %v4579 = vld [vmem:[#allocation17 + $0x10b4] sm:$0xf]
    %v4580 = vld [vmem:[#allocation17 + $0x10b8] sm:$0xf]
    %v4581 = vld [vmem:[#allocation17 + $0x10bc] sm:$0xf]
    %v4582 = vld [vmem:[#allocation17 + $0x10c0] sm:$0xf]
    %v4583 = vld [vmem:[#allocation17 + $0x10c4] sm:$0xf]
    %v4584 = vld [vmem:[#allocation17 + $0x10c8] sm:$0xf]
    %v4585 = vld [vmem:[#allocation17 + $0x10cc] sm:$0xf]
    %v4586 = vld [vmem:[#allocation17 + $0x10d0] sm:$0xf]
    %v4587 = vld [vmem:[#allocation17 + $0x10d4] sm:$0xf]
    %v4588 = vld [vmem:[#allocation17 + $0x10d8] sm:$0xf]
    %v4589 = vld [vmem:[#allocation17 + $0x10dc] sm:$0xf]
    %v4590 = vld [vmem:[#allocation17 + $0x10e0] sm:$0xf]
    %v4591 = vld [vmem:[#allocation17 + $0x10e4] sm:$0xf]
    %v4592 = vld [vmem:[#allocation17 + $0x10e8] sm:$0xf]
    %v4593 = vld [vmem:[#allocation17 + $0x10ec] sm:$0xf]
    %v4594 = vld [vmem:[#allocation17 + $0x10f0] sm:$0xf]
    %v4595 = vld [vmem:[#allocation17 + $0x10f4] sm:$0xf]
    %v4596 = vld [vmem:[#allocation17 + $0x10f8] sm:$0xf]
    %v4597 = vld [vmem:[#allocation17 + $0x10fc] sm:$0xf]
    %v4598 = vld [vmem:[#allocation17 + $0x1100] sm:$0xf]
    %v4599 = vld [vmem:[#allocation17 + $0x1104] sm:$0xf]
    %v4600 = vld [vmem:[#allocation17 + $0x1108] sm:$0xf]
    %v4601 = vld [vmem:[#allocation17 + $0x110c] sm:$0xf]
    %v4602 = vld [vmem:[#allocation17 + $0x1110] sm:$0xf]
    %v4603 = vld [vmem:[#allocation17 + $0x1114] sm:$0xf]
    %v4604 = vld [vmem:[#allocation17 + $0x1118] sm:$0xf]
    %v4605 = vld [vmem:[#allocation17 + $0x111c] sm:$0xf]
    %v4606 = vld [vmem:[#allocation17 + $0x1120] sm:$0xf]
    %v4607 = vld [vmem:[#allocation17 + $0x1124] sm:$0xf]
    %v4608 = vld [vmem:[#allocation17 + $0x1128] sm:$0xf]
    %v4609 = vld [vmem:[#allocation17 + $0x112c] sm:$0xf]
    %v4610 = vld [vmem:[#allocation17 + $0x1130] sm:$0xf]
    %v4611 = vld [vmem:[#allocation17 + $0x1134] sm:$0xf]
    %v4612 = vld [vmem:[#allocation17 + $0x1138] sm:$0xf]
    %v4613 = vld [vmem:[#allocation17 + $0x113c] sm:$0xf]
    %v4614 = vld [vmem:[#allocation17 + $0x1140] sm:$0xf]
    %v4615 = vld [vmem:[#allocation17 + $0x1144] sm:$0xf]
    %v4616 = vld [vmem:[#allocation17 + $0x1148] sm:$0xf]
    %v4617 = vld [vmem:[#allocation17 + $0x114c] sm:$0xf]
    %v4618 = vld [vmem:[#allocation17 + $0x1150] sm:$0xf]
    %v4619 = vld [vmem:[#allocation17 + $0x1154] sm:$0xf]
    %v4620 = vld [vmem:[#allocation17 + $0x1158] sm:$0xf]
    %v4621 = vld [vmem:[#allocation17 + $0x115c] sm:$0xf]
    %v4622 = vld [vmem:[#allocation17 + $0x1160] sm:$0xf]
    %v4623 = vld [vmem:[#allocation17 + $0x1164] sm:$0xf]
    %v4624 = vld [vmem:[#allocation17 + $0x1168] sm:$0xf]
    %v4625 = vld [vmem:[#allocation17 + $0x116c] sm:$0xf]
    %v4626 = vld [vmem:[#allocation17 + $0x1170] sm:$0xf]
    %v4627 = vld [vmem:[#allocation17 + $0x1174] sm:$0xf]
    %v4628 = vld [vmem:[#allocation17 + $0x1178] sm:$0xf]
    %v4629 = vld [vmem:[#allocation17 + $0x117c] sm:$0xf]
    %v4630 = vld [vmem:[#allocation17 + $0x1180] sm:$0xf]
    %v4631 = vld [vmem:[#allocation17 + $0x1184] sm:$0xf]
    %v4632 = vld [vmem:[#allocation17 + $0x1188] sm:$0xf]
    %v4633 = vld [vmem:[#allocation17 + $0x118c] sm:$0xf]
    %v4634 = vld [vmem:[#allocation17 + $0x1190] sm:$0xf]
    %v4635 = vld [vmem:[#allocation17 + $0x1194] sm:$0xf]
    %v4636 = vld [vmem:[#allocation17 + $0x1198] sm:$0xf]
    %v4637 = vld [vmem:[#allocation17 + $0x119c] sm:$0xf]
    %v4638 = vld [vmem:[#allocation17 + $0x11a0] sm:$0xf]
    %v4639 = vld [vmem:[#allocation17 + $0x11a4] sm:$0xf]
    %v4640 = vld [vmem:[#allocation17 + $0x11a8] sm:$0xf]
    %v4641 = vld [vmem:[#allocation17 + $0x11ac] sm:$0xf]
    %v4642 = vld [vmem:[#allocation17 + $0x11b0] sm:$0xf]
    %v4643 = vld [vmem:[#allocation17 + $0x11b4] sm:$0xf]
    %v4644 = vld [vmem:[#allocation17 + $0x11b8] sm:$0xf]
    %v4645 = vld [vmem:[#allocation17 + $0x11bc] sm:$0xf]
    %v4646 = vld [vmem:[#allocation17 + $0x11c0] sm:$0xf]
    %v4647 = vld [vmem:[#allocation17 + $0x11c4] sm:$0xf]
    %v4648 = vld [vmem:[#allocation17 + $0x11c8] sm:$0xf]
    %v4649 = vld [vmem:[#allocation17 + $0x11cc] sm:$0xf]
    %v4650 = vld [vmem:[#allocation17 + $0x11d0] sm:$0xf]
    %v4651 = vld [vmem:[#allocation17 + $0x11d4] sm:$0xf]
    %v4652 = vld [vmem:[#allocation17 + $0x11d8] sm:$0xf]
    %v4653 = vld [vmem:[#allocation17 + $0x11dc] sm:$0xf]
    %v4654 = vld [vmem:[#allocation17 + $0x11e0] sm:$0xf]
    %v4655 = vld [vmem:[#allocation17 + $0x11e4] sm:$0xf]
    %v4656 = vld [vmem:[#allocation17 + $0x11e8] sm:$0xf]
    %v4657 = vld [vmem:[#allocation17 + $0x11ec] sm:$0xf]
    %v4658 = vld [vmem:[#allocation17 + $0x11f0] sm:$0xf]
    %v4659 = vld [vmem:[#allocation17 + $0x11f4] sm:$0xf]
    %v4660 = vld [vmem:[#allocation17 + $0x11f8] sm:$0xf]
    %v4661 = vld [vmem:[#allocation17 + $0x11fc] sm:$0xf]
    %v4662 = vld [vmem:[#allocation17 + $0x1200] sm:$0xf]
    %v4663 = vld [vmem:[#allocation17 + $0x1204] sm:$0xf]
    %v4664 = vld [vmem:[#allocation17 + $0x1208] sm:$0xf]
    %v4665 = vld [vmem:[#allocation17 + $0x120c] sm:$0xf]
    %v4666 = vld [vmem:[#allocation17 + $0x1210] sm:$0xf]
    %v4667 = vld [vmem:[#allocation17 + $0x1214] sm:$0xf]
    %v4668 = vld [vmem:[#allocation17 + $0x1218] sm:$0xf]
    %v4669 = vld [vmem:[#allocation17 + $0x121c] sm:$0xf]
    %v4670 = vld [vmem:[#allocation17 + $0x1220] sm:$0xf]
    %v4671 = vld [vmem:[#allocation17 + $0x1224] sm:$0xf]
    %v4672 = vld [vmem:[#allocation17 + $0x1228] sm:$0xf]
    %v4673 = vld [vmem:[#allocation17 + $0x122c] sm:$0xf]
    %v4674 = vld [vmem:[#allocation17 + $0x1230] sm:$0xf]
    %v4675 = vld [vmem:[#allocation17 + $0x1234] sm:$0xf]
    %v4676 = vld [vmem:[#allocation17 + $0x1238] sm:$0xf]
    %v4677 = vld [vmem:[#allocation17 + $0x123c] sm:$0xf]
    %v4678 = vld [vmem:[#allocation17 + $0x1240] sm:$0xf]
    %v4679 = vld [vmem:[#allocation17 + $0x1244] sm:$0xf]
    %v4680 = vld [vmem:[#allocation17 + $0x1248] sm:$0xf]
    %v4681 = vld [vmem:[#allocation17 + $0x124c] sm:$0xf]
    %v4682 = vld [vmem:[#allocation17 + $0x1250] sm:$0xf]
    %v4683 = vld [vmem:[#allocation17 + $0x1254] sm:$0xf]
    %v4684 = vld [vmem:[#allocation17 + $0x1258] sm:$0xf]
    %v4685 = vld [vmem:[#allocation17 + $0x125c] sm:$0xf]
    %v4686 = vld [vmem:[#allocation17 + $0x1260] sm:$0xf]
    %v4687 = vld [vmem:[#allocation17 + $0x1264] sm:$0xf]
    %v4688 = vld [vmem:[#allocation17 + $0x1268] sm:$0xf]
    %v4689 = vld [vmem:[#allocation17 + $0x126c] sm:$0xf]
    %v4690 = vld [vmem:[#allocation17 + $0x1270] sm:$0xf]
    %v4691 = vld [vmem:[#allocation17 + $0x1274] sm:$0xf]
    %v4692 = vld [vmem:[#allocation17 + $0x1278] sm:$0xf]
    %v4693 = vld [vmem:[#allocation17 + $0x127c] sm:$0xf]
    %v4694 = vld [vmem:[#allocation17 + $0x1280] sm:$0xf]
    %v4695 = vld [vmem:[#allocation17 + $0x1284] sm:$0xf]
    %v4696 = vld [vmem:[#allocation17 + $0x1288] sm:$0xf]
    %v4697 = vld [vmem:[#allocation17 + $0x128c] sm:$0xf]
    %v4698 = vld [vmem:[#allocation17 + $0x1290] sm:$0xf]
    %v4699 = vld [vmem:[#allocation17 + $0x1294] sm:$0xf]
    %v4700 = vld [vmem:[#allocation17 + $0x1298] sm:$0xf]
    %v4701 = vld [vmem:[#allocation17 + $0x129c] sm:$0xf]
    %v4702 = vld [vmem:[#allocation17 + $0x12a0] sm:$0xf]
    %v4703 = vld [vmem:[#allocation17 + $0x12a4] sm:$0xf]
    %v4704 = vld [vmem:[#allocation17 + $0x12a8] sm:$0xf]
    %v4705 = vld [vmem:[#allocation17 + $0x12ac] sm:$0xf]
    %v4706 = vld [vmem:[#allocation17 + $0x12b0] sm:$0xf]
    %v4707 = vld [vmem:[#allocation17 + $0x12b4] sm:$0xf]
    %v4708 = vld [vmem:[#allocation17 + $0x12b8] sm:$0xf]
    %v4709 = vld [vmem:[#allocation17 + $0x12bc] sm:$0xf]
    %v4710 = vld [vmem:[#allocation18] sm:$0x1]
    %v4712 = vlaneseq
    %v4713 = vshrl.u32 %v4712, 7
    %v4714 = vsub.s32 0, %v4713
    %v4715 = vrot.slane %v4710, %v4714
    %v5917 = vunpack.c.l.b16 %v3510
    %v5918 = vunpack.c.l.b16 %v3511
    %v5919 = vunpack.c.l.b16 %v3512
    %v5920 = vunpack.c.l.b16 %v3513
    %v5921 = vunpack.c.l.b16 %v3514
    %v5922 = vunpack.c.l.b16 %v3515
    %v5923 = vunpack.c.l.b16 %v3516
    %v5924 = vunpack.c.l.b16 %v3517
    %v5925 = vunpack.c.l.b16 %v3518
    %v5926 = vunpack.c.l.b16 %v3519
    %v5927 = vunpack.c.l.b16 %v3520
    %v5928 = vunpack.c.l.b16 %v3521
    %v5929 = vunpack.c.l.b16 %v3522
    %v5930 = vunpack.c.l.b16 %v3523
    %v5931 = vunpack.c.l.b16 %v3524
    %v5932 = vunpack.c.l.b16 %v3525
    %v5933 = vunpack.c.l.b16 %v3526
    %v5934 = vunpack.c.l.b16 %v3527
    %v5935 = vunpack.c.l.b16 %v3528
    %v5936 = vunpack.c.l.b16 %v3529
    %v5937 = vunpack.c.l.b16 %v3530
    %v5938 = vunpack.c.l.b16 %v3531
    %v5939 = vunpack.c.l.b16 %v3532
    %v5940 = vunpack.c.l.b16 %v3533
    %v5941 = vunpack.c.l.b16 %v3534
    %v5942 = vunpack.c.l.b16 %v3535
    %v5943 = vunpack.c.l.b16 %v3536
    %v5944 = vunpack.c.l.b16 %v3537
    %v5945 = vunpack.c.l.b16 %v3538
    %v5946 = vunpack.c.l.b16 %v3539
    %v5947 = vunpack.c.l.b16 %v3540
    %v5948 = vunpack.c.l.b16 %v3541
    %v5949 = vunpack.c.l.b16 %v3542
    %v5950 = vunpack.c.l.b16 %v3543
    %v5951 = vunpack.c.l.b16 %v3544
    %v5952 = vunpack.c.l.b16 %v3545
    %v5953 = vunpack.c.l.b16 %v3546
    %v5954 = vunpack.c.l.b16 %v3547
    %v5955 = vunpack.c.l.b16 %v3548
    %v5956 = vunpack.c.l.b16 %v3549
    %v5957 = vunpack.c.l.b16 %v3550
    %v5958 = vunpack.c.l.b16 %v3551
    %v5959 = vunpack.c.l.b16 %v3552
    %v5960 = vunpack.c.l.b16 %v3553
    %v5961 = vunpack.c.l.b16 %v3554
    %v5962 = vunpack.c.l.b16 %v3555
    %v5963 = vunpack.c.l.b16 %v3556
    %v5964 = vunpack.c.l.b16 %v3557
    %v5965 = vunpack.c.l.b16 %v3558
    %v5966 = vunpack.c.l.b16 %v3559
    %v5967 = vunpack.c.l.b16 %v3560
    %v5968 = vunpack.c.l.b16 %v3561
    %v5969 = vunpack.c.l.b16 %v3562
    %v5970 = vunpack.c.l.b16 %v3563
    %v5971 = vunpack.c.l.b16 %v3564
    %v5972 = vunpack.c.l.b16 %v3565
    %v5973 = vunpack.c.l.b16 %v3566
    %v5974 = vunpack.c.l.b16 %v3567
    %v5975 = vunpack.c.l.b16 %v3568
    %v5976 = vunpack.c.l.b16 %v3569
    %v5977 = vunpack.c.l.b16 %v3570
    %v5978 = vunpack.c.l.b16 %v3571
    %v5979 = vunpack.c.l.b16 %v3572
    %v5980 = vunpack.c.l.b16 %v3573
    %v5981 = vunpack.c.l.b16 %v3574
    %v5982 = vunpack.c.l.b16 %v3575
    %v5983 = vunpack.c.l.b16 %v3576
    %v5984 = vunpack.c.l.b16 %v3577
    %v5985 = vunpack.c.l.b16 %v3578
    %v5986 = vunpack.c.l.b16 %v3579
    %v5987 = vunpack.c.l.b16 %v3580
    %v5988 = vunpack.c.l.b16 %v3581
    %v5989 = vunpack.c.l.b16 %v3582
    %v5990 = vunpack.c.l.b16 %v3583
    %v5991 = vunpack.c.l.b16 %v3584
    %v5992 = vunpack.c.l.b16 %v3585
    %v5993 = vunpack.c.l.b16 %v3586
    %v5994 = vunpack.c.l.b16 %v3587
    %v5995 = vunpack.c.l.b16 %v3588
    %v5996 = vunpack.c.l.b16 %v3589
    %v5997 = vunpack.c.l.b16 %v3590
    %v5998 = vunpack.c.l.b16 %v3591
    %v5999 = vunpack.c.l.b16 %v3592
    %v6000 = vunpack.c.l.b16 %v3593
    %v6001 = vunpack.c.l.b16 %v3594
    %v6002 = vunpack.c.l.b16 %v3595
    %v6003 = vunpack.c.l.b16 %v3596
    %v6004 = vunpack.c.l.b16 %v3597
    %v6005 = vunpack.c.l.b16 %v3598
    %v6006 = vunpack.c.l.b16 %v3599
    %v6007 = vunpack.c.l.b16 %v3600
    %v6008 = vunpack.c.l.b16 %v3601
    %v6009 = vunpack.c.l.b16 %v3602
    %v6010 = vunpack.c.l.b16 %v3603
    %v6011 = vunpack.c.l.b16 %v3604
    %v6012 = vunpack.c.l.b16 %v3605
    %v6013 = vunpack.c.l.b16 %v3606
    %v6014 = vunpack.c.l.b16 %v3607
    %v6015 = vunpack.c.l.b16 %v3608
    %v6016 = vunpack.c.l.b16 %v3609
    %v6017 = vunpack.c.l.b16 %v3610
    %v6018 = vunpack.c.l.b16 %v3611
    %v6019 = vunpack.c.l.b16 %v3612
    %v6020 = vunpack.c.l.b16 %v3613
    %v6021 = vunpack.c.l.b16 %v3614
    %v6022 = vunpack.c.l.b16 %v3615
    %v6023 = vunpack.c.l.b16 %v3616
    %v6024 = vunpack.c.l.b16 %v3617
    %v6025 = vunpack.c.l.b16 %v3618
    %v6026 = vunpack.c.l.b16 %v3619
    %v6027 = vunpack.c.l.b16 %v3620
    %v6028 = vunpack.c.l.b16 %v3621
    %v6029 = vunpack.c.l.b16 %v3622
    %v6030 = vunpack.c.l.b16 %v3623
    %v6031 = vunpack.c.l.b16 %v3624
    %v6032 = vunpack.c.l.b16 %v3625
    %v6033 = vunpack.c.l.b16 %v3626
    %v6034 = vunpack.c.l.b16 %v3627
    %v6035 = vunpack.c.l.b16 %v3628
    %v6036 = vunpack.c.l.b16 %v3629
    %v6037 = vunpack.c.l.b16 %v3630
    %v6038 = vunpack.c.l.b16 %v3631
    %v6039 = vunpack.c.l.b16 %v3632
    %v6040 = vunpack.c.l.b16 %v3633
    %v6041 = vunpack.c.l.b16 %v3634
    %v6042 = vunpack.c.l.b16 %v3635
    %v6043 = vunpack.c.l.b16 %v3636
    %v6044 = vunpack.c.l.b16 %v3637
    %v6045 = vunpack.c.l.b16 %v3638
    %v6046 = vunpack.c.l.b16 %v3639
    %v6047 = vunpack.c.l.b16 %v3640
    %v6048 = vunpack.c.l.b16 %v3641
    %v6049 = vunpack.c.l.b16 %v3642
    %v6050 = vunpack.c.l.b16 %v3643
    %v6051 = vunpack.c.l.b16 %v3644
    %v6052 = vunpack.c.l.b16 %v3645
    %v6053 = vunpack.c.l.b16 %v3646
    %v6054 = vunpack.c.l.b16 %v3647
    %v6055 = vunpack.c.l.b16 %v3648
    %v6056 = vunpack.c.l.b16 %v3649
    %v6057 = vunpack.c.l.b16 %v3650
    %v6058 = vunpack.c.l.b16 %v3651
    %v6059 = vunpack.c.l.b16 %v3652
    %v6060 = vunpack.c.l.b16 %v3653
    %v6061 = vunpack.c.l.b16 %v3654
    %v6062 = vunpack.c.l.b16 %v3655
    %v6063 = vunpack.c.l.b16 %v3656
    %v6064 = vunpack.c.l.b16 %v3657
    %v6065 = vunpack.c.l.b16 %v3658
    %v6066 = vunpack.c.l.b16 %v3659
    %v6067 = vunpack.c.l.b16 %v3660
    %v6068 = vunpack.c.l.b16 %v3661
    %v6069 = vunpack.c.l.b16 %v3662
    %v6070 = vunpack.c.l.b16 %v3663
    %v6071 = vunpack.c.l.b16 %v3664
    %v6072 = vunpack.c.l.b16 %v3665
    %v6073 = vunpack.c.l.b16 %v3666
    %v6074 = vunpack.c.l.b16 %v3667
    %v6075 = vunpack.c.l.b16 %v3668
    %v6076 = vunpack.c.l.b16 %v3669
    %v6077 = vunpack.c.l.b16 %v3670
    %v6078 = vunpack.c.l.b16 %v3671
    %v6079 = vunpack.c.l.b16 %v3672
    %v6080 = vunpack.c.l.b16 %v3673
    %v6081 = vunpack.c.l.b16 %v3674
    %v6082 = vunpack.c.l.b16 %v3675
    %v6083 = vunpack.c.l.b16 %v3676
    %v6084 = vunpack.c.l.b16 %v3677
    %v6085 = vunpack.c.l.b16 %v3678
    %v6086 = vunpack.c.l.b16 %v3679
    %v6087 = vunpack.c.l.b16 %v3680
    %v6088 = vunpack.c.l.b16 %v3681
    %v6089 = vunpack.c.l.b16 %v3682
    %v6090 = vunpack.c.l.b16 %v3683
    %v6091 = vunpack.c.l.b16 %v3684
    %v6092 = vunpack.c.l.b16 %v3685
    %v6093 = vunpack.c.l.b16 %v3686
    %v6094 = vunpack.c.l.b16 %v3687
    %v6095 = vunpack.c.l.b16 %v3688
    %v6096 = vunpack.c.l.b16 %v3689
    %v6097 = vunpack.c.l.b16 %v3690
    %v6098 = vunpack.c.l.b16 %v3691
    %v6099 = vunpack.c.l.b16 %v3692
    %v6100 = vunpack.c.l.b16 %v3693
    %v6101 = vunpack.c.l.b16 %v3694
    %v6102 = vunpack.c.l.b16 %v3695
    %v6103 = vunpack.c.l.b16 %v3696
    %v6104 = vunpack.c.l.b16 %v3697
    %v6105 = vunpack.c.l.b16 %v3698
    %v6106 = vunpack.c.l.b16 %v3699
    %v6107 = vunpack.c.l.b16 %v3700
    %v6108 = vunpack.c.l.b16 %v3701
    %v6109 = vunpack.c.l.b16 %v3702
    %v6110 = vunpack.c.l.b16 %v3703
    %v6111 = vunpack.c.l.b16 %v3704
    %v6112 = vunpack.c.l.b16 %v3705
    %v6113 = vunpack.c.l.b16 %v3706
    %v6114 = vunpack.c.l.b16 %v3707
    %v6115 = vunpack.c.l.b16 %v3708
    %v6116 = vunpack.c.l.b16 %v3709
    %v6117 = vunpack.c.l.b16 %v3710
    %v6118 = vunpack.c.l.b16 %v3711
    %v6119 = vunpack.c.l.b16 %v3712
    %v6120 = vunpack.c.l.b16 %v3713
    %v6121 = vunpack.c.l.b16 %v3714
    %v6122 = vunpack.c.l.b16 %v3715
    %v6123 = vunpack.c.l.b16 %v3716
    %v6124 = vunpack.c.l.b16 %v3717
    %v6125 = vunpack.c.l.b16 %v3718
    %v6126 = vunpack.c.l.b16 %v3719
    %v6127 = vunpack.c.l.b16 %v3720
    %v6128 = vunpack.c.l.b16 %v3721
    %v6129 = vunpack.c.l.b16 %v3722
    %v6130 = vunpack.c.l.b16 %v3723
    %v6131 = vunpack.c.l.b16 %v3724
    %v6132 = vunpack.c.l.b16 %v3725
    %v6133 = vunpack.c.l.b16 %v3726
    %v6134 = vunpack.c.l.b16 %v3727
    %v6135 = vunpack.c.l.b16 %v3728
    %v6136 = vunpack.c.l.b16 %v3729
    %v6137 = vunpack.c.l.b16 %v3730
    %v6138 = vunpack.c.l.b16 %v3731
    %v6139 = vunpack.c.l.b16 %v3732
    %v6140 = vunpack.c.l.b16 %v3733
    %v6141 = vunpack.c.l.b16 %v3734
    %v6142 = vunpack.c.l.b16 %v3735
    %v6143 = vunpack.c.l.b16 %v3736
    %v6144 = vunpack.c.l.b16 %v3737
    %v6145 = vunpack.c.l.b16 %v3738
    %v6146 = vunpack.c.l.b16 %v3739
    %v6147 = vunpack.c.l.b16 %v3740
    %v6148 = vunpack.c.l.b16 %v3741
    %v6149 = vunpack.c.l.b16 %v3742
    %v6150 = vunpack.c.l.b16 %v3743
    %v6151 = vunpack.c.l.b16 %v3744
    %v6152 = vunpack.c.l.b16 %v3745
    %v6153 = vunpack.c.l.b16 %v3746
    %v6154 = vunpack.c.l.b16 %v3747
    %v6155 = vunpack.c.l.b16 %v3748
    %v6156 = vunpack.c.l.b16 %v3749
    %v6157 = vunpack.c.l.b16 %v3750
    %v6158 = vunpack.c.l.b16 %v3751
    %v6159 = vunpack.c.l.b16 %v3752
    %v6160 = vunpack.c.l.b16 %v3753
    %v6161 = vunpack.c.l.b16 %v3754
    %v6162 = vunpack.c.l.b16 %v3755
    %v6163 = vunpack.c.l.b16 %v3756
    %v6164 = vunpack.c.l.b16 %v3757
    %v6165 = vunpack.c.l.b16 %v3758
    %v6166 = vunpack.c.l.b16 %v3759
    %v6167 = vunpack.c.l.b16 %v3760
    %v6168 = vunpack.c.l.b16 %v3761
    %v6169 = vunpack.c.l.b16 %v3762
    %v6170 = vunpack.c.l.b16 %v3763
    %v6171 = vunpack.c.l.b16 %v3764
    %v6172 = vunpack.c.l.b16 %v3765
    %v6173 = vunpack.c.l.b16 %v3766
    %v6174 = vunpack.c.l.b16 %v3767
    %v6175 = vunpack.c.l.b16 %v3768
    %v6176 = vunpack.c.l.b16 %v3769
    %v6177 = vunpack.c.l.b16 %v3770
    %v6178 = vunpack.c.l.b16 %v3771
    %v6179 = vunpack.c.l.b16 %v3772
    %v6180 = vunpack.c.l.b16 %v3773
    %v6181 = vunpack.c.l.b16 %v3774
    %v6182 = vunpack.c.l.b16 %v3775
    %v6183 = vunpack.c.l.b16 %v3776
    %v6184 = vunpack.c.l.b16 %v3777
    %v6185 = vunpack.c.l.b16 %v3778
    %v6186 = vunpack.c.l.b16 %v3779
    %v6187 = vunpack.c.l.b16 %v3780
    %v6188 = vunpack.c.l.b16 %v3781
    %v6189 = vunpack.c.l.b16 %v3782
    %v6190 = vunpack.c.l.b16 %v3783
    %v6191 = vunpack.c.l.b16 %v3784
    %v6192 = vunpack.c.l.b16 %v3785
    %v6193 = vunpack.c.l.b16 %v3786
    %v6194 = vunpack.c.l.b16 %v3787
    %v6195 = vunpack.c.l.b16 %v3788
    %v6196 = vunpack.c.l.b16 %v3789
    %v6197 = vunpack.c.l.b16 %v3790
    %v6198 = vunpack.c.l.b16 %v3791
    %v6199 = vunpack.c.l.b16 %v3792
    %v6200 = vunpack.c.l.b16 %v3793
    %v6201 = vunpack.c.l.b16 %v3794
    %v6202 = vunpack.c.l.b16 %v3795
    %v6203 = vunpack.c.l.b16 %v3796
    %v6204 = vunpack.c.l.b16 %v3797
    %v6205 = vunpack.c.l.b16 %v3798
    %v6206 = vunpack.c.l.b16 %v3799
    %v6207 = vunpack.c.l.b16 %v3800
    %v6208 = vunpack.c.l.b16 %v3801
    %v6209 = vunpack.c.l.b16 %v3802
    %v6210 = vunpack.c.l.b16 %v3803
    %v6211 = vunpack.c.l.b16 %v3804
    %v6212 = vunpack.c.l.b16 %v3805
    %v6213 = vunpack.c.l.b16 %v3806
    %v6214 = vunpack.c.l.b16 %v3807
    %v6215 = vunpack.c.l.b16 %v3808
    %v6216 = vunpack.c.l.b16 %v3809
    %v6217 = vunpack.c.l.b16 %v3810
    %v6218 = vunpack.c.l.b16 %v3811
    %v6219 = vunpack.c.l.b16 %v3812
    %v6220 = vunpack.c.l.b16 %v3813
    %v6221 = vunpack.c.l.b16 %v3814
    %v6222 = vunpack.c.l.b16 %v3815
    %v6223 = vunpack.c.l.b16 %v3816
    %v6224 = vunpack.c.l.b16 %v3817
    %v6225 = vunpack.c.l.b16 %v3818
    %v6226 = vunpack.c.l.b16 %v3819
    %v6227 = vunpack.c.l.b16 %v3820
    %v6228 = vunpack.c.l.b16 %v3821
    %v6229 = vunpack.c.l.b16 %v3822
    %v6230 = vunpack.c.l.b16 %v3823
    %v6231 = vunpack.c.l.b16 %v3824
    %v6232 = vunpack.c.l.b16 %v3825
    %v6233 = vunpack.c.l.b16 %v3826
    %v6234 = vunpack.c.l.b16 %v3827
    %v6235 = vunpack.c.l.b16 %v3828
    %v6236 = vunpack.c.l.b16 %v3829
    %v6237 = vunpack.c.l.b16 %v3830
    %v6238 = vunpack.c.l.b16 %v3831
    %v6239 = vunpack.c.l.b16 %v3832
    %v6240 = vunpack.c.l.b16 %v3833
    %v6241 = vunpack.c.l.b16 %v3834
    %v6242 = vunpack.c.l.b16 %v3835
    %v6243 = vunpack.c.l.b16 %v3836
    %v6244 = vunpack.c.l.b16 %v3837
    %v6245 = vunpack.c.l.b16 %v3838
    %v6246 = vunpack.c.l.b16 %v3839
    %v6247 = vunpack.c.l.b16 %v3840
    %v6248 = vunpack.c.l.b16 %v3841
    %v6249 = vunpack.c.l.b16 %v3842
    %v6250 = vunpack.c.l.b16 %v3843
    %v6251 = vunpack.c.l.b16 %v3844
    %v6252 = vunpack.c.l.b16 %v3845
    %v6253 = vunpack.c.l.b16 %v3846
    %v6254 = vunpack.c.l.b16 %v3847
    %v6255 = vunpack.c.l.b16 %v3848
    %v6256 = vunpack.c.l.b16 %v3849
    %v6257 = vunpack.c.l.b16 %v3850
    %v6258 = vunpack.c.l.b16 %v3851
    %v6259 = vunpack.c.l.b16 %v3852
    %v6260 = vunpack.c.l.b16 %v3853
    %v6261 = vunpack.c.l.b16 %v3854
    %v6262 = vunpack.c.l.b16 %v3855
    %v6263 = vunpack.c.l.b16 %v3856
    %v6264 = vunpack.c.l.b16 %v3857
    %v6265 = vunpack.c.l.b16 %v3858
    %v6266 = vunpack.c.l.b16 %v3859
    %v6267 = vunpack.c.l.b16 %v3860
    %v6268 = vunpack.c.l.b16 %v3861
    %v6269 = vunpack.c.l.b16 %v3862
    %v6270 = vunpack.c.l.b16 %v3863
    %v6271 = vunpack.c.l.b16 %v3864
    %v6272 = vunpack.c.l.b16 %v3865
    %v6273 = vunpack.c.l.b16 %v3866
    %v6274 = vunpack.c.l.b16 %v3867
    %v6275 = vunpack.c.l.b16 %v3868
    %v6276 = vunpack.c.l.b16 %v3869
    %v6277 = vunpack.c.l.b16 %v3870
    %v6278 = vunpack.c.l.b16 %v3871
    %v6279 = vunpack.c.l.b16 %v3872
    %v6280 = vunpack.c.l.b16 %v3873
    %v6281 = vunpack.c.l.b16 %v3874
    %v6282 = vunpack.c.l.b16 %v3875
    %v6283 = vunpack.c.l.b16 %v3876
    %v6284 = vunpack.c.l.b16 %v3877
    %v6285 = vunpack.c.l.b16 %v3878
    %v6286 = vunpack.c.l.b16 %v3879
    %v6287 = vunpack.c.l.b16 %v3880
    %v6288 = vunpack.c.l.b16 %v3881
    %v6289 = vunpack.c.l.b16 %v3882
    %v6290 = vunpack.c.l.b16 %v3883
    %v6291 = vunpack.c.l.b16 %v3884
    %v6292 = vunpack.c.l.b16 %v3885
    %v6293 = vunpack.c.l.b16 %v3886
    %v6294 = vunpack.c.l.b16 %v3887
    %v6295 = vunpack.c.l.b16 %v3888
    %v6296 = vunpack.c.l.b16 %v3889
    %v6297 = vunpack.c.l.b16 %v3890
    %v6298 = vunpack.c.l.b16 %v3891
    %v6299 = vunpack.c.l.b16 %v3892
    %v6300 = vunpack.c.l.b16 %v3893
    %v6301 = vunpack.c.l.b16 %v3894
    %v6302 = vunpack.c.l.b16 %v3895
    %v6303 = vunpack.c.l.b16 %v3896
    %v6304 = vunpack.c.l.b16 %v3897
    %v6305 = vunpack.c.l.b16 %v3898
    %v6306 = vunpack.c.l.b16 %v3899
    %v6307 = vunpack.c.l.b16 %v3900
    %v6308 = vunpack.c.l.b16 %v3901
    %v6309 = vunpack.c.l.b16 %v3902
    %v6310 = vunpack.c.l.b16 %v3903
    %v6311 = vunpack.c.l.b16 %v3904
    %v6312 = vunpack.c.l.b16 %v3905
    %v6313 = vunpack.c.l.b16 %v3906
    %v6314 = vunpack.c.l.b16 %v3907
    %v6315 = vunpack.c.l.b16 %v3908
    %v6316 = vunpack.c.l.b16 %v3909
    %v6317 = vunpack.c.l.b16 %v3910
    %v6318 = vunpack.c.l.b16 %v3911
    %v6319 = vunpack.c.l.b16 %v3912
    %v6320 = vunpack.c.l.b16 %v3913
    %v6321 = vunpack.c.l.b16 %v3914
    %v6322 = vunpack.c.l.b16 %v3915
    %v6323 = vunpack.c.l.b16 %v3916
    %v6324 = vunpack.c.l.b16 %v3917
    %v6325 = vunpack.c.l.b16 %v3918
    %v6326 = vunpack.c.l.b16 %v3919
    %v6327 = vunpack.c.l.b16 %v3920
    %v6328 = vunpack.c.l.b16 %v3921
    %v6329 = vunpack.c.l.b16 %v3922
    %v6330 = vunpack.c.l.b16 %v3923
    %v6331 = vunpack.c.l.b16 %v3924
    %v6332 = vunpack.c.l.b16 %v3925
    %v6333 = vunpack.c.l.b16 %v3926
    %v6334 = vunpack.c.l.b16 %v3927
    %v6335 = vunpack.c.l.b16 %v3928
    %v6336 = vunpack.c.l.b16 %v3929
    %v6337 = vunpack.c.l.b16 %v3930
    %v6338 = vunpack.c.l.b16 %v3931
    %v6339 = vunpack.c.l.b16 %v3932
    %v6340 = vunpack.c.l.b16 %v3933
    %v6341 = vunpack.c.l.b16 %v3934
    %v6342 = vunpack.c.l.b16 %v3935
    %v6343 = vunpack.c.l.b16 %v3936
    %v6344 = vunpack.c.l.b16 %v3937
    %v6345 = vunpack.c.l.b16 %v3938
    %v6346 = vunpack.c.l.b16 %v3939
    %v6347 = vunpack.c.l.b16 %v3940
    %v6348 = vunpack.c.l.b16 %v3941
    %v6349 = vunpack.c.l.b16 %v3942
    %v6350 = vunpack.c.l.b16 %v3943
    %v6351 = vunpack.c.l.b16 %v3944
    %v6352 = vunpack.c.l.b16 %v3945
    %v6353 = vunpack.c.l.b16 %v3946
    %v6354 = vunpack.c.l.b16 %v3947
    %v6355 = vunpack.c.l.b16 %v3948
    %v6356 = vunpack.c.l.b16 %v3949
    %v6357 = vunpack.c.l.b16 %v3950
    %v6358 = vunpack.c.l.b16 %v3951
    %v6359 = vunpack.c.l.b16 %v3952
    %v6360 = vunpack.c.l.b16 %v3953
    %v6361 = vunpack.c.l.b16 %v3954
    %v6362 = vunpack.c.l.b16 %v3955
    %v6363 = vunpack.c.l.b16 %v3956
    %v6364 = vunpack.c.l.b16 %v3957
    %v6365 = vunpack.c.l.b16 %v3958
    %v6366 = vunpack.c.l.b16 %v3959
    %v6367 = vunpack.c.l.b16 %v3960
    %v6368 = vunpack.c.l.b16 %v3961
    %v6369 = vunpack.c.l.b16 %v3962
    %v6370 = vunpack.c.l.b16 %v3963
    %v6371 = vunpack.c.l.b16 %v3964
    %v6372 = vunpack.c.l.b16 %v3965
    %v6373 = vunpack.c.l.b16 %v3966
    %v6374 = vunpack.c.l.b16 %v3967
    %v6375 = vunpack.c.l.b16 %v3968
    %v6376 = vunpack.c.l.b16 %v3969
    %v6377 = vunpack.c.l.b16 %v3970
    %v6378 = vunpack.c.l.b16 %v3971
    %v6379 = vunpack.c.l.b16 %v3972
    %v6380 = vunpack.c.l.b16 %v3973
    %v6381 = vunpack.c.l.b16 %v3974
    %v6382 = vunpack.c.l.b16 %v3975
    %v6383 = vunpack.c.l.b16 %v3976
    %v6384 = vunpack.c.l.b16 %v3977
    %v6385 = vunpack.c.l.b16 %v3978
    %v6386 = vunpack.c.l.b16 %v3979
    %v6387 = vunpack.c.l.b16 %v3980
    %v6388 = vunpack.c.l.b16 %v3981
    %v6389 = vunpack.c.l.b16 %v3982
    %v6390 = vunpack.c.l.b16 %v3983
    %v6391 = vunpack.c.l.b16 %v3984
    %v6392 = vunpack.c.l.b16 %v3985
    %v6393 = vunpack.c.l.b16 %v3986
    %v6394 = vunpack.c.l.b16 %v3987
    %v6395 = vunpack.c.l.b16 %v3988
    %v6396 = vunpack.c.l.b16 %v3989
    %v6397 = vunpack.c.l.b16 %v3990
    %v6398 = vunpack.c.l.b16 %v3991
    %v6399 = vunpack.c.l.b16 %v3992
    %v6400 = vunpack.c.l.b16 %v3993
    %v6401 = vunpack.c.l.b16 %v3994
    %v6402 = vunpack.c.l.b16 %v3995
    %v6403 = vunpack.c.l.b16 %v3996
    %v6404 = vunpack.c.l.b16 %v3997
    %v6405 = vunpack.c.l.b16 %v3998
    %v6406 = vunpack.c.l.b16 %v3999
    %v6407 = vunpack.c.l.b16 %v4000
    %v6408 = vunpack.c.l.b16 %v4001
    %v6409 = vunpack.c.l.b16 %v4002
    %v6410 = vunpack.c.l.b16 %v4003
    %v6411 = vunpack.c.l.b16 %v4004
    %v6412 = vunpack.c.l.b16 %v4005
    %v6413 = vunpack.c.l.b16 %v4006
    %v6414 = vunpack.c.l.b16 %v4007
    %v6415 = vunpack.c.l.b16 %v4008
    %v6416 = vunpack.c.l.b16 %v4009
    %v6417 = vunpack.c.l.b16 %v4010
    %v6418 = vunpack.c.l.b16 %v4011
    %v6419 = vunpack.c.l.b16 %v4012
    %v6420 = vunpack.c.l.b16 %v4013
    %v6421 = vunpack.c.l.b16 %v4014
    %v6422 = vunpack.c.l.b16 %v4015
    %v6423 = vunpack.c.l.b16 %v4016
    %v6424 = vunpack.c.l.b16 %v4017
    %v6425 = vunpack.c.l.b16 %v4018
    %v6426 = vunpack.c.l.b16 %v4019
    %v6427 = vunpack.c.l.b16 %v4020
    %v6428 = vunpack.c.l.b16 %v4021
    %v6429 = vunpack.c.l.b16 %v4022
    %v6430 = vunpack.c.l.b16 %v4023
    %v6431 = vunpack.c.l.b16 %v4024
    %v6432 = vunpack.c.l.b16 %v4025
    %v6433 = vunpack.c.l.b16 %v4026
    %v6434 = vunpack.c.l.b16 %v4027
    %v6435 = vunpack.c.l.b16 %v4028
    %v6436 = vunpack.c.l.b16 %v4029
    %v6437 = vunpack.c.l.b16 %v4030
    %v6438 = vunpack.c.l.b16 %v4031
    %v6439 = vunpack.c.l.b16 %v4032
    %v6440 = vunpack.c.l.b16 %v4033
    %v6441 = vunpack.c.l.b16 %v4034
    %v6442 = vunpack.c.l.b16 %v4035
    %v6443 = vunpack.c.l.b16 %v4036
    %v6444 = vunpack.c.l.b16 %v4037
    %v6445 = vunpack.c.l.b16 %v4038
    %v6446 = vunpack.c.l.b16 %v4039
    %v6447 = vunpack.c.l.b16 %v4040
    %v6448 = vunpack.c.l.b16 %v4041
    %v6449 = vunpack.c.l.b16 %v4042
    %v6450 = vunpack.c.l.b16 %v4043
    %v6451 = vunpack.c.l.b16 %v4044
    %v6452 = vunpack.c.l.b16 %v4045
    %v6453 = vunpack.c.l.b16 %v4046
    %v6454 = vunpack.c.l.b16 %v4047
    %v6455 = vunpack.c.l.b16 %v4048
    %v6456 = vunpack.c.l.b16 %v4049
    %v6457 = vunpack.c.l.b16 %v4050
    %v6458 = vunpack.c.l.b16 %v4051
    %v6459 = vunpack.c.l.b16 %v4052
    %v6460 = vunpack.c.l.b16 %v4053
    %v6461 = vunpack.c.l.b16 %v4054
    %v6462 = vunpack.c.l.b16 %v4055
    %v6463 = vunpack.c.l.b16 %v4056
    %v6464 = vunpack.c.l.b16 %v4057
    %v6465 = vunpack.c.l.b16 %v4058
    %v6466 = vunpack.c.l.b16 %v4059
    %v6467 = vunpack.c.l.b16 %v4060
    %v6468 = vunpack.c.l.b16 %v4061
    %v6469 = vunpack.c.l.b16 %v4062
    %v6470 = vunpack.c.l.b16 %v4063
    %v6471 = vunpack.c.l.b16 %v4064
    %v6472 = vunpack.c.l.b16 %v4065
    %v6473 = vunpack.c.l.b16 %v4066
    %v6474 = vunpack.c.l.b16 %v4067
    %v6475 = vunpack.c.l.b16 %v4068
    %v6476 = vunpack.c.l.b16 %v4069
    %v6477 = vunpack.c.l.b16 %v4070
    %v6478 = vunpack.c.l.b16 %v4071
    %v6479 = vunpack.c.l.b16 %v4072
    %v6480 = vunpack.c.l.b16 %v4073
    %v6481 = vunpack.c.l.b16 %v4074
    %v6482 = vunpack.c.l.b16 %v4075
    %v6483 = vunpack.c.l.b16 %v4076
    %v6484 = vunpack.c.l.b16 %v4077
    %v6485 = vunpack.c.l.b16 %v4078
    %v6486 = vunpack.c.l.b16 %v4079
    %v6487 = vunpack.c.l.b16 %v4080
    %v6488 = vunpack.c.l.b16 %v4081
    %v6489 = vunpack.c.l.b16 %v4082
    %v6490 = vunpack.c.l.b16 %v4083
    %v6491 = vunpack.c.l.b16 %v4084
    %v6492 = vunpack.c.l.b16 %v4085
    %v6493 = vunpack.c.l.b16 %v4086
    %v6494 = vunpack.c.l.b16 %v4087
    %v6495 = vunpack.c.l.b16 %v4088
    %v6496 = vunpack.c.l.b16 %v4089
    %v6497 = vunpack.c.l.b16 %v4090
    %v6498 = vunpack.c.l.b16 %v4091
    %v6499 = vunpack.c.l.b16 %v4092
    %v6500 = vunpack.c.l.b16 %v4093
    %v6501 = vunpack.c.l.b16 %v4094
    %v6502 = vunpack.c.l.b16 %v4095
    %v6503 = vunpack.c.l.b16 %v4096
    %v6504 = vunpack.c.l.b16 %v4097
    %v6505 = vunpack.c.l.b16 %v4098
    %v6506 = vunpack.c.l.b16 %v4099
    %v6507 = vunpack.c.l.b16 %v4100
    %v6508 = vunpack.c.l.b16 %v4101
    %v6509 = vunpack.c.l.b16 %v4102
    %v6510 = vunpack.c.l.b16 %v4103
    %v6511 = vunpack.c.l.b16 %v4104
    %v6512 = vunpack.c.l.b16 %v4105
    %v6513 = vunpack.c.l.b16 %v4106
    %v6514 = vunpack.c.l.b16 %v4107
    %v6515 = vunpack.c.l.b16 %v4108
    %v6516 = vunpack.c.l.b16 %v4109
    %v6517 = vunpack.c.l.b16 %v4110
    %v6518 = vunpack.c.l.b16 %v4111
    %v6519 = vunpack.c.l.b16 %v4112
    %v6520 = vunpack.c.l.b16 %v4113
    %v6521 = vunpack.c.l.b16 %v4114
    %v6522 = vunpack.c.l.b16 %v4115
    %v6523 = vunpack.c.l.b16 %v4116
    %v6524 = vunpack.c.l.b16 %v4117
    %v6525 = vunpack.c.l.b16 %v4118
    %v6526 = vunpack.c.l.b16 %v4119
    %v6527 = vunpack.c.l.b16 %v4120
    %v6528 = vunpack.c.l.b16 %v4121
    %v6529 = vunpack.c.l.b16 %v4122
    %v6530 = vunpack.c.l.b16 %v4123
    %v6531 = vunpack.c.l.b16 %v4124
    %v6532 = vunpack.c.l.b16 %v4125
    %v6533 = vunpack.c.l.b16 %v4126
    %v6534 = vunpack.c.l.b16 %v4127
    %v6535 = vunpack.c.l.b16 %v4128
    %v6536 = vunpack.c.l.b16 %v4129
    %v6537 = vunpack.c.l.b16 %v4130
    %v6538 = vunpack.c.l.b16 %v4131
    %v6539 = vunpack.c.l.b16 %v4132
    %v6540 = vunpack.c.l.b16 %v4133
    %v6541 = vunpack.c.l.b16 %v4134
    %v6542 = vunpack.c.l.b16 %v4135
    %v6543 = vunpack.c.l.b16 %v4136
    %v6544 = vunpack.c.l.b16 %v4137
    %v6545 = vunpack.c.l.b16 %v4138
    %v6546 = vunpack.c.l.b16 %v4139
    %v6547 = vunpack.c.l.b16 %v4140
    %v6548 = vunpack.c.l.b16 %v4141
    %v6549 = vunpack.c.l.b16 %v4142
    %v6550 = vunpack.c.l.b16 %v4143
    %v6551 = vunpack.c.l.b16 %v4144
    %v6552 = vunpack.c.l.b16 %v4145
    %v6553 = vunpack.c.l.b16 %v4146
    %v6554 = vunpack.c.l.b16 %v4147
    %v6555 = vunpack.c.l.b16 %v4148
    %v6556 = vunpack.c.l.b16 %v4149
    %v6557 = vunpack.c.l.b16 %v4150
    %v6558 = vunpack.c.l.b16 %v4151
    %v6559 = vunpack.c.l.b16 %v4152
    %v6560 = vunpack.c.l.b16 %v4153
    %v6561 = vunpack.c.l.b16 %v4154
    %v6562 = vunpack.c.l.b16 %v4155
    %v6563 = vunpack.c.l.b16 %v4156
    %v6564 = vunpack.c.l.b16 %v4157
    %v6565 = vunpack.c.l.b16 %v4158
    %v6566 = vunpack.c.l.b16 %v4159
    %v6567 = vunpack.c.l.b16 %v4160
    %v6568 = vunpack.c.l.b16 %v4161
    %v6569 = vunpack.c.l.b16 %v4162
    %v6570 = vunpack.c.l.b16 %v4163
    %v6571 = vunpack.c.l.b16 %v4164
    %v6572 = vunpack.c.l.b16 %v4165
    %v6573 = vunpack.c.l.b16 %v4166
    %v6574 = vunpack.c.l.b16 %v4167
    %v6575 = vunpack.c.l.b16 %v4168
    %v6576 = vunpack.c.l.b16 %v4169
    %v6577 = vunpack.c.l.b16 %v4170
    %v6578 = vunpack.c.l.b16 %v4171
    %v6579 = vunpack.c.l.b16 %v4172
    %v6580 = vunpack.c.l.b16 %v4173
    %v6581 = vunpack.c.l.b16 %v4174
    %v6582 = vunpack.c.l.b16 %v4175
    %v6583 = vunpack.c.l.b16 %v4176
    %v6584 = vunpack.c.l.b16 %v4177
    %v6585 = vunpack.c.l.b16 %v4178
    %v6586 = vunpack.c.l.b16 %v4179
    %v6587 = vunpack.c.l.b16 %v4180
    %v6588 = vunpack.c.l.b16 %v4181
    %v6589 = vunpack.c.l.b16 %v4182
    %v6590 = vunpack.c.l.b16 %v4183
    %v6591 = vunpack.c.l.b16 %v4184
    %v6592 = vunpack.c.l.b16 %v4185
    %v6593 = vunpack.c.l.b16 %v4186
    %v6594 = vunpack.c.l.b16 %v4187
    %v6595 = vunpack.c.l.b16 %v4188
    %v6596 = vunpack.c.l.b16 %v4189
    %v6597 = vunpack.c.l.b16 %v4190
    %v6598 = vunpack.c.l.b16 %v4191
    %v6599 = vunpack.c.l.b16 %v4192
    %v6600 = vunpack.c.l.b16 %v4193
    %v6601 = vunpack.c.l.b16 %v4194
    %v6602 = vunpack.c.l.b16 %v4195
    %v6603 = vunpack.c.l.b16 %v4196
    %v6604 = vunpack.c.l.b16 %v4197
    %v6605 = vunpack.c.l.b16 %v4198
    %v6606 = vunpack.c.l.b16 %v4199
    %v6607 = vunpack.c.l.b16 %v4200
    %v6608 = vunpack.c.l.b16 %v4201
    %v6609 = vunpack.c.l.b16 %v4202
    %v6610 = vunpack.c.l.b16 %v4203
    %v6611 = vunpack.c.l.b16 %v4204
    %v6612 = vunpack.c.l.b16 %v4205
    %v6613 = vunpack.c.l.b16 %v4206
    %v6614 = vunpack.c.l.b16 %v4207
    %v6615 = vunpack.c.l.b16 %v4208
    %v6616 = vunpack.c.l.b16 %v4209
    %v6617 = vunpack.c.l.b16 %v4210
    %v6618 = vunpack.c.l.b16 %v4211
    %v6619 = vunpack.c.l.b16 %v4212
    %v6620 = vunpack.c.l.b16 %v4213
    %v6621 = vunpack.c.l.b16 %v4214
    %v6622 = vunpack.c.l.b16 %v4215
    %v6623 = vunpack.c.l.b16 %v4216
    %v6624 = vunpack.c.l.b16 %v4217
    %v6625 = vunpack.c.l.b16 %v4218
    %v6626 = vunpack.c.l.b16 %v4219
    %v6627 = vunpack.c.l.b16 %v4220
    %v6628 = vunpack.c.l.b16 %v4221
    %v6629 = vunpack.c.l.b16 %v4222
    %v6630 = vunpack.c.l.b16 %v4223
    %v6631 = vunpack.c.l.b16 %v4224
    %v6632 = vunpack.c.l.b16 %v4225
    %v6633 = vunpack.c.l.b16 %v4226
    %v6634 = vunpack.c.l.b16 %v4227
    %v6635 = vunpack.c.l.b16 %v4228
    %v6636 = vunpack.c.l.b16 %v4229
    %v6637 = vunpack.c.l.b16 %v4230
    %v6638 = vunpack.c.l.b16 %v4231
    %v6639 = vunpack.c.l.b16 %v4232
    %v6640 = vunpack.c.l.b16 %v4233
    %v6641 = vunpack.c.l.b16 %v4234
    %v6642 = vunpack.c.l.b16 %v4235
    %v6643 = vunpack.c.l.b16 %v4236
    %v6644 = vunpack.c.l.b16 %v4237
    %v6645 = vunpack.c.l.b16 %v4238
    %v6646 = vunpack.c.l.b16 %v4239
    %v6647 = vunpack.c.l.b16 %v4240
    %v6648 = vunpack.c.l.b16 %v4241
    %v6649 = vunpack.c.l.b16 %v4242
    %v6650 = vunpack.c.l.b16 %v4243
    %v6651 = vunpack.c.l.b16 %v4244
    %v6652 = vunpack.c.l.b16 %v4245
    %v6653 = vunpack.c.l.b16 %v4246
    %v6654 = vunpack.c.l.b16 %v4247
    %v6655 = vunpack.c.l.b16 %v4248
    %v6656 = vunpack.c.l.b16 %v4249
    %v6657 = vunpack.c.l.b16 %v4250
    %v6658 = vunpack.c.l.b16 %v4251
    %v6659 = vunpack.c.l.b16 %v4252
    %v6660 = vunpack.c.l.b16 %v4253
    %v6661 = vunpack.c.l.b16 %v4254
    %v6662 = vunpack.c.l.b16 %v4255
    %v6663 = vunpack.c.l.b16 %v4256
    %v6664 = vunpack.c.l.b16 %v4257
    %v6665 = vunpack.c.l.b16 %v4258
    %v6666 = vunpack.c.l.b16 %v4259
    %v6667 = vunpack.c.l.b16 %v4260
    %v6668 = vunpack.c.l.b16 %v4261
    %v6669 = vunpack.c.l.b16 %v4262
    %v6670 = vunpack.c.l.b16 %v4263
    %v6671 = vunpack.c.l.b16 %v4264
    %v6672 = vunpack.c.l.b16 %v4265
    %v6673 = vunpack.c.l.b16 %v4266
    %v6674 = vunpack.c.l.b16 %v4267
    %v6675 = vunpack.c.l.b16 %v4268
    %v6676 = vunpack.c.l.b16 %v4269
    %v6677 = vunpack.c.l.b16 %v4270
    %v6678 = vunpack.c.l.b16 %v4271
    %v6679 = vunpack.c.l.b16 %v4272
    %v6680 = vunpack.c.l.b16 %v4273
    %v6681 = vunpack.c.l.b16 %v4274
    %v6682 = vunpack.c.l.b16 %v4275
    %v6683 = vunpack.c.l.b16 %v4276
    %v6684 = vunpack.c.l.b16 %v4277
    %v6685 = vunpack.c.l.b16 %v4278
    %v6686 = vunpack.c.l.b16 %v4279
    %v6687 = vunpack.c.l.b16 %v4280
    %v6688 = vunpack.c.l.b16 %v4281
    %v6689 = vunpack.c.l.b16 %v4282
    %v6690 = vunpack.c.l.b16 %v4283
    %v6691 = vunpack.c.l.b16 %v4284
    %v6692 = vunpack.c.l.b16 %v4285
    %v6693 = vunpack.c.l.b16 %v4286
    %v6694 = vunpack.c.l.b16 %v4287
    %v6695 = vunpack.c.l.b16 %v4288
    %v6696 = vunpack.c.l.b16 %v4289
    %v6697 = vunpack.c.l.b16 %v4290
    %v6698 = vunpack.c.l.b16 %v4291
    %v6699 = vunpack.c.l.b16 %v4292
    %v6700 = vunpack.c.l.b16 %v4293
    %v6701 = vunpack.c.l.b16 %v4294
    %v6702 = vunpack.c.l.b16 %v4295
    %v6703 = vunpack.c.l.b16 %v4296
    %v6704 = vunpack.c.l.b16 %v4297
    %v6705 = vunpack.c.l.b16 %v4298
    %v6706 = vunpack.c.l.b16 %v4299
    %v6707 = vunpack.c.l.b16 %v4300
    %v6708 = vunpack.c.l.b16 %v4301
    %v6709 = vunpack.c.l.b16 %v4302
    %v6710 = vunpack.c.l.b16 %v4303
    %v6711 = vunpack.c.l.b16 %v4304
    %v6712 = vunpack.c.l.b16 %v4305
    %v6713 = vunpack.c.l.b16 %v4306
    %v6714 = vunpack.c.l.b16 %v4307
    %v6715 = vunpack.c.l.b16 %v4308
    %v6716 = vunpack.c.l.b16 %v4309
    %v6717 = vunpack.c.l.b16 %v4310
    %v6718 = vunpack.c.l.b16 %v4311
    %v6719 = vunpack.c.l.b16 %v4312
    %v6720 = vunpack.c.l.b16 %v4313
    %v6721 = vunpack.c.l.b16 %v4314
    %v6722 = vunpack.c.l.b16 %v4315
    %v6723 = vunpack.c.l.b16 %v4316
    %v6724 = vunpack.c.l.b16 %v4317
    %v6725 = vunpack.c.l.b16 %v4318
    %v6726 = vunpack.c.l.b16 %v4319
    %v6727 = vunpack.c.l.b16 %v4320
    %v6728 = vunpack.c.l.b16 %v4321
    %v6729 = vunpack.c.l.b16 %v4322
    %v6730 = vunpack.c.l.b16 %v4323
    %v6731 = vunpack.c.l.b16 %v4324
    %v6732 = vunpack.c.l.b16 %v4325
    %v6733 = vunpack.c.l.b16 %v4326
    %v6734 = vunpack.c.l.b16 %v4327
    %v6735 = vunpack.c.l.b16 %v4328
    %v6736 = vunpack.c.l.b16 %v4329
    %v6737 = vunpack.c.l.b16 %v4330
    %v6738 = vunpack.c.l.b16 %v4331
    %v6739 = vunpack.c.l.b16 %v4332
    %v6740 = vunpack.c.l.b16 %v4333
    %v6741 = vunpack.c.l.b16 %v4334
    %v6742 = vunpack.c.l.b16 %v4335
    %v6743 = vunpack.c.l.b16 %v4336
    %v6744 = vunpack.c.l.b16 %v4337
    %v6745 = vunpack.c.l.b16 %v4338
    %v6746 = vunpack.c.l.b16 %v4339
    %v6747 = vunpack.c.l.b16 %v4340
    %v6748 = vunpack.c.l.b16 %v4341
    %v6749 = vunpack.c.l.b16 %v4342
    %v6750 = vunpack.c.l.b16 %v4343
    %v6751 = vunpack.c.l.b16 %v4344
    %v6752 = vunpack.c.l.b16 %v4345
    %v6753 = vunpack.c.l.b16 %v4346
    %v6754 = vunpack.c.l.b16 %v4347
    %v6755 = vunpack.c.l.b16 %v4348
    %v6756 = vunpack.c.l.b16 %v4349
    %v6757 = vunpack.c.l.b16 %v4350
    %v6758 = vunpack.c.l.b16 %v4351
    %v6759 = vunpack.c.l.b16 %v4352
    %v6760 = vunpack.c.l.b16 %v4353
    %v6761 = vunpack.c.l.b16 %v4354
    %v6762 = vunpack.c.l.b16 %v4355
    %v6763 = vunpack.c.l.b16 %v4356
    %v6764 = vunpack.c.l.b16 %v4357
    %v6765 = vunpack.c.l.b16 %v4358
    %v6766 = vunpack.c.l.b16 %v4359
    %v6767 = vunpack.c.l.b16 %v4360
    %v6768 = vunpack.c.l.b16 %v4361
    %v6769 = vunpack.c.l.b16 %v4362
    %v6770 = vunpack.c.l.b16 %v4363
    %v6771 = vunpack.c.l.b16 %v4364
    %v6772 = vunpack.c.l.b16 %v4365
    %v6773 = vunpack.c.l.b16 %v4366
    %v6774 = vunpack.c.l.b16 %v4367
    %v6775 = vunpack.c.l.b16 %v4368
    %v6776 = vunpack.c.l.b16 %v4369
    %v6777 = vunpack.c.l.b16 %v4370
    %v6778 = vunpack.c.l.b16 %v4371
    %v6779 = vunpack.c.l.b16 %v4372
    %v6780 = vunpack.c.l.b16 %v4373
    %v6781 = vunpack.c.l.b16 %v4374
    %v6782 = vunpack.c.l.b16 %v4375
    %v6783 = vunpack.c.l.b16 %v4376
    %v6784 = vunpack.c.l.b16 %v4377
    %v6785 = vunpack.c.l.b16 %v4378
    %v6786 = vunpack.c.l.b16 %v4379
    %v6787 = vunpack.c.l.b16 %v4380
    %v6788 = vunpack.c.l.b16 %v4381
    %v6789 = vunpack.c.l.b16 %v4382
    %v6790 = vunpack.c.l.b16 %v4383
    %v6791 = vunpack.c.l.b16 %v4384
    %v6792 = vunpack.c.l.b16 %v4385
    %v6793 = vunpack.c.l.b16 %v4386
    %v6794 = vunpack.c.l.b16 %v4387
    %v6795 = vunpack.c.l.b16 %v4388
    %v6796 = vunpack.c.l.b16 %v4389
    %v6797 = vunpack.c.l.b16 %v4390
    %v6798 = vunpack.c.l.b16 %v4391
    %v6799 = vunpack.c.l.b16 %v4392
    %v6800 = vunpack.c.l.b16 %v4393
    %v6801 = vunpack.c.l.b16 %v4394
    %v6802 = vunpack.c.l.b16 %v4395
    %v6803 = vunpack.c.l.b16 %v4396
    %v6804 = vunpack.c.l.b16 %v4397
    %v6805 = vunpack.c.l.b16 %v4398
    %v6806 = vunpack.c.l.b16 %v4399
    %v6807 = vunpack.c.l.b16 %v4400
    %v6808 = vunpack.c.l.b16 %v4401
    %v6809 = vunpack.c.l.b16 %v4402
    %v6810 = vunpack.c.l.b16 %v4403
    %v6811 = vunpack.c.l.b16 %v4404
    %v6812 = vunpack.c.l.b16 %v4405
    %v6813 = vunpack.c.l.b16 %v4406
    %v6814 = vunpack.c.l.b16 %v4407
    %v6815 = vunpack.c.l.b16 %v4408
    %v6816 = vunpack.c.l.b16 %v4409
    %v6817 = vunpack.c.l.b16 %v4410
    %v6818 = vunpack.c.l.b16 %v4411
    %v6819 = vunpack.c.l.b16 %v4412
    %v6820 = vunpack.c.l.b16 %v4413
    %v6821 = vunpack.c.l.b16 %v4414
    %v6822 = vunpack.c.l.b16 %v4415
    %v6823 = vunpack.c.l.b16 %v4416
    %v6824 = vunpack.c.l.b16 %v4417
    %v6825 = vunpack.c.l.b16 %v4418
    %v6826 = vunpack.c.l.b16 %v4419
    %v6827 = vunpack.c.l.b16 %v4420
    %v6828 = vunpack.c.l.b16 %v4421
    %v6829 = vunpack.c.l.b16 %v4422
    %v6830 = vunpack.c.l.b16 %v4423
    %v6831 = vunpack.c.l.b16 %v4424
    %v6832 = vunpack.c.l.b16 %v4425
    %v6833 = vunpack.c.l.b16 %v4426
    %v6834 = vunpack.c.l.b16 %v4427
    %v6835 = vunpack.c.l.b16 %v4428
    %v6836 = vunpack.c.l.b16 %v4429
    %v6837 = vunpack.c.l.b16 %v4430
    %v6838 = vunpack.c.l.b16 %v4431
    %v6839 = vunpack.c.l.b16 %v4432
    %v6840 = vunpack.c.l.b16 %v4433
    %v6841 = vunpack.c.l.b16 %v4434
    %v6842 = vunpack.c.l.b16 %v4435
    %v6843 = vunpack.c.l.b16 %v4436
    %v6844 = vunpack.c.l.b16 %v4437
    %v6845 = vunpack.c.l.b16 %v4438
    %v6846 = vunpack.c.l.b16 %v4439
    %v6847 = vunpack.c.l.b16 %v4440
    %v6848 = vunpack.c.l.b16 %v4441
    %v6849 = vunpack.c.l.b16 %v4442
    %v6850 = vunpack.c.l.b16 %v4443
    %v6851 = vunpack.c.l.b16 %v4444
    %v6852 = vunpack.c.l.b16 %v4445
    %v6853 = vunpack.c.l.b16 %v4446
    %v6854 = vunpack.c.l.b16 %v4447
    %v6855 = vunpack.c.l.b16 %v4448
    %v6856 = vunpack.c.l.b16 %v4449
    %v6857 = vunpack.c.l.b16 %v4450
    %v6858 = vunpack.c.l.b16 %v4451
    %v6859 = vunpack.c.l.b16 %v4452
    %v6860 = vunpack.c.l.b16 %v4453
    %v6861 = vunpack.c.l.b16 %v4454
    %v6862 = vunpack.c.l.b16 %v4455
    %v6863 = vunpack.c.l.b16 %v4456
    %v6864 = vunpack.c.l.b16 %v4457
    %v6865 = vunpack.c.l.b16 %v4458
    %v6866 = vunpack.c.l.b16 %v4459
    %v6867 = vunpack.c.l.b16 %v4460
    %v6868 = vunpack.c.l.b16 %v4461
    %v6869 = vunpack.c.l.b16 %v4462
    %v6870 = vunpack.c.l.b16 %v4463
    %v6871 = vunpack.c.l.b16 %v4464
    %v6872 = vunpack.c.l.b16 %v4465
    %v6873 = vunpack.c.l.b16 %v4466
    %v6874 = vunpack.c.l.b16 %v4467
    %v6875 = vunpack.c.l.b16 %v4468
    %v6876 = vunpack.c.l.b16 %v4469
    %v6877 = vunpack.c.l.b16 %v4470
    %v6878 = vunpack.c.l.b16 %v4471
    %v6879 = vunpack.c.l.b16 %v4472
    %v6880 = vunpack.c.l.b16 %v4473
    %v6881 = vunpack.c.l.b16 %v4474
    %v6882 = vunpack.c.l.b16 %v4475
    %v6883 = vunpack.c.l.b16 %v4476
    %v6884 = vunpack.c.l.b16 %v4477
    %v6885 = vunpack.c.l.b16 %v4478
    %v6886 = vunpack.c.l.b16 %v4479
    %v6887 = vunpack.c.l.b16 %v4480
    %v6888 = vunpack.c.l.b16 %v4481
    %v6889 = vunpack.c.l.b16 %v4482
    %v6890 = vunpack.c.l.b16 %v4483
    %v6891 = vunpack.c.l.b16 %v4484
    %v6892 = vunpack.c.l.b16 %v4485
    %v6893 = vunpack.c.l.b16 %v4486
    %v6894 = vunpack.c.l.b16 %v4487
    %v6895 = vunpack.c.l.b16 %v4488
    %v6896 = vunpack.c.l.b16 %v4489
    %v6897 = vunpack.c.l.b16 %v4490
    %v6898 = vunpack.c.l.b16 %v4491
    %v6899 = vunpack.c.l.b16 %v4492
    %v6900 = vunpack.c.l.b16 %v4493
    %v6901 = vunpack.c.l.b16 %v4494
    %v6902 = vunpack.c.l.b16 %v4495
    %v6903 = vunpack.c.l.b16 %v4496
    %v6904 = vunpack.c.l.b16 %v4497
    %v6905 = vunpack.c.l.b16 %v4498
    %v6906 = vunpack.c.l.b16 %v4499
    %v6907 = vunpack.c.l.b16 %v4500
    %v6908 = vunpack.c.l.b16 %v4501
    %v6909 = vunpack.c.l.b16 %v4502
    %v6910 = vunpack.c.l.b16 %v4503
    %v6911 = vunpack.c.l.b16 %v4504
    %v6912 = vunpack.c.l.b16 %v4505
    %v6913 = vunpack.c.l.b16 %v4506
    %v6914 = vunpack.c.l.b16 %v4507
    %v6915 = vunpack.c.l.b16 %v4508
    %v6916 = vunpack.c.l.b16 %v4509
    %v6917 = vunpack.c.l.b16 %v4510
    %v6918 = vunpack.c.l.b16 %v4511
    %v6919 = vunpack.c.l.b16 %v4512
    %v6920 = vunpack.c.l.b16 %v4513
    %v6921 = vunpack.c.l.b16 %v4514
    %v6922 = vunpack.c.l.b16 %v4515
    %v6923 = vunpack.c.l.b16 %v4516
    %v6924 = vunpack.c.l.b16 %v4517
    %v6925 = vunpack.c.l.b16 %v4518
    %v6926 = vunpack.c.l.b16 %v4519
    %v6927 = vunpack.c.l.b16 %v4520
    %v6928 = vunpack.c.l.b16 %v4521
    %v6929 = vunpack.c.l.b16 %v4522
    %v6930 = vunpack.c.l.b16 %v4523
    %v6931 = vunpack.c.l.b16 %v4524
    %v6932 = vunpack.c.l.b16 %v4525
    %v6933 = vunpack.c.l.b16 %v4526
    %v6934 = vunpack.c.l.b16 %v4527
    %v6935 = vunpack.c.l.b16 %v4528
    %v6936 = vunpack.c.l.b16 %v4529
    %v6937 = vunpack.c.l.b16 %v4530
    %v6938 = vunpack.c.l.b16 %v4531
    %v6939 = vunpack.c.l.b16 %v4532
    %v6940 = vunpack.c.l.b16 %v4533
    %v6941 = vunpack.c.l.b16 %v4534
    %v6942 = vunpack.c.l.b16 %v4535
    %v6943 = vunpack.c.l.b16 %v4536
    %v6944 = vunpack.c.l.b16 %v4537
    %v6945 = vunpack.c.l.b16 %v4538
    %v6946 = vunpack.c.l.b16 %v4539
    %v6947 = vunpack.c.l.b16 %v4540
    %v6948 = vunpack.c.l.b16 %v4541
    %v6949 = vunpack.c.l.b16 %v4542
    %v6950 = vunpack.c.l.b16 %v4543
    %v6951 = vunpack.c.l.b16 %v4544
    %v6952 = vunpack.c.l.b16 %v4545
    %v6953 = vunpack.c.l.b16 %v4546
    %v6954 = vunpack.c.l.b16 %v4547
    %v6955 = vunpack.c.l.b16 %v4548
    %v6956 = vunpack.c.l.b16 %v4549
    %v6957 = vunpack.c.l.b16 %v4550
    %v6958 = vunpack.c.l.b16 %v4551
    %v6959 = vunpack.c.l.b16 %v4552
    %v6960 = vunpack.c.l.b16 %v4553
    %v6961 = vunpack.c.l.b16 %v4554
    %v6962 = vunpack.c.l.b16 %v4555
    %v6963 = vunpack.c.l.b16 %v4556
    %v6964 = vunpack.c.l.b16 %v4557
    %v6965 = vunpack.c.l.b16 %v4558
    %v6966 = vunpack.c.l.b16 %v4559
    %v6967 = vunpack.c.l.b16 %v4560
    %v6968 = vunpack.c.l.b16 %v4561
    %v6969 = vunpack.c.l.b16 %v4562
    %v6970 = vunpack.c.l.b16 %v4563
    %v6971 = vunpack.c.l.b16 %v4564
    %v6972 = vunpack.c.l.b16 %v4565
    %v6973 = vunpack.c.l.b16 %v4566
    %v6974 = vunpack.c.l.b16 %v4567
    %v6975 = vunpack.c.l.b16 %v4568
    %v6976 = vunpack.c.l.b16 %v4569
    %v6977 = vunpack.c.l.b16 %v4570
    %v6978 = vunpack.c.l.b16 %v4571
    %v6979 = vunpack.c.l.b16 %v4572
    %v6980 = vunpack.c.l.b16 %v4573
    %v6981 = vunpack.c.l.b16 %v4574
    %v6982 = vunpack.c.l.b16 %v4575
    %v6983 = vunpack.c.l.b16 %v4576
    %v6984 = vunpack.c.l.b16 %v4577
    %v6985 = vunpack.c.l.b16 %v4578
    %v6986 = vunpack.c.l.b16 %v4579
    %v6987 = vunpack.c.l.b16 %v4580
    %v6988 = vunpack.c.l.b16 %v4581
    %v6989 = vunpack.c.l.b16 %v4582
    %v6990 = vunpack.c.l.b16 %v4583
    %v6991 = vunpack.c.l.b16 %v4584
    %v6992 = vunpack.c.l.b16 %v4585
    %v6993 = vunpack.c.l.b16 %v4586
    %v6994 = vunpack.c.l.b16 %v4587
    %v6995 = vunpack.c.l.b16 %v4588
    %v6996 = vunpack.c.l.b16 %v4589
    %v6997 = vunpack.c.l.b16 %v4590
    %v6998 = vunpack.c.l.b16 %v4591
    %v6999 = vunpack.c.l.b16 %v4592
    %v7000 = vunpack.c.l.b16 %v4593
    %v7001 = vunpack.c.l.b16 %v4594
    %v7002 = vunpack.c.l.b16 %v4595
    %v7003 = vunpack.c.l.b16 %v4596
    %v7004 = vunpack.c.l.b16 %v4597
    %v7005 = vunpack.c.l.b16 %v4598
    %v7006 = vunpack.c.l.b16 %v4599
    %v7007 = vunpack.c.l.b16 %v4600
    %v7008 = vunpack.c.l.b16 %v4601
    %v7009 = vunpack.c.l.b16 %v4602
    %v7010 = vunpack.c.l.b16 %v4603
    %v7011 = vunpack.c.l.b16 %v4604
    %v7012 = vunpack.c.l.b16 %v4605
    %v7013 = vunpack.c.l.b16 %v4606
    %v7014 = vunpack.c.l.b16 %v4607
    %v7015 = vunpack.c.l.b16 %v4608
    %v7016 = vunpack.c.l.b16 %v4609
    %v7017 = vunpack.c.l.b16 %v4610
    %v7018 = vunpack.c.l.b16 %v4611
    %v7019 = vunpack.c.l.b16 %v4612
    %v7020 = vunpack.c.l.b16 %v4613
    %v7021 = vunpack.c.l.b16 %v4614
    %v7022 = vunpack.c.l.b16 %v4615
    %v7023 = vunpack.c.l.b16 %v4616
    %v7024 = vunpack.c.l.b16 %v4617
    %v7025 = vunpack.c.l.b16 %v4618
    %v7026 = vunpack.c.l.b16 %v4619
    %v7027 = vunpack.c.l.b16 %v4620
    %v7028 = vunpack.c.l.b16 %v4621
    %v7029 = vunpack.c.l.b16 %v4622
    %v7030 = vunpack.c.l.b16 %v4623
    %v7031 = vunpack.c.l.b16 %v4624
    %v7032 = vunpack.c.l.b16 %v4625
    %v7033 = vunpack.c.l.b16 %v4626
    %v7034 = vunpack.c.l.b16 %v4627
    %v7035 = vunpack.c.l.b16 %v4628
    %v7036 = vunpack.c.l.b16 %v4629
    %v7037 = vunpack.c.l.b16 %v4630
    %v7038 = vunpack.c.l.b16 %v4631
    %v7039 = vunpack.c.l.b16 %v4632
    %v7040 = vunpack.c.l.b16 %v4633
    %v7041 = vunpack.c.l.b16 %v4634
    %v7042 = vunpack.c.l.b16 %v4635
    %v7043 = vunpack.c.l.b16 %v4636
    %v7044 = vunpack.c.l.b16 %v4637
    %v7045 = vunpack.c.l.b16 %v4638
    %v7046 = vunpack.c.l.b16 %v4639
    %v7047 = vunpack.c.l.b16 %v4640
    %v7048 = vunpack.c.l.b16 %v4641
    %v7049 = vunpack.c.l.b16 %v4642
    %v7050 = vunpack.c.l.b16 %v4643
    %v7051 = vunpack.c.l.b16 %v4644
    %v7052 = vunpack.c.l.b16 %v4645
    %v7053 = vunpack.c.l.b16 %v4646
    %v7054 = vunpack.c.l.b16 %v4647
    %v7055 = vunpack.c.l.b16 %v4648
    %v7056 = vunpack.c.l.b16 %v4649
    %v7057 = vunpack.c.l.b16 %v4650
    %v7058 = vunpack.c.l.b16 %v4651
    %v7059 = vunpack.c.l.b16 %v4652
    %v7060 = vunpack.c.l.b16 %v4653
    %v7061 = vunpack.c.l.b16 %v4654
    %v7062 = vunpack.c.l.b16 %v4655
    %v7063 = vunpack.c.l.b16 %v4656
    %v7064 = vunpack.c.l.b16 %v4657
    %v7065 = vunpack.c.l.b16 %v4658
    %v7066 = vunpack.c.l.b16 %v4659
    %v7067 = vunpack.c.l.b16 %v4660
    %v7068 = vunpack.c.l.b16 %v4661
    %v7069 = vunpack.c.l.b16 %v4662
    %v7070 = vunpack.c.l.b16 %v4663
    %v7071 = vunpack.c.l.b16 %v4664
    %v7072 = vunpack.c.l.b16 %v4665
    %v7073 = vunpack.c.l.b16 %v4666
    %v7074 = vunpack.c.l.b16 %v4667
    %v7075 = vunpack.c.l.b16 %v4668
    %v7076 = vunpack.c.l.b16 %v4669
    %v7077 = vunpack.c.l.b16 %v4670
    %v7078 = vunpack.c.l.b16 %v4671
    %v7079 = vunpack.c.l.b16 %v4672
    %v7080 = vunpack.c.l.b16 %v4673
    %v7081 = vunpack.c.l.b16 %v4674
    %v7082 = vunpack.c.l.b16 %v4675
    %v7083 = vunpack.c.l.b16 %v4676
    %v7084 = vunpack.c.l.b16 %v4677
    %v7085 = vunpack.c.l.b16 %v4678
    %v7086 = vunpack.c.l.b16 %v4679
    %v7087 = vunpack.c.l.b16 %v4680
    %v7088 = vunpack.c.l.b16 %v4681
    %v7089 = vunpack.c.l.b16 %v4682
    %v7090 = vunpack.c.l.b16 %v4683
    %v7091 = vunpack.c.l.b16 %v4684
    %v7092 = vunpack.c.l.b16 %v4685
    %v7093 = vunpack.c.l.b16 %v4686
    %v7094 = vunpack.c.l.b16 %v4687
    %v7095 = vunpack.c.l.b16 %v4688
    %v7096 = vunpack.c.l.b16 %v4689
    %v7097 = vunpack.c.l.b16 %v4690
    %v7098 = vunpack.c.l.b16 %v4691
    %v7099 = vunpack.c.l.b16 %v4692
    %v7100 = vunpack.c.l.b16 %v4693
    %v7101 = vunpack.c.l.b16 %v4694
    %v7102 = vunpack.c.l.b16 %v4695
    %v7103 = vunpack.c.l.b16 %v4696
    %v7104 = vunpack.c.l.b16 %v4697
    %v7105 = vunpack.c.l.b16 %v4698
    %v7106 = vunpack.c.l.b16 %v4699
    %v7107 = vunpack.c.l.b16 %v4700
    %v7108 = vunpack.c.l.b16 %v4701
    %v7109 = vunpack.c.l.b16 %v4702
    %v7110 = vunpack.c.l.b16 %v4703
    %v7111 = vunpack.c.l.b16 %v4704
    %v7112 = vunpack.c.l.b16 %v4705
    %v7113 = vunpack.c.l.b16 %v4706
    %v7114 = vunpack.c.l.b16 %v4707
    %v7115 = vunpack.c.l.b16 %v4708
    %v7116 = vunpack.c.l.b16 %v4709
    %v7117 = vpack.c.b16 %v5918, %v5917
    %v7118 = vpack.c.b16 %v5920, %v5919
    %v7119 = vpack.c.b16 %v5922, %v5921
    %v7120 = vpack.c.b16 %v5924, %v5923
    %v7121 = vpack.c.b16 %v5926, %v5925
    %v7122 = vpack.c.b16 %v5928, %v5927
    %v7123 = vpack.c.b16 %v5930, %v5929
    %v7124 = vpack.c.b16 %v5932, %v5931
    %v7125 = vpack.c.b16 %v5934, %v5933
    %v7126 = vpack.c.b16 %v5936, %v5935
    %v7127 = vpack.c.b16 %v5938, %v5937
    %v7128 = vpack.c.b16 %v5940, %v5939
    %v7129 = vpack.c.b16 %v5942, %v5941
    %v7130 = vpack.c.b16 %v5944, %v5943
    %v7131 = vpack.c.b16 %v5946, %v5945
    %v7132 = vpack.c.b16 %v5948, %v5947
    %v7133 = vpack.c.b16 %v5950, %v5949
    %v7134 = vpack.c.b16 %v5952, %v5951
    %v7135 = vpack.c.b16 %v5954, %v5953
    %v7136 = vpack.c.b16 %v5956, %v5955
    %v7137 = vpack.c.b16 %v5958, %v5957
    %v7138 = vpack.c.b16 %v5960, %v5959
    %v7139 = vpack.c.b16 %v5962, %v5961
    %v7140 = vpack.c.b16 %v5964, %v5963
    %v7141 = vpack.c.b16 %v5966, %v5965
    %v7142 = vpack.c.b16 %v5968, %v5967
    %v7143 = vpack.c.b16 %v5970, %v5969
    %v7144 = vpack.c.b16 %v5972, %v5971
    %v7145 = vpack.c.b16 %v5974, %v5973
    %v7146 = vpack.c.b16 %v5976, %v5975
    %v7147 = vpack.c.b16 %v5978, %v5977
    %v7148 = vpack.c.b16 %v5980, %v5979
    %v7149 = vpack.c.b16 %v5982, %v5981
    %v7150 = vpack.c.b16 %v5984, %v5983
    %v7151 = vpack.c.b16 %v5986, %v5985
    %v7152 = vpack.c.b16 %v5988, %v5987
    %v7153 = vpack.c.b16 %v5990, %v5989
    %v7154 = vpack.c.b16 %v5992, %v5991
    %v7155 = vpack.c.b16 %v5994, %v5993
    %v7156 = vpack.c.b16 %v5996, %v5995
    %v7157 = vpack.c.b16 %v5998, %v5997
    %v7158 = vpack.c.b16 %v6000, %v5999
    %v7159 = vpack.c.b16 %v6002, %v6001
    %v7160 = vpack.c.b16 %v6004, %v6003
    %v7161 = vpack.c.b16 %v6006, %v6005
    %v7162 = vpack.c.b16 %v6008, %v6007
    %v7163 = vpack.c.b16 %v6010, %v6009
    %v7164 = vpack.c.b16 %v6012, %v6011
    %v7165 = vpack.c.b16 %v6014, %v6013
    %v7166 = vpack.c.b16 %v6016, %v6015
    %v7167 = vpack.c.b16 %v6018, %v6017
    %v7168 = vpack.c.b16 %v6020, %v6019
    %v7169 = vpack.c.b16 %v6022, %v6021
    %v7170 = vpack.c.b16 %v6024, %v6023
    %v7171 = vpack.c.b16 %v6026, %v6025
    %v7172 = vpack.c.b16 %v6028, %v6027
    %v7173 = vpack.c.b16 %v6030, %v6029
    %v7174 = vpack.c.b16 %v6032, %v6031
    %v7175 = vpack.c.b16 %v6034, %v6033
    %v7176 = vpack.c.b16 %v6036, %v6035
    %v7177 = vpack.c.b16 %v6038, %v6037
    %v7178 = vpack.c.b16 %v6040, %v6039
    %v7179 = vpack.c.b16 %v6042, %v6041
    %v7180 = vpack.c.b16 %v6044, %v6043
    %v7181 = vpack.c.b16 %v6046, %v6045
    %v7182 = vpack.c.b16 %v6048, %v6047
    %v7183 = vpack.c.b16 %v6050, %v6049
    %v7184 = vpack.c.b16 %v6052, %v6051
    %v7185 = vpack.c.b16 %v6054, %v6053
    %v7186 = vpack.c.b16 %v6056, %v6055
    %v7187 = vpack.c.b16 %v6058, %v6057
    %v7188 = vpack.c.b16 %v6060, %v6059
    %v7189 = vpack.c.b16 %v6062, %v6061
    %v7190 = vpack.c.b16 %v6064, %v6063
    %v7191 = vpack.c.b16 %v6066, %v6065
    %v7192 = vpack.c.b16 %v6068, %v6067
    %v7193 = vpack.c.b16 %v6070, %v6069
    %v7194 = vpack.c.b16 %v6072, %v6071
    %v7195 = vpack.c.b16 %v6074, %v6073
    %v7196 = vpack.c.b16 %v6076, %v6075
    %v7197 = vpack.c.b16 %v6078, %v6077
    %v7198 = vpack.c.b16 %v6080, %v6079
    %v7199 = vpack.c.b16 %v6082, %v6081
    %v7200 = vpack.c.b16 %v6084, %v6083
    %v7201 = vpack.c.b16 %v6086, %v6085
    %v7202 = vpack.c.b16 %v6088, %v6087
    %v7203 = vpack.c.b16 %v6090, %v6089
    %v7204 = vpack.c.b16 %v6092, %v6091
    %v7205 = vpack.c.b16 %v6094, %v6093
    %v7206 = vpack.c.b16 %v6096, %v6095
    %v7207 = vpack.c.b16 %v6098, %v6097
    %v7208 = vpack.c.b16 %v6100, %v6099
    %v7209 = vpack.c.b16 %v6102, %v6101
    %v7210 = vpack.c.b16 %v6104, %v6103
    %v7211 = vpack.c.b16 %v6106, %v6105
    %v7212 = vpack.c.b16 %v6108, %v6107
    %v7213 = vpack.c.b16 %v6110, %v6109
    %v7214 = vpack.c.b16 %v6112, %v6111
    %v7215 = vpack.c.b16 %v6114, %v6113
    %v7216 = vpack.c.b16 %v6116, %v6115
    %v7217 = vpack.c.b16 %v6118, %v6117
    %v7218 = vpack.c.b16 %v6120, %v6119
    %v7219 = vpack.c.b16 %v6122, %v6121
    %v7220 = vpack.c.b16 %v6124, %v6123
    %v7221 = vpack.c.b16 %v6126, %v6125
    %v7222 = vpack.c.b16 %v6128, %v6127
    %v7223 = vpack.c.b16 %v6130, %v6129
    %v7224 = vpack.c.b16 %v6132, %v6131
    %v7225 = vpack.c.b16 %v6134, %v6133
    %v7226 = vpack.c.b16 %v6136, %v6135
    %v7227 = vpack.c.b16 %v6138, %v6137
    %v7228 = vpack.c.b16 %v6140, %v6139
    %v7229 = vpack.c.b16 %v6142, %v6141
    %v7230 = vpack.c.b16 %v6144, %v6143
    %v7231 = vpack.c.b16 %v6146, %v6145
    %v7232 = vpack.c.b16 %v6148, %v6147
    %v7233 = vpack.c.b16 %v6150, %v6149
    %v7234 = vpack.c.b16 %v6152, %v6151
    %v7235 = vpack.c.b16 %v6154, %v6153
    %v7236 = vpack.c.b16 %v6156, %v6155
    %v7237 = vpack.c.b16 %v6158, %v6157
    %v7238 = vpack.c.b16 %v6160, %v6159
    %v7239 = vpack.c.b16 %v6162, %v6161
    %v7240 = vpack.c.b16 %v6164, %v6163
    %v7241 = vpack.c.b16 %v6166, %v6165
    %v7242 = vpack.c.b16 %v6168, %v6167
    %v7243 = vpack.c.b16 %v6170, %v6169
    %v7244 = vpack.c.b16 %v6172, %v6171
    %v7245 = vpack.c.b16 %v6174, %v6173
    %v7246 = vpack.c.b16 %v6176, %v6175
    %v7247 = vpack.c.b16 %v6178, %v6177
    %v7248 = vpack.c.b16 %v6180, %v6179
    %v7249 = vpack.c.b16 %v6182, %v6181
    %v7250 = vpack.c.b16 %v6184, %v6183
    %v7251 = vpack.c.b16 %v6186, %v6185
    %v7252 = vpack.c.b16 %v6188, %v6187
    %v7253 = vpack.c.b16 %v6190, %v6189
    %v7254 = vpack.c.b16 %v6192, %v6191
    %v7255 = vpack.c.b16 %v6194, %v6193
    %v7256 = vpack.c.b16 %v6196, %v6195
    %v7257 = vpack.c.b16 %v6198, %v6197
    %v7258 = vpack.c.b16 %v6200, %v6199
    %v7259 = vpack.c.b16 %v6202, %v6201
    %v7260 = vpack.c.b16 %v6204, %v6203
    %v7261 = vpack.c.b16 %v6206, %v6205
    %v7262 = vpack.c.b16 %v6208, %v6207
    %v7263 = vpack.c.b16 %v6210, %v6209
    %v7264 = vpack.c.b16 %v6212, %v6211
    %v7265 = vpack.c.b16 %v6214, %v6213
    %v7266 = vpack.c.b16 %v6216, %v6215
    %v7267 = vpack.c.b16 %v6218, %v6217
    %v7268 = vpack.c.b16 %v6220, %v6219
    %v7269 = vpack.c.b16 %v6222, %v6221
    %v7270 = vpack.c.b16 %v6224, %v6223
    %v7271 = vpack.c.b16 %v6226, %v6225
    %v7272 = vpack.c.b16 %v6228, %v6227
    %v7273 = vpack.c.b16 %v6230, %v6229
    %v7274 = vpack.c.b16 %v6232, %v6231
    %v7275 = vpack.c.b16 %v6234, %v6233
    %v7276 = vpack.c.b16 %v6236, %v6235
    %v7277 = vpack.c.b16 %v6238, %v6237
    %v7278 = vpack.c.b16 %v6240, %v6239
    %v7279 = vpack.c.b16 %v6242, %v6241
    %v7280 = vpack.c.b16 %v6244, %v6243
    %v7281 = vpack.c.b16 %v6246, %v6245
    %v7282 = vpack.c.b16 %v6248, %v6247
    %v7283 = vpack.c.b16 %v6250, %v6249
    %v7284 = vpack.c.b16 %v6252, %v6251
    %v7285 = vpack.c.b16 %v6254, %v6253
    %v7286 = vpack.c.b16 %v6256, %v6255
    %v7287 = vpack.c.b16 %v6258, %v6257
    %v7288 = vpack.c.b16 %v6260, %v6259
    %v7289 = vpack.c.b16 %v6262, %v6261
    %v7290 = vpack.c.b16 %v6264, %v6263
    %v7291 = vpack.c.b16 %v6266, %v6265
    %v7292 = vpack.c.b16 %v6268, %v6267
    %v7293 = vpack.c.b16 %v6270, %v6269
    %v7294 = vpack.c.b16 %v6272, %v6271
    %v7295 = vpack.c.b16 %v6274, %v6273
    %v7296 = vpack.c.b16 %v6276, %v6275
    %v7297 = vpack.c.b16 %v6278, %v6277
    %v7298 = vpack.c.b16 %v6280, %v6279
    %v7299 = vpack.c.b16 %v6282, %v6281
    %v7300 = vpack.c.b16 %v6284, %v6283
    %v7301 = vpack.c.b16 %v6286, %v6285
    %v7302 = vpack.c.b16 %v6288, %v6287
    %v7303 = vpack.c.b16 %v6290, %v6289
    %v7304 = vpack.c.b16 %v6292, %v6291
    %v7305 = vpack.c.b16 %v6294, %v6293
    %v7306 = vpack.c.b16 %v6296, %v6295
    %v7307 = vpack.c.b16 %v6298, %v6297
    %v7308 = vpack.c.b16 %v6300, %v6299
    %v7309 = vpack.c.b16 %v6302, %v6301
    %v7310 = vpack.c.b16 %v6304, %v6303
    %v7311 = vpack.c.b16 %v6306, %v6305
    %v7312 = vpack.c.b16 %v6308, %v6307
    %v7313 = vpack.c.b16 %v6310, %v6309
    %v7314 = vpack.c.b16 %v6312, %v6311
    %v7315 = vpack.c.b16 %v6314, %v6313
    %v7316 = vpack.c.b16 %v6316, %v6315
    %v7317 = vpack.c.b16 %v6318, %v6317
    %v7318 = vpack.c.b16 %v6320, %v6319
    %v7319 = vpack.c.b16 %v6322, %v6321
    %v7320 = vpack.c.b16 %v6324, %v6323
    %v7321 = vpack.c.b16 %v6326, %v6325
    %v7322 = vpack.c.b16 %v6328, %v6327
    %v7323 = vpack.c.b16 %v6330, %v6329
    %v7324 = vpack.c.b16 %v6332, %v6331
    %v7325 = vpack.c.b16 %v6334, %v6333
    %v7326 = vpack.c.b16 %v6336, %v6335
    %v7327 = vpack.c.b16 %v6338, %v6337
    %v7328 = vpack.c.b16 %v6340, %v6339
    %v7329 = vpack.c.b16 %v6342, %v6341
    %v7330 = vpack.c.b16 %v6344, %v6343
    %v7331 = vpack.c.b16 %v6346, %v6345
    %v7332 = vpack.c.b16 %v6348, %v6347
    %v7333 = vpack.c.b16 %v6350, %v6349
    %v7334 = vpack.c.b16 %v6352, %v6351
    %v7335 = vpack.c.b16 %v6354, %v6353
    %v7336 = vpack.c.b16 %v6356, %v6355
    %v7337 = vpack.c.b16 %v6358, %v6357
    %v7338 = vpack.c.b16 %v6360, %v6359
    %v7339 = vpack.c.b16 %v6362, %v6361
    %v7340 = vpack.c.b16 %v6364, %v6363
    %v7341 = vpack.c.b16 %v6366, %v6365
    %v7342 = vpack.c.b16 %v6368, %v6367
    %v7343 = vpack.c.b16 %v6370, %v6369
    %v7344 = vpack.c.b16 %v6372, %v6371
    %v7345 = vpack.c.b16 %v6374, %v6373
    %v7346 = vpack.c.b16 %v6376, %v6375
    %v7347 = vpack.c.b16 %v6378, %v6377
    %v7348 = vpack.c.b16 %v6380, %v6379
    %v7349 = vpack.c.b16 %v6382, %v6381
    %v7350 = vpack.c.b16 %v6384, %v6383
    %v7351 = vpack.c.b16 %v6386, %v6385
    %v7352 = vpack.c.b16 %v6388, %v6387
    %v7353 = vpack.c.b16 %v6390, %v6389
    %v7354 = vpack.c.b16 %v6392, %v6391
    %v7355 = vpack.c.b16 %v6394, %v6393
    %v7356 = vpack.c.b16 %v6396, %v6395
    %v7357 = vpack.c.b16 %v6398, %v6397
    %v7358 = vpack.c.b16 %v6400, %v6399
    %v7359 = vpack.c.b16 %v6402, %v6401
    %v7360 = vpack.c.b16 %v6404, %v6403
    %v7361 = vpack.c.b16 %v6406, %v6405
    %v7362 = vpack.c.b16 %v6408, %v6407
    %v7363 = vpack.c.b16 %v6410, %v6409
    %v7364 = vpack.c.b16 %v6412, %v6411
    %v7365 = vpack.c.b16 %v6414, %v6413
    %v7366 = vpack.c.b16 %v6416, %v6415
    %v7367 = vpack.c.b16 %v6418, %v6417
    %v7368 = vpack.c.b16 %v6420, %v6419
    %v7369 = vpack.c.b16 %v6422, %v6421
    %v7370 = vpack.c.b16 %v6424, %v6423
    %v7371 = vpack.c.b16 %v6426, %v6425
    %v7372 = vpack.c.b16 %v6428, %v6427
    %v7373 = vpack.c.b16 %v6430, %v6429
    %v7374 = vpack.c.b16 %v6432, %v6431
    %v7375 = vpack.c.b16 %v6434, %v6433
    %v7376 = vpack.c.b16 %v6436, %v6435
    %v7377 = vpack.c.b16 %v6438, %v6437
    %v7378 = vpack.c.b16 %v6440, %v6439
    %v7379 = vpack.c.b16 %v6442, %v6441
    %v7380 = vpack.c.b16 %v6444, %v6443
    %v7381 = vpack.c.b16 %v6446, %v6445
    %v7382 = vpack.c.b16 %v6448, %v6447
    %v7383 = vpack.c.b16 %v6450, %v6449
    %v7384 = vpack.c.b16 %v6452, %v6451
    %v7385 = vpack.c.b16 %v6454, %v6453
    %v7386 = vpack.c.b16 %v6456, %v6455
    %v7387 = vpack.c.b16 %v6458, %v6457
    %v7388 = vpack.c.b16 %v6460, %v6459
    %v7389 = vpack.c.b16 %v6462, %v6461
    %v7390 = vpack.c.b16 %v6464, %v6463
    %v7391 = vpack.c.b16 %v6466, %v6465
    %v7392 = vpack.c.b16 %v6468, %v6467
    %v7393 = vpack.c.b16 %v6470, %v6469
    %v7394 = vpack.c.b16 %v6472, %v6471
    %v7395 = vpack.c.b16 %v6474, %v6473
    %v7396 = vpack.c.b16 %v6476, %v6475
    %v7397 = vpack.c.b16 %v6478, %v6477
    %v7398 = vpack.c.b16 %v6480, %v6479
    %v7399 = vpack.c.b16 %v6482, %v6481
    %v7400 = vpack.c.b16 %v6484, %v6483
    %v7401 = vpack.c.b16 %v6486, %v6485
    %v7402 = vpack.c.b16 %v6488, %v6487
    %v7403 = vpack.c.b16 %v6490, %v6489
    %v7404 = vpack.c.b16 %v6492, %v6491
    %v7405 = vpack.c.b16 %v6494, %v6493
    %v7406 = vpack.c.b16 %v6496, %v6495
    %v7407 = vpack.c.b16 %v6498, %v6497
    %v7408 = vpack.c.b16 %v6500, %v6499
    %v7409 = vpack.c.b16 %v6502, %v6501
    %v7410 = vpack.c.b16 %v6504, %v6503
    %v7411 = vpack.c.b16 %v6506, %v6505
    %v7412 = vpack.c.b16 %v6508, %v6507
    %v7413 = vpack.c.b16 %v6510, %v6509
    %v7414 = vpack.c.b16 %v6512, %v6511
    %v7415 = vpack.c.b16 %v6514, %v6513
    %v7416 = vpack.c.b16 %v6516, %v6515
    %v7417 = vpack.c.b16 %v6518, %v6517
    %v7418 = vpack.c.b16 %v6520, %v6519
    %v7419 = vpack.c.b16 %v6522, %v6521
    %v7420 = vpack.c.b16 %v6524, %v6523
    %v7421 = vpack.c.b16 %v6526, %v6525
    %v7422 = vpack.c.b16 %v6528, %v6527
    %v7423 = vpack.c.b16 %v6530, %v6529
    %v7424 = vpack.c.b16 %v6532, %v6531
    %v7425 = vpack.c.b16 %v6534, %v6533
    %v7426 = vpack.c.b16 %v6536, %v6535
    %v7427 = vpack.c.b16 %v6538, %v6537
    %v7428 = vpack.c.b16 %v6540, %v6539
    %v7429 = vpack.c.b16 %v6542, %v6541
    %v7430 = vpack.c.b16 %v6544, %v6543
    %v7431 = vpack.c.b16 %v6546, %v6545
    %v7432 = vpack.c.b16 %v6548, %v6547
    %v7433 = vpack.c.b16 %v6550, %v6549
    %v7434 = vpack.c.b16 %v6552, %v6551
    %v7435 = vpack.c.b16 %v6554, %v6553
    %v7436 = vpack.c.b16 %v6556, %v6555
    %v7437 = vpack.c.b16 %v6558, %v6557
    %v7438 = vpack.c.b16 %v6560, %v6559
    %v7439 = vpack.c.b16 %v6562, %v6561
    %v7440 = vpack.c.b16 %v6564, %v6563
    %v7441 = vpack.c.b16 %v6566, %v6565
    %v7442 = vpack.c.b16 %v6568, %v6567
    %v7443 = vpack.c.b16 %v6570, %v6569
    %v7444 = vpack.c.b16 %v6572, %v6571
    %v7445 = vpack.c.b16 %v6574, %v6573
    %v7446 = vpack.c.b16 %v6576, %v6575
    %v7447 = vpack.c.b16 %v6578, %v6577
    %v7448 = vpack.c.b16 %v6580, %v6579
    %v7449 = vpack.c.b16 %v6582, %v6581
    %v7450 = vpack.c.b16 %v6584, %v6583
    %v7451 = vpack.c.b16 %v6586, %v6585
    %v7452 = vpack.c.b16 %v6588, %v6587
    %v7453 = vpack.c.b16 %v6590, %v6589
    %v7454 = vpack.c.b16 %v6592, %v6591
    %v7455 = vpack.c.b16 %v6594, %v6593
    %v7456 = vpack.c.b16 %v6596, %v6595
    %v7457 = vpack.c.b16 %v6598, %v6597
    %v7458 = vpack.c.b16 %v6600, %v6599
    %v7459 = vpack.c.b16 %v6602, %v6601
    %v7460 = vpack.c.b16 %v6604, %v6603
    %v7461 = vpack.c.b16 %v6606, %v6605
    %v7462 = vpack.c.b16 %v6608, %v6607
    %v7463 = vpack.c.b16 %v6610, %v6609
    %v7464 = vpack.c.b16 %v6612, %v6611
    %v7465 = vpack.c.b16 %v6614, %v6613
    %v7466 = vpack.c.b16 %v6616, %v6615
    %v7467 = vpack.c.b16 %v6618, %v6617
    %v7468 = vpack.c.b16 %v6620, %v6619
    %v7469 = vpack.c.b16 %v6622, %v6621
    %v7470 = vpack.c.b16 %v6624, %v6623
    %v7471 = vpack.c.b16 %v6626, %v6625
    %v7472 = vpack.c.b16 %v6628, %v6627
    %v7473 = vpack.c.b16 %v6630, %v6629
    %v7474 = vpack.c.b16 %v6632, %v6631
    %v7475 = vpack.c.b16 %v6634, %v6633
    %v7476 = vpack.c.b16 %v6636, %v6635
    %v7477 = vpack.c.b16 %v6638, %v6637
    %v7478 = vpack.c.b16 %v6640, %v6639
    %v7479 = vpack.c.b16 %v6642, %v6641
    %v7480 = vpack.c.b16 %v6644, %v6643
    %v7481 = vpack.c.b16 %v6646, %v6645
    %v7482 = vpack.c.b16 %v6648, %v6647
    %v7483 = vpack.c.b16 %v6650, %v6649
    %v7484 = vpack.c.b16 %v6652, %v6651
    %v7485 = vpack.c.b16 %v6654, %v6653
    %v7486 = vpack.c.b16 %v6656, %v6655
    %v7487 = vpack.c.b16 %v6658, %v6657
    %v7488 = vpack.c.b16 %v6660, %v6659
    %v7489 = vpack.c.b16 %v6662, %v6661
    %v7490 = vpack.c.b16 %v6664, %v6663
    %v7491 = vpack.c.b16 %v6666, %v6665
    %v7492 = vpack.c.b16 %v6668, %v6667
    %v7493 = vpack.c.b16 %v6670, %v6669
    %v7494 = vpack.c.b16 %v6672, %v6671
    %v7495 = vpack.c.b16 %v6674, %v6673
    %v7496 = vpack.c.b16 %v6676, %v6675
    %v7497 = vpack.c.b16 %v6678, %v6677
    %v7498 = vpack.c.b16 %v6680, %v6679
    %v7499 = vpack.c.b16 %v6682, %v6681
    %v7500 = vpack.c.b16 %v6684, %v6683
    %v7501 = vpack.c.b16 %v6686, %v6685
    %v7502 = vpack.c.b16 %v6688, %v6687
    %v7503 = vpack.c.b16 %v6690, %v6689
    %v7504 = vpack.c.b16 %v6692, %v6691
    %v7505 = vpack.c.b16 %v6694, %v6693
    %v7506 = vpack.c.b16 %v6696, %v6695
    %v7507 = vpack.c.b16 %v6698, %v6697
    %v7508 = vpack.c.b16 %v6700, %v6699
    %v7509 = vpack.c.b16 %v6702, %v6701
    %v7510 = vpack.c.b16 %v6704, %v6703
    %v7511 = vpack.c.b16 %v6706, %v6705
    %v7512 = vpack.c.b16 %v6708, %v6707
    %v7513 = vpack.c.b16 %v6710, %v6709
    %v7514 = vpack.c.b16 %v6712, %v6711
    %v7515 = vpack.c.b16 %v6714, %v6713
    %v7516 = vpack.c.b16 %v6716, %v6715
    %v7517 = vpack.c.b16 %v6718, %v6717
    %v7518 = vpack.c.b16 %v6720, %v6719
    %v7519 = vpack.c.b16 %v6722, %v6721
    %v7520 = vpack.c.b16 %v6724, %v6723
    %v7521 = vpack.c.b16 %v6726, %v6725
    %v7522 = vpack.c.b16 %v6728, %v6727
    %v7523 = vpack.c.b16 %v6730, %v6729
    %v7524 = vpack.c.b16 %v6732, %v6731
    %v7525 = vpack.c.b16 %v6734, %v6733
    %v7526 = vpack.c.b16 %v6736, %v6735
    %v7527 = vpack.c.b16 %v6738, %v6737
    %v7528 = vpack.c.b16 %v6740, %v6739
    %v7529 = vpack.c.b16 %v6742, %v6741
    %v7530 = vpack.c.b16 %v6744, %v6743
    %v7531 = vpack.c.b16 %v6746, %v6745
    %v7532 = vpack.c.b16 %v6748, %v6747
    %v7533 = vpack.c.b16 %v6750, %v6749
    %v7534 = vpack.c.b16 %v6752, %v6751
    %v7535 = vpack.c.b16 %v6754, %v6753
    %v7536 = vpack.c.b16 %v6756, %v6755
    %v7537 = vpack.c.b16 %v6758, %v6757
    %v7538 = vpack.c.b16 %v6760, %v6759
    %v7539 = vpack.c.b16 %v6762, %v6761
    %v7540 = vpack.c.b16 %v6764, %v6763
    %v7541 = vpack.c.b16 %v6766, %v6765
    %v7542 = vpack.c.b16 %v6768, %v6767
    %v7543 = vpack.c.b16 %v6770, %v6769
    %v7544 = vpack.c.b16 %v6772, %v6771
    %v7545 = vpack.c.b16 %v6774, %v6773
    %v7546 = vpack.c.b16 %v6776, %v6775
    %v7547 = vpack.c.b16 %v6778, %v6777
    %v7548 = vpack.c.b16 %v6780, %v6779
    %v7549 = vpack.c.b16 %v6782, %v6781
    %v7550 = vpack.c.b16 %v6784, %v6783
    %v7551 = vpack.c.b16 %v6786, %v6785
    %v7552 = vpack.c.b16 %v6788, %v6787
    %v7553 = vpack.c.b16 %v6790, %v6789
    %v7554 = vpack.c.b16 %v6792, %v6791
    %v7555 = vpack.c.b16 %v6794, %v6793
    %v7556 = vpack.c.b16 %v6796, %v6795
    %v7557 = vpack.c.b16 %v6798, %v6797
    %v7558 = vpack.c.b16 %v6800, %v6799
    %v7559 = vpack.c.b16 %v6802, %v6801
    %v7560 = vpack.c.b16 %v6804, %v6803
    %v7561 = vpack.c.b16 %v6806, %v6805
    %v7562 = vpack.c.b16 %v6808, %v6807
    %v7563 = vpack.c.b16 %v6810, %v6809
    %v7564 = vpack.c.b16 %v6812, %v6811
    %v7565 = vpack.c.b16 %v6814, %v6813
    %v7566 = vpack.c.b16 %v6816, %v6815
    %v7567 = vpack.c.b16 %v6818, %v6817
    %v7568 = vpack.c.b16 %v6820, %v6819
    %v7569 = vpack.c.b16 %v6822, %v6821
    %v7570 = vpack.c.b16 %v6824, %v6823
    %v7571 = vpack.c.b16 %v6826, %v6825
    %v7572 = vpack.c.b16 %v6828, %v6827
    %v7573 = vpack.c.b16 %v6830, %v6829
    %v7574 = vpack.c.b16 %v6832, %v6831
    %v7575 = vpack.c.b16 %v6834, %v6833
    %v7576 = vpack.c.b16 %v6836, %v6835
    %v7577 = vpack.c.b16 %v6838, %v6837
    %v7578 = vpack.c.b16 %v6840, %v6839
    %v7579 = vpack.c.b16 %v6842, %v6841
    %v7580 = vpack.c.b16 %v6844, %v6843
    %v7581 = vpack.c.b16 %v6846, %v6845
    %v7582 = vpack.c.b16 %v6848, %v6847
    %v7583 = vpack.c.b16 %v6850, %v6849
    %v7584 = vpack.c.b16 %v6852, %v6851
    %v7585 = vpack.c.b16 %v6854, %v6853
    %v7586 = vpack.c.b16 %v6856, %v6855
    %v7587 = vpack.c.b16 %v6858, %v6857
    %v7588 = vpack.c.b16 %v6860, %v6859
    %v7589 = vpack.c.b16 %v6862, %v6861
    %v7590 = vpack.c.b16 %v6864, %v6863
    %v7591 = vpack.c.b16 %v6866, %v6865
    %v7592 = vpack.c.b16 %v6868, %v6867
    %v7593 = vpack.c.b16 %v6870, %v6869
    %v7594 = vpack.c.b16 %v6872, %v6871
    %v7595 = vpack.c.b16 %v6874, %v6873
    %v7596 = vpack.c.b16 %v6876, %v6875
    %v7597 = vpack.c.b16 %v6878, %v6877
    %v7598 = vpack.c.b16 %v6880, %v6879
    %v7599 = vpack.c.b16 %v6882, %v6881
    %v7600 = vpack.c.b16 %v6884, %v6883
    %v7601 = vpack.c.b16 %v6886, %v6885
    %v7602 = vpack.c.b16 %v6888, %v6887
    %v7603 = vpack.c.b16 %v6890, %v6889
    %v7604 = vpack.c.b16 %v6892, %v6891
    %v7605 = vpack.c.b16 %v6894, %v6893
    %v7606 = vpack.c.b16 %v6896, %v6895
    %v7607 = vpack.c.b16 %v6898, %v6897
    %v7608 = vpack.c.b16 %v6900, %v6899
    %v7609 = vpack.c.b16 %v6902, %v6901
    %v7610 = vpack.c.b16 %v6904, %v6903
    %v7611 = vpack.c.b16 %v6906, %v6905
    %v7612 = vpack.c.b16 %v6908, %v6907
    %v7613 = vpack.c.b16 %v6910, %v6909
    %v7614 = vpack.c.b16 %v6912, %v6911
    %v7615 = vpack.c.b16 %v6914, %v6913
    %v7616 = vpack.c.b16 %v6916, %v6915
    %v7617 = vpack.c.b16 %v6918, %v6917
    %v7618 = vpack.c.b16 %v6920, %v6919
    %v7619 = vpack.c.b16 %v6922, %v6921
    %v7620 = vpack.c.b16 %v6924, %v6923
    %v7621 = vpack.c.b16 %v6926, %v6925
    %v7622 = vpack.c.b16 %v6928, %v6927
    %v7623 = vpack.c.b16 %v6930, %v6929
    %v7624 = vpack.c.b16 %v6932, %v6931
    %v7625 = vpack.c.b16 %v6934, %v6933
    %v7626 = vpack.c.b16 %v6936, %v6935
    %v7627 = vpack.c.b16 %v6938, %v6937
    %v7628 = vpack.c.b16 %v6940, %v6939
    %v7629 = vpack.c.b16 %v6942, %v6941
    %v7630 = vpack.c.b16 %v6944, %v6943
    %v7631 = vpack.c.b16 %v6946, %v6945
    %v7632 = vpack.c.b16 %v6948, %v6947
    %v7633 = vpack.c.b16 %v6950, %v6949
    %v7634 = vpack.c.b16 %v6952, %v6951
    %v7635 = vpack.c.b16 %v6954, %v6953
    %v7636 = vpack.c.b16 %v6956, %v6955
    %v7637 = vpack.c.b16 %v6958, %v6957
    %v7638 = vpack.c.b16 %v6960, %v6959
    %v7639 = vpack.c.b16 %v6962, %v6961
    %v7640 = vpack.c.b16 %v6964, %v6963
    %v7641 = vpack.c.b16 %v6966, %v6965
    %v7642 = vpack.c.b16 %v6968, %v6967
    %v7643 = vpack.c.b16 %v6970, %v6969
    %v7644 = vpack.c.b16 %v6972, %v6971
    %v7645 = vpack.c.b16 %v6974, %v6973
    %v7646 = vpack.c.b16 %v6976, %v6975
    %v7647 = vpack.c.b16 %v6978, %v6977
    %v7648 = vpack.c.b16 %v6980, %v6979
    %v7649 = vpack.c.b16 %v6982, %v6981
    %v7650 = vpack.c.b16 %v6984, %v6983
    %v7651 = vpack.c.b16 %v6986, %v6985
    %v7652 = vpack.c.b16 %v6988, %v6987
    %v7653 = vpack.c.b16 %v6990, %v6989
    %v7654 = vpack.c.b16 %v6992, %v6991
    %v7655 = vpack.c.b16 %v6994, %v6993
    %v7656 = vpack.c.b16 %v6996, %v6995
    %v7657 = vpack.c.b16 %v6998, %v6997
    %v7658 = vpack.c.b16 %v7000, %v6999
    %v7659 = vpack.c.b16 %v7002, %v7001
    %v7660 = vpack.c.b16 %v7004, %v7003
    %v7661 = vpack.c.b16 %v7006, %v7005
    %v7662 = vpack.c.b16 %v7008, %v7007
    %v7663 = vpack.c.b16 %v7010, %v7009
    %v7664 = vpack.c.b16 %v7012, %v7011
    %v7665 = vpack.c.b16 %v7014, %v7013
    %v7666 = vpack.c.b16 %v7016, %v7015
    %v7667 = vpack.c.b16 %v7018, %v7017
    %v7668 = vpack.c.b16 %v7020, %v7019
    %v7669 = vpack.c.b16 %v7022, %v7021
    %v7670 = vpack.c.b16 %v7024, %v7023
    %v7671 = vpack.c.b16 %v7026, %v7025
    %v7672 = vpack.c.b16 %v7028, %v7027
    %v7673 = vpack.c.b16 %v7030, %v7029
    %v7674 = vpack.c.b16 %v7032, %v7031
    %v7675 = vpack.c.b16 %v7034, %v7033
    %v7676 = vpack.c.b16 %v7036, %v7035
    %v7677 = vpack.c.b16 %v7038, %v7037
    %v7678 = vpack.c.b16 %v7040, %v7039
    %v7679 = vpack.c.b16 %v7042, %v7041
    %v7680 = vpack.c.b16 %v7044, %v7043
    %v7681 = vpack.c.b16 %v7046, %v7045
    %v7682 = vpack.c.b16 %v7048, %v7047
    %v7683 = vpack.c.b16 %v7050, %v7049
    %v7684 = vpack.c.b16 %v7052, %v7051
    %v7685 = vpack.c.b16 %v7054, %v7053
    %v7686 = vpack.c.b16 %v7056, %v7055
    %v7687 = vpack.c.b16 %v7058, %v7057
    %v7688 = vpack.c.b16 %v7060, %v7059
    %v7689 = vpack.c.b16 %v7062, %v7061
    %v7690 = vpack.c.b16 %v7064, %v7063
    %v7691 = vpack.c.b16 %v7066, %v7065
    %v7692 = vpack.c.b16 %v7068, %v7067
    %v7693 = vpack.c.b16 %v7070, %v7069
    %v7694 = vpack.c.b16 %v7072, %v7071
    %v7695 = vpack.c.b16 %v7074, %v7073
    %v7696 = vpack.c.b16 %v7076, %v7075
    %v7697 = vpack.c.b16 %v7078, %v7077
    %v7698 = vpack.c.b16 %v7080, %v7079
    %v7699 = vpack.c.b16 %v7082, %v7081
    %v7700 = vpack.c.b16 %v7084, %v7083
    %v7701 = vpack.c.b16 %v7086, %v7085
    %v7702 = vpack.c.b16 %v7088, %v7087
    %v7703 = vpack.c.b16 %v7090, %v7089
    %v7704 = vpack.c.b16 %v7092, %v7091
    %v7705 = vpack.c.b16 %v7094, %v7093
    %v7706 = vpack.c.b16 %v7096, %v7095
    %v7707 = vpack.c.b16 %v7098, %v7097
    %v7708 = vpack.c.b16 %v7100, %v7099
    %v7709 = vpack.c.b16 %v7102, %v7101
    %v7710 = vpack.c.b16 %v7104, %v7103
    %v7711 = vpack.c.b16 %v7106, %v7105
    %v7712 = vpack.c.b16 %v7108, %v7107
    %v7713 = vpack.c.b16 %v7110, %v7109
    %v7714 = vpack.c.b16 %v7112, %v7111
    %v7715 = vpack.c.b16 %v7114, %v7113
    %v7716 = vpack.c.b16 %v7116, %v7115
    %8317 = vmatprep.subr.bf16.mxu0 0
    %8318 = vmatpush1.bf16.msra.mxu0 %v7117
    %8319 = vmatprep.subr.bf16.mxu0 0
    %8320 = vmatpush1.bf16.msra.mxu0 %v7118
    %8321 = vmatprep.subr.bf16.mxu0 0
    %8322 = vmatpush1.bf16.msra.mxu0 %v7119
    %8323 = vmatprep.subr.bf16.mxu0 0
    %8324 = vmatpush1.bf16.msra.mxu0 %v7120
    %8325 = vmatprep.subr.bf16.mxu0 0
    %8326 = vmatpush1.bf16.msra.mxu0 %v7121
    %8327 = vmatprep.subr.bf16.mxu0 0
    %8328 = vmatpush1.bf16.msra.mxu0 %v7122
    %8329 = vmatprep.subr.bf16.mxu0 0
    %8330 = vmatpush1.bf16.msra.mxu0 %v7123
    %8331 = vmatprep.subr.bf16.mxu0 0
    %8332 = vmatpush1.bf16.msra.mxu0 %v7124
    %8333 = vmatprep.subr.bf16.mxu0 0
    %8334 = vmatpush1.bf16.msra.mxu0 %v7125
    %8335 = vmatprep.subr.bf16.mxu0 0
    %8336 = vmatpush1.bf16.msra.mxu0 %v7126
    %8337 = vmatprep.subr.bf16.mxu0 0
    %8338 = vmatpush1.bf16.msra.mxu0 %v7127
    %8339 = vmatprep.subr.bf16.mxu0 0
    %8340 = vmatpush1.bf16.msra.mxu0 %v7128
    %8341 = vmatprep.subr.bf16.mxu0 0
    %8342 = vmatpush1.bf16.msra.mxu0 %v7129
    %8343 = vmatprep.subr.bf16.mxu0 0
    %8344 = vmatpush1.bf16.msra.mxu0 %v7130
    %8345 = vmatprep.subr.bf16.mxu0 0
    %8346 = vmatpush1.bf16.msra.mxu0 %v7131
    %8347 = vmatprep.subr.bf16.mxu0 0
    %8348 = vmatpush1.bf16.msra.mxu0 %v7132
    %8349 = vmatprep.mubr.bf16.mxu0 %v1687
    %8350 = vmatmul.mubr.bf16.gmra.mrb[0].mxu0 %v1686
    %v8351 = vpop.f32.mrb[0].mxu0
    %v8352 = vadd.f32 %v4715, %v8351
    %v8353 = vpop.f32.mrb[0].mxu0
    %v8354 = vpop.f32.mrb[0].mxu0
    %v8355 = vadd.f32 %v4715, %v8354
    %v8356 = vpop.f32.mrb[0].mxu0
    %8357 = vdwg.mxu0
    %8358 = vmatprep.subr.bf16.mxu0 0
    %8359 = vmatpush1.bf16.msra.mxu0 %v7133
    %8360 = vmatprep.subr.bf16.mxu0 0
    %8361 = vmatpush1.bf16.msra.mxu0 %v7134
    %8362 = vmatprep.subr.bf16.mxu0 0
    %8363 = vmatpush1.bf16.msra.mxu0 %v7135
    %8364 = vmatprep.subr.bf16.mxu0 0
    %8365 = vmatpush1.bf16.msra.mxu0 %v7136
    %8366 = vmatprep.subr.bf16.mxu0 0
    %8367 = vmatpush1.bf16.msra.mxu0 %v7137
    %8368 = vmatprep.subr.bf16.mxu0 0
    %8369 = vmatpush1.bf16.msra.mxu0 %v7138
    %8370 = vmatprep.subr.bf16.mxu0 0
    %8371 = vmatpush1.bf16.msra.mxu0 %v7139
    %8372 = vmatprep.subr.bf16.mxu0 0
    %8373 = vmatpush1.bf16.msra.mxu0 %v7140
    %8374 = vmatprep.subr.bf16.mxu0 0
    %8375 = vmatpush1.bf16.msra.mxu0 %v7141
    %8376 = vmatprep.subr.bf16.mxu0 0
    %8377 = vmatpush1.bf16.msra.mxu0 %v7142
    %8378 = vmatprep.subr.bf16.mxu0 0
    %8379 = vmatpush1.bf16.msra.mxu0 %v7143
    %8380 = vmatprep.subr.bf16.mxu0 0
    %8381 = vmatpush1.bf16.msra.mxu0 %v7144
    %8382 = vmatprep.subr.bf16.mxu0 0
    %8383 = vmatpush1.bf16.msra.mxu0 %v7145
    %8384 = vmatprep.subr.bf16.mxu0 0
    %8385 = vmatpush1.bf16.msra.mxu0 %v7146
    %8386 = vmatprep.subr.bf16.mxu0 0
    %8387 = vmatpush1.bf16.msra.mxu0 %v7147
    %8388 = vmatprep.subr.bf16.mxu0 0
    %8389 = vmatpush1.bf16.msra.mxu0 %v7148
    %8390 = vmatprep.mubr.bf16.mxu0 %v1689
    %8391 = vmatmul.mubr.bf16.gmra.mrb[0].mxu0 %v1688
    %v8392 = vpop.f32.mrb[0].mxu0
    %v8393 = vadd.f32 %v8352, %v8392
    %v8394 = vpop.f32.mrb[0].mxu0
    %v8395 = vpop.f32.mrb[0].mxu0
    %v8396 = vadd.f32 %v8355, %v8395
    %v8397 = vpop.f32.mrb[0].mxu0
    %8398 = vdwg.mxu0
    %8399 = vmatprep.subr.bf16.mxu0 0
    %8400 = vmatpush1.bf16.msra.mxu0 %v7149
    %8401 = vmatprep.subr.bf16.mxu0 0
    %8402 = vmatpush1.bf16.msra.mxu0 %v7150
    %8403 = vmatprep.subr.bf16.mxu0 0
    %8404 = vmatpush1.bf16.msra.mxu0 %v7151
    %8405 = vmatprep.subr.bf16.mxu0 0
    %8406 = vmatpush1.bf16.msra.mxu0 %v7152
    %8407 = vmatprep.subr.bf16.mxu0 0
    %8408 = vmatpush1.bf16.msra.mxu0 %v7153
    %8409 = vmatprep.subr.bf16.mxu0 0
    %8410 = vmatpush1.bf16.msra.mxu0 %v7154
    %8411 = vmatprep.subr.bf16.mxu0 0
    %8412 = vmatpush1.bf16.msra.mxu0 %v7155
    %8413 = vmatprep.subr.bf16.mxu0 0
    %8414 = vmatpush1.bf16.msra.mxu0 %v7156
    %8415 = vmatprep.subr.bf16.mxu0 0
    %8416 = vmatpush1.bf16.msra.mxu0 %v7157
    %8417 = vmatprep.subr.bf16.mxu0 0
    %8418 = vmatpush1.bf16.msra.mxu0 %v7158
    %8419 = vmatprep.subr.bf16.mxu0 0
    %8420 = vmatpush1.bf16.msra.mxu0 %v7159
    %8421 = vmatprep.subr.bf16.mxu0 0
    %8422 = vmatpush1.bf16.msra.mxu0 %v7160
    %8423 = vmatprep.subr.bf16.mxu0 0
    %8424 = vmatpush1.bf16.msra.mxu0 %v7161
    %8425 = vmatprep.subr.bf16.mxu0 0
    %8426 = vmatpush1.bf16.msra.mxu0 %v7162
    %8427 = vmatprep.subr.bf16.mxu0 0
    %8428 = vmatpush1.bf16.msra.mxu0 %v7163
    %8429 = vmatprep.subr.bf16.mxu0 0
    %8430 = vmatpush1.bf16.msra.mxu0 %v7164
    %8431 = vmatprep.mubr.bf16.mxu0 %v1691
    %8432 = vmatmul.mubr.bf16.gmra.mrb[0].mxu0 %v1690
    %v8433 = vpop.f32.mrb[0].mxu0
    %v8434 = vadd.f32 %v8393, %v8433
    %v8435 = vpop.f32.mrb[0].mxu0
    %v8436 = vpop.f32.mrb[0].mxu0
    %v8437 = vadd.f32 %v8396, %v8436
    %v8438 = vpop.f32.mrb[0].mxu0
    %8439 = vdwg.mxu0
    %8440 = vmatprep.subr.bf16.mxu0 0
    %8441 = vmatpush1.bf16.msra.mxu0 %v7165
    %8442 = vmatprep.subr.bf16.mxu0 0
    %8443 = vmatpush1.bf16.msra.mxu0 %v7166
    %8444 = vmatprep.subr.bf16.mxu0 0
    %8445 = vmatpush1.bf16.msra.mxu0 %v7167
    %8446 = vmatprep.subr.bf16.mxu0 0
    %8447 = vmatpush1.bf16.msra.mxu0 %v7168
    %8448 = vmatprep.subr.bf16.mxu0 0
    %8449 = vmatpush1.bf16.msra.mxu0 %v7169
    %8450 = vmatprep.subr.bf16.mxu0 0
    %8451 = vmatpush1.bf16.msra.mxu0 %v7170
    %8452 = vmatprep.subr.bf16.mxu0 0
    %8453 = vmatpush1.bf16.msra.mxu0 %v7171
    %8454 = vmatprep.subr.bf16.mxu0 0
    %8455 = vmatpush1.bf16.msra.mxu0 %v7172
    %8456 = vmatprep.subr.bf16.mxu0 0
    %8457 = vmatpush1.bf16.msra.mxu0 %v7173
    %8458 = vmatprep.subr.bf16.mxu0 0
    %8459 = vmatpush1.bf16.msra.mxu0 %v7174
    %8460 = vmatprep.subr.bf16.mxu0 0
    %8461 = vmatpush1.bf16.msra.mxu0 %v7175
    %8462 = vmatprep.subr.bf16.mxu0 0
    %8463 = vmatpush1.bf16.msra.mxu0 %v7176
    %8464 = vmatprep.subr.bf16.mxu0 0
    %8465 = vmatpush1.bf16.msra.mxu0 %v7177
    %8466 = vmatprep.subr.bf16.mxu0 0
    %8467 = vmatpush1.bf16.msra.mxu0 %v7178
    %8468 = vmatprep.subr.bf16.mxu0 0
    %8469 = vmatpush1.bf16.msra.mxu0 %v7179
    %8470 = vmatprep.subr.bf16.mxu0 0
    %8471 = vmatpush1.bf16.msra.mxu0 %v7180
    %8472 = vmatprep.mubr.bf16.mxu0 %v1693
    %8473 = vmatmul.mubr.bf16.gmra.mrb[0].mxu0 %v1692
    %v8474 = vpop.f32.mrb[0].mxu0
    %v8475 = vadd.f32 %v8434, %v8474
    %v8476 = vpop.f32.mrb[0].mxu0
    %v8477 = vpop.f32.mrb[0].mxu0
    %v8478 = vadd.f32 %v8437, %v8477
    %v8479 = vpop.f32.mrb[0].mxu0
    %8480 = vdwg.mxu0
    %8481 = vmatprep.subr.bf16.mxu0 0
    %8482 = vmatpush1.bf16.msra.mxu0 %v7181
    %8483 = vmatprep.subr.bf16.mxu0 0
    %8484 = vmatpush1.bf16.msra.mxu0 %v7182
    %8485 = vmatprep.subr.bf16.mxu0 0
    %8486 = vmatpush1.bf16.msra.mxu0 %v7183
    %8487 = vmatprep.subr.bf16.mxu0 0
    %8488 = vmatpush1.bf16.msra.mxu0 %v7184
    %8489 = vmatprep.subr.bf16.mxu0 0
    %8490 = vmatpush1.bf16.msra.mxu0 %v7185
    %8491 = vmatprep.subr.bf16.mxu0 0
    %8492 = vmatpush1.bf16.msra.mxu0 %v7186
    %8493 = vmatprep.subr.bf16.mxu0 0
    %8494 = vmatpush1.bf16.msra.mxu0 %v7187
    %8495 = vmatprep.subr.bf16.mxu0 0
    %8496 = vmatpush1.bf16.msra.mxu0 %v7188
    %8497 = vmatprep.subr.bf16.mxu0 0
    %8498 = vmatpush1.bf16.msra.mxu0 %v7189
    %8499 = vmatprep.subr.bf16.mxu0 0
    %8500 = vmatpush1.bf16.msra.mxu0 %v7190
    %8501 = vmatprep.subr.bf16.mxu0 0
    %8502 = vmatpush1.bf16.msra.mxu0 %v7191
    %8503 = vmatprep.subr.bf16.mxu0 0
    %8504 = vmatpush1.bf16.msra.mxu0 %v7192
    %8505 = vmatprep.subr.bf16.mxu0 0
    %8506 = vmatpush1.bf16.msra.mxu0 %v7193
    %8507 = vmatprep.subr.bf16.mxu0 0
    %8508 = vmatpush1.bf16.msra.mxu0 %v7194
    %8509 = vmatprep.subr.bf16.mxu0 0
    %8510 = vmatpush1.bf16.msra.mxu0 %v7195
    %8511 = vmatprep.subr.bf16.mxu0 0
    %8512 = vmatpush1.bf16.msra.mxu0 %v7196
    %8513 = vmatprep.mubr.bf16.mxu0 %v1695
    %8514 = vmatmul.mubr.bf16.gmra.mrb[0].mxu0 %v1694
    %v8515 = vpop.f32.mrb[0].mxu0
    %v8516 = vadd.f32 %v8475, %v8515
    %v8517 = vpop.f32.mrb[0].mxu0
    %v8518 = vpop.f32.mrb[0].mxu0
    %v8519 = vadd.f32 %v8478, %v8518
    %v8520 = vpop.f32.mrb[0].mxu0
    %8521 = vdwg.mxu0
    %8522 = vmatprep.subr.bf16.mxu0 0
    %8523 = vmatpush1.bf16.msra.mxu0 %v7197
    %8524 = vmatprep.subr.bf16.mxu0 0
    %8525 = vmatpush1.bf16.msra.mxu0 %v7198
    %8526 = vmatprep.subr.bf16.mxu0 0
    %8527 = vmatpush1.bf16.msra.mxu0 %v7199
    %8528 = vmatprep.subr.bf16.mxu0 0
    %8529 = vmatpush1.bf16.msra.mxu0 %v7200
    %8530 = vmatprep.subr.bf16.mxu0 0
    %8531 = vmatpush1.bf16.msra.mxu0 %v7201
    %8532 = vmatprep.subr.bf16.mxu0 0
    %8533 = vmatpush1.bf16.msra.mxu0 %v7202
    %8534 = vmatprep.subr.bf16.mxu0 0
    %8535 = vmatpush1.bf16.msra.mxu0 %v7203
    %8536 = vmatprep.subr.bf16.mxu0 0
    %8537 = vmatpush1.bf16.msra.mxu0 %v7204
    %8538 = vmatprep.subr.bf16.mxu0 0
    %8539 = vmatpush1.bf16.msra.mxu0 %v7205
    %8540 = vmatprep.subr.bf16.mxu0 0
    %8541 = vmatpush1.bf16.msra.mxu0 %v7206
    %8542 = vmatprep.subr.bf16.mxu0 0
    %8543 = vmatpush1.bf16.msra.mxu0 %v7207
    %8544 = vmatprep.subr.bf16.mxu0 0
    %8545 = vmatpush1.bf16.msra.mxu0 %v7208
    %8546 = vmatprep.subr.bf16.mxu0 0
    %8547 = vmatpush1.bf16.msra.mxu0 %v7209
    %8548 = vmatprep.subr.bf16.mxu0 0
    %8549 = vmatpush1.bf16.msra.mxu0 %v7210
    %8550 = vmatprep.subr.bf16.mxu0 0
    %8551 = vmatpush1.bf16.msra.mxu0 %v7211
    %8552 = vmatprep.subr.bf16.mxu0 0
    %8553 = vmatpush1.bf16.msra.mxu0 %v7212
    %8554 = vmatprep.mubr.bf16.mxu0 %v1697
    %8555 = vmatmul.mubr.bf16.gmra.mrb[0].mxu0 %v1696
    %v8556 = vpop.f32.mrb[0].mxu0
    %v8557 = vadd.f32 %v8516, %v8556
    %v8558 = vpop.f32.mrb[0].mxu0
    %v8559 = vpop.f32.mrb[0].mxu0
    %v8560 = vadd.f32 %v8519, %v8559
    %v8561 = vpop.f32.mrb[0].mxu0
    %8562 = vdwg.mxu0
    %8563 = vmatprep.subr.bf16.mxu0 0
    %8564 = vmatpush1.bf16.msra.mxu0 %v7213
    %8565 = vmatprep.subr.bf16.mxu0 0
    %8566 = vmatpush1.bf16.msra.mxu0 %v7214
    %8567 = vmatprep.subr.bf16.mxu0 0
    %8568 = vmatpush1.bf16.msra.mxu0 %v7215
    %8569 = vmatprep.subr.bf16.mxu0 0
    %8570 = vmatpush1.bf16.msra.mxu0 %v7216
    %8571 = vmatprep.subr.bf16.mxu0 0
    %8572 = vmatpush1.bf16.msra.mxu0 %v7217
    %8573 = vmatprep.subr.bf16.mxu0 0
    %8574 = vmatpush1.bf16.msra.mxu0 %v7218
    %8575 = vmatprep.subr.bf16.mxu0 0
    %8576 = vmatpush1.bf16.msra.mxu0 %v7219
    %8577 = vmatprep.subr.bf16.mxu0 0
    %8578 = vmatpush1.bf16.msra.mxu0 %v7220
    %8579 = vmatprep.subr.bf16.mxu0 0
    %8580 = vmatpush1.bf16.msra.mxu0 %v7221
    %8581 = vmatprep.subr.bf16.mxu0 0
    %8582 = vmatpush1.bf16.msra.mxu0 %v7222
    %8583 = vmatprep.subr.bf16.mxu0 0
    %8584 = vmatpush1.bf16.msra.mxu0 %v7223
    %8585 = vmatprep.subr.bf16.mxu0 0
    %8586 = vmatpush1.bf16.msra.mxu0 %v7224
    %8587 = vmatprep.subr.bf16.mxu0 0
    %8588 = vmatpush1.bf16.msra.mxu0 %v7225
    %8589 = vmatprep.subr.bf16.mxu0 0
    %8590 = vmatpush1.bf16.msra.mxu0 %v7226
    %8591 = vmatprep.subr.bf16.mxu0 0
    %8592 = vmatpush1.bf16.msra.mxu0 %v7227
    %8593 = vmatprep.subr.bf16.mxu0 0
    %8594 = vmatpush1.bf16.msra.mxu0 %v7228
    %8595 = vmatprep.mubr.bf16.mxu0 %v1699
    %8596 = vmatmul.mubr.bf16.gmra.mrb[0].mxu0 %v1698
    %v8597 = vpop.f32.mrb[0].mxu0
    %v8598 = vadd.f32 %v8557, %v8597
    %v8599 = vpop.f32.mrb[0].mxu0
    %v8600 = vpop.f32.mrb[0].mxu0
    %v8601 = vadd.f32 %v8560, %v8600
    %v8602 = vpop.f32.mrb[0].mxu0
    %8603 = vdwg.mxu0
    %8604 = vmatprep.subr.bf16.mxu0 0
    %8605 = vmatpush1.bf16.msra.mxu0 %v7229
    %8606 = vmatprep.subr.bf16.mxu0 0
    %8607 = vmatpush1.bf16.msra.mxu0 %v7230
    %8608 = vmatprep.subr.bf16.mxu0 0
    %8609 = vmatpush1.bf16.msra.mxu0 %v7231
    %8610 = vmatprep.subr.bf16.mxu0 0
    %8611 = vmatpush1.bf16.msra.mxu0 %v7232
    %8612 = vmatprep.subr.bf16.mxu0 0
    %8613 = vmatpush1.bf16.msra.mxu0 %v7233
    %8614 = vmatprep.subr.bf16.mxu0 0
    %8615 = vmatpush1.bf16.msra.mxu0 %v7234
    %8616 = vmatprep.subr.bf16.mxu0 0
    %8617 = vmatpush1.bf16.msra.mxu0 %v7235
    %8618 = vmatprep.subr.bf16.mxu0 0
    %8619 = vmatpush1.bf16.msra.mxu0 %v7236
    %8620 = vmatprep.subr.bf16.mxu0 0
    %8621 = vmatpush1.bf16.msra.mxu0 %v7237
    %8622 = vmatprep.subr.bf16.mxu0 0
    %8623 = vmatpush1.bf16.msra.mxu0 %v7238
    %8624 = vmatprep.subr.bf16.mxu0 0
    %8625 = vmatpush1.bf16.msra.mxu0 %v7239
    %8626 = vmatprep.subr.bf16.mxu0 0
    %8627 = vmatpush1.bf16.msra.mxu0 %v7240
    %8628 = vmatprep.subr.bf16.mxu0 0
    %8629 = vmatpush1.bf16.msra.mxu0 %v7241
    %8630 = vmatprep.subr.bf16.mxu0 0
    %8631 = vmatpush1.bf16.msra.mxu0 %v7242
    %8632 = vmatprep.subr.bf16.mxu0 0
    %8633 = vmatpush1.bf16.msra.mxu0 %v7243
    %8634 = vmatprep.subr.bf16.mxu0 0
    %8635 = vmatpush1.bf16.msra.mxu0 %v7244
    %8636 = vmatprep.mubr.bf16.mxu0 %v1701
    %8637 = vmatmul.mubr.bf16.gmra.mrb[0].mxu0 %v1700
    %v8638 = vpop.f32.mrb[0].mxu0
    %v8639 = vadd.f32 %v8598, %v8638
    %v8640 = vpop.f32.mrb[0].mxu0
    %v8641 = vpop.f32.mrb[0].mxu0
    %v8642 = vadd.f32 %v8601, %v8641
    %v8643 = vpop.f32.mrb[0].mxu0
    %8644 = vdwg.mxu0
    %8645 = vmatprep.subr.bf16.mxu0 0
    %8646 = vmatpush1.bf16.msra.mxu0 %v7245
    %8647 = vmatprep.subr.bf16.mxu0 0
    %8648 = vmatpush1.bf16.msra.mxu0 %v7246
    %8649 = vmatprep.subr.bf16.mxu0 0
    %8650 = vmatpush1.bf16.msra.mxu0 %v7247
    %8651 = vmatprep.subr.bf16.mxu0 0
    %8652 = vmatpush1.bf16.msra.mxu0 %v7248
    %8653 = vmatprep.subr.bf16.mxu0 0
    %8654 = vmatpush1.bf16.msra.mxu0 %v7249
    %8655 = vmatprep.subr.bf16.mxu0 0
    %8656 = vmatpush1.bf16.msra.mxu0 %v7250
    %8657 = vmatprep.subr.bf16.mxu0 0
    %8658 = vmatpush1.bf16.msra.mxu0 %v7251
    %8659 = vmatprep.subr.bf16.mxu0 0
    %8660 = vmatpush1.bf16.msra.mxu0 %v7252
    %8661 = vmatprep.subr.bf16.mxu0 0
    %8662 = vmatpush1.bf16.msra.mxu0 %v7253
    %8663 = vmatprep.subr.bf16.mxu0 0
    %8664 = vmatpush1.bf16.msra.mxu0 %v7254
    %8665 = vmatprep.subr.bf16.mxu0 0
    %8666 = vmatpush1.bf16.msra.mxu0 %v7255
    %8667 = vmatprep.subr.bf16.mxu0 0
    %8668 = vmatpush1.bf16.msra.mxu0 %v7256
    %8669 = vmatprep.subr.bf16.mxu0 0
    %8670 = vmatpush1.bf16.msra.mxu0 %v7257
    %8671 = vmatprep.subr.bf16.mxu0 0
    %8672 = vmatpush1.bf16.msra.mxu0 %v7258
    %8673 = vmatprep.subr.bf16.mxu0 0
    %8674 = vmatpush1.bf16.msra.mxu0 %v7259
    %8675 = vmatprep.subr.bf16.mxu0 0
    %8676 = vmatpush1.bf16.msra.mxu0 %v7260
    %8677 = vmatprep.mubr.bf16.mxu0 %v1703
    %8678 = vmatmul.mubr.bf16.gmra.mrb[0].mxu0 %v1702
    %v8679 = vpop.f32.mrb[0].mxu0
    %v8680 = vadd.f32 %v8639, %v8679
    %v8681 = vpop.f32.mrb[0].mxu0
    %v8682 = vpop.f32.mrb[0].mxu0
    %v8683 = vadd.f32 %v8642, %v8682
    %v8684 = vpop.f32.mrb[0].mxu0
    %8685 = vdwg.mxu0
    %8686 = vmatprep.subr.bf16.mxu0 0
    %8687 = vmatpush1.bf16.msra.mxu0 %v7261
    %8688 = vmatprep.subr.bf16.mxu0 0
    %8689 = vmatpush1.bf16.msra.mxu0 %v7262
    %8690 = vmatprep.subr.bf16.mxu0 0
    %8691 = vmatpush1.bf16.msra.mxu0 %v7263
    %8692 = vmatprep.subr.bf16.mxu0 0
    %8693 = vmatpush1.bf16.msra.mxu0 %v7264
    %8694 = vmatprep.subr.bf16.mxu0 0
    %8695 = vmatpush1.bf16.msra.mxu0 %v7265
    %8696 = vmatprep.subr.bf16.mxu0 0
    %8697 = vmatpush1.bf16.msra.mxu0 %v7266
    %8698 = vmatprep.subr.bf16.mxu0 0
    %8699 = vmatpush1.bf16.msra.mxu0 %v7267
    %8700 = vmatprep.subr.bf16.mxu0 0
    %8701 = vmatpush1.bf16.msra.mxu0 %v7268
    %8702 = vmatprep.subr.bf16.mxu0 0
    %8703 = vmatpush1.bf16.msra.mxu0 %v7269
    %8704 = vmatprep.subr.bf16.mxu0 0
    %8705 = vmatpush1.bf16.msra.mxu0 %v7270
    %8706 = vmatprep.subr.bf16.mxu0 0
    %8707 = vmatpush1.bf16.msra.mxu0 %v7271
    %8708 = vmatprep.subr.bf16.mxu0 0
    %8709 = vmatpush1.bf16.msra.mxu0 %v7272
    %8710 = vmatprep.subr.bf16.mxu0 0
    %8711 = vmatpush1.bf16.msra.mxu0 %v7273
    %8712 = vmatprep.subr.bf16.mxu0 0
    %8713 = vmatpush1.bf16.msra.mxu0 %v7274
    %8714 = vmatprep.subr.bf16.mxu0 0
    %8715 = vmatpush1.bf16.msra.mxu0 %v7275
    %8716 = vmatprep.subr.bf16.mxu0 0
    %8717 = vmatpush1.bf16.msra.mxu0 %v7276
    %8718 = vmatprep.mubr.bf16.mxu0 %v1705
    %8719 = vmatmul.mubr.bf16.gmra.mrb[0].mxu0 %v1704
    %v8720 = vpop.f32.mrb[0].mxu0
    %v8721 = vadd.f32 %v8680, %v8720
    %v8722 = vpop.f32.mrb[0].mxu0
    %v8723 = vpop.f32.mrb[0].mxu0
    %v8724 = vadd.f32 %v8683, %v8723
    %v8725 = vpop.f32.mrb[0].mxu0
    %8726 = vdwg.mxu0
    %8727 = vmatprep.subr.bf16.mxu0 0
    %8728 = vmatpush1.bf16.msra.mxu0 %v7277
    %8729 = vmatprep.subr.bf16.mxu0 0
    %8730 = vmatpush1.bf16.msra.mxu0 %v7278
    %8731 = vmatprep.subr.bf16.mxu0 0
    %8732 = vmatpush1.bf16.msra.mxu0 %v7279
    %8733 = vmatprep.subr.bf16.mxu0 0
    %8734 = vmatpush1.bf16.msra.mxu0 %v7280
    %8735 = vmatprep.subr.bf16.mxu0 0
    %8736 = vmatpush1.bf16.msra.mxu0 %v7281
    %8737 = vmatprep.subr.bf16.mxu0 0
    %8738 = vmatpush1.bf16.msra.mxu0 %v7282
    %8739 = vmatprep.subr.bf16.mxu0 0
    %8740 = vmatpush1.bf16.msra.mxu0 %v7283
    %8741 = vmatprep.subr.bf16.mxu0 0
    %8742 = vmatpush1.bf16.msra.mxu0 %v7284
    %8743 = vmatprep.subr.bf16.mxu0 0
    %8744 = vmatpush1.bf16.msra.mxu0 %v7285
    %8745 = vmatprep.subr.bf16.mxu0 0
    %8746 = vmatpush1.bf16.msra.mxu0 %v7286
    %8747 = vmatprep.subr.bf16.mxu0 0
    %8748 = vmatpush1.bf16.msra.mxu0 %v7287
    %8749 = vmatprep.subr.bf16.mxu0 0
    %8750 = vmatpush1.bf16.msra.mxu0 %v7288
    %8751 = vmatprep.subr.bf16.mxu0 0
    %8752 = vmatpush1.bf16.msra.mxu0 %v7289
    %8753 = vmatprep.subr.bf16.mxu0 0
    %8754 = vmatpush1.bf16.msra.mxu0 %v7290
    %8755 = vmatprep.subr.bf16.mxu0 0
    %8756 = vmatpush1.bf16.msra.mxu0 %v7291
    %8757 = vmatprep.subr.bf16.mxu0 0
    %8758 = vmatpush1.bf16.msra.mxu0 %v7292
    %8759 = vmatprep.mubr.bf16.mxu0 %v1707
    %8760 = vmatmul.mubr.bf16.gmra.mrb[0].mxu0 %v1706
    %v8761 = vpop.f32.mrb[0].mxu0
    %v8762 = vadd.f32 %v8721, %v8761
    %v8763 = vpop.f32.mrb[0].mxu0
    %v8764 = vpop.f32.mrb[0].mxu0
    %v8765 = vadd.f32 %v8724, %v8764
    %v8766 = vpop.f32.mrb[0].mxu0
    %8767 = vdwg.mxu0
    %8768 = vmatprep.subr.bf16.mxu0 0
    %8769 = vmatpush1.bf16.msra.mxu0 %v7293
    %8770 = vmatprep.subr.bf16.mxu0 0
    %8771 = vmatpush1.bf16.msra.mxu0 %v7294
    %8772 = vmatprep.subr.bf16.mxu0 0
    %8773 = vmatpush1.bf16.msra.mxu0 %v7295
    %8774 = vmatprep.subr.bf16.mxu0 0
    %8775 = vmatpush1.bf16.msra.mxu0 %v7296
    %8776 = vmatprep.subr.bf16.mxu0 0
    %8777 = vmatpush1.bf16.msra.mxu0 %v7297
    %8778 = vmatprep.subr.bf16.mxu0 0
    %8779 = vmatpush1.bf16.msra.mxu0 %v7298
    %8780 = vmatprep.subr.bf16.mxu0 0
    %8781 = vmatpush1.bf16.msra.mxu0 %v7299
    %8782 = vmatprep.subr.bf16.mxu0 0
    %8783 = vmatpush1.bf16.msra.mxu0 %v7300
    %8784 = vmatprep.subr.bf16.mxu0 0
    %8785 = vmatpush1.bf16.msra.mxu0 %v7301
    %8786 = vmatprep.subr.bf16.mxu0 0
    %8787 = vmatpush1.bf16.msra.mxu0 %v7302
    %8788 = vmatprep.subr.bf16.mxu0 0
    %8789 = vmatpush1.bf16.msra.mxu0 %v7303
    %8790 = vmatprep.subr.bf16.mxu0 0
    %8791 = vmatpush1.bf16.msra.mxu0 %v7304
    %8792 = vmatprep.subr.bf16.mxu0 0
    %8793 = vmatpush1.bf16.msra.mxu0 %v7305
    %8794 = vmatprep.subr.bf16.mxu0 0
    %8795 = vmatpush1.bf16.msra.mxu0 %v7306
    %8796 = vmatprep.subr.bf16.mxu0 0
    %8797 = vmatpush1.bf16.msra.mxu0 %v7307
    %8798 = vmatprep.subr.bf16.mxu0 0
    %8799 = vmatpush1.bf16.msra.mxu0 %v7308
    %8800 = vmatprep.mubr.bf16.mxu0 %v1709
    %8801 = vmatmul.mubr.bf16.gmra.mrb[0].mxu0 %v1708
    %v8802 = vpop.f32.mrb[0].mxu0
    %v8803 = vadd.f32 %v8762, %v8802
    %v8804 = vpop.f32.mrb[0].mxu0
    %v8805 = vpop.f32.mrb[0].mxu0
    %v8806 = vadd.f32 %v8765, %v8805
    %v8807 = vpop.f32.mrb[0].mxu0
    %8808 = vdwg.mxu0
    %8809 = vmatprep.subr.bf16.mxu0 0
    %8810 = vmatpush1.bf16.msra.mxu0 %v7309
    %8811 = vmatprep.subr.bf16.mxu0 0
    %8812 = vmatpush1.bf16.msra.mxu0 %v7310
    %8813 = vmatprep.subr.bf16.mxu0 0
    %8814 = vmatpush1.bf16.msra.mxu0 %v7311
    %8815 = vmatprep.subr.bf16.mxu0 0
    %8816 = vmatpush1.bf16.msra.mxu0 %v7312
    %8817 = vmatprep.subr.bf16.mxu0 0
    %8818 = vmatpush1.bf16.msra.mxu0 %v7313
    %8819 = vmatprep.subr.bf16.mxu0 0
    %8820 = vmatpush1.bf16.msra.mxu0 %v7314
    %8821 = vmatprep.subr.bf16.mxu0 0
    %8822 = vmatpush1.bf16.msra.mxu0 %v7315
    %8823 = vmatprep.subr.bf16.mxu0 0
    %8824 = vmatpush1.bf16.msra.mxu0 %v7316
    %8825 = vmatprep.subr.bf16.mxu0 0
    %8826 = vmatpush1.bf16.msra.mxu0 %v7317
    %8827 = vmatprep.subr.bf16.mxu0 0
    %8828 = vmatpush1.bf16.msra.mxu0 %v7318
    %8829 = vmatprep.subr.bf16.mxu0 0
    %8830 = vmatpush1.bf16.msra.mxu0 %v7319
    %8831 = vmatprep.subr.bf16.mxu0 0
    %8832 = vmatpush1.bf16.msra.mxu0 %v7320
    %8833 = vmatprep.subr.bf16.mxu0 0
    %8834 = vmatpush1.bf16.msra.mxu0 %v7321
    %8835 = vmatprep.subr.bf16.mxu0 0
    %8836 = vmatpush1.bf16.msra.mxu0 %v7322
    %8837 = vmatprep.subr.bf16.mxu0 0
    %8838 = vmatpush1.bf16.msra.mxu0 %v7323
    %8839 = vmatprep.subr.bf16.mxu0 0
    %8840 = vmatpush1.bf16.msra.mxu0 %v7324
    %8841 = vmatprep.mubr.bf16.mxu0 %v1711
    %8842 = vmatmul.mubr.bf16.gmra.mrb[0].mxu0 %v1710
    %v8843 = vpop.f32.mrb[0].mxu0
    %v8844 = vadd.f32 %v8803, %v8843
    %v8845 = vpop.f32.mrb[0].mxu0
    %v8846 = vpop.f32.mrb[0].mxu0
    %v8847 = vadd.f32 %v8806, %v8846
    %v8848 = vpop.f32.mrb[0].mxu0
    %8849 = vdwg.mxu0
    %8850 = vmatprep.subr.bf16.mxu0 0
    %8851 = vmatpush1.bf16.msra.mxu0 %v7325
    %8852 = vmatprep.subr.bf16.mxu0 0
    %8853 = vmatpush1.bf16.msra.mxu0 %v7326
    %8854 = vmatprep.subr.bf16.mxu0 0
    %8855 = vmatpush1.bf16.msra.mxu0 %v7327
    %8856 = vmatprep.subr.bf16.mxu0 0
    %8857 = vmatpush1.bf16.msra.mxu0 %v7328
    %8858 = vmatprep.subr.bf16.mxu0 0
    %8859 = vmatpush1.bf16.msra.mxu0 %v7329
    %8860 = vmatprep.subr.bf16.mxu0 0
    %8861 = vmatpush1.bf16.msra.mxu0 %v7330
    %8862 = vmatprep.subr.bf16.mxu0 0
    %8863 = vmatpush1.bf16.msra.mxu0 %v7331
    %8864 = vmatprep.subr.bf16.mxu0 0
    %8865 = vmatpush1.bf16.msra.mxu0 %v7332
    %8866 = vmatprep.subr.bf16.mxu0 0
    %8867 = vmatpush1.bf16.msra.mxu0 %v7333
    %8868 = vmatprep.subr.bf16.mxu0 0
    %8869 = vmatpush1.bf16.msra.mxu0 %v7334
    %8870 = vmatprep.subr.bf16.mxu0 0
    %8871 = vmatpush1.bf16.msra.mxu0 %v7335
    %8872 = vmatprep.subr.bf16.mxu0 0
    %8873 = vmatpush1.bf16.msra.mxu0 %v7336
    %8874 = vmatprep.subr.bf16.mxu0 0
    %8875 = vmatpush1.bf16.msra.mxu0 %v7337
    %8876 = vmatprep.subr.bf16.mxu0 0
    %8877 = vmatpush1.bf16.msra.mxu0 %v7338
    %8878 = vmatprep.subr.bf16.mxu0 0
    %8879 = vmatpush1.bf16.msra.mxu0 %v7339
    %8880 = vmatprep.subr.bf16.mxu0 0
    %8881 = vmatpush1.bf16.msra.mxu0 %v7340
    %8882 = vmatprep.mubr.bf16.mxu0 %v1713
    %8883 = vmatmul.mubr.bf16.gmra.mrb[0].mxu0 %v1712
    %v8884 = vpop.f32.mrb[0].mxu0
    %v8885 = vadd.f32 %v8844, %v8884
    %v8886 = vpop.f32.mrb[0].mxu0
    %v8887 = vpop.f32.mrb[0].mxu0
    %v8888 = vadd.f32 %v8847, %v8887
    %v8889 = vpop.f32.mrb[0].mxu0
    %8890 = vdwg.mxu0
    %8891 = vmatprep.subr.bf16.mxu0 0
    %8892 = vmatpush1.bf16.msra.mxu0 %v7341
    %8893 = vmatprep.subr.bf16.mxu0 0
    %8894 = vmatpush1.bf16.msra.mxu0 %v7342
    %8895 = vmatprep.subr.bf16.mxu0 0
    %8896 = vmatpush1.bf16.msra.mxu0 %v7343
    %8897 = vmatprep.subr.bf16.mxu0 0
    %8898 = vmatpush1.bf16.msra.mxu0 %v7344
    %8899 = vmatprep.subr.bf16.mxu0 0
    %8900 = vmatpush1.bf16.msra.mxu0 %v7345
    %8901 = vmatprep.subr.bf16.mxu0 0
    %8902 = vmatpush1.bf16.msra.mxu0 %v7346
    %8903 = vmatprep.subr.bf16.mxu0 0
    %8904 = vmatpush1.bf16.msra.mxu0 %v7347
    %8905 = vmatprep.subr.bf16.mxu0 0
    %8906 = vmatpush1.bf16.msra.mxu0 %v7348
    %8907 = vmatprep.subr.bf16.mxu0 0
    %8908 = vmatpush1.bf16.msra.mxu0 %v7349
    %8909 = vmatprep.subr.bf16.mxu0 0
    %8910 = vmatpush1.bf16.msra.mxu0 %v7350
    %8911 = vmatprep.subr.bf16.mxu0 0
    %8912 = vmatpush1.bf16.msra.mxu0 %v7351
    %8913 = vmatprep.subr.bf16.mxu0 0
    %8914 = vmatpush1.bf16.msra.mxu0 %v7352
    %8915 = vmatprep.subr.bf16.mxu0 0
    %8916 = vmatpush1.bf16.msra.mxu0 %v7353
    %8917 = vmatprep.subr.bf16.mxu0 0
    %8918 = vmatpush1.bf16.msra.mxu0 %v7354
    %8919 = vmatprep.subr.bf16.mxu0 0
    %8920 = vmatpush1.bf16.msra.mxu0 %v7355
    %8921 = vmatprep.subr.bf16.mxu0 0
    %8922 = vmatpush1.bf16.msra.mxu0 %v7356
    %8923 = vmatprep.mubr.bf16.mxu0 %v1715
    %8924 = vmatmul.mubr.bf16.gmra.mrb[0].mxu0 %v1714
    %v8925 = vpop.f32.mrb[0].mxu0
    %v8926 = vadd.f32 %v8885, %v8925
    %v8927 = vpop.f32.mrb[0].mxu0
    %v8928 = vpop.f32.mrb[0].mxu0
    %v8929 = vadd.f32 %v8888, %v8928
    %v8930 = vpop.f32.mrb[0].mxu0
    %8931 = vdwg.mxu0
    %8932 = vmatprep.subr.bf16.mxu0 0
    %8933 = vmatpush1.bf16.msra.mxu0 %v7357
    %8934 = vmatprep.subr.bf16.mxu0 0
    %8935 = vmatpush1.bf16.msra.mxu0 %v7358
    %8936 = vmatprep.subr.bf16.mxu0 0
    %8937 = vmatpush1.bf16.msra.mxu0 %v7359
    %8938 = vmatprep.subr.bf16.mxu0 0
    %8939 = vmatpush1.bf16.msra.mxu0 %v7360
    %8940 = vmatprep.subr.bf16.mxu0 0
    %8941 = vmatpush1.bf16.msra.mxu0 %v7361
    %8942 = vmatprep.subr.bf16.mxu0 0
    %8943 = vmatpush1.bf16.msra.mxu0 %v7362
    %8944 = vmatprep.subr.bf16.mxu0 0
    %8945 = vmatpush1.bf16.msra.mxu0 %v7363
    %8946 = vmatprep.subr.bf16.mxu0 0
    %8947 = vmatpush1.bf16.msra.mxu0 %v7364
    %8948 = vmatprep.subr.bf16.mxu0 0
    %8949 = vmatpush1.bf16.msra.mxu0 %v7365
    %8950 = vmatprep.subr.bf16.mxu0 0
    %8951 = vmatpush1.bf16.msra.mxu0 %v7366
    %8952 = vmatprep.subr.bf16.mxu0 0
    %8953 = vmatpush1.bf16.msra.mxu0 %v7367
    %8954 = vmatprep.subr.bf16.mxu0 0
    %8955 = vmatpush1.bf16.msra.mxu0 %v7368
    %8956 = vmatprep.subr.bf16.mxu0 0
    %8957 = vmatpush1.bf16.msra.mxu0 %v7369
    %8958 = vmatprep.subr.bf16.mxu0 0
    %8959 = vmatpush1.bf16.msra.mxu0 %v7370
    %8960 = vmatprep.subr.bf16.mxu0 0
    %8961 = vmatpush1.bf16.msra.mxu0 %v7371
    %8962 = vmatprep.subr.bf16.mxu0 0
    %8963 = vmatpush1.bf16.msra.mxu0 %v7372
    %8964 = vmatprep.mubr.bf16.mxu0 %v1717
    %8965 = vmatmul.mubr.bf16.gmra.mrb[0].mxu0 %v1716
    %v8966 = vpop.f32.mrb[0].mxu0
    %v8967 = vadd.f32 %v8926, %v8966
    %v8968 = vpop.f32.mrb[0].mxu0
    %v8969 = vpop.f32.mrb[0].mxu0
    %v8970 = vadd.f32 %v8929, %v8969
    %v8971 = vpop.f32.mrb[0].mxu0
    %8972 = vdwg.mxu0
    %8973 = vmatprep.subr.bf16.mxu0 0
    %8974 = vmatpush1.bf16.msra.mxu0 %v7373
    %8975 = vmatprep.subr.bf16.mxu0 0
    %8976 = vmatpush1.bf16.msra.mxu0 %v7374
    %8977 = vmatprep.subr.bf16.mxu0 0
    %8978 = vmatpush1.bf16.msra.mxu0 %v7375
    %8979 = vmatprep.subr.bf16.mxu0 0
    %8980 = vmatpush1.bf16.msra.mxu0 %v7376
    %8981 = vmatprep.subr.bf16.mxu0 0
    %8982 = vmatpush1.bf16.msra.mxu0 %v7377
    %8983 = vmatprep.subr.bf16.mxu0 0
    %8984 = vmatpush1.bf16.msra.mxu0 %v7378
    %8985 = vmatprep.subr.bf16.mxu0 0
    %8986 = vmatpush1.bf16.msra.mxu0 %v7379
    %8987 = vmatprep.subr.bf16.mxu0 0
    %8988 = vmatpush1.bf16.msra.mxu0 %v7380
    %8989 = vmatprep.subr.bf16.mxu0 0
    %8990 = vmatpush1.bf16.msra.mxu0 %v7381
    %8991 = vmatprep.subr.bf16.mxu0 0
    %8992 = vmatpush1.bf16.msra.mxu0 %v7382
    %8993 = vmatprep.subr.bf16.mxu0 0
    %8994 = vmatpush1.bf16.msra.mxu0 %v7383
    %8995 = vmatprep.subr.bf16.mxu0 0
    %8996 = vmatpush1.bf16.msra.mxu0 %v7384
    %8997 = vmatprep.subr.bf16.mxu0 0
    %8998 = vmatpush1.bf16.msra.mxu0 %v7385
    %8999 = vmatprep.subr.bf16.mxu0 0
    %9000 = vmatpush1.bf16.msra.mxu0 %v7386
    %9001 = vmatprep.subr.bf16.mxu0 0
    %9002 = vmatpush1.bf16.msra.mxu0 %v7387
    %9003 = vmatprep.subr.bf16.mxu0 0
    %9004 = vmatpush1.bf16.msra.mxu0 %v7388
    %9005 = vmatprep.mubr.bf16.mxu0 %v3468
    %9006 = vmatmul.mubr.bf16.gmra.mrb[0].mxu0 %v1718
    %v9007 = vpop.f32.mrb[0].mxu0
    %v9008 = vadd.f32 %v8967, %v9007
    %v9009 = vpop.f32.mrb[0].mxu0
    %v9010 = vpop.f32.mrb[0].mxu0
    %v9011 = vadd.f32 %v8970, %v9010
    %v9012 = vpop.f32.mrb[0].mxu0
    %9013 = vdwg.mxu0
    %9014 = vmatprep.subr.bf16.mxu0 0
    %9015 = vmatpush1.bf16.msra.mxu0 %v7389
    %9016 = vmatprep.subr.bf16.mxu0 0
    %9017 = vmatpush1.bf16.msra.mxu0 %v7390
    %9018 = vmatprep.subr.bf16.mxu0 0
    %9019 = vmatpush1.bf16.msra.mxu0 %v7391
    %9020 = vmatprep.subr.bf16.mxu0 0
    %9021 = vmatpush1.bf16.msra.mxu0 %v7392
    %9022 = vmatprep.subr.bf16.mxu0 0
    %9023 = vmatpush1.bf16.msra.mxu0 %v7393
    %9024 = vmatprep.subr.bf16.mxu0 0
    %9025 = vmatpush1.bf16.msra.mxu0 %v7394
    %9026 = vmatprep.subr.bf16.mxu0 0
    %9027 = vmatpush1.bf16.msra.mxu0 %v7395
    %9028 = vmatprep.subr.bf16.mxu0 0
    %9029 = vmatpush1.bf16.msra.mxu0 %v7396
    %9030 = vmatprep.subr.bf16.mxu0 0
    %9031 = vmatpush1.bf16.msra.mxu0 %v7397
    %9032 = vmatprep.subr.bf16.mxu0 0
    %9033 = vmatpush1.bf16.msra.mxu0 %v7398
    %9034 = vmatprep.subr.bf16.mxu0 0
    %9035 = vmatpush1.bf16.msra.mxu0 %v7399
    %9036 = vmatprep.subr.bf16.mxu0 0
    %9037 = vmatpush1.bf16.msra.mxu0 %v7400
    %9038 = vmatprep.subr.bf16.mxu0 0
    %9039 = vmatpush1.bf16.msra.mxu0 %v7401
    %9040 = vmatprep.subr.bf16.mxu0 0
    %9041 = vmatpush1.bf16.msra.mxu0 %v7402
    %9042 = vmatprep.subr.bf16.mxu0 0
    %9043 = vmatpush1.bf16.msra.mxu0 %v7403
    %9044 = vmatprep.subr.bf16.mxu0 0
    %9045 = vmatpush1.bf16.msra.mxu0 %v7404
    %9046 = vmatprep.mubr.bf16.mxu0 %v3470
    %9047 = vmatmul.mubr.bf16.gmra.mrb[0].mxu0 %v3469
    %v9048 = vpop.f32.mrb[0].mxu0
    %v9049 = vadd.f32 %v9008, %v9048
    %v9050 = vpop.f32.mrb[0].mxu0
    %v9051 = vpop.f32.mrb[0].mxu0
    %v9052 = vadd.f32 %v9011, %v9051
    %v9053 = vpop.f32.mrb[0].mxu0
    %9054 = vdwg.mxu0
    %9055 = vmatprep.subr.bf16.mxu0 0
    %9056 = vmatpush1.bf16.msra.mxu0 %v7405
    %9057 = vmatprep.subr.bf16.mxu0 0
    %9058 = vmatpush1.bf16.msra.mxu0 %v7406
    %9059 = vmatprep.subr.bf16.mxu0 0
    %9060 = vmatpush1.bf16.msra.mxu0 %v7407
    %9061 = vmatprep.subr.bf16.mxu0 0
    %9062 = vmatpush1.bf16.msra.mxu0 %v7408
    %9063 = vmatprep.subr.bf16.mxu0 0
    %9064 = vmatpush1.bf16.msra.mxu0 %v7409
    %9065 = vmatprep.subr.bf16.mxu0 0
    %9066 = vmatpush1.bf16.msra.mxu0 %v7410
    %9067 = vmatprep.subr.bf16.mxu0 0
    %9068 = vmatpush1.bf16.msra.mxu0 %v7411
    %9069 = vmatprep.subr.bf16.mxu0 0
    %9070 = vmatpush1.bf16.msra.mxu0 %v7412
    %9071 = vmatprep.subr.bf16.mxu0 0
    %9072 = vmatpush1.bf16.msra.mxu0 %v7413
    %9073 = vmatprep.subr.bf16.mxu0 0
    %9074 = vmatpush1.bf16.msra.mxu0 %v7414
    %9075 = vmatprep.subr.bf16.mxu0 0
    %9076 = vmatpush1.bf16.msra.mxu0 %v7415
    %9077 = vmatprep.subr.bf16.mxu0 0
    %9078 = vmatpush1.bf16.msra.mxu0 %v7416
    %9079 = vmatprep.subr.bf16.mxu0 0
    %9080 = vmatpush1.bf16.msra.mxu0 %v7417
    %9081 = vmatprep.subr.bf16.mxu0 0
    %9082 = vmatpush1.bf16.msra.mxu0 %v7418
    %9083 = vmatprep.subr.bf16.mxu0 0
    %9084 = vmatpush1.bf16.msra.mxu0 %v7419
    %9085 = vmatprep.subr.bf16.mxu0 0
    %9086 = vmatpush1.bf16.msra.mxu0 %v7420
    %9087 = vmatprep.mubr.bf16.mxu0 %v3472
    %9088 = vmatmul.mubr.bf16.gmra.mrb[0].mxu0 %v3471
    %v9089 = vpop.f32.mrb[0].mxu0
    %v9090 = vadd.f32 %v9049, %v9089
    %v9091 = vpop.f32.mrb[0].mxu0
    %v9092 = vpop.f32.mrb[0].mxu0
    %v9093 = vadd.f32 %v9052, %v9092
    %v9094 = vpop.f32.mrb[0].mxu0
    %9095 = vdwg.mxu0
    %9096 = vmatprep.subr.bf16.mxu0 0
    %9097 = vmatpush1.bf16.msra.mxu0 %v7421
    %9098 = vmatprep.subr.bf16.mxu0 0
    %9099 = vmatpush1.bf16.msra.mxu0 %v7422
    %9100 = vmatprep.subr.bf16.mxu0 0
    %9101 = vmatpush1.bf16.msra.mxu0 %v7423
    %9102 = vmatprep.subr.bf16.mxu0 0
    %9103 = vmatpush1.bf16.msra.mxu0 %v7424
    %9104 = vmatprep.subr.bf16.mxu0 0
    %9105 = vmatpush1.bf16.msra.mxu0 %v7425
    %9106 = vmatprep.subr.bf16.mxu0 0
    %9107 = vmatpush1.bf16.msra.mxu0 %v7426
    %9108 = vmatprep.subr.bf16.mxu0 0
    %9109 = vmatpush1.bf16.msra.mxu0 %v7427
    %9110 = vmatprep.subr.bf16.mxu0 0
    %9111 = vmatpush1.bf16.msra.mxu0 %v7428
    %9112 = vmatprep.subr.bf16.mxu0 0
    %9113 = vmatpush1.bf16.msra.mxu0 %v7429
    %9114 = vmatprep.subr.bf16.mxu0 0
    %9115 = vmatpush1.bf16.msra.mxu0 %v7430
    %9116 = vmatprep.subr.bf16.mxu0 0
    %9117 = vmatpush1.bf16.msra.mxu0 %v7431
    %9118 = vmatprep.subr.bf16.mxu0 0
    %9119 = vmatpush1.bf16.msra.mxu0 %v7432
    %9120 = vmatprep.subr.bf16.mxu0 0
    %9121 = vmatpush1.bf16.msra.mxu0 %v7433
    %9122 = vmatprep.subr.bf16.mxu0 0
    %9123 = vmatpush1.bf16.msra.mxu0 %v7434
    %9124 = vmatprep.subr.bf16.mxu0 0
    %9125 = vmatpush1.bf16.msra.mxu0 %v7435
    %9126 = vmatprep.subr.bf16.mxu0 0
    %9127 = vmatpush1.bf16.msra.mxu0 %v7436
    %9128 = vmatprep.mubr.bf16.mxu0 %v3474
    %9129 = vmatmul.mubr.bf16.gmra.mrb[0].mxu0 %v3473
    %v9130 = vpop.f32.mrb[0].mxu0
    %v9131 = vadd.f32 %v9090, %v9130
    %v9132 = vpop.f32.mrb[0].mxu0
    %v9133 = vpop.f32.mrb[0].mxu0
    %v9134 = vadd.f32 %v9093, %v9133
    %v9135 = vpop.f32.mrb[0].mxu0
    %9136 = vdwg.mxu0
    %9137 = vmatprep.subr.bf16.mxu0 0
    %9138 = vmatpush1.bf16.msra.mxu0 %v7437
    %9139 = vmatprep.subr.bf16.mxu0 0
    %9140 = vmatpush1.bf16.msra.mxu0 %v7438
    %9141 = vmatprep.subr.bf16.mxu0 0
    %9142 = vmatpush1.bf16.msra.mxu0 %v7439
    %9143 = vmatprep.subr.bf16.mxu0 0
    %9144 = vmatpush1.bf16.msra.mxu0 %v7440
    %9145 = vmatprep.subr.bf16.mxu0 0
    %9146 = vmatpush1.bf16.msra.mxu0 %v7441
    %9147 = vmatprep.subr.bf16.mxu0 0
    %9148 = vmatpush1.bf16.msra.mxu0 %v7442
    %9149 = vmatprep.subr.bf16.mxu0 0
    %9150 = vmatpush1.bf16.msra.mxu0 %v7443
    %9151 = vmatprep.subr.bf16.mxu0 0
    %9152 = vmatpush1.bf16.msra.mxu0 %v7444
    %9153 = vmatprep.subr.bf16.mxu0 0
    %9154 = vmatpush1.bf16.msra.mxu0 %v7445
    %9155 = vmatprep.subr.bf16.mxu0 0
    %9156 = vmatpush1.bf16.msra.mxu0 %v7446
    %9157 = vmatprep.subr.bf16.mxu0 0
    %9158 = vmatpush1.bf16.msra.mxu0 %v7447
    %9159 = vmatprep.subr.bf16.mxu0 0
    %9160 = vmatpush1.bf16.msra.mxu0 %v7448
    %9161 = vmatprep.subr.bf16.mxu0 0
    %9162 = vmatpush1.bf16.msra.mxu0 %v7449
    %9163 = vmatprep.subr.bf16.mxu0 0
    %9164 = vmatpush1.bf16.msra.mxu0 %v7450
    %9165 = vmatprep.subr.bf16.mxu0 0
    %9166 = vmatpush1.bf16.msra.mxu0 %v7451
    %9167 = vmatprep.subr.bf16.mxu0 0
    %9168 = vmatpush1.bf16.msra.mxu0 %v7452
    %9169 = vmatprep.mubr.bf16.mxu0 %v3476
    %9170 = vmatmul.mubr.bf16.gmra.mrb[0].mxu0 %v3475
    %v9171 = vpop.f32.mrb[0].mxu0
    %v9172 = vadd.f32 %v9131, %v9171
    %v9173 = vpop.f32.mrb[0].mxu0
    %v9174 = vpop.f32.mrb[0].mxu0
    %v9175 = vadd.f32 %v9134, %v9174
    %v9176 = vpop.f32.mrb[0].mxu0
    %9177 = vdwg.mxu0
    %9178 = vmatprep.subr.bf16.mxu0 0
    %9179 = vmatpush1.bf16.msra.mxu0 %v7453
    %9180 = vmatprep.subr.bf16.mxu0 0
    %9181 = vmatpush1.bf16.msra.mxu0 %v7454
    %9182 = vmatprep.subr.bf16.mxu0 0
    %9183 = vmatpush1.bf16.msra.mxu0 %v7455
    %9184 = vmatprep.subr.bf16.mxu0 0
    %9185 = vmatpush1.bf16.msra.mxu0 %v7456
    %9186 = vmatprep.subr.bf16.mxu0 0
    %9187 = vmatpush1.bf16.msra.mxu0 %v7457
    %9188 = vmatprep.subr.bf16.mxu0 0
    %9189 = vmatpush1.bf16.msra.mxu0 %v7458
    %9190 = vmatprep.subr.bf16.mxu0 0
    %9191 = vmatpush1.bf16.msra.mxu0 %v7459
    %9192 = vmatprep.subr.bf16.mxu0 0
    %9193 = vmatpush1.bf16.msra.mxu0 %v7460
    %9194 = vmatprep.subr.bf16.mxu0 0
    %9195 = vmatpush1.bf16.msra.mxu0 %v7461
    %9196 = vmatprep.subr.bf16.mxu0 0
    %9197 = vmatpush1.bf16.msra.mxu0 %v7462
    %9198 = vmatprep.subr.bf16.mxu0 0
    %9199 = vmatpush1.bf16.msra.mxu0 %v7463
    %9200 = vmatprep.subr.bf16.mxu0 0
    %9201 = vmatpush1.bf16.msra.mxu0 %v7464
    %9202 = vmatprep.subr.bf16.mxu0 0
    %9203 = vmatpush1.bf16.msra.mxu0 %v7465
    %9204 = vmatprep.subr.bf16.mxu0 0
    %9205 = vmatpush1.bf16.msra.mxu0 %v7466
    %9206 = vmatprep.subr.bf16.mxu0 0
    %9207 = vmatpush1.bf16.msra.mxu0 %v7467
    %9208 = vmatprep.subr.bf16.mxu0 0
    %9209 = vmatpush1.bf16.msra.mxu0 %v7468
    %9210 = vmatprep.mubr.bf16.mxu0 %v3478
    %9211 = vmatmul.mubr.bf16.gmra.mrb[0].mxu0 %v3477
    %v9212 = vpop.f32.mrb[0].mxu0
    %v9213 = vadd.f32 %v9172, %v9212
    %v9214 = vpop.f32.mrb[0].mxu0
    %v9215 = vpop.f32.mrb[0].mxu0
    %v9216 = vadd.f32 %v9175, %v9215
    %v9217 = vpop.f32.mrb[0].mxu0
    %9218 = vdwg.mxu0
    %9219 = vmatprep.subr.bf16.mxu0 0
    %9220 = vmatpush1.bf16.msra.mxu0 %v7469
    %9221 = vmatprep.subr.bf16.mxu0 0
    %9222 = vmatpush1.bf16.msra.mxu0 %v7470
    %9223 = vmatprep.subr.bf16.mxu0 0
    %9224 = vmatpush1.bf16.msra.mxu0 %v7471
    %9225 = vmatprep.subr.bf16.mxu0 0
    %9226 = vmatpush1.bf16.msra.mxu0 %v7472
    %9227 = vmatprep.subr.bf16.mxu0 0
    %9228 = vmatpush1.bf16.msra.mxu0 %v7473
    %9229 = vmatprep.subr.bf16.mxu0 0
    %9230 = vmatpush1.bf16.msra.mxu0 %v7474
    %9231 = vmatprep.subr.bf16.mxu0 0
    %9232 = vmatpush1.bf16.msra.mxu0 %v7475
    %9233 = vmatprep.subr.bf16.mxu0 0
    %9234 = vmatpush1.bf16.msra.mxu0 %v7476
    %9235 = vmatprep.subr.bf16.mxu0 0
    %9236 = vmatpush1.bf16.msra.mxu0 %v7477
    %9237 = vmatprep.subr.bf16.mxu0 0
    %9238 = vmatpush1.bf16.msra.mxu0 %v7478
    %9239 = vmatprep.subr.bf16.mxu0 0
    %9240 = vmatpush1.bf16.msra.mxu0 %v7479
    %9241 = vmatprep.subr.bf16.mxu0 0
    %9242 = vmatpush1.bf16.msra.mxu0 %v7480
    %9243 = vmatprep.subr.bf16.mxu0 0
    %9244 = vmatpush1.bf16.msra.mxu0 %v7481
    %9245 = vmatprep.subr.bf16.mxu0 0
    %9246 = vmatpush1.bf16.msra.mxu0 %v7482
    %9247 = vmatprep.subr.bf16.mxu0 0
    %9248 = vmatpush1.bf16.msra.mxu0 %v7483
    %9249 = vmatprep.subr.bf16.mxu0 0
    %9250 = vmatpush1.bf16.msra.mxu0 %v7484
    %9251 = vmatprep.mubr.bf16.mxu0 %v3480
    %9252 = vmatmul.mubr.bf16.gmra.mrb[0].mxu0 %v3479
    %v9253 = vpop.f32.mrb[0].mxu0
    %v9254 = vadd.f32 %v9213, %v9253
    %v9255 = vpop.f32.mrb[0].mxu0
    %v9256 = vpop.f32.mrb[0].mxu0
    %v9257 = vadd.f32 %v9216, %v9256
    %v9258 = vpop.f32.mrb[0].mxu0
    %9259 = vdwg.mxu0
    %9260 = vmatprep.subr.bf16.mxu0 0
    %9261 = vmatpush1.bf16.msra.mxu0 %v7485
    %9262 = vmatprep.subr.bf16.mxu0 0
    %9263 = vmatpush1.bf16.msra.mxu0 %v7486
    %9264 = vmatprep.subr.bf16.mxu0 0
    %9265 = vmatpush1.bf16.msra.mxu0 %v7487
    %9266 = vmatprep.subr.bf16.mxu0 0
    %9267 = vmatpush1.bf16.msra.mxu0 %v7488
    %9268 = vmatprep.subr.bf16.mxu0 0
    %9269 = vmatpush1.bf16.msra.mxu0 %v7489
    %9270 = vmatprep.subr.bf16.mxu0 0
    %9271 = vmatpush1.bf16.msra.mxu0 %v7490
    %9272 = vmatprep.subr.bf16.mxu0 0
    %9273 = vmatpush1.bf16.msra.mxu0 %v7491
    %9274 = vmatprep.subr.bf16.mxu0 0
    %9275 = vmatpush1.bf16.msra.mxu0 %v7492
    %9276 = vmatprep.subr.bf16.mxu0 0
    %9277 = vmatpush1.bf16.msra.mxu0 %v7493
    %9278 = vmatprep.subr.bf16.mxu0 0
    %9279 = vmatpush1.bf16.msra.mxu0 %v7494
    %9280 = vmatprep.subr.bf16.mxu0 0
    %9281 = vmatpush1.bf16.msra.mxu0 %v7495
    %9282 = vmatprep.subr.bf16.mxu0 0
    %9283 = vmatpush1.bf16.msra.mxu0 %v7496
    %9284 = vmatprep.subr.bf16.mxu0 0
    %9285 = vmatpush1.bf16.msra.mxu0 %v7497
    %9286 = vmatprep.subr.bf16.mxu0 0
    %9287 = vmatpush1.bf16.msra.mxu0 %v7498
    %9288 = vmatprep.subr.bf16.mxu0 0
    %9289 = vmatpush1.bf16.msra.mxu0 %v7499
    %9290 = vmatprep.subr.bf16.mxu0 0
    %9291 = vmatpush1.bf16.msra.mxu0 %v7500
    %9292 = vmatprep.mubr.bf16.mxu0 %v3482
    %9293 = vmatmul.mubr.bf16.gmra.mrb[0].mxu0 %v3481
    %v9294 = vpop.f32.mrb[0].mxu0
    %v9295 = vadd.f32 %v9254, %v9294
    %v9296 = vpop.f32.mrb[0].mxu0
    %v9297 = vpop.f32.mrb[0].mxu0
    %v9298 = vadd.f32 %v9257, %v9297
    %v9299 = vpop.f32.mrb[0].mxu0
    %9300 = vdwg.mxu0
    %9301 = vmatprep.subr.bf16.mxu0 0
    %9302 = vmatpush1.bf16.msra.mxu0 %v7501
    %9303 = vmatprep.subr.bf16.mxu0 0
    %9304 = vmatpush1.bf16.msra.mxu0 %v7502
    %9305 = vmatprep.subr.bf16.mxu0 0
    %9306 = vmatpush1.bf16.msra.mxu0 %v7503
    %9307 = vmatprep.subr.bf16.mxu0 0
    %9308 = vmatpush1.bf16.msra.mxu0 %v7504
    %9309 = vmatprep.subr.bf16.mxu0 0
    %9310 = vmatpush1.bf16.msra.mxu0 %v7505
    %9311 = vmatprep.subr.bf16.mxu0 0
    %9312 = vmatpush1.bf16.msra.mxu0 %v7506
    %9313 = vmatprep.subr.bf16.mxu0 0
    %9314 = vmatpush1.bf16.msra.mxu0 %v7507
    %9315 = vmatprep.subr.bf16.mxu0 0
    %9316 = vmatpush1.bf16.msra.mxu0 %v7508
    %9317 = vmatprep.subr.bf16.mxu0 0
    %9318 = vmatpush1.bf16.msra.mxu0 %v7509
    %9319 = vmatprep.subr.bf16.mxu0 0
    %9320 = vmatpush1.bf16.msra.mxu0 %v7510
    %9321 = vmatprep.subr.bf16.mxu0 0
    %9322 = vmatpush1.bf16.msra.mxu0 %v7511
    %9323 = vmatprep.subr.bf16.mxu0 0
    %9324 = vmatpush1.bf16.msra.mxu0 %v7512
    %9325 = vmatprep.subr.bf16.mxu0 0
    %9326 = vmatpush1.bf16.msra.mxu0 %v7513
    %9327 = vmatprep.subr.bf16.mxu0 0
    %9328 = vmatpush1.bf16.msra.mxu0 %v7514
    %9329 = vmatprep.subr.bf16.mxu0 0
    %9330 = vmatpush1.bf16.msra.mxu0 %v7515
    %9331 = vmatprep.subr.bf16.mxu0 0
    %9332 = vmatpush1.bf16.msra.mxu0 %v7516
    %9333 = vmatprep.mubr.bf16.mxu0 %v3484
    %9334 = vmatmul.mubr.bf16.gmra.mrb[0].mxu0 %v3483
    %v9335 = vpop.f32.mrb[0].mxu0
    %v9336 = vadd.f32 %v9295, %v9335
    %v9337 = vpop.f32.mrb[0].mxu0
    %v9338 = vpop.f32.mrb[0].mxu0
    %v9339 = vadd.f32 %v9298, %v9338
    %v9340 = vpop.f32.mrb[0].mxu0
    %9341 = vdwg.mxu0
    %9342 = vmatprep.subr.bf16.mxu0 0
    %9343 = vmatpush1.bf16.msra.mxu0 %v7517
    %9344 = vmatprep.subr.bf16.mxu0 0
    %9345 = vmatpush1.bf16.msra.mxu0 %v7518
    %9346 = vmatprep.subr.bf16.mxu0 0
    %9347 = vmatpush1.bf16.msra.mxu0 %v7519
    %9348 = vmatprep.subr.bf16.mxu0 0
    %9349 = vmatpush1.bf16.msra.mxu0 %v7520
    %9350 = vmatprep.subr.bf16.mxu0 0
    %9351 = vmatpush1.bf16.msra.mxu0 %v7521
    %9352 = vmatprep.subr.bf16.mxu0 0
    %9353 = vmatpush1.bf16.msra.mxu0 %v7522
    %9354 = vmatprep.subr.bf16.mxu0 0
    %9355 = vmatpush1.bf16.msra.mxu0 %v7523
    %9356 = vmatprep.subr.bf16.mxu0 0
    %9357 = vmatpush1.bf16.msra.mxu0 %v7524
    %9358 = vmatprep.subr.bf16.mxu0 0
    %9359 = vmatpush1.bf16.msra.mxu0 %v7525
    %9360 = vmatprep.subr.bf16.mxu0 0
    %9361 = vmatpush1.bf16.msra.mxu0 %v7526
    %9362 = vmatprep.subr.bf16.mxu0 0
    %9363 = vmatpush1.bf16.msra.mxu0 %v7527
    %9364 = vmatprep.subr.bf16.mxu0 0
    %9365 = vmatpush1.bf16.msra.mxu0 %v7528
    %9366 = vmatprep.subr.bf16.mxu0 0
    %9367 = vmatpush1.bf16.msra.mxu0 %v7529
    %9368 = vmatprep.subr.bf16.mxu0 0
    %9369 = vmatpush1.bf16.msra.mxu0 %v7530
    %9370 = vmatprep.subr.bf16.mxu0 0
    %9371 = vmatpush1.bf16.msra.mxu0 %v7531
    %9372 = vmatprep.subr.bf16.mxu0 0
    %9373 = vmatpush1.bf16.msra.mxu0 %v7532
    %9374 = vmatprep.mubr.bf16.mxu0 %v3486
    %9375 = vmatmul.mubr.bf16.gmra.mrb[0].mxu0 %v3485
    %v9376 = vpop.f32.mrb[0].mxu0
    %v9377 = vadd.f32 %v9336, %v9376
    %v9378 = vpop.f32.mrb[0].mxu0
    %v9379 = vpop.f32.mrb[0].mxu0
    %v9380 = vadd.f32 %v9339, %v9379
    %v9381 = vpop.f32.mrb[0].mxu0
    %9382 = vdwg.mxu0
    %9383 = vmatprep.subr.bf16.mxu0 0
    %9384 = vmatpush1.bf16.msra.mxu0 %v7533
    %9385 = vmatprep.subr.bf16.mxu0 0
    %9386 = vmatpush1.bf16.msra.mxu0 %v7534
    %9387 = vmatprep.subr.bf16.mxu0 0
    %9388 = vmatpush1.bf16.msra.mxu0 %v7535
    %9389 = vmatprep.subr.bf16.mxu0 0
    %9390 = vmatpush1.bf16.msra.mxu0 %v7536
    %9391 = vmatprep.subr.bf16.mxu0 0
    %9392 = vmatpush1.bf16.msra.mxu0 %v7537
    %9393 = vmatprep.subr.bf16.mxu0 0
    %9394 = vmatpush1.bf16.msra.mxu0 %v7538
    %9395 = vmatprep.subr.bf16.mxu0 0
    %9396 = vmatpush1.bf16.msra.mxu0 %v7539
    %9397 = vmatprep.subr.bf16.mxu0 0
    %9398 = vmatpush1.bf16.msra.mxu0 %v7540
    %9399 = vmatprep.subr.bf16.mxu0 0
    %9400 = vmatpush1.bf16.msra.mxu0 %v7541
    %9401 = vmatprep.subr.bf16.mxu0 0
    %9402 = vmatpush1.bf16.msra.mxu0 %v7542
    %9403 = vmatprep.subr.bf16.mxu0 0
    %9404 = vmatpush1.bf16.msra.mxu0 %v7543
    %9405 = vmatprep.subr.bf16.mxu0 0
    %9406 = vmatpush1.bf16.msra.mxu0 %v7544
    %9407 = vmatprep.subr.bf16.mxu0 0
    %9408 = vmatpush1.bf16.msra.mxu0 %v7545
    %9409 = vmatprep.subr.bf16.mxu0 0
    %9410 = vmatpush1.bf16.msra.mxu0 %v7546
    %9411 = vmatprep.subr.bf16.mxu0 0
    %9412 = vmatpush1.bf16.msra.mxu0 %v7547
    %9413 = vmatprep.subr.bf16.mxu0 0
    %9414 = vmatpush1.bf16.msra.mxu0 %v7548
    %9415 = vmatprep.mubr.bf16.mxu0 %v3488
    %9416 = vmatmul.mubr.bf16.gmra.mrb[0].mxu0 %v3487
    %v9417 = vpop.f32.mrb[0].mxu0
    %v9418 = vadd.f32 %v9377, %v9417
    %v9419 = vpop.f32.mrb[0].mxu0
    %v9420 = vpop.f32.mrb[0].mxu0
    %v9421 = vadd.f32 %v9380, %v9420
    %v9422 = vpop.f32.mrb[0].mxu0
    %9423 = vdwg.mxu0
    %9424 = vmatprep.subr.bf16.mxu0 0
    %9425 = vmatpush1.bf16.msra.mxu0 %v7549
    %9426 = vmatprep.subr.bf16.mxu0 0
    %9427 = vmatpush1.bf16.msra.mxu0 %v7550
    %9428 = vmatprep.subr.bf16.mxu0 0
    %9429 = vmatpush1.bf16.msra.mxu0 %v7551
    %9430 = vmatprep.subr.bf16.mxu0 0
    %9431 = vmatpush1.bf16.msra.mxu0 %v7552
    %9432 = vmatprep.subr.bf16.mxu0 0
    %9433 = vmatpush1.bf16.msra.mxu0 %v7553
    %9434 = vmatprep.subr.bf16.mxu0 0
    %9435 = vmatpush1.bf16.msra.mxu0 %v7554
    %9436 = vmatprep.subr.bf16.mxu0 0
    %9437 = vmatpush1.bf16.msra.mxu0 %v7555
    %9438 = vmatprep.subr.bf16.mxu0 0
    %9439 = vmatpush1.bf16.msra.mxu0 %v7556
    %9440 = vmatprep.subr.bf16.mxu0 0
    %9441 = vmatpush1.bf16.msra.mxu0 %v7557
    %9442 = vmatprep.subr.bf16.mxu0 0
    %9443 = vmatpush1.bf16.msra.mxu0 %v7558
    %9444 = vmatprep.subr.bf16.mxu0 0
    %9445 = vmatpush1.bf16.msra.mxu0 %v7559
    %9446 = vmatprep.subr.bf16.mxu0 0
    %9447 = vmatpush1.bf16.msra.mxu0 %v7560
    %9448 = vmatprep.subr.bf16.mxu0 0
    %9449 = vmatpush1.bf16.msra.mxu0 %v7561
    %9450 = vmatprep.subr.bf16.mxu0 0
    %9451 = vmatpush1.bf16.msra.mxu0 %v7562
    %9452 = vmatprep.subr.bf16.mxu0 0
    %9453 = vmatpush1.bf16.msra.mxu0 %v7563
    %9454 = vmatprep.subr.bf16.mxu0 0
    %9455 = vmatpush1.bf16.msra.mxu0 %v7564
    %9456 = vmatprep.mubr.bf16.mxu0 %v3490
    %9457 = vmatmul.mubr.bf16.gmra.mrb[0].mxu0 %v3489
    %v9458 = vpop.f32.mrb[0].mxu0
    %v9459 = vadd.f32 %v9418, %v9458
    %v9460 = vpop.f32.mrb[0].mxu0
    %v9461 = vpop.f32.mrb[0].mxu0
    %v9462 = vadd.f32 %v9421, %v9461
    %v9463 = vpop.f32.mrb[0].mxu0
    %9464 = vdwg.mxu0
    %9465 = vmatprep.subr.bf16.mxu0 0
    %9466 = vmatpush1.bf16.msra.mxu0 %v7565
    %9467 = vmatprep.subr.bf16.mxu0 0
    %9468 = vmatpush1.bf16.msra.mxu0 %v7566
    %9469 = vmatprep.subr.bf16.mxu0 0
    %9470 = vmatpush1.bf16.msra.mxu0 %v7567
    %9471 = vmatprep.subr.bf16.mxu0 0
    %9472 = vmatpush1.bf16.msra.mxu0 %v7568
    %9473 = vmatprep.subr.bf16.mxu0 0
    %9474 = vmatpush1.bf16.msra.mxu0 %v7569
    %9475 = vmatprep.subr.bf16.mxu0 0
    %9476 = vmatpush1.bf16.msra.mxu0 %v7570
    %9477 = vmatprep.subr.bf16.mxu0 0
    %9478 = vmatpush1.bf16.msra.mxu0 %v7571
    %9479 = vmatprep.subr.bf16.mxu0 0
    %9480 = vmatpush1.bf16.msra.mxu0 %v7572
    %9481 = vmatprep.subr.bf16.mxu0 0
    %9482 = vmatpush1.bf16.msra.mxu0 %v7573
    %9483 = vmatprep.subr.bf16.mxu0 0
    %9484 = vmatpush1.bf16.msra.mxu0 %v7574
    %9485 = vmatprep.subr.bf16.mxu0 0
    %9486 = vmatpush1.bf16.msra.mxu0 %v7575
    %9487 = vmatprep.subr.bf16.mxu0 0
    %9488 = vmatpush1.bf16.msra.mxu0 %v7576
    %9489 = vmatprep.subr.bf16.mxu0 0
    %9490 = vmatpush1.bf16.msra.mxu0 %v7577
    %9491 = vmatprep.subr.bf16.mxu0 0
    %9492 = vmatpush1.bf16.msra.mxu0 %v7578
    %9493 = vmatprep.subr.bf16.mxu0 0
    %9494 = vmatpush1.bf16.msra.mxu0 %v7579
    %9495 = vmatprep.subr.bf16.mxu0 0
    %9496 = vmatpush1.bf16.msra.mxu0 %v7580
    %9497 = vmatprep.mubr.bf16.mxu0 %v3492
    %9498 = vmatmul.mubr.bf16.gmra.mrb[0].mxu0 %v3491
    %v9499 = vpop.f32.mrb[0].mxu0
    %v9500 = vadd.f32 %v9459, %v9499
    %v9501 = vpop.f32.mrb[0].mxu0
    %v9502 = vpop.f32.mrb[0].mxu0
    %v9503 = vadd.f32 %v9462, %v9502
    %v9504 = vpop.f32.mrb[0].mxu0
    %9505 = vdwg.mxu0
    %9506 = vmatprep.subr.bf16.mxu0 0
    %9507 = vmatpush1.bf16.msra.mxu0 %v7581
    %9508 = vmatprep.subr.bf16.mxu0 0
    %9509 = vmatpush1.bf16.msra.mxu0 %v7582
    %9510 = vmatprep.subr.bf16.mxu0 0
    %9511 = vmatpush1.bf16.msra.mxu0 %v7583
    %9512 = vmatprep.subr.bf16.mxu0 0
    %9513 = vmatpush1.bf16.msra.mxu0 %v7584
    %9514 = vmatprep.subr.bf16.mxu0 0
    %9515 = vmatpush1.bf16.msra.mxu0 %v7585
    %9516 = vmatprep.subr.bf16.mxu0 0
    %9517 = vmatpush1.bf16.msra.mxu0 %v7586
    %9518 = vmatprep.subr.bf16.mxu0 0
    %9519 = vmatpush1.bf16.msra.mxu0 %v7587
    %9520 = vmatprep.subr.bf16.mxu0 0
    %9521 = vmatpush1.bf16.msra.mxu0 %v7588
    %9522 = vmatprep.subr.bf16.mxu0 0
    %9523 = vmatpush1.bf16.msra.mxu0 %v7589
    %9524 = vmatprep.subr.bf16.mxu0 0
    %9525 = vmatpush1.bf16.msra.mxu0 %v7590
    %9526 = vmatprep.subr.bf16.mxu0 0
    %9527 = vmatpush1.bf16.msra.mxu0 %v7591
    %9528 = vmatprep.subr.bf16.mxu0 0
    %9529 = vmatpush1.bf16.msra.mxu0 %v7592
    %9530 = vmatprep.subr.bf16.mxu0 0
    %9531 = vmatpush1.bf16.msra.mxu0 %v7593
    %9532 = vmatprep.subr.bf16.mxu0 0
    %9533 = vmatpush1.bf16.msra.mxu0 %v7594
    %9534 = vmatprep.subr.bf16.mxu0 0
    %9535 = vmatpush1.bf16.msra.mxu0 %v7595
    %9536 = vmatprep.subr.bf16.mxu0 0
    %9537 = vmatpush1.bf16.msra.mxu0 %v7596
    %9538 = vmatprep.mubr.bf16.mxu0 %v3494
    %9539 = vmatmul.mubr.bf16.gmra.mrb[0].mxu0 %v3493
    %v9540 = vpop.f32.mrb[0].mxu0
    %v9541 = vadd.f32 %v9500, %v9540
    %v9542 = vpop.f32.mrb[0].mxu0
    %v9543 = vpop.f32.mrb[0].mxu0
    %v9544 = vadd.f32 %v9503, %v9543
    %v9545 = vpop.f32.mrb[0].mxu0
    %9546 = vdwg.mxu0
    %9547 = vmatprep.subr.bf16.mxu0 0
    %9548 = vmatpush1.bf16.msra.mxu0 %v7597
    %9549 = vmatprep.subr.bf16.mxu0 0
    %9550 = vmatpush1.bf16.msra.mxu0 %v7598
    %9551 = vmatprep.subr.bf16.mxu0 0
    %9552 = vmatpush1.bf16.msra.mxu0 %v7599
    %9553 = vmatprep.subr.bf16.mxu0 0
    %9554 = vmatpush1.bf16.msra.mxu0 %v7600
    %9555 = vmatprep.subr.bf16.mxu0 0
    %9556 = vmatpush1.bf16.msra.mxu0 %v7601
    %9557 = vmatprep.subr.bf16.mxu0 0
    %9558 = vmatpush1.bf16.msra.mxu0 %v7602
    %9559 = vmatprep.subr.bf16.mxu0 0
    %9560 = vmatpush1.bf16.msra.mxu0 %v7603
    %9561 = vmatprep.subr.bf16.mxu0 0
    %9562 = vmatpush1.bf16.msra.mxu0 %v7604
    %9563 = vmatprep.subr.bf16.mxu0 0
    %9564 = vmatpush1.bf16.msra.mxu0 %v7605
    %9565 = vmatprep.subr.bf16.mxu0 0
    %9566 = vmatpush1.bf16.msra.mxu0 %v7606
    %9567 = vmatprep.subr.bf16.mxu0 0
    %9568 = vmatpush1.bf16.msra.mxu0 %v7607
    %9569 = vmatprep.subr.bf16.mxu0 0
    %9570 = vmatpush1.bf16.msra.mxu0 %v7608
    %9571 = vmatprep.subr.bf16.mxu0 0
    %9572 = vmatpush1.bf16.msra.mxu0 %v7609
    %9573 = vmatprep.subr.bf16.mxu0 0
    %9574 = vmatpush1.bf16.msra.mxu0 %v7610
    %9575 = vmatprep.subr.bf16.mxu0 0
    %9576 = vmatpush1.bf16.msra.mxu0 %v7611
    %9577 = vmatprep.subr.bf16.mxu0 0
    %9578 = vmatpush1.bf16.msra.mxu0 %v7612
    %9579 = vmatprep.mubr.bf16.mxu0 %v3496
    %9580 = vmatmul.mubr.bf16.gmra.mrb[0].mxu0 %v3495
    %v9581 = vpop.f32.mrb[0].mxu0
    %v9582 = vadd.f32 %v9541, %v9581
    %v9583 = vpop.f32.mrb[0].mxu0
    %v9584 = vpop.f32.mrb[0].mxu0
    %v9585 = vadd.f32 %v9544, %v9584
    %v9586 = vpop.f32.mrb[0].mxu0
    %9587 = vdwg.mxu0
    %9588 = vmatprep.subr.bf16.mxu0 0
    %9589 = vmatpush1.bf16.msra.mxu0 %v7613
    %9590 = vmatprep.subr.bf16.mxu0 0
    %9591 = vmatpush1.bf16.msra.mxu0 %v7614
    %9592 = vmatprep.subr.bf16.mxu0 0
    %9593 = vmatpush1.bf16.msra.mxu0 %v7615
    %9594 = vmatprep.subr.bf16.mxu0 0
    %9595 = vmatpush1.bf16.msra.mxu0 %v7616
    %9596 = vmatprep.subr.bf16.mxu0 0
    %9597 = vmatpush1.bf16.msra.mxu0 %v7617
    %9598 = vmatprep.subr.bf16.mxu0 0
    %9599 = vmatpush1.bf16.msra.mxu0 %v7618
    %9600 = vmatprep.subr.bf16.mxu0 0
    %9601 = vmatpush1.bf16.msra.mxu0 %v7619
    %9602 = vmatprep.subr.bf16.mxu0 0
    %9603 = vmatpush1.bf16.msra.mxu0 %v7620
    %9604 = vmatprep.subr.bf16.mxu0 0
    %9605 = vmatpush1.bf16.msra.mxu0 %v7621
    %9606 = vmatprep.subr.bf16.mxu0 0
    %9607 = vmatpush1.bf16.msra.mxu0 %v7622
    %9608 = vmatprep.subr.bf16.mxu0 0
    %9609 = vmatpush1.bf16.msra.mxu0 %v7623
    %9610 = vmatprep.subr.bf16.mxu0 0
    %9611 = vmatpush1.bf16.msra.mxu0 %v7624
    %9612 = vmatprep.subr.bf16.mxu0 0
    %9613 = vmatpush1.bf16.msra.mxu0 %v7625
    %9614 = vmatprep.subr.bf16.mxu0 0
    %9615 = vmatpush1.bf16.msra.mxu0 %v7626
    %9616 = vmatprep.subr.bf16.mxu0 0
    %9617 = vmatpush1.bf16.msra.mxu0 %v7627
    %9618 = vmatprep.subr.bf16.mxu0 0
    %9619 = vmatpush1.bf16.msra.mxu0 %v7628
    %9620 = vmatprep.mubr.bf16.mxu0 %v3498
    %9621 = vmatmul.mubr.bf16.gmra.mrb[0].mxu0 %v3497
    %v9622 = vpop.f32.mrb[0].mxu0
    %v9623 = vadd.f32 %v9582, %v9622
    %v9624 = vpop.f32.mrb[0].mxu0
    %v9625 = vpop.f32.mrb[0].mxu0
    %v9626 = vadd.f32 %v9585, %v9625
    %v9627 = vpop.f32.mrb[0].mxu0
    %9628 = vdwg.mxu0
    %9629 = vmatprep.subr.bf16.mxu0 0
    %9630 = vmatpush1.bf16.msra.mxu0 %v7629
    %9631 = vmatprep.subr.bf16.mxu0 0
    %9632 = vmatpush1.bf16.msra.mxu0 %v7630
    %9633 = vmatprep.subr.bf16.mxu0 0
    %9634 = vmatpush1.bf16.msra.mxu0 %v7631
    %9635 = vmatprep.subr.bf16.mxu0 0
    %9636 = vmatpush1.bf16.msra.mxu0 %v7632
    %9637 = vmatprep.subr.bf16.mxu0 0
    %9638 = vmatpush1.bf16.msra.mxu0 %v7633
    %9639 = vmatprep.subr.bf16.mxu0 0
    %9640 = vmatpush1.bf16.msra.mxu0 %v7634
    %9641 = vmatprep.subr.bf16.mxu0 0
    %9642 = vmatpush1.bf16.msra.mxu0 %v7635
    %9643 = vmatprep.subr.bf16.mxu0 0
    %9644 = vmatpush1.bf16.msra.mxu0 %v7636
    %9645 = vmatprep.subr.bf16.mxu0 0
    %9646 = vmatpush1.bf16.msra.mxu0 %v7637
    %9647 = vmatprep.subr.bf16.mxu0 0
    %9648 = vmatpush1.bf16.msra.mxu0 %v7638
    %9649 = vmatprep.subr.bf16.mxu0 0
    %9650 = vmatpush1.bf16.msra.mxu0 %v7639
    %9651 = vmatprep.subr.bf16.mxu0 0
    %9652 = vmatpush1.bf16.msra.mxu0 %v7640
    %9653 = vmatprep.subr.bf16.mxu0 0
    %9654 = vmatpush1.bf16.msra.mxu0 %v7641
    %9655 = vmatprep.subr.bf16.mxu0 0
    %9656 = vmatpush1.bf16.msra.mxu0 %v7642
    %9657 = vmatprep.subr.bf16.mxu0 0
    %9658 = vmatpush1.bf16.msra.mxu0 %v7643
    %9659 = vmatprep.subr.bf16.mxu0 0
    %9660 = vmatpush1.bf16.msra.mxu0 %v7644
    %9661 = vmatprep.mubr.bf16.mxu0 %v3500
    %9662 = vmatmul.mubr.bf16.gmra.mrb[0].mxu0 %v3499
    %v9663 = vpop.f32.mrb[0].mxu0
    %v9664 = vadd.f32 %v9623, %v9663
    %v9665 = vpop.f32.mrb[0].mxu0
    %v9666 = vpop.f32.mrb[0].mxu0
    %v9667 = vadd.f32 %v9626, %v9666
    %v9668 = vpop.f32.mrb[0].mxu0
    %9669 = vdwg.mxu0
    %9670 = vmatprep.subr.bf16.mxu0 0
    %9671 = vmatpush1.bf16.msra.mxu0 %v7645
    %9672 = vmatprep.subr.bf16.mxu0 0
    %9673 = vmatpush1.bf16.msra.mxu0 %v7646
    %9674 = vmatprep.subr.bf16.mxu0 0
    %9675 = vmatpush1.bf16.msra.mxu0 %v7647
    %9676 = vmatprep.subr.bf16.mxu0 0
    %9677 = vmatpush1.bf16.msra.mxu0 %v7648
    %9678 = vmatprep.subr.bf16.mxu0 0
    %9679 = vmatpush1.bf16.msra.mxu0 %v7649
    %9680 = vmatprep.subr.bf16.mxu0 0
    %9681 = vmatpush1.bf16.msra.mxu0 %v7650
    %9682 = vmatprep.subr.bf16.mxu0 0
    %9683 = vmatpush1.bf16.msra.mxu0 %v7651
    %9684 = vmatprep.subr.bf16.mxu0 0
    %9685 = vmatpush1.bf16.msra.mxu0 %v7652
    %9686 = vmatprep.subr.bf16.mxu0 0
    %9687 = vmatpush1.bf16.msra.mxu0 %v7653
    %9688 = vmatprep.subr.bf16.mxu0 0
    %9689 = vmatpush1.bf16.msra.mxu0 %v7654
    %9690 = vmatprep.subr.bf16.mxu0 0
    %9691 = vmatpush1.bf16.msra.mxu0 %v7655
    %9692 = vmatprep.subr.bf16.mxu0 0
    %9693 = vmatpush1.bf16.msra.mxu0 %v7656
    %9694 = vmatprep.subr.bf16.mxu0 0
    %9695 = vmatpush1.bf16.msra.mxu0 %v7657
    %9696 = vmatprep.subr.bf16.mxu0 0
    %9697 = vmatpush1.bf16.msra.mxu0 %v7658
    %9698 = vmatprep.subr.bf16.mxu0 0
    %9699 = vmatpush1.bf16.msra.mxu0 %v7659
    %9700 = vmatprep.subr.bf16.mxu0 0
    %9701 = vmatpush1.bf16.msra.mxu0 %v7660
    %9702 = vmatprep.mubr.bf16.mxu0 %v3502
    %9703 = vmatmul.mubr.bf16.gmra.mrb[0].mxu0 %v3501
    %v9704 = vpop.f32.mrb[0].mxu0
    %v9705 = vadd.f32 %v9664, %v9704
    %v9706 = vpop.f32.mrb[0].mxu0
    %v9707 = vpop.f32.mrb[0].mxu0
    %v9708 = vadd.f32 %v9667, %v9707
    %v9709 = vpop.f32.mrb[0].mxu0
    %9710 = vdwg.mxu0
    %9711 = vmatprep.subr.bf16.mxu0 0
    %9712 = vmatpush1.bf16.msra.mxu0 %v7661
    %9713 = vmatprep.subr.bf16.mxu0 0
    %9714 = vmatpush1.bf16.msra.mxu0 %v7662
    %9715 = vmatprep.subr.bf16.mxu0 0
    %9716 = vmatpush1.bf16.msra.mxu0 %v7663
    %9717 = vmatprep.subr.bf16.mxu0 0
    %9718 = vmatpush1.bf16.msra.mxu0 %v7664
    %9719 = vmatprep.subr.bf16.mxu0 0
    %9720 = vmatpush1.bf16.msra.mxu0 %v7665
    %9721 = vmatprep.subr.bf16.mxu0 0
    %9722 = vmatpush1.bf16.msra.mxu0 %v7666
    %9723 = vmatprep.subr.bf16.mxu0 0
    %9724 = vmatpush1.bf16.msra.mxu0 %v7667
    %9725 = vmatprep.subr.bf16.mxu0 0
    %9726 = vmatpush1.bf16.msra.mxu0 %v7668
    %9727 = vmatprep.subr.bf16.mxu0 0
    %9728 = vmatpush1.bf16.msra.mxu0 %v7669
    %9729 = vmatprep.subr.bf16.mxu0 0
    %9730 = vmatpush1.bf16.msra.mxu0 %v7670
    %9731 = vmatprep.subr.bf16.mxu0 0
    %9732 = vmatpush1.bf16.msra.mxu0 %v7671
    %9733 = vmatprep.subr.bf16.mxu0 0
    %9734 = vmatpush1.bf16.msra.mxu0 %v7672
    %9735 = vmatprep.subr.bf16.mxu0 0
    %9736 = vmatpush1.bf16.msra.mxu0 %v7673
    %9737 = vmatprep.subr.bf16.mxu0 0
    %9738 = vmatpush1.bf16.msra.mxu0 %v7674
    %9739 = vmatprep.subr.bf16.mxu0 0
    %9740 = vmatpush1.bf16.msra.mxu0 %v7675
    %9741 = vmatprep.subr.bf16.mxu0 0
    %9742 = vmatpush1.bf16.msra.mxu0 %v7676
    %9743 = vmatprep.mubr.bf16.mxu0 %v3504
    %9744 = vmatmul.mubr.bf16.gmra.mrb[0].mxu0 %v3503
    %v9745 = vpop.f32.mrb[0].mxu0
    %v9746 = vadd.f32 %v9705, %v9745
    %v9747 = vpop.f32.mrb[0].mxu0
    %v9748 = vpop.f32.mrb[0].mxu0
    %v9749 = vadd.f32 %v9708, %v9748
    %v9750 = vpop.f32.mrb[0].mxu0
    %9751 = vdwg.mxu0
    %9752 = vmatprep.subr.bf16.mxu0 0
    %9753 = vmatpush1.bf16.msra.mxu0 %v7677
    %9754 = vmatprep.subr.bf16.mxu0 0
    %9755 = vmatpush1.bf16.msra.mxu0 %v7678
    %9756 = vmatprep.subr.bf16.mxu0 0
    %9757 = vmatpush1.bf16.msra.mxu0 %v7679
    %9758 = vmatprep.subr.bf16.mxu0 0
    %9759 = vmatpush1.bf16.msra.mxu0 %v7680
    %9760 = vmatprep.subr.bf16.mxu0 0
    %9761 = vmatpush1.bf16.msra.mxu0 %v7681
    %9762 = vmatprep.subr.bf16.mxu0 0
    %9763 = vmatpush1.bf16.msra.mxu0 %v7682
    %9764 = vmatprep.subr.bf16.mxu0 0
    %9765 = vmatpush1.bf16.msra.mxu0 %v7683
    %9766 = vmatprep.subr.bf16.mxu0 0
    %9767 = vmatpush1.bf16.msra.mxu0 %v7684
    %9768 = vmatprep.subr.bf16.mxu0 0
    %9769 = vmatpush1.bf16.msra.mxu0 %v7685
    %9770 = vmatprep.subr.bf16.mxu0 0
    %9771 = vmatpush1.bf16.msra.mxu0 %v7686
    %9772 = vmatprep.subr.bf16.mxu0 0
    %9773 = vmatpush1.bf16.msra.mxu0 %v7687
    %9774 = vmatprep.subr.bf16.mxu0 0
    %9775 = vmatpush1.bf16.msra.mxu0 %v7688
    %9776 = vmatprep.subr.bf16.mxu0 0
    %9777 = vmatpush1.bf16.msra.mxu0 %v7689
    %9778 = vmatprep.subr.bf16.mxu0 0
    %9779 = vmatpush1.bf16.msra.mxu0 %v7690
    %9780 = vmatprep.subr.bf16.mxu0 0
    %9781 = vmatpush1.bf16.msra.mxu0 %v7691
    %9782 = vmatprep.subr.bf16.mxu0 0
    %9783 = vmatpush1.bf16.msra.mxu0 %v7692
    %9784 = vmatprep.mubr.bf16.mxu0 %v3506
    %9785 = vmatmul.mubr.bf16.gmra.mrb[0].mxu0 %v3505
    %v9786 = vpop.f32.mrb[0].mxu0
    %v9787 = vadd.f32 %v9746, %v9786
    %v9788 = vpop.f32.mrb[0].mxu0
    %v9789 = vpop.f32.mrb[0].mxu0
    %v9790 = vadd.f32 %v9749, %v9789
    %v9791 = vpop.f32.mrb[0].mxu0
    %9792 = vdwg.mxu0
    %9793 = vmatprep.subr.bf16.mxu0 0
    %9794 = vmatpush1.bf16.msra.mxu0 %v7693
    %9795 = vmatprep.subr.bf16.mxu0 0
    %9796 = vmatpush1.bf16.msra.mxu0 %v7694
    %9797 = vmatprep.subr.bf16.mxu0 0
    %9798 = vmatpush1.bf16.msra.mxu0 %v7695
    %9799 = vmatprep.subr.bf16.mxu0 0
    %9800 = vmatpush1.bf16.msra.mxu0 %v7696
    %9801 = vmatprep.subr.bf16.mxu0 0
    %9802 = vmatpush1.bf16.msra.mxu0 %v7697
    %9803 = vmatprep.subr.bf16.mxu0 0
    %9804 = vmatpush1.bf16.msra.mxu0 %v7698
    %9805 = vmatprep.subr.bf16.mxu0 0
    %9806 = vmatpush1.bf16.msra.mxu0 %v7699
    %9807 = vmatprep.subr.bf16.mxu0 0
    %9808 = vmatpush1.bf16.msra.mxu0 %v7700
    %9809 = vmatprep.subr.bf16.mxu0 0
    %9810 = vmatpush1.bf16.msra.mxu0 %v7701
    %9811 = vmatprep.subr.bf16.mxu0 0
    %9812 = vmatpush1.bf16.msra.mxu0 %v7702
    %9813 = vmatprep.subr.bf16.mxu0 0
    %9814 = vmatpush1.bf16.msra.mxu0 %v7703
    %9815 = vmatprep.subr.bf16.mxu0 0
    %9816 = vmatpush1.bf16.msra.mxu0 %v7704
    %9817 = vmatprep.subr.bf16.mxu0 0
    %9818 = vmatpush1.bf16.msra.mxu0 %v7705
    %9819 = vmatprep.subr.bf16.mxu0 0
    %9820 = vmatpush1.bf16.msra.mxu0 %v7706
    %9821 = vmatprep.subr.bf16.mxu0 0
    %9822 = vmatpush1.bf16.msra.mxu0 %v7707
    %9823 = vmatprep.subr.bf16.mxu0 0
    %9824 = vmatpush1.bf16.msra.mxu0 %v7708
    %9825 = vmatprep.mubr.bf16.mxu0 %v3508
    %9826 = vmatmul.mubr.bf16.gmra.mrb[0].mxu0 %v3507
    %v9827 = vpop.f32.mrb[0].mxu0
    %v9828 = vadd.f32 %v9787, %v9827
    %v9829 = vpop.f32.mrb[0].mxu0
    %v9830 = vpop.f32.mrb[0].mxu0
    %v9831 = vadd.f32 %v9790, %v9830
    %v9832 = vpop.f32.mrb[0].mxu0
    %9833 = vdwg.mxu0
    %9834 = vmatprep.subr.bf16.mxu0 0
    %9835 = vmatpush1.bf16.msra.mxu0 %v7709
    %9836 = vmatprep.subr.bf16.mxu0 0
    %9837 = vmatpush1.bf16.msra.mxu0 %v7710
    %9838 = vmatprep.subr.bf16.mxu0 0
    %9839 = vmatpush1.bf16.msra.mxu0 %v7711
    %9840 = vmatprep.subr.bf16.mxu0 0
    %9841 = vmatpush1.bf16.msra.mxu0 %v7712
    %9842 = vmatprep.subr.bf16.mxu0 0
    %9843 = vmatpush1.bf16.msra.mxu0 %v7713
    %9844 = vmatprep.subr.bf16.mxu0 0
    %9845 = vmatpush1.bf16.msra.mxu0 %v7714
    %9846 = vmatprep.subr.bf16.mxu0 0
    %9847 = vmatpush1.bf16.msra.mxu0 %v7715
    %9848 = vmatprep.subr.bf16.mxu0 0
    %9849 = vmatpush1.bf16.msra.mxu0 %v7716
    %9850 = vmatprep.subr.bf16.mxu0 0
    %9851 = vmatpush1.bf16.msra.mxu0 0
    %9852 = vmatprep.subr.bf16.mxu0 0
    %9853 = vmatpush1.bf16.msra.mxu0 0
    %9854 = vmatprep.subr.bf16.mxu0 0
    %9855 = vmatpush1.bf16.msra.mxu0 0
    %9856 = vmatprep.subr.bf16.mxu0 0
    %9857 = vmatpush1.bf16.msra.mxu0 0
    %9858 = vmatprep.subr.bf16.mxu0 0
    %9859 = vmatpush1.bf16.msra.mxu0 0
    %9860 = vmatprep.subr.bf16.mxu0 0
    %9861 = vmatpush1.bf16.msra.mxu0 0
    %9862 = vmatprep.subr.bf16.mxu0 0
    %9863 = vmatpush1.bf16.msra.mxu0 0
    %9864 = vmatprep.subr.bf16.mxu0 0
    %9865 = vmatpush1.bf16.msra.mxu0 0
    %9866 = vmatprep.mubr.bf16.mxu0 0
    %9867 = vmatmul.mubr.bf16.gmra.mrb[0].mxu0 %v3509
    %v9868 = vpop.f32.mrb[0].mxu0
    %v9869 = vadd.f32 %v9828, %v9868
    %v9870 = vpop.f32.mrb[0].mxu0
    %v9871 = vpop.f32.mrb[0].mxu0
    %v9872 = vadd.f32 %v9831, %v9871
    %v9873 = vpop.f32.mrb[0].mxu0
    %9874 = vdwg.mxu0
    %s9875 = smul.u32 0, 16
    %s9876 = scalar_lea.vmem [#allocation2], %s9875
    %9877 = vst [vmem:[%s9876] sm:$0xff] %v9869
    %9878 = vst [vmem:[%s9876 + $0x8] sm:$0xff] %v9872
    %p9879 = scmp.eq.s32.totalorder 0, 0
    // Predicated region
    $region150: #{forward.1} parent=1 // pred_check
      %p9880 = pneg %p9879
    $region151: #{forward.1} parent=1 // pred_check_branch
      %9882 = sbr.rel (%p9880) target = $region153
    $region152: #{forward.1} parent=1 // pred_region
      %v9883 = vld [vmem:[#allocation2] sm:$0xff]
      %v9884 = vld [vmem:[#allocation2 + $0x8] sm:$0xff]
      %v9885 = vld [vmem:[#allocation20] sm:$0xff]
      %v9886 = vld [vmem:[#allocation20 + $0x8] sm:$0xff]
      %v9887 = vld [vmem:[#allocation20 + $0x10] sm:$0xff]
      %v9888 = vld [vmem:[#allocation20 + $0x18] sm:$0xff]
      %v9889 = vld [vmem:[#allocation20 + $0x20] sm:$0xff]
      %v9890 = vld [vmem:[#allocation20 + $0x28] sm:$0xff]
      %v9891 = vld [vmem:[#allocation20 + $0x30] sm:$0xff]
      %v9892 = vld [vmem:[#allocation20 + $0x38] sm:$0xff]
      %v9893 = vld [vmem:[#allocation20 + $0x40] sm:$0xff]
      %v9894 = vld [vmem:[#allocation20 + $0x48] sm:$0xff]
      %v9895 = vld [vmem:[#allocation20 + $0x50] sm:$0xff]
      %v9896 = vld [vmem:[#allocation20 + $0x58] sm:$0xff]
      %v9897 = vld [vmem:[#allocation20 + $0x60] sm:$0xff]
      %v9898 = vld [vmem:[#allocation20 + $0x68] sm:$0xff]
      %v9899 = vld [vmem:[#allocation20 + $0x70] sm:$0xff]
      %v9900 = vld [vmem:[#allocation20 + $0x78] sm:$0xff]
      %v9901 = vld [vmem:[#allocation24] sm:$0xff]
      %v9902 = vld [vmem:[#allocation24 + $0x8] sm:$0xff]
      %v9903 = vld [vmem:[#allocation24 + $0x10] sm:$0xff]
      %v9904 = vld [vmem:[#allocation24 + $0x18] sm:$0xff]
      %v9905 = vld [vmem:[#allocation21] sm:$0xff]
      %v9906 = vld [vmem:[#allocation21 + $0x8] sm:$0xff]
      %v9907 = vld [vmem:[#allocation21 + $0x10] sm:$0xff]
      %v9908 = vld [vmem:[#allocation21 + $0x18] sm:$0xff]
      %v9909 = vld [vmem:[#allocation26] sm:$0xff]
      %v9910 = vld [vmem:[#allocation26 + $0x8] sm:$0xff]
      %v9911 = vld [vmem:[#allocation26 + $0x10] sm:$0xff]
      %v9912 = vld [vmem:[#allocation26 + $0x18] sm:$0xff]
      %v9913 = vld [vmem:[#allocation27] sm:$0x1]
      %v9915 = vlaneseq
      %v9916 = vshrl.u32 %v9915, 7
      %v9917 = vsub.s32 0, %v9916
      %v9918 = vrot.slane %v9913, %v9917
      %v9920 = vld [vmem:[#allocation23] sm:$0x1]
      %v9922 = vlaneseq
      %v9923 = vshrl.u32 %v9922, 7
      %v9924 = vsub.s32 0, %v9923
      %v9925 = vrot.slane %v9920, %v9924
      %9927 = vmatprep.subr.mxu0 0.0
      %9928 = vmatpush1.msra.mxu0 %v9885
      %9929 = vmatprep.subr.mxu0 0.0
      %9930 = vmatpush1.msra.mxu0 %v9886
      %9931 = vmatprep.subr.mxu0 0.0
      %9932 = vmatpush1.msra.mxu0 %v9887
      %9933 = vmatprep.subr.mxu0 0.0
      %9934 = vmatpush1.msra.mxu0 %v9888
      %9935 = vmatprep.subr.mxu0 0.0
      %9936 = vmatpush1.msra.mxu0 %v9889
      %9937 = vmatprep.subr.mxu0 0.0
      %9938 = vmatpush1.msra.mxu0 %v9890
      %9939 = vmatprep.subr.mxu0 0.0
      %9940 = vmatpush1.msra.mxu0 %v9891
      %9941 = vmatprep.subr.mxu0 0.0
      %9942 = vmatpush1.msra.mxu0 %v9892
      %9943 = vmatprep.subr.mxu0 0.0
      %9944 = vmatpush1.msra.mxu0 %v9893
      %9945 = vmatprep.subr.mxu0 0.0
      %9946 = vmatpush1.msra.mxu0 %v9894
      %9947 = vmatprep.subr.mxu0 0.0
      %9948 = vmatpush1.msra.mxu0 %v9895
      %9949 = vmatprep.subr.mxu0 0.0
      %9950 = vmatpush1.msra.mxu0 %v9896
      %9951 = vmatprep.subr.mxu0 0.0
      %9952 = vmatpush1.msra.mxu0 %v9897
      %9953 = vmatprep.subr.mxu0 0.0
      %9954 = vmatpush1.msra.mxu0 %v9898
      %9955 = vmatprep.subr.mxu0 0.0
      %9956 = vmatpush1.msra.mxu0 %v9899
      %9957 = vmatprep.subr.mxu0 0.0
      %9958 = vmatpush1.msra.mxu0 %v9900
      %9959 = vmatprep.subr.mxu0 0.0
      %9960 = vmatpush1.msra.mxu0 0.0
      %9961 = vmatprep.subr.mxu0 0.0
      %9962 = vmatpush1.msra.mxu0 0.0
      %9963 = vmatprep.subr.mxu0 0.0
      %9964 = vmatpush1.msra.mxu0 0.0
      %9965 = vmatprep.subr.mxu0 0.0
      %9966 = vmatpush1.msra.mxu0 0.0
      %9967 = vmatprep.subr.mxu0 0.0
      %9968 = vmatpush1.msra.mxu0 0.0
      %9969 = vmatprep.subr.mxu0 0.0
      %9970 = vmatpush1.msra.mxu0 0.0
      %9971 = vmatprep.subr.mxu0 0.0
      %9972 = vmatpush1.msra.mxu0 0.0
      %9973 = vmatprep.subr.mxu0 0.0
      %9974 = vmatpush1.msra.mxu0 0.0
      %9975 = vmatprep.subr.mxu0 0.0
      %9976 = vmatpush1.msra.mxu0 0.0
      %9977 = vmatprep.subr.mxu0 0.0
      %9978 = vmatpush1.msra.mxu0 0.0
      %9979 = vmatprep.subr.mxu0 0.0
      %9980 = vmatpush1.msra.mxu0 0.0
      %9981 = vmatprep.subr.mxu0 0.0
      %9982 = vmatpush1.msra.mxu0 0.0
      %9983 = vmatprep.subr.mxu0 0.0
      %9984 = vmatpush1.msra.mxu0 0.0
      %9985 = vmatprep.subr.mxu0 0.0
      %9986 = vmatpush1.msra.mxu0 0.0
      %9987 = vmatprep.subr.mxu0 0.0
      %9988 = vmatpush1.msra.mxu0 0.0
      %9989 = vmatprep.subr.mxu0 0.0
      %9990 = vmatpush1.msra.mxu0 0.0
      %9991 = vmatprep.mubr.f32.mxu0 0.0
      %9992 = vmatmul.mubr.f32.gmra.mrb[0].mxu0 %v9883
      %v9993 = vpop.f32.mrb[0].mxu0
      %v9994 = vadd.f32 %v9925, %v9993
      %v9995 = vpop.f32.mrb[0].mxu0
      %9996 = vmatprep.mubr.f32.mxu0 0.0
      %9997 = vmatmul.mubr.f32.gmra.mrb[0].mxu0 %v9884
      %v9998 = vpop.f32.mrb[0].mxu0
      %v9999 = vadd.f32 %v9925, %v9998
      %v10000 = vpop.f32.mrb[0].mxu0
      %10001 = vdwg.mxu0
      %vm10002 = vcmask 261120
      %v10004 = vsel %vm10002, 0.0, 0
      %10006 = vmatprep.subr.mxu0 0.0
      %10007 = vmatpush1.msra.mxu0 %v9905
      %10008 = vmatprep.subr.mxu0 0.0
      %10009 = vmatpush1.msra.mxu0 %v9906
      %10010 = vmatprep.subr.mxu0 0.0
      %10011 = vmatpush1.msra.mxu0 %v9907
      %10012 = vmatprep.subr.mxu0 0.0
      %10013 = vmatpush1.msra.mxu0 %v9908
      %10014 = vmatprep.subr.mxu0 0.0
      %10015 = vmatpush1.msra.mxu0 0.0
      %10016 = vmatprep.subr.mxu0 0.0
      %10017 = vmatpush1.msra.mxu0 0.0
      %10018 = vmatprep.subr.mxu0 0.0
      %10019 = vmatpush1.msra.mxu0 0.0
      %10020 = vmatprep.subr.mxu0 0.0
      %10021 = vmatpush1.msra.mxu0 0.0
      %10022 = vmatprep.subr.mxu0 0.0
      %10023 = vmatpush1.msra.mxu0 0.0
      %10024 = vmatprep.subr.mxu0 0.0
      %10025 = vmatpush1.msra.mxu0 0.0
      %10026 = vmatprep.subr.mxu0 0.0
      %10027 = vmatpush1.msra.mxu0 0.0
      %10028 = vmatprep.subr.mxu0 0.0
      %10029 = vmatpush1.msra.mxu0 0.0
      %10030 = vmatprep.subr.mxu0 0.0
      %10031 = vmatpush1.msra.mxu0 0.0
      %10032 = vmatprep.subr.mxu0 0.0
      %10033 = vmatpush1.msra.mxu0 0.0
      %10034 = vmatprep.subr.mxu0 0.0
      %10035 = vmatpush1.msra.mxu0 0.0
      %10036 = vmatprep.subr.mxu0 0.0
      %10037 = vmatpush1.msra.mxu0 0.0
      %10038 = vmatprep.subr.mxu0 0.0
      %10039 = vmatpush1.msra.mxu0 0.0
      %10040 = vmatprep.subr.mxu0 0.0
      %10041 = vmatpush1.msra.mxu0 0.0
      %10042 = vmatprep.subr.mxu0 0.0
      %10043 = vmatpush1.msra.mxu0 0.0
      %10044 = vmatprep.subr.mxu0 0.0
      %10045 = vmatpush1.msra.mxu0 0.0
      %10046 = vmatprep.subr.mxu0 0.0
      %10047 = vmatpush1.msra.mxu0 0.0
      %10048 = vmatprep.subr.mxu0 0.0
      %10049 = vmatpush1.msra.mxu0 0.0
      %10050 = vmatprep.subr.mxu0 0.0
      %10051 = vmatpush1.msra.mxu0 0.0
      %10052 = vmatprep.subr.mxu0 0.0
      %10053 = vmatpush1.msra.mxu0 0.0
      %10054 = vmatprep.subr.mxu0 0.0
      %10055 = vmatpush1.msra.mxu0 0.0
      %10056 = vmatprep.subr.mxu0 0.0
      %10057 = vmatpush1.msra.mxu0 0.0
      %10058 = vmatprep.subr.mxu0 0.0
      %10059 = vmatpush1.msra.mxu0 0.0
      %10060 = vmatprep.subr.mxu0 0.0
      %10061 = vmatpush1.msra.mxu0 0.0
      %10062 = vmatprep.subr.mxu0 0.0
      %10063 = vmatpush1.msra.mxu0 0.0
      %10064 = vmatprep.subr.mxu0 0.0
      %10065 = vmatpush1.msra.mxu0 0.0
      %10066 = vmatprep.subr.mxu0 0.0
      %10067 = vmatpush1.msra.mxu0 0.0
      %10068 = vmatprep.subr.mxu0 0.0
      %10069 = vmatpush1.msra.mxu0 0.0
      %10070 = vmatprep.mubr.f32.mxu0 0.0
      %10071 = vmatmul.mubr.f32.gmra.mrb[0].mxu0 %v10004
      %v10072 = vpop.f32.mrb[0].mxu0
      %v10073 = vadd.f32 0.0, %v10072
      %v10074 = vpop.f32.mrb[0].mxu0
      %10075 = vdwg.mxu0
      %v10076 = vadd.f32 %v9994, %v10073
      %v10077 = vxor.u32 %v10076, 2147483648
      %v10078 = vmul.f32 %v10077, 1.442695
      %v10079 = vpow.pop %v10078
      %v10080 = vadd.f32 %v10079, 1.0
      %v10081 = vrcp.pop %v10080
      %v10082 = vmul.f32 1.0, %v10081
      %v10083 = vtanh.pop %v10076
      %v10084 = vmul.f32 %v10082, 0.0
      %10086 = vrot.lane.b32.xlu0 %v10083, 32
      %v10087 = vpop.permute.xlu0 %10086
      %v10089 = vmul.f32 %v10082, %v10087
      %10091 = vrot.lane.b32.xlu0 %v10089, 32
      %v10092 = vpop.permute.xlu0 %10091
      %v10094 = vadd.f32 %v10084, %v10092
      %v10095 = vtanh.pop %v10094
      %10097 = vrot.lane.b32.xlu0 %v10095, 32
      %v10098 = vpop.permute.xlu0 %10097
      %v10100 = vmul.f32 %v10082, %v10098
      %10101 = vmatprep.subr.mxu0 0.0
      %10102 = vmatpush1.msra.mxu0 %v9909
      %10103 = vmatprep.subr.mxu0 0.0
      %10104 = vmatpush1.msra.mxu0 %v9910
      %10105 = vmatprep.subr.mxu0 0.0
      %10106 = vmatpush1.msra.mxu0 %v9911
      %10107 = vmatprep.subr.mxu0 0.0
      %10108 = vmatpush1.msra.mxu0 %v9912
      %10109 = vmatprep.subr.mxu0 0.0
      %10110 = vmatpush1.msra.mxu0 0.0
      %10111 = vmatprep.subr.mxu0 0.0
      %10112 = vmatpush1.msra.mxu0 0.0
      %10113 = vmatprep.subr.mxu0 0.0
      %10114 = vmatpush1.msra.mxu0 0.0
      %10115 = vmatprep.subr.mxu0 0.0
      %10116 = vmatpush1.msra.mxu0 0.0
      %10117 = vmatprep.subr.mxu0 0.0
      %10118 = vmatpush1.msra.mxu0 0.0
      %10119 = vmatprep.subr.mxu0 0.0
      %10120 = vmatpush1.msra.mxu0 0.0
      %10121 = vmatprep.subr.mxu0 0.0
      %10122 = vmatpush1.msra.mxu0 0.0
      %10123 = vmatprep.subr.mxu0 0.0
      %10124 = vmatpush1.msra.mxu0 0.0
      %10125 = vmatprep.subr.mxu0 0.0
      %10126 = vmatpush1.msra.mxu0 0.0
      %10127 = vmatprep.subr.mxu0 0.0
      %10128 = vmatpush1.msra.mxu0 0.0
      %10129 = vmatprep.subr.mxu0 0.0
      %10130 = vmatpush1.msra.mxu0 0.0
      %10131 = vmatprep.subr.mxu0 0.0
      %10132 = vmatpush1.msra.mxu0 0.0
      %10133 = vmatprep.subr.mxu0 0.0
      %10134 = vmatpush1.msra.mxu0 0.0
      %10135 = vmatprep.subr.mxu0 0.0
      %10136 = vmatpush1.msra.mxu0 0.0
      %10137 = vmatprep.subr.mxu0 0.0
      %10138 = vmatpush1.msra.mxu0 0.0
      %10139 = vmatprep.subr.mxu0 0.0
      %10140 = vmatpush1.msra.mxu0 0.0
      %10141 = vmatprep.subr.mxu0 0.0
      %10142 = vmatpush1.msra.mxu0 0.0
      %10143 = vmatprep.subr.mxu0 0.0
      %10144 = vmatpush1.msra.mxu0 0.0
      %10145 = vmatprep.subr.mxu0 0.0
      %10146 = vmatpush1.msra.mxu0 0.0
      %10147 = vmatprep.subr.mxu0 0.0
      %10148 = vmatpush1.msra.mxu0 0.0
      %10149 = vmatprep.subr.mxu0 0.0
      %10150 = vmatpush1.msra.mxu0 0.0
      %10151 = vmatprep.subr.mxu0 0.0
      %10152 = vmatpush1.msra.mxu0 0.0
      %10153 = vmatprep.subr.mxu0 0.0
      %10154 = vmatpush1.msra.mxu0 0.0
      %10155 = vmatprep.subr.mxu0 0.0
      %10156 = vmatpush1.msra.mxu0 0.0
      %10157 = vmatprep.subr.mxu0 0.0
      %10158 = vmatpush1.msra.mxu0 0.0
      %10159 = vmatprep.subr.mxu0 0.0
      %10160 = vmatpush1.msra.mxu0 0.0
      %10161 = vmatprep.subr.mxu0 0.0
      %10162 = vmatpush1.msra.mxu0 0.0
      %10163 = vmatprep.subr.mxu0 0.0
      %10164 = vmatpush1.msra.mxu0 0.0
      %10165 = vmatprep.mubr.f32.mxu0 0.0
      %10166 = vmatmul.mubr.f32.gmra.mrb[0].mxu0 %v10004
      %v10167 = vpop.f32.mrb[0].mxu0
      %v10168 = vadd.f32 0.0, %v10167
      %v10169 = vpop.f32.mrb[0].mxu0
      %10170 = vdwg.mxu0
      %10172 = vrot.lane.b32.xlu0 %v10100, 64
      %v10173 = vpop.permute.xlu0 %10172
      %v10174 = vsel %vm10002, %v10173, 0
      %10176 = vmatprep.subr.mxu0 0.0
      %10177 = vmatpush1.msra.mxu0 %v9901
      %10178 = vmatprep.subr.mxu0 0.0
      %10179 = vmatpush1.msra.mxu0 %v9902
      %10180 = vmatprep.subr.mxu0 0.0
      %10181 = vmatpush1.msra.mxu0 %v9903
      %10182 = vmatprep.subr.mxu0 0.0
      %10183 = vmatpush1.msra.mxu0 %v9904
      %10184 = vmatprep.subr.mxu0 0.0
      %10185 = vmatpush1.msra.mxu0 0.0
      %10186 = vmatprep.subr.mxu0 0.0
      %10187 = vmatpush1.msra.mxu0 0.0
      %10188 = vmatprep.subr.mxu0 0.0
      %10189 = vmatpush1.msra.mxu0 0.0
      %10190 = vmatprep.subr.mxu0 0.0
      %10191 = vmatpush1.msra.mxu0 0.0
      %10192 = vmatprep.subr.mxu0 0.0
      %10193 = vmatpush1.msra.mxu0 0.0
      %10194 = vmatprep.subr.mxu0 0.0
      %10195 = vmatpush1.msra.mxu0 0.0
      %10196 = vmatprep.subr.mxu0 0.0
      %10197 = vmatpush1.msra.mxu0 0.0
      %10198 = vmatprep.subr.mxu0 0.0
      %10199 = vmatpush1.msra.mxu0 0.0
      %10200 = vmatprep.subr.mxu0 0.0
      %10201 = vmatpush1.msra.mxu0 0.0
      %10202 = vmatprep.subr.mxu0 0.0
      %10203 = vmatpush1.msra.mxu0 0.0
      %10204 = vmatprep.subr.mxu0 0.0
      %10205 = vmatpush1.msra.mxu0 0.0
      %10206 = vmatprep.subr.mxu0 0.0
      %10207 = vmatpush1.msra.mxu0 0.0
      %10208 = vmatprep.subr.mxu0 0.0
      %10209 = vmatpush1.msra.mxu0 0.0
      %10210 = vmatprep.subr.mxu0 0.0
      %10211 = vmatpush1.msra.mxu0 0.0
      %10212 = vmatprep.subr.mxu0 0.0
      %10213 = vmatpush1.msra.mxu0 0.0
      %10214 = vmatprep.subr.mxu0 0.0
      %10215 = vmatpush1.msra.mxu0 0.0
      %10216 = vmatprep.subr.mxu0 0.0
      %10217 = vmatpush1.msra.mxu0 0.0
      %10218 = vmatprep.subr.mxu0 0.0
      %10219 = vmatpush1.msra.mxu0 0.0
      %10220 = vmatprep.subr.mxu0 0.0
      %10221 = vmatpush1.msra.mxu0 0.0
      %10222 = vmatprep.subr.mxu0 0.0
      %10223 = vmatpush1.msra.mxu0 0.0
      %10224 = vmatprep.subr.mxu0 0.0
      %10225 = vmatpush1.msra.mxu0 0.0
      %10226 = vmatprep.subr.mxu0 0.0
      %10227 = vmatpush1.msra.mxu0 0.0
      %10228 = vmatprep.subr.mxu0 0.0
      %10229 = vmatpush1.msra.mxu0 0.0
      %10230 = vmatprep.subr.mxu0 0.0
      %10231 = vmatpush1.msra.mxu0 0.0
      %10232 = vmatprep.subr.mxu0 0.0
      %10233 = vmatpush1.msra.mxu0 0.0
      %10234 = vmatprep.subr.mxu0 0.0
      %10235 = vmatpush1.msra.mxu0 0.0
      %10236 = vmatprep.subr.mxu0 0.0
      %10237 = vmatpush1.msra.mxu0 0.0
      %10238 = vmatprep.subr.mxu0 0.0
      %10239 = vmatpush1.msra.mxu0 0.0
      %10240 = vmatprep.mubr.f32.mxu0 0.0
      %10241 = vmatmul.mubr.f32.gmra.mrb[0].mxu0 %v10174
      %v10242 = vpop.f32.mrb[0].mxu0
      %v10243 = vadd.f32 %v10168, %v10242
      %v10244 = vpop.f32.mrb[0].mxu0
      %10245 = vdwg.mxu0
      %v10246 = vadd.f32 %v10243, %v9918
      %v10247 = vxor.u32 %v10246, 2147483648
      %v10248 = vmul.f32 %v10247, 1.442695
      %v10249 = vpow.pop %v10248
      %v10250 = vadd.f32 %v10249, 1.0
      %v10251 = vrcp.pop %v10250
      %v10252 = vmul.f32 1.0, %v10251
      %v10253 = vtanh.pop %v10246
      %v10254 = vmul.f32 %v10252, 0.0
      %10256 = vrot.lane.b32.xlu0 %v10253, 32
      %v10257 = vpop.permute.xlu0 %10256
      %v10259 = vmul.f32 %v10252, %v10257
      %10261 = vrot.lane.b32.xlu0 %v10259, 32
      %v10262 = vpop.permute.xlu0 %10261
      %v10264 = vadd.f32 %v10254, %v10262
      %v10265 = vtanh.pop %v10264
      %10267 = vrot.lane.b32.xlu0 %v10265, 32
      %v10268 = vpop.permute.xlu0 %10267
      %v10270 = vmul.f32 %v10252, %v10268
      %10271 = vmatprep.subr.mxu0 0.0
      %10272 = vmatpush1.msra.mxu0 %v9905
      %10273 = vmatprep.subr.mxu0 0.0
      %10274 = vmatpush1.msra.mxu0 %v9906
      %10275 = vmatprep.subr.mxu0 0.0
      %10276 = vmatpush1.msra.mxu0 %v9907
      %10277 = vmatprep.subr.mxu0 0.0
      %10278 = vmatpush1.msra.mxu0 %v9908
      %10279 = vmatprep.subr.mxu0 0.0
      %10280 = vmatpush1.msra.mxu0 0.0
      %10281 = vmatprep.subr.mxu0 0.0
      %10282 = vmatpush1.msra.mxu0 0.0
      %10283 = vmatprep.subr.mxu0 0.0
      %10284 = vmatpush1.msra.mxu0 0.0
      %10285 = vmatprep.subr.mxu0 0.0
      %10286 = vmatpush1.msra.mxu0 0.0
      %10287 = vmatprep.subr.mxu0 0.0
      %10288 = vmatpush1.msra.mxu0 0.0
      %10289 = vmatprep.subr.mxu0 0.0
      %10290 = vmatpush1.msra.mxu0 0.0
      %10291 = vmatprep.subr.mxu0 0.0
      %10292 = vmatpush1.msra.mxu0 0.0
      %10293 = vmatprep.subr.mxu0 0.0
      %10294 = vmatpush1.msra.mxu0 0.0
      %10295 = vmatprep.subr.mxu0 0.0
      %10296 = vmatpush1.msra.mxu0 0.0
      %10297 = vmatprep.subr.mxu0 0.0
      %10298 = vmatpush1.msra.mxu0 0.0
      %10299 = vmatprep.subr.mxu0 0.0
      %10300 = vmatpush1.msra.mxu0 0.0
      %10301 = vmatprep.subr.mxu0 0.0
      %10302 = vmatpush1.msra.mxu0 0.0
      %10303 = vmatprep.subr.mxu0 0.0
      %10304 = vmatpush1.msra.mxu0 0.0
      %10305 = vmatprep.subr.mxu0 0.0
      %10306 = vmatpush1.msra.mxu0 0.0
      %10307 = vmatprep.subr.mxu0 0.0
      %10308 = vmatpush1.msra.mxu0 0.0
      %10309 = vmatprep.subr.mxu0 0.0
      %10310 = vmatpush1.msra.mxu0 0.0
      %10311 = vmatprep.subr.mxu0 0.0
      %10312 = vmatpush1.msra.mxu0 0.0
      %10313 = vmatprep.subr.mxu0 0.0
      %10314 = vmatpush1.msra.mxu0 0.0
      %10315 = vmatprep.subr.mxu0 0.0
      %10316 = vmatpush1.msra.mxu0 0.0
      %10317 = vmatprep.subr.mxu0 0.0
      %10318 = vmatpush1.msra.mxu0 0.0
      %10319 = vmatprep.subr.mxu0 0.0
      %10320 = vmatpush1.msra.mxu0 0.0
      %10321 = vmatprep.subr.mxu0 0.0
      %10322 = vmatpush1.msra.mxu0 0.0
      %10323 = vmatprep.subr.mxu0 0.0
      %10324 = vmatpush1.msra.mxu0 0.0
      %10325 = vmatprep.subr.mxu0 0.0
      %10326 = vmatpush1.msra.mxu0 0.0
      %10327 = vmatprep.subr.mxu0 0.0
      %10328 = vmatpush1.msra.mxu0 0.0
      %10329 = vmatprep.subr.mxu0 0.0
      %10330 = vmatpush1.msra.mxu0 0.0
      %10331 = vmatprep.subr.mxu0 0.0
      %10332 = vmatpush1.msra.mxu0 0.0
      %10333 = vmatprep.subr.mxu0 0.0
      %10334 = vmatpush1.msra.mxu0 0.0
      %10335 = vmatprep.mubr.f32.mxu0 0.0
      %10336 = vmatmul.mubr.f32.gmra.mrb[0].mxu0 %v10174
      %v10337 = vpop.f32.mrb[0].mxu0
      %v10338 = vadd.f32 0.0, %v10337
      %v10339 = vpop.f32.mrb[0].mxu0
      %10340 = vdwg.mxu0
      %v10342 = vrot.slane %v10338, 6
      %v10344 = vadd.f32 %v9994, %v10342
      %v10345 = vxor.u32 %v10344, 2147483648
      %v10346 = vmul.f32 %v10345, 1.442695
      %v10347 = vpow.pop %v10346
      %v10348 = vadd.f32 %v10347, 1.0
      %v10349 = vrcp.pop %v10348
      %v10350 = vmul.f32 1.0, %v10349
      %v10351 = vtanh.pop %v10344
      %v10353 = vrot.slane %v10094, 6
      %v10355 = vmul.f32 %v10350, %v10353
      %10357 = vrot.lane.b32.xlu0 %v10351, 32
      %v10358 = vpop.permute.xlu0 %10357
      %v10360 = vmul.f32 %v10350, %v10358
      %10362 = vrot.lane.b32.xlu0 %v10360, 32
      %v10363 = vpop.permute.xlu0 %10362
      %v10365 = vadd.f32 %v10355, %v10363
      %v10366 = vtanh.pop %v10365
      %10368 = vrot.lane.b32.xlu0 %v10366, 32
      %v10369 = vpop.permute.xlu0 %10368
      %v10371 = vmul.f32 %v10350, %v10369
      %10373 = vrot.lane.b32.xlu0 %v10270, 64
      %v10374 = vpop.permute.xlu0 %10373
      %v10375 = vsel %vm10002, %v10374, 0
      %10377 = vmatprep.subr.mxu0 0.0
      %10378 = vmatpush1.msra.mxu0 %v9909
      %10379 = vmatprep.subr.mxu0 0.0
      %10380 = vmatpush1.msra.mxu0 %v9910
      %10381 = vmatprep.subr.mxu0 0.0
      %10382 = vmatpush1.msra.mxu0 %v9911
      %10383 = vmatprep.subr.mxu0 0.0
      %10384 = vmatpush1.msra.mxu0 %v9912
      %10385 = vmatprep.subr.mxu0 0.0
      %10386 = vmatpush1.msra.mxu0 0.0
      %10387 = vmatprep.subr.mxu0 0.0
      %10388 = vmatpush1.msra.mxu0 0.0
      %10389 = vmatprep.subr.mxu0 0.0
      %10390 = vmatpush1.msra.mxu0 0.0
      %10391 = vmatprep.subr.mxu0 0.0
      %10392 = vmatpush1.msra.mxu0 0.0
      %10393 = vmatprep.subr.mxu0 0.0
      %10394 = vmatpush1.msra.mxu0 0.0
      %10395 = vmatprep.subr.mxu0 0.0
      %10396 = vmatpush1.msra.mxu0 0.0
      %10397 = vmatprep.subr.mxu0 0.0
      %10398 = vmatpush1.msra.mxu0 0.0
      %10399 = vmatprep.subr.mxu0 0.0
      %10400 = vmatpush1.msra.mxu0 0.0
      %10401 = vmatprep.subr.mxu0 0.0
      %10402 = vmatpush1.msra.mxu0 0.0
      %10403 = vmatprep.subr.mxu0 0.0
      %10404 = vmatpush1.msra.mxu0 0.0
      %10405 = vmatprep.subr.mxu0 0.0
      %10406 = vmatpush1.msra.mxu0 0.0
      %10407 = vmatprep.subr.mxu0 0.0
      %10408 = vmatpush1.msra.mxu0 0.0
      %10409 = vmatprep.subr.mxu0 0.0
      %10410 = vmatpush1.msra.mxu0 0.0
      %10411 = vmatprep.subr.mxu0 0.0
      %10412 = vmatpush1.msra.mxu0 0.0
      %10413 = vmatprep.subr.mxu0 0.0
      %10414 = vmatpush1.msra.mxu0 0.0
      %10415 = vmatprep.subr.mxu0 0.0
      %10416 = vmatpush1.msra.mxu0 0.0
      %10417 = vmatprep.subr.mxu0 0.0
      %10418 = vmatpush1.msra.mxu0 0.0
      %10419 = vmatprep.subr.mxu0 0.0
      %10420 = vmatpush1.msra.mxu0 0.0
      %10421 = vmatprep.subr.mxu0 0.0
      %10422 = vmatpush1.msra.mxu0 0.0
      %10423 = vmatprep.subr.mxu0 0.0
      %10424 = vmatpush1.msra.mxu0 0.0
      %10425 = vmatprep.subr.mxu0 0.0
      %10426 = vmatpush1.msra.mxu0 0.0
      %10427 = vmatprep.subr.mxu0 0.0
      %10428 = vmatpush1.msra.mxu0 0.0
      %10429 = vmatprep.subr.mxu0 0.0
      %10430 = vmatpush1.msra.mxu0 0.0
      %10431 = vmatprep.subr.mxu0 0.0
      %10432 = vmatpush1.msra.mxu0 0.0
      %10433 = vmatprep.subr.mxu0 0.0
      %10434 = vmatpush1.msra.mxu0 0.0
      %10435 = vmatprep.subr.mxu0 0.0
      %10436 = vmatpush1.msra.mxu0 0.0
      %10437 = vmatprep.subr.mxu0 0.0
      %10438 = vmatpush1.msra.mxu0 0.0
      %10439 = vmatprep.subr.mxu0 0.0
      %10440 = vmatpush1.msra.mxu0 0.0
      %10441 = vmatprep.mubr.f32.mxu0 0.0
      %10442 = vmatmul.mubr.f32.gmra.mrb[0].mxu0 %v10375
      %v10443 = vpop.f32.mrb[0].mxu0
      %v10444 = vadd.f32 0.0, %v10443
      %v10445 = vpop.f32.mrb[0].mxu0
      %10446 = vdwg.mxu0
      %v10448 = vrot.slane %v10371, 2
      %10449 = vrot.lane.b32.xlu0 %v10448, 64
      %v10450 = vpop.permute.xlu0 %10449
      %v10451 = vsel %vm10002, %v10450, 0
      %10453 = vmatprep.subr.mxu0 0.0
      %10454 = vmatpush1.msra.mxu0 %v9901
      %10455 = vmatprep.subr.mxu0 0.0
      %10456 = vmatpush1.msra.mxu0 %v9902
      %10457 = vmatprep.subr.mxu0 0.0
      %10458 = vmatpush1.msra.mxu0 %v9903
      %10459 = vmatprep.subr.mxu0 0.0
      %10460 = vmatpush1.msra.mxu0 %v9904
      %10461 = vmatprep.subr.mxu0 0.0
      %10462 = vmatpush1.msra.mxu0 0.0
      %10463 = vmatprep.subr.mxu0 0.0
      %10464 = vmatpush1.msra.mxu0 0.0
      %10465 = vmatprep.subr.mxu0 0.0
      %10466 = vmatpush1.msra.mxu0 0.0
      %10467 = vmatprep.subr.mxu0 0.0
      %10468 = vmatpush1.msra.mxu0 0.0
      %10469 = vmatprep.subr.mxu0 0.0
      %10470 = vmatpush1.msra.mxu0 0.0
      %10471 = vmatprep.subr.mxu0 0.0
      %10472 = vmatpush1.msra.mxu0 0.0
      %10473 = vmatprep.subr.mxu0 0.0
      %10474 = vmatpush1.msra.mxu0 0.0
      %10475 = vmatprep.subr.mxu0 0.0
      %10476 = vmatpush1.msra.mxu0 0.0
      %10477 = vmatprep.subr.mxu0 0.0
      %10478 = vmatpush1.msra.mxu0 0.0
      %10479 = vmatprep.subr.mxu0 0.0
      %10480 = vmatpush1.msra.mxu0 0.0
      %10481 = vmatprep.subr.mxu0 0.0
      %10482 = vmatpush1.msra.mxu0 0.0
      %10483 = vmatprep.subr.mxu0 0.0
      %10484 = vmatpush1.msra.mxu0 0.0
      %10485 = vmatprep.subr.mxu0 0.0
      %10486 = vmatpush1.msra.mxu0 0.0
      %10487 = vmatprep.subr.mxu0 0.0
      %10488 = vmatpush1.msra.mxu0 0.0
      %10489 = vmatprep.subr.mxu0 0.0
      %10490 = vmatpush1.msra.mxu0 0.0
      %10491 = vmatprep.subr.mxu0 0.0
      %10492 = vmatpush1.msra.mxu0 0.0
      %10493 = vmatprep.subr.mxu0 0.0
      %10494 = vmatpush1.msra.mxu0 0.0
      %10495 = vmatprep.subr.mxu0 0.0
      %10496 = vmatpush1.msra.mxu0 0.0
      %10497 = vmatprep.subr.mxu0 0.0
      %10498 = vmatpush1.msra.mxu0 0.0
      %10499 = vmatprep.subr.mxu0 0.0
      %10500 = vmatpush1.msra.mxu0 0.0
      %10501 = vmatprep.subr.mxu0 0.0
      %10502 = vmatpush1.msra.mxu0 0.0
      %10503 = vmatprep.subr.mxu0 0.0
      %10504 = vmatpush1.msra.mxu0 0.0
      %10505 = vmatprep.subr.mxu0 0.0
      %10506 = vmatpush1.msra.mxu0 0.0
      %10507 = vmatprep.subr.mxu0 0.0
      %10508 = vmatpush1.msra.mxu0 0.0
      %10509 = vmatprep.subr.mxu0 0.0
      %10510 = vmatpush1.msra.mxu0 0.0
      %10511 = vmatprep.subr.mxu0 0.0
      %10512 = vmatpush1.msra.mxu0 0.0
      %10513 = vmatprep.subr.mxu0 0.0
      %10514 = vmatpush1.msra.mxu0 0.0
      %10515 = vmatprep.subr.mxu0 0.0
      %10516 = vmatpush1.msra.mxu0 0.0
      %10517 = vmatprep.mubr.f32.mxu0 0.0
      %10518 = vmatmul.mubr.f32.gmra.mrb[0].mxu0 %v10451
      %v10519 = vpop.f32.mrb[0].mxu0
      %v10520 = vadd.f32 %v10444, %v10519
      %v10521 = vpop.f32.mrb[0].mxu0
      %10522 = vdwg.mxu0
      %v10523 = vadd.f32 %v10520, %v9918
      %v10524 = vxor.u32 %v10523, 2147483648
      %v10525 = vmul.f32 %v10524, 1.442695
      %v10526 = vpow.pop %v10525
      %v10527 = vadd.f32 %v10526, 1.0
      %v10528 = vrcp.pop %v10527
      %v10529 = vmul.f32 1.0, %v10528
      %v10530 = vtanh.pop %v10523
      %v10531 = vmul.f32 %v10529, %v10264
      %10533 = vrot.lane.b32.xlu0 %v10530, 32
      %v10534 = vpop.permute.xlu0 %10533
      %v10536 = vmul.f32 %v10529, %v10534
      %10538 = vrot.lane.b32.xlu0 %v10536, 32
      %v10539 = vpop.permute.xlu0 %10538
      %v10541 = vadd.f32 %v10531, %v10539
      %v10542 = vtanh.pop %v10541
      %10544 = vrot.lane.b32.xlu0 %v10542, 32
      %v10545 = vpop.permute.xlu0 %10544
      %v10547 = vmul.f32 %v10529, %v10545
      %10548 = vmatprep.subr.mxu0 0.0
      %10549 = vmatpush1.msra.mxu0 %v9905
      %10550 = vmatprep.subr.mxu0 0.0
      %10551 = vmatpush1.msra.mxu0 %v9906
      %10552 = vmatprep.subr.mxu0 0.0
      %10553 = vmatpush1.msra.mxu0 %v9907
      %10554 = vmatprep.subr.mxu0 0.0
      %10555 = vmatpush1.msra.mxu0 %v9908
      %10556 = vmatprep.subr.mxu0 0.0
      %10557 = vmatpush1.msra.mxu0 0.0
      %10558 = vmatprep.subr.mxu0 0.0
      %10559 = vmatpush1.msra.mxu0 0.0
      %10560 = vmatprep.subr.mxu0 0.0
      %10561 = vmatpush1.msra.mxu0 0.0
      %10562 = vmatprep.subr.mxu0 0.0
      %10563 = vmatpush1.msra.mxu0 0.0
      %10564 = vmatprep.subr.mxu0 0.0
      %10565 = vmatpush1.msra.mxu0 0.0
      %10566 = vmatprep.subr.mxu0 0.0
      %10567 = vmatpush1.msra.mxu0 0.0
      %10568 = vmatprep.subr.mxu0 0.0
      %10569 = vmatpush1.msra.mxu0 0.0
      %10570 = vmatprep.subr.mxu0 0.0
      %10571 = vmatpush1.msra.mxu0 0.0
      %10572 = vmatprep.subr.mxu0 0.0
      %10573 = vmatpush1.msra.mxu0 0.0
      %10574 = vmatprep.subr.mxu0 0.0
      %10575 = vmatpush1.msra.mxu0 0.0
      %10576 = vmatprep.subr.mxu0 0.0
      %10577 = vmatpush1.msra.mxu0 0.0
      %10578 = vmatprep.subr.mxu0 0.0
      %10579 = vmatpush1.msra.mxu0 0.0
      %10580 = vmatprep.subr.mxu0 0.0
      %10581 = vmatpush1.msra.mxu0 0.0
      %10582 = vmatprep.subr.mxu0 0.0
      %10583 = vmatpush1.msra.mxu0 0.0
      %10584 = vmatprep.subr.mxu0 0.0
      %10585 = vmatpush1.msra.mxu0 0.0
      %10586 = vmatprep.subr.mxu0 0.0
      %10587 = vmatpush1.msra.mxu0 0.0
      %10588 = vmatprep.subr.mxu0 0.0
      %10589 = vmatpush1.msra.mxu0 0.0
      %10590 = vmatprep.subr.mxu0 0.0
      %10591 = vmatpush1.msra.mxu0 0.0
      %10592 = vmatprep.subr.mxu0 0.0
      %10593 = vmatpush1.msra.mxu0 0.0
      %10594 = vmatprep.subr.mxu0 0.0
      %10595 = vmatpush1.msra.mxu0 0.0
      %10596 = vmatprep.subr.mxu0 0.0
      %10597 = vmatpush1.msra.mxu0 0.0
      %10598 = vmatprep.subr.mxu0 0.0
      %10599 = vmatpush1.msra.mxu0 0.0
      %10600 = vmatprep.subr.mxu0 0.0
      %10601 = vmatpush1.msra.mxu0 0.0
      %10602 = vmatprep.subr.mxu0 0.0
      %10603 = vmatpush1.msra.mxu0 0.0
      %10604 = vmatprep.subr.mxu0 0.0
      %10605 = vmatpush1.msra.mxu0 0.0
      %10606 = vmatprep.subr.mxu0 0.0
      %10607 = vmatpush1.msra.mxu0 0.0
      %10608 = vmatprep.subr.mxu0 0.0
      %10609 = vmatpush1.msra.mxu0 0.0
      %10610 = vmatprep.subr.mxu0 0.0
      %10611 = vmatpush1.msra.mxu0 0.0
      %10612 = vmatprep.mubr.f32.mxu0 0.0
      %10613 = vmatmul.mubr.f32.gmra.mrb[0].mxu0 %v10451
      %v10614 = vpop.f32.mrb[0].mxu0
      %v10615 = vadd.f32 0.0, %v10614
      %v10616 = vpop.f32.mrb[0].mxu0
      %10617 = vdwg.mxu0
      %v10619 = vrot.slane %v10615, 4
      %v10621 = vadd.f32 %v9994, %v10619
      %v10622 = vxor.u32 %v10621, 2147483648
      %v10623 = vmul.f32 %v10622, 1.442695
      %v10624 = vpow.pop %v10623
      %v10625 = vadd.f32 %v10624, 1.0
      %v10626 = vrcp.pop %v10625
      %v10627 = vmul.f32 1.0, %v10626
      %v10628 = vtanh.pop %v10621
      %v10630 = vrot.slane %v10365, 6
      %v10632 = vmul.f32 %v10627, %v10630
      %10634 = vrot.lane.b32.xlu0 %v10628, 32
      %v10635 = vpop.permute.xlu0 %10634
      %v10637 = vmul.f32 %v10627, %v10635
      %10639 = vrot.lane.b32.xlu0 %v10637, 32
      %v10640 = vpop.permute.xlu0 %10639
      %v10642 = vadd.f32 %v10632, %v10640
      %v10643 = vtanh.pop %v10642
      %10645 = vrot.lane.b32.xlu0 %v10643, 32
      %v10646 = vpop.permute.xlu0 %10645
      %v10648 = vmul.f32 %v10627, %v10646
      %10650 = vrot.lane.b32.xlu0 %v10547, 64
      %v10651 = vpop.permute.xlu0 %10650
      %v10652 = vsel %vm10002, %v10651, 0
      %10654 = vmatprep.subr.mxu0 0.0
      %10655 = vmatpush1.msra.mxu0 %v9909
      %10656 = vmatprep.subr.mxu0 0.0
      %10657 = vmatpush1.msra.mxu0 %v9910
      %10658 = vmatprep.subr.mxu0 0.0
      %10659 = vmatpush1.msra.mxu0 %v9911
      %10660 = vmatprep.subr.mxu0 0.0
      %10661 = vmatpush1.msra.mxu0 %v9912
      %10662 = vmatprep.subr.mxu0 0.0
      %10663 = vmatpush1.msra.mxu0 0.0
      %10664 = vmatprep.subr.mxu0 0.0
      %10665 = vmatpush1.msra.mxu0 0.0
      %10666 = vmatprep.subr.mxu0 0.0
      %10667 = vmatpush1.msra.mxu0 0.0
      %10668 = vmatprep.subr.mxu0 0.0
      %10669 = vmatpush1.msra.mxu0 0.0
      %10670 = vmatprep.subr.mxu0 0.0
      %10671 = vmatpush1.msra.mxu0 0.0
      %10672 = vmatprep.subr.mxu0 0.0
      %10673 = vmatpush1.msra.mxu0 0.0
      %10674 = vmatprep.subr.mxu0 0.0
      %10675 = vmatpush1.msra.mxu0 0.0
      %10676 = vmatprep.subr.mxu0 0.0
      %10677 = vmatpush1.msra.mxu0 0.0
      %10678 = vmatprep.subr.mxu0 0.0
      %10679 = vmatpush1.msra.mxu0 0.0
      %10680 = vmatprep.subr.mxu0 0.0
      %10681 = vmatpush1.msra.mxu0 0.0
      %10682 = vmatprep.subr.mxu0 0.0
      %10683 = vmatpush1.msra.mxu0 0.0
      %10684 = vmatprep.subr.mxu0 0.0
      %10685 = vmatpush1.msra.mxu0 0.0
      %10686 = vmatprep.subr.mxu0 0.0
      %10687 = vmatpush1.msra.mxu0 0.0
      %10688 = vmatprep.subr.mxu0 0.0
      %10689 = vmatpush1.msra.mxu0 0.0
      %10690 = vmatprep.subr.mxu0 0.0
      %10691 = vmatpush1.msra.mxu0 0.0
      %10692 = vmatprep.subr.mxu0 0.0
      %10693 = vmatpush1.msra.mxu0 0.0
      %10694 = vmatprep.subr.mxu0 0.0
      %10695 = vmatpush1.msra.mxu0 0.0
      %10696 = vmatprep.subr.mxu0 0.0
      %10697 = vmatpush1.msra.mxu0 0.0
      %10698 = vmatprep.subr.mxu0 0.0
      %10699 = vmatpush1.msra.mxu0 0.0
      %10700 = vmatprep.subr.mxu0 0.0
      %10701 = vmatpush1.msra.mxu0 0.0
      %10702 = vmatprep.subr.mxu0 0.0
      %10703 = vmatpush1.msra.mxu0 0.0
      %10704 = vmatprep.subr.mxu0 0.0
      %10705 = vmatpush1.msra.mxu0 0.0
      %10706 = vmatprep.subr.mxu0 0.0
      %10707 = vmatpush1.msra.mxu0 0.0
      %10708 = vmatprep.subr.mxu0 0.0
      %10709 = vmatpush1.msra.mxu0 0.0
      %10710 = vmatprep.subr.mxu0 0.0
      %10711 = vmatpush1.msra.mxu0 0.0
      %10712 = vmatprep.subr.mxu0 0.0
      %10713 = vmatpush1.msra.mxu0 0.0
      %10714 = vmatprep.subr.mxu0 0.0
      %10715 = vmatpush1.msra.mxu0 0.0
      %10716 = vmatprep.subr.mxu0 0.0
      %10717 = vmatpush1.msra.mxu0 0.0
      %10718 = vmatprep.mubr.f32.mxu0 0.0
      %10719 = vmatmul.mubr.f32.gmra.mrb[0].mxu0 %v10652
      %v10720 = vpop.f32.mrb[0].mxu0
      %v10721 = vadd.f32 0.0, %v10720
      %v10722 = vpop.f32.mrb[0].mxu0
      %10723 = vdwg.mxu0
      %v10725 = vrot.slane %v10648, 4
      %10726 = vrot.lane.b32.xlu0 %v10725, 64
      %v10727 = vpop.permute.xlu0 %10726
      %v10728 = vsel %vm10002, %v10727, 0
      %10730 = vmatprep.subr.mxu0 0.0
      %10731 = vmatpush1.msra.mxu0 %v9901
      %10732 = vmatprep.subr.mxu0 0.0
      %10733 = vmatpush1.msra.mxu0 %v9902
      %10734 = vmatprep.subr.mxu0 0.0
      %10735 = vmatpush1.msra.mxu0 %v9903
      %10736 = vmatprep.subr.mxu0 0.0
      %10737 = vmatpush1.msra.mxu0 %v9904
      %10738 = vmatprep.subr.mxu0 0.0
      %10739 = vmatpush1.msra.mxu0 0.0
      %10740 = vmatprep.subr.mxu0 0.0
      %10741 = vmatpush1.msra.mxu0 0.0
      %10742 = vmatprep.subr.mxu0 0.0
      %10743 = vmatpush1.msra.mxu0 0.0
      %10744 = vmatprep.subr.mxu0 0.0
      %10745 = vmatpush1.msra.mxu0 0.0
      %10746 = vmatprep.subr.mxu0 0.0
      %10747 = vmatpush1.msra.mxu0 0.0
      %10748 = vmatprep.subr.mxu0 0.0
      %10749 = vmatpush1.msra.mxu0 0.0
      %10750 = vmatprep.subr.mxu0 0.0
      %10751 = vmatpush1.msra.mxu0 0.0
      %10752 = vmatprep.subr.mxu0 0.0
      %10753 = vmatpush1.msra.mxu0 0.0
      %10754 = vmatprep.subr.mxu0 0.0
      %10755 = vmatpush1.msra.mxu0 0.0
      %10756 = vmatprep.subr.mxu0 0.0
      %10757 = vmatpush1.msra.mxu0 0.0
      %10758 = vmatprep.subr.mxu0 0.0
      %10759 = vmatpush1.msra.mxu0 0.0
      %10760 = vmatprep.subr.mxu0 0.0
      %10761 = vmatpush1.msra.mxu0 0.0
      %10762 = vmatprep.subr.mxu0 0.0
      %10763 = vmatpush1.msra.mxu0 0.0
      %10764 = vmatprep.subr.mxu0 0.0
      %10765 = vmatpush1.msra.mxu0 0.0
      %10766 = vmatprep.subr.mxu0 0.0
      %10767 = vmatpush1.msra.mxu0 0.0
      %10768 = vmatprep.subr.mxu0 0.0
      %10769 = vmatpush1.msra.mxu0 0.0
      %10770 = vmatprep.subr.mxu0 0.0
      %10771 = vmatpush1.msra.mxu0 0.0
      %10772 = vmatprep.subr.mxu0 0.0
      %10773 = vmatpush1.msra.mxu0 0.0
      %10774 = vmatprep.subr.mxu0 0.0
      %10775 = vmatpush1.msra.mxu0 0.0
      %10776 = vmatprep.subr.mxu0 0.0
      %10777 = vmatpush1.msra.mxu0 0.0
      %10778 = vmatprep.subr.mxu0 0.0
      %10779 = vmatpush1.msra.mxu0 0.0
      %10780 = vmatprep.subr.mxu0 0.0
      %10781 = vmatpush1.msra.mxu0 0.0
      %10782 = vmatprep.subr.mxu0 0.0
      %10783 = vmatpush1.msra.mxu0 0.0
      %10784 = vmatprep.subr.mxu0 0.0
      %10785 = vmatpush1.msra.mxu0 0.0
      %10786 = vmatprep.subr.mxu0 0.0
      %10787 = vmatpush1.msra.mxu0 0.0
      %10788 = vmatprep.subr.mxu0 0.0
      %10789 = vmatpush1.msra.mxu0 0.0
      %10790 = vmatprep.subr.mxu0 0.0
      %10791 = vmatpush1.msra.mxu0 0.0
      %10792 = vmatprep.subr.mxu0 0.0
      %10793 = vmatpush1.msra.mxu0 0.0
      %10794 = vmatprep.mubr.f32.mxu0 0.0
      %10795 = vmatmul.mubr.f32.gmra.mrb[0].mxu0 %v10728
      %v10796 = vpop.f32.mrb[0].mxu0
      %v10797 = vadd.f32 %v10721, %v10796
      %v10798 = vpop.f32.mrb[0].mxu0
      %10799 = vdwg.mxu0
      %v10800 = vadd.f32 %v10797, %v9918
      %v10801 = vxor.u32 %v10800, 2147483648
      %v10802 = vmul.f32 %v10801, 1.442695
      %v10803 = vpow.pop %v10802
      %v10804 = vadd.f32 %v10803, 1.0
      %v10805 = vrcp.pop %v10804
      %v10806 = vmul.f32 1.0, %v10805
      %v10807 = vtanh.pop %v10800
      %v10808 = vmul.f32 %v10806, %v10541
      %10810 = vrot.lane.b32.xlu0 %v10807, 32
      %v10811 = vpop.permute.xlu0 %10810
      %v10813 = vmul.f32 %v10806, %v10811
      %10815 = vrot.lane.b32.xlu0 %v10813, 32
      %v10816 = vpop.permute.xlu0 %10815
      %v10818 = vadd.f32 %v10808, %v10816
      %v10819 = vtanh.pop %v10818
      %10821 = vrot.lane.b32.xlu0 %v10819, 32
      %v10822 = vpop.permute.xlu0 %10821
      %v10824 = vmul.f32 %v10806, %v10822
      %10825 = vmatprep.subr.mxu0 0.0
      %10826 = vmatpush1.msra.mxu0 %v9905
      %10827 = vmatprep.subr.mxu0 0.0
      %10828 = vmatpush1.msra.mxu0 %v9906
      %10829 = vmatprep.subr.mxu0 0.0
      %10830 = vmatpush1.msra.mxu0 %v9907
      %10831 = vmatprep.subr.mxu0 0.0
      %10832 = vmatpush1.msra.mxu0 %v9908
      %10833 = vmatprep.subr.mxu0 0.0
      %10834 = vmatpush1.msra.mxu0 0.0
      %10835 = vmatprep.subr.mxu0 0.0
      %10836 = vmatpush1.msra.mxu0 0.0
      %10837 = vmatprep.subr.mxu0 0.0
      %10838 = vmatpush1.msra.mxu0 0.0
      %10839 = vmatprep.subr.mxu0 0.0
      %10840 = vmatpush1.msra.mxu0 0.0
      %10841 = vmatprep.subr.mxu0 0.0
      %10842 = vmatpush1.msra.mxu0 0.0
      %10843 = vmatprep.subr.mxu0 0.0
      %10844 = vmatpush1.msra.mxu0 0.0
      %10845 = vmatprep.subr.mxu0 0.0
      %10846 = vmatpush1.msra.mxu0 0.0
      %10847 = vmatprep.subr.mxu0 0.0
      %10848 = vmatpush1.msra.mxu0 0.0
      %10849 = vmatprep.subr.mxu0 0.0
      %10850 = vmatpush1.msra.mxu0 0.0
      %10851 = vmatprep.subr.mxu0 0.0
      %10852 = vmatpush1.msra.mxu0 0.0
      %10853 = vmatprep.subr.mxu0 0.0
      %10854 = vmatpush1.msra.mxu0 0.0
      %10855 = vmatprep.subr.mxu0 0.0
      %10856 = vmatpush1.msra.mxu0 0.0
      %10857 = vmatprep.subr.mxu0 0.0
      %10858 = vmatpush1.msra.mxu0 0.0
      %10859 = vmatprep.subr.mxu0 0.0
      %10860 = vmatpush1.msra.mxu0 0.0
      %10861 = vmatprep.subr.mxu0 0.0
      %10862 = vmatpush1.msra.mxu0 0.0
      %10863 = vmatprep.subr.mxu0 0.0
      %10864 = vmatpush1.msra.mxu0 0.0
      %10865 = vmatprep.subr.mxu0 0.0
      %10866 = vmatpush1.msra.mxu0 0.0
      %10867 = vmatprep.subr.mxu0 0.0
      %10868 = vmatpush1.msra.mxu0 0.0
      %10869 = vmatprep.subr.mxu0 0.0
      %10870 = vmatpush1.msra.mxu0 0.0
      %10871 = vmatprep.subr.mxu0 0.0
      %10872 = vmatpush1.msra.mxu0 0.0
      %10873 = vmatprep.subr.mxu0 0.0
      %10874 = vmatpush1.msra.mxu0 0.0
      %10875 = vmatprep.subr.mxu0 0.0
      %10876 = vmatpush1.msra.mxu0 0.0
      %10877 = vmatprep.subr.mxu0 0.0
      %10878 = vmatpush1.msra.mxu0 0.0
      %10879 = vmatprep.subr.mxu0 0.0
      %10880 = vmatpush1.msra.mxu0 0.0
      %10881 = vmatprep.subr.mxu0 0.0
      %10882 = vmatpush1.msra.mxu0 0.0
      %10883 = vmatprep.subr.mxu0 0.0
      %10884 = vmatpush1.msra.mxu0 0.0
      %10885 = vmatprep.subr.mxu0 0.0
      %10886 = vmatpush1.msra.mxu0 0.0
      %10887 = vmatprep.subr.mxu0 0.0
      %10888 = vmatpush1.msra.mxu0 0.0
      %10889 = vmatprep.mubr.f32.mxu0 0.0
      %10890 = vmatmul.mubr.f32.gmra.mrb[0].mxu0 %v10728
      %v10891 = vpop.f32.mrb[0].mxu0
      %v10892 = vadd.f32 0.0, %v10891
      %v10893 = vpop.f32.mrb[0].mxu0
      %10894 = vdwg.mxu0
      %v10896 = vrot.slane %v10892, 2
      %v10898 = vadd.f32 %v9994, %v10896
      %v10899 = vxor.u32 %v10898, 2147483648
      %v10900 = vmul.f32 %v10899, 1.442695
      %v10901 = vpow.pop %v10900
      %v10902 = vadd.f32 %v10901, 1.0
      %v10903 = vrcp.pop %v10902
      %v10904 = vmul.f32 1.0, %v10903
      %v10905 = vtanh.pop %v10898
      %v10907 = vrot.slane %v10642, 6
      %v10909 = vmul.f32 %v10904, %v10907
      %10911 = vrot.lane.b32.xlu0 %v10905, 32
      %v10912 = vpop.permute.xlu0 %10911
      %v10914 = vmul.f32 %v10904, %v10912
      %10916 = vrot.lane.b32.xlu0 %v10914, 32
      %v10917 = vpop.permute.xlu0 %10916
      %v10919 = vadd.f32 %v10909, %v10917
      %v10920 = vtanh.pop %v10919
      %10922 = vrot.lane.b32.xlu0 %v10920, 32
      %v10923 = vpop.permute.xlu0 %10922
      %v10925 = vmul.f32 %v10904, %v10923
      %10927 = vrot.lane.b32.xlu0 %v10824, 64
      %v10928 = vpop.permute.xlu0 %10927
      %v10929 = vsel %vm10002, %v10928, 0
      %10931 = vmatprep.subr.mxu0 0.0
      %10932 = vmatpush1.msra.mxu0 %v9909
      %10933 = vmatprep.subr.mxu0 0.0
      %10934 = vmatpush1.msra.mxu0 %v9910
      %10935 = vmatprep.subr.mxu0 0.0
      %10936 = vmatpush1.msra.mxu0 %v9911
      %10937 = vmatprep.subr.mxu0 0.0
      %10938 = vmatpush1.msra.mxu0 %v9912
      %10939 = vmatprep.subr.mxu0 0.0
      %10940 = vmatpush1.msra.mxu0 0.0
      %10941 = vmatprep.subr.mxu0 0.0
      %10942 = vmatpush1.msra.mxu0 0.0
      %10943 = vmatprep.subr.mxu0 0.0
      %10944 = vmatpush1.msra.mxu0 0.0
      %10945 = vmatprep.subr.mxu0 0.0
      %10946 = vmatpush1.msra.mxu0 0.0
      %10947 = vmatprep.subr.mxu0 0.0
      %10948 = vmatpush1.msra.mxu0 0.0
      %10949 = vmatprep.subr.mxu0 0.0
      %10950 = vmatpush1.msra.mxu0 0.0
      %10951 = vmatprep.subr.mxu0 0.0
      %10952 = vmatpush1.msra.mxu0 0.0
      %10953 = vmatprep.subr.mxu0 0.0
      %10954 = vmatpush1.msra.mxu0 0.0
      %10955 = vmatprep.subr.mxu0 0.0
      %10956 = vmatpush1.msra.mxu0 0.0
      %10957 = vmatprep.subr.mxu0 0.0
      %10958 = vmatpush1.msra.mxu0 0.0
      %10959 = vmatprep.subr.mxu0 0.0
      %10960 = vmatpush1.msra.mxu0 0.0
      %10961 = vmatprep.subr.mxu0 0.0
      %10962 = vmatpush1.msra.mxu0 0.0
      %10963 = vmatprep.subr.mxu0 0.0
      %10964 = vmatpush1.msra.mxu0 0.0
      %10965 = vmatprep.subr.mxu0 0.0
      %10966 = vmatpush1.msra.mxu0 0.0
      %10967 = vmatprep.subr.mxu0 0.0
      %10968 = vmatpush1.msra.mxu0 0.0
      %10969 = vmatprep.subr.mxu0 0.0
      %10970 = vmatpush1.msra.mxu0 0.0
      %10971 = vmatprep.subr.mxu0 0.0
      %10972 = vmatpush1.msra.mxu0 0.0
      %10973 = vmatprep.subr.mxu0 0.0
      %10974 = vmatpush1.msra.mxu0 0.0
      %10975 = vmatprep.subr.mxu0 0.0
      %10976 = vmatpush1.msra.mxu0 0.0
      %10977 = vmatprep.subr.mxu0 0.0
      %10978 = vmatpush1.msra.mxu0 0.0
      %10979 = vmatprep.subr.mxu0 0.0
      %10980 = vmatpush1.msra.mxu0 0.0
      %10981 = vmatprep.subr.mxu0 0.0
      %10982 = vmatpush1.msra.mxu0 0.0
      %10983 = vmatprep.subr.mxu0 0.0
      %10984 = vmatpush1.msra.mxu0 0.0
      %10985 = vmatprep.subr.mxu0 0.0
      %10986 = vmatpush1.msra.mxu0 0.0
      %10987 = vmatprep.subr.mxu0 0.0
      %10988 = vmatpush1.msra.mxu0 0.0
      %10989 = vmatprep.subr.mxu0 0.0
      %10990 = vmatpush1.msra.mxu0 0.0
      %10991 = vmatprep.subr.mxu0 0.0
      %10992 = vmatpush1.msra.mxu0 0.0
      %10993 = vmatprep.subr.mxu0 0.0
      %10994 = vmatpush1.msra.mxu0 0.0
      %10995 = vmatprep.mubr.f32.mxu0 0.0
      %10996 = vmatmul.mubr.f32.gmra.mrb[0].mxu0 %v10929
      %v10997 = vpop.f32.mrb[0].mxu0
      %v10998 = vadd.f32 0.0, %v10997
      %v10999 = vpop.f32.mrb[0].mxu0
      %11000 = vdwg.mxu0
      %v11002 = vrot.slane %v10925, 6
      %11003 = vrot.lane.b32.xlu0 %v11002, 64
      %v11004 = vpop.permute.xlu0 %11003
      %v11005 = vsel %vm10002, %v11004, 0
      %11007 = vmatprep.subr.mxu0 0.0
      %11008 = vmatpush1.msra.mxu0 %v9901
      %11009 = vmatprep.subr.mxu0 0.0
      %11010 = vmatpush1.msra.mxu0 %v9902
      %11011 = vmatprep.subr.mxu0 0.0
      %11012 = vmatpush1.msra.mxu0 %v9903
      %11013 = vmatprep.subr.mxu0 0.0
      %11014 = vmatpush1.msra.mxu0 %v9904
      %11015 = vmatprep.subr.mxu0 0.0
      %11016 = vmatpush1.msra.mxu0 0.0
      %11017 = vmatprep.subr.mxu0 0.0
      %11018 = vmatpush1.msra.mxu0 0.0
      %11019 = vmatprep.subr.mxu0 0.0
      %11020 = vmatpush1.msra.mxu0 0.0
      %11021 = vmatprep.subr.mxu0 0.0
      %11022 = vmatpush1.msra.mxu0 0.0
      %11023 = vmatprep.subr.mxu0 0.0
      %11024 = vmatpush1.msra.mxu0 0.0
      %11025 = vmatprep.subr.mxu0 0.0
      %11026 = vmatpush1.msra.mxu0 0.0
      %11027 = vmatprep.subr.mxu0 0.0
      %11028 = vmatpush1.msra.mxu0 0.0
      %11029 = vmatprep.subr.mxu0 0.0
      %11030 = vmatpush1.msra.mxu0 0.0
      %11031 = vmatprep.subr.mxu0 0.0
      %11032 = vmatpush1.msra.mxu0 0.0
      %11033 = vmatprep.subr.mxu0 0.0
      %11034 = vmatpush1.msra.mxu0 0.0
      %11035 = vmatprep.subr.mxu0 0.0
      %11036 = vmatpush1.msra.mxu0 0.0
      %11037 = vmatprep.subr.mxu0 0.0
      %11038 = vmatpush1.msra.mxu0 0.0
      %11039 = vmatprep.subr.mxu0 0.0
      %11040 = vmatpush1.msra.mxu0 0.0
      %11041 = vmatprep.subr.mxu0 0.0
      %11042 = vmatpush1.msra.mxu0 0.0
      %11043 = vmatprep.subr.mxu0 0.0
      %11044 = vmatpush1.msra.mxu0 0.0
      %11045 = vmatprep.subr.mxu0 0.0
      %11046 = vmatpush1.msra.mxu0 0.0
      %11047 = vmatprep.subr.mxu0 0.0
      %11048 = vmatpush1.msra.mxu0 0.0
      %11049 = vmatprep.subr.mxu0 0.0
      %11050 = vmatpush1.msra.mxu0 0.0
      %11051 = vmatprep.subr.mxu0 0.0
      %11052 = vmatpush1.msra.mxu0 0.0
      %11053 = vmatprep.subr.mxu0 0.0
      %11054 = vmatpush1.msra.mxu0 0.0
      %11055 = vmatprep.subr.mxu0 0.0
      %11056 = vmatpush1.msra.mxu0 0.0
      %11057 = vmatprep.subr.mxu0 0.0
      %11058 = vmatpush1.msra.mxu0 0.0
      %11059 = vmatprep.subr.mxu0 0.0
      %11060 = vmatpush1.msra.mxu0 0.0
      %11061 = vmatprep.subr.mxu0 0.0
      %11062 = vmatpush1.msra.mxu0 0.0
      %11063 = vmatprep.subr.mxu0 0.0
      %11064 = vmatpush1.msra.mxu0 0.0
      %11065 = vmatprep.subr.mxu0 0.0
      %11066 = vmatpush1.msra.mxu0 0.0
      %11067 = vmatprep.subr.mxu0 0.0
      %11068 = vmatpush1.msra.mxu0 0.0
      %11069 = vmatprep.subr.mxu0 0.0
      %11070 = vmatpush1.msra.mxu0 0.0
      %11071 = vmatprep.mubr.f32.mxu0 0.0
      %11072 = vmatmul.mubr.f32.gmra.mrb[0].mxu0 %v11005
      %v11073 = vpop.f32.mrb[0].mxu0
      %v11074 = vadd.f32 %v10998, %v11073
      %v11075 = vpop.f32.mrb[0].mxu0
      %11076 = vdwg.mxu0
      %v11077 = vadd.f32 %v11074, %v9918
      %v11078 = vxor.u32 %v11077, 2147483648
      %v11079 = vmul.f32 %v11078, 1.442695
      %v11080 = vpow.pop %v11079
      %v11081 = vadd.f32 %v11080, 1.0
      %v11082 = vrcp.pop %v11081
      %v11083 = vmul.f32 1.0, %v11082
      %v11084 = vtanh.pop %v11077
      %v11085 = vmul.f32 %v11083, %v10818
      %11087 = vrot.lane.b32.xlu0 %v11084, 32
      %v11088 = vpop.permute.xlu0 %11087
      %v11090 = vmul.f32 %v11083, %v11088
      %11092 = vrot.lane.b32.xlu0 %v11090, 32
      %v11093 = vpop.permute.xlu0 %11092
      %v11095 = vadd.f32 %v11085, %v11093
      %v11096 = vtanh.pop %v11095
      %11098 = vrot.lane.b32.xlu0 %v11096, 32
      %v11099 = vpop.permute.xlu0 %11098
      %v11101 = vmul.f32 %v11083, %v11099
      %11102 = vmatprep.subr.mxu0 0.0
      %11103 = vmatpush1.msra.mxu0 %v9905
      %11104 = vmatprep.subr.mxu0 0.0
      %11105 = vmatpush1.msra.mxu0 %v9906
      %11106 = vmatprep.subr.mxu0 0.0
      %11107 = vmatpush1.msra.mxu0 %v9907
      %11108 = vmatprep.subr.mxu0 0.0
      %11109 = vmatpush1.msra.mxu0 %v9908
      %11110 = vmatprep.subr.mxu0 0.0
      %11111 = vmatpush1.msra.mxu0 0.0
      %11112 = vmatprep.subr.mxu0 0.0
      %11113 = vmatpush1.msra.mxu0 0.0
      %11114 = vmatprep.subr.mxu0 0.0
      %11115 = vmatpush1.msra.mxu0 0.0
      %11116 = vmatprep.subr.mxu0 0.0
      %11117 = vmatpush1.msra.mxu0 0.0
      %11118 = vmatprep.subr.mxu0 0.0
      %11119 = vmatpush1.msra.mxu0 0.0
      %11120 = vmatprep.subr.mxu0 0.0
      %11121 = vmatpush1.msra.mxu0 0.0
      %11122 = vmatprep.subr.mxu0 0.0
      %11123 = vmatpush1.msra.mxu0 0.0
      %11124 = vmatprep.subr.mxu0 0.0
      %11125 = vmatpush1.msra.mxu0 0.0
      %11126 = vmatprep.subr.mxu0 0.0
      %11127 = vmatpush1.msra.mxu0 0.0
      %11128 = vmatprep.subr.mxu0 0.0
      %11129 = vmatpush1.msra.mxu0 0.0
      %11130 = vmatprep.subr.mxu0 0.0
      %11131 = vmatpush1.msra.mxu0 0.0
      %11132 = vmatprep.subr.mxu0 0.0
      %11133 = vmatpush1.msra.mxu0 0.0
      %11134 = vmatprep.subr.mxu0 0.0
      %11135 = vmatpush1.msra.mxu0 0.0
      %11136 = vmatprep.subr.mxu0 0.0
      %11137 = vmatpush1.msra.mxu0 0.0
      %11138 = vmatprep.subr.mxu0 0.0
      %11139 = vmatpush1.msra.mxu0 0.0
      %11140 = vmatprep.subr.mxu0 0.0
      %11141 = vmatpush1.msra.mxu0 0.0
      %11142 = vmatprep.subr.mxu0 0.0
      %11143 = vmatpush1.msra.mxu0 0.0
      %11144 = vmatprep.subr.mxu0 0.0
      %11145 = vmatpush1.msra.mxu0 0.0
      %11146 = vmatprep.subr.mxu0 0.0
      %11147 = vmatpush1.msra.mxu0 0.0
      %11148 = vmatprep.subr.mxu0 0.0
      %11149 = vmatpush1.msra.mxu0 0.0
      %11150 = vmatprep.subr.mxu0 0.0
      %11151 = vmatpush1.msra.mxu0 0.0
      %11152 = vmatprep.subr.mxu0 0.0
      %11153 = vmatpush1.msra.mxu0 0.0
      %11154 = vmatprep.subr.mxu0 0.0
      %11155 = vmatpush1.msra.mxu0 0.0
      %11156 = vmatprep.subr.mxu0 0.0
      %11157 = vmatpush1.msra.mxu0 0.0
      %11158 = vmatprep.subr.mxu0 0.0
      %11159 = vmatpush1.msra.mxu0 0.0
      %11160 = vmatprep.subr.mxu0 0.0
      %11161 = vmatpush1.msra.mxu0 0.0
      %11162 = vmatprep.subr.mxu0 0.0
      %11163 = vmatpush1.msra.mxu0 0.0
      %11164 = vmatprep.subr.mxu0 0.0
      %11165 = vmatpush1.msra.mxu0 0.0
      %11166 = vmatprep.mubr.f32.mxu0 0.0
      %11167 = vmatmul.mubr.f32.gmra.mrb[0].mxu0 %v11005
      %v11168 = vpop.f32.mrb[0].mxu0
      %v11169 = vadd.f32 0.0, %v11168
      %v11170 = vpop.f32.mrb[0].mxu0
      %11171 = vdwg.mxu0
      %v11172 = vadd.f32 %v9999, %v11169
      %v11173 = vxor.u32 %v11172, 2147483648
      %v11174 = vmul.f32 %v11173, 1.442695
      %v11175 = vpow.pop %v11174
      %v11176 = vadd.f32 %v11175, 1.0
      %v11177 = vrcp.pop %v11176
      %v11178 = vmul.f32 1.0, %v11177
      %v11179 = vtanh.pop %v11172
      %v11181 = vrot.slane %v10919, 6
      %v11183 = vmul.f32 %v11178, %v11181
      %11185 = vrot.lane.b32.xlu0 %v11179, 32
      %v11186 = vpop.permute.xlu0 %11185
      %v11188 = vmul.f32 %v11178, %v11186
      %11190 = vrot.lane.b32.xlu0 %v11188, 32
      %v11191 = vpop.permute.xlu0 %11190
      %v11193 = vadd.f32 %v11183, %v11191
      %v11194 = vtanh.pop %v11193
      %11196 = vrot.lane.b32.xlu0 %v11194, 32
      %v11197 = vpop.permute.xlu0 %11196
      %v11199 = vmul.f32 %v11178, %v11197
      %11201 = vrot.lane.b32.xlu0 %v11101, 64
      %v11202 = vpop.permute.xlu0 %11201
      %v11203 = vsel %vm10002, %v11202, 0
      %11205 = vmatprep.subr.mxu0 0.0
      %11206 = vmatpush1.msra.mxu0 %v9909
      %11207 = vmatprep.subr.mxu0 0.0
      %11208 = vmatpush1.msra.mxu0 %v9910
      %11209 = vmatprep.subr.mxu0 0.0
      %11210 = vmatpush1.msra.mxu0 %v9911
      %11211 = vmatprep.subr.mxu0 0.0
      %11212 = vmatpush1.msra.mxu0 %v9912
      %11213 = vmatprep.subr.mxu0 0.0
      %11214 = vmatpush1.msra.mxu0 0.0
      %11215 = vmatprep.subr.mxu0 0.0
      %11216 = vmatpush1.msra.mxu0 0.0
      %11217 = vmatprep.subr.mxu0 0.0
      %11218 = vmatpush1.msra.mxu0 0.0
      %11219 = vmatprep.subr.mxu0 0.0
      %11220 = vmatpush1.msra.mxu0 0.0
      %11221 = vmatprep.subr.mxu0 0.0
      %11222 = vmatpush1.msra.mxu0 0.0
      %11223 = vmatprep.subr.mxu0 0.0
      %11224 = vmatpush1.msra.mxu0 0.0
      %11225 = vmatprep.subr.mxu0 0.0
      %11226 = vmatpush1.msra.mxu0 0.0
      %11227 = vmatprep.subr.mxu0 0.0
      %11228 = vmatpush1.msra.mxu0 0.0
      %11229 = vmatprep.subr.mxu0 0.0
      %11230 = vmatpush1.msra.mxu0 0.0
      %11231 = vmatprep.subr.mxu0 0.0
      %11232 = vmatpush1.msra.mxu0 0.0
      %11233 = vmatprep.subr.mxu0 0.0
      %11234 = vmatpush1.msra.mxu0 0.0
      %11235 = vmatprep.subr.mxu0 0.0
      %11236 = vmatpush1.msra.mxu0 0.0
      %11237 = vmatprep.subr.mxu0 0.0
      %11238 = vmatpush1.msra.mxu0 0.0
      %11239 = vmatprep.subr.mxu0 0.0
      %11240 = vmatpush1.msra.mxu0 0.0
      %11241 = vmatprep.subr.mxu0 0.0
      %11242 = vmatpush1.msra.mxu0 0.0
      %11243 = vmatprep.subr.mxu0 0.0
      %11244 = vmatpush1.msra.mxu0 0.0
      %11245 = vmatprep.subr.mxu0 0.0
      %11246 = vmatpush1.msra.mxu0 0.0
      %11247 = vmatprep.subr.mxu0 0.0
      %11248 = vmatpush1.msra.mxu0 0.0
      %11249 = vmatprep.subr.mxu0 0.0
      %11250 = vmatpush1.msra.mxu0 0.0
      %11251 = vmatprep.subr.mxu0 0.0
      %11252 = vmatpush1.msra.mxu0 0.0
      %11253 = vmatprep.subr.mxu0 0.0
      %11254 = vmatpush1.msra.mxu0 0.0
      %11255 = vmatprep.subr.mxu0 0.0
      %11256 = vmatpush1.msra.mxu0 0.0
      %11257 = vmatprep.subr.mxu0 0.0
      %11258 = vmatpush1.msra.mxu0 0.0
      %11259 = vmatprep.subr.mxu0 0.0
      %11260 = vmatpush1.msra.mxu0 0.0
      %11261 = vmatprep.subr.mxu0 0.0
      %11262 = vmatpush1.msra.mxu0 0.0
      %11263 = vmatprep.subr.mxu0 0.0
      %11264 = vmatpush1.msra.mxu0 0.0
      %11265 = vmatprep.subr.mxu0 0.0
      %11266 = vmatpush1.msra.mxu0 0.0
      %11267 = vmatprep.subr.mxu0 0.0
      %11268 = vmatpush1.msra.mxu0 0.0
      %11269 = vmatprep.mubr.f32.mxu0 0.0
      %11270 = vmatmul.mubr.f32.gmra.mrb[0].mxu0 %v11203
      %v11271 = vpop.f32.mrb[0].mxu0
      %v11272 = vadd.f32 0.0, %v11271
      %v11273 = vpop.f32.mrb[0].mxu0
      %11274 = vdwg.mxu0
      %11276 = vrot.lane.b32.xlu0 %v11199, 64
      %v11277 = vpop.permute.xlu0 %11276
      %v11278 = vsel %vm10002, %v11277, 0
      %11280 = vmatprep.subr.mxu0 0.0
      %11281 = vmatpush1.msra.mxu0 %v9901
      %11282 = vmatprep.subr.mxu0 0.0
      %11283 = vmatpush1.msra.mxu0 %v9902
      %11284 = vmatprep.subr.mxu0 0.0
      %11285 = vmatpush1.msra.mxu0 %v9903
      %11286 = vmatprep.subr.mxu0 0.0
      %11287 = vmatpush1.msra.mxu0 %v9904
      %11288 = vmatprep.subr.mxu0 0.0
      %11289 = vmatpush1.msra.mxu0 0.0
      %11290 = vmatprep.subr.mxu0 0.0
      %11291 = vmatpush1.msra.mxu0 0.0
      %11292 = vmatprep.subr.mxu0 0.0
      %11293 = vmatpush1.msra.mxu0 0.0
      %11294 = vmatprep.subr.mxu0 0.0
      %11295 = vmatpush1.msra.mxu0 0.0
      %11296 = vmatprep.subr.mxu0 0.0
      %11297 = vmatpush1.msra.mxu0 0.0
      %11298 = vmatprep.subr.mxu0 0.0
      %11299 = vmatpush1.msra.mxu0 0.0
      %11300 = vmatprep.subr.mxu0 0.0
      %11301 = vmatpush1.msra.mxu0 0.0
      %11302 = vmatprep.subr.mxu0 0.0
      %11303 = vmatpush1.msra.mxu0 0.0
      %11304 = vmatprep.subr.mxu0 0.0
      %11305 = vmatpush1.msra.mxu0 0.0
      %11306 = vmatprep.subr.mxu0 0.0
      %11307 = vmatpush1.msra.mxu0 0.0
      %11308 = vmatprep.subr.mxu0 0.0
      %11309 = vmatpush1.msra.mxu0 0.0
      %11310 = vmatprep.subr.mxu0 0.0
      %11311 = vmatpush1.msra.mxu0 0.0
      %11312 = vmatprep.subr.mxu0 0.0
      %11313 = vmatpush1.msra.mxu0 0.0
      %11314 = vmatprep.subr.mxu0 0.0
      %11315 = vmatpush1.msra.mxu0 0.0
      %11316 = vmatprep.subr.mxu0 0.0
      %11317 = vmatpush1.msra.mxu0 0.0
      %11318 = vmatprep.subr.mxu0 0.0
      %11319 = vmatpush1.msra.mxu0 0.0
      %11320 = vmatprep.subr.mxu0 0.0
      %11321 = vmatpush1.msra.mxu0 0.0
      %11322 = vmatprep.subr.mxu0 0.0
      %11323 = vmatpush1.msra.mxu0 0.0
      %11324 = vmatprep.subr.mxu0 0.0
      %11325 = vmatpush1.msra.mxu0 0.0
      %11326 = vmatprep.subr.mxu0 0.0
      %11327 = vmatpush1.msra.mxu0 0.0
      %11328 = vmatprep.subr.mxu0 0.0
      %11329 = vmatpush1.msra.mxu0 0.0
      %11330 = vmatprep.subr.mxu0 0.0
      %11331 = vmatpush1.msra.mxu0 0.0
      %11332 = vmatprep.subr.mxu0 0.0
      %11333 = vmatpush1.msra.mxu0 0.0
      %11334 = vmatprep.subr.mxu0 0.0
      %11335 = vmatpush1.msra.mxu0 0.0
      %11336 = vmatprep.subr.mxu0 0.0
      %11337 = vmatpush1.msra.mxu0 0.0
      %11338 = vmatprep.subr.mxu0 0.0
      %11339 = vmatpush1.msra.mxu0 0.0
      %11340 = vmatprep.subr.mxu0 0.0
      %11341 = vmatpush1.msra.mxu0 0.0
      %11342 = vmatprep.subr.mxu0 0.0
      %11343 = vmatpush1.msra.mxu0 0.0
      %11344 = vmatprep.mubr.f32.mxu0 0.0
      %11345 = vmatmul.mubr.f32.gmra.mrb[0].mxu0 %v11278
      %v11346 = vpop.f32.mrb[0].mxu0
      %v11347 = vadd.f32 %v11272, %v11346
      %v11348 = vpop.f32.mrb[0].mxu0
      %11349 = vdwg.mxu0
      %v11350 = vadd.f32 %v11347, %v9918
      %v11351 = vxor.u32 %v11350, 2147483648
      %v11352 = vmul.f32 %v11351, 1.442695
      %v11353 = vpow.pop %v11352
      %v11354 = vadd.f32 %v11353, 1.0
      %v11355 = vrcp.pop %v11354
      %v11356 = vmul.f32 1.0, %v11355
      %v11357 = vtanh.pop %v11350
      %v11358 = vmul.f32 %v11356, %v11095
      %11360 = vrot.lane.b32.xlu0 %v11357, 32
      %v11361 = vpop.permute.xlu0 %11360
      %v11363 = vmul.f32 %v11356, %v11361
      %11365 = vrot.lane.b32.xlu0 %v11363, 32
      %v11366 = vpop.permute.xlu0 %11365
      %v11368 = vadd.f32 %v11358, %v11366
      %v11369 = vtanh.pop %v11368
      %11371 = vrot.lane.b32.xlu0 %v11369, 32
      %v11372 = vpop.permute.xlu0 %11371
      %v11374 = vmul.f32 %v11356, %v11372
      %11375 = vmatprep.subr.mxu0 0.0
      %11376 = vmatpush1.msra.mxu0 %v9905
      %11377 = vmatprep.subr.mxu0 0.0
      %11378 = vmatpush1.msra.mxu0 %v9906
      %11379 = vmatprep.subr.mxu0 0.0
      %11380 = vmatpush1.msra.mxu0 %v9907
      %11381 = vmatprep.subr.mxu0 0.0
      %11382 = vmatpush1.msra.mxu0 %v9908
      %11383 = vmatprep.subr.mxu0 0.0
      %11384 = vmatpush1.msra.mxu0 0.0
      %11385 = vmatprep.subr.mxu0 0.0
      %11386 = vmatpush1.msra.mxu0 0.0
      %11387 = vmatprep.subr.mxu0 0.0
      %11388 = vmatpush1.msra.mxu0 0.0
      %11389 = vmatprep.subr.mxu0 0.0
      %11390 = vmatpush1.msra.mxu0 0.0
      %11391 = vmatprep.subr.mxu0 0.0
      %11392 = vmatpush1.msra.mxu0 0.0
      %11393 = vmatprep.subr.mxu0 0.0
      %11394 = vmatpush1.msra.mxu0 0.0
      %11395 = vmatprep.subr.mxu0 0.0
      %11396 = vmatpush1.msra.mxu0 0.0
      %11397 = vmatprep.subr.mxu0 0.0
      %11398 = vmatpush1.msra.mxu0 0.0
      %11399 = vmatprep.subr.mxu0 0.0
      %11400 = vmatpush1.msra.mxu0 0.0
      %11401 = vmatprep.subr.mxu0 0.0
      %11402 = vmatpush1.msra.mxu0 0.0
      %11403 = vmatprep.subr.mxu0 0.0
      %11404 = vmatpush1.msra.mxu0 0.0
      %11405 = vmatprep.subr.mxu0 0.0
      %11406 = vmatpush1.msra.mxu0 0.0
      %11407 = vmatprep.subr.mxu0 0.0
      %11408 = vmatpush1.msra.mxu0 0.0
      %11409 = vmatprep.subr.mxu0 0.0
      %11410 = vmatpush1.msra.mxu0 0.0
      %11411 = vmatprep.subr.mxu0 0.0
      %11412 = vmatpush1.msra.mxu0 0.0
      %11413 = vmatprep.subr.mxu0 0.0
      %11414 = vmatpush1.msra.mxu0 0.0
      %11415 = vmatprep.subr.mxu0 0.0
      %11416 = vmatpush1.msra.mxu0 0.0
      %11417 = vmatprep.subr.mxu0 0.0
      %11418 = vmatpush1.msra.mxu0 0.0
      %11419 = vmatprep.subr.mxu0 0.0
      %11420 = vmatpush1.msra.mxu0 0.0
      %11421 = vmatprep.subr.mxu0 0.0
      %11422 = vmatpush1.msra.mxu0 0.0
      %11423 = vmatprep.subr.mxu0 0.0
      %11424 = vmatpush1.msra.mxu0 0.0
      %11425 = vmatprep.subr.mxu0 0.0
      %11426 = vmatpush1.msra.mxu0 0.0
      %11427 = vmatprep.subr.mxu0 0.0
      %11428 = vmatpush1.msra.mxu0 0.0
      %11429 = vmatprep.subr.mxu0 0.0
      %11430 = vmatpush1.msra.mxu0 0.0
      %11431 = vmatprep.subr.mxu0 0.0
      %11432 = vmatpush1.msra.mxu0 0.0
      %11433 = vmatprep.subr.mxu0 0.0
      %11434 = vmatpush1.msra.mxu0 0.0
      %11435 = vmatprep.subr.mxu0 0.0
      %11436 = vmatpush1.msra.mxu0 0.0
      %11437 = vmatprep.subr.mxu0 0.0
      %11438 = vmatpush1.msra.mxu0 0.0
      %11439 = vmatprep.mubr.f32.mxu0 0.0
      %11440 = vmatmul.mubr.f32.gmra.mrb[0].mxu0 %v11278
      %v11441 = vpop.f32.mrb[0].mxu0
      %v11442 = vadd.f32 0.0, %v11441
      %v11443 = vpop.f32.mrb[0].mxu0
      %11444 = vdwg.mxu0
      %v11446 = vrot.slane %v11442, 6
      %v11448 = vadd.f32 %v9999, %v11446
      %v11449 = vxor.u32 %v11448, 2147483648
      %v11450 = vmul.f32 %v11449, 1.442695
      %v11451 = vpow.pop %v11450
      %v11452 = vadd.f32 %v11451, 1.0
      %v11453 = vrcp.pop %v11452
      %v11454 = vmul.f32 1.0, %v11453
      %v11455 = vtanh.pop %v11448
      %v11457 = vrot.slane %v11193, 6
      %v11459 = vmul.f32 %v11454, %v11457
      %11461 = vrot.lane.b32.xlu0 %v11455, 32
      %v11462 = vpop.permute.xlu0 %11461
      %v11464 = vmul.f32 %v11454, %v11462
      %11466 = vrot.lane.b32.xlu0 %v11464, 32
      %v11467 = vpop.permute.xlu0 %11466
      %v11469 = vadd.f32 %v11459, %v11467
      %v11470 = vtanh.pop %v11469
      %11472 = vrot.lane.b32.xlu0 %v11470, 32
      %v11473 = vpop.permute.xlu0 %11472
      %v11475 = vmul.f32 %v11454, %v11473
      %11477 = vrot.lane.b32.xlu0 %v11374, 64
      %v11478 = vpop.permute.xlu0 %11477
      %v11479 = vsel %vm10002, %v11478, 0
      %11481 = vmatprep.subr.mxu0 0.0
      %11482 = vmatpush1.msra.mxu0 %v9909
      %11483 = vmatprep.subr.mxu0 0.0
      %11484 = vmatpush1.msra.mxu0 %v9910
      %11485 = vmatprep.subr.mxu0 0.0
      %11486 = vmatpush1.msra.mxu0 %v9911
      %11487 = vmatprep.subr.mxu0 0.0
      %11488 = vmatpush1.msra.mxu0 %v9912
      %11489 = vmatprep.subr.mxu0 0.0
      %11490 = vmatpush1.msra.mxu0 0.0
      %11491 = vmatprep.subr.mxu0 0.0
      %11492 = vmatpush1.msra.mxu0 0.0
      %11493 = vmatprep.subr.mxu0 0.0
      %11494 = vmatpush1.msra.mxu0 0.0
      %11495 = vmatprep.subr.mxu0 0.0
      %11496 = vmatpush1.msra.mxu0 0.0
      %11497 = vmatprep.subr.mxu0 0.0
      %11498 = vmatpush1.msra.mxu0 0.0
      %11499 = vmatprep.subr.mxu0 0.0
      %11500 = vmatpush1.msra.mxu0 0.0
      %11501 = vmatprep.subr.mxu0 0.0
      %11502 = vmatpush1.msra.mxu0 0.0
      %11503 = vmatprep.subr.mxu0 0.0
      %11504 = vmatpush1.msra.mxu0 0.0
      %11505 = vmatprep.subr.mxu0 0.0
      %11506 = vmatpush1.msra.mxu0 0.0
      %11507 = vmatprep.subr.mxu0 0.0
      %11508 = vmatpush1.msra.mxu0 0.0
      %11509 = vmatprep.subr.mxu0 0.0
      %11510 = vmatpush1.msra.mxu0 0.0
      %11511 = vmatprep.subr.mxu0 0.0
      %11512 = vmatpush1.msra.mxu0 0.0
      %11513 = vmatprep.subr.mxu0 0.0
      %11514 = vmatpush1.msra.mxu0 0.0
      %11515 = vmatprep.subr.mxu0 0.0
      %11516 = vmatpush1.msra.mxu0 0.0
      %11517 = vmatprep.subr.mxu0 0.0
      %11518 = vmatpush1.msra.mxu0 0.0
      %11519 = vmatprep.subr.mxu0 0.0
      %11520 = vmatpush1.msra.mxu0 0.0
      %11521 = vmatprep.subr.mxu0 0.0
      %11522 = vmatpush1.msra.mxu0 0.0
      %11523 = vmatprep.subr.mxu0 0.0
      %11524 = vmatpush1.msra.mxu0 0.0
      %11525 = vmatprep.subr.mxu0 0.0
      %11526 = vmatpush1.msra.mxu0 0.0
      %11527 = vmatprep.subr.mxu0 0.0
      %11528 = vmatpush1.msra.mxu0 0.0
      %11529 = vmatprep.subr.mxu0 0.0
      %11530 = vmatpush1.msra.mxu0 0.0
      %11531 = vmatprep.subr.mxu0 0.0
      %11532 = vmatpush1.msra.mxu0 0.0
      %11533 = vmatprep.subr.mxu0 0.0
      %11534 = vmatpush1.msra.mxu0 0.0
      %11535 = vmatprep.subr.mxu0 0.0
      %11536 = vmatpush1.msra.mxu0 0.0
      %11537 = vmatprep.subr.mxu0 0.0
      %11538 = vmatpush1.msra.mxu0 0.0
      %11539 = vmatprep.subr.mxu0 0.0
      %11540 = vmatpush1.msra.mxu0 0.0
      %11541 = vmatprep.subr.mxu0 0.0
      %11542 = vmatpush1.msra.mxu0 0.0
      %11543 = vmatprep.subr.mxu0 0.0
      %11544 = vmatpush1.msra.mxu0 0.0
      %11545 = vmatprep.mubr.f32.mxu0 0.0
      %11546 = vmatmul.mubr.f32.gmra.mrb[0].mxu0 %v11479
      %v11547 = vpop.f32.mrb[0].mxu0
      %v11548 = vadd.f32 0.0, %v11547
      %v11549 = vpop.f32.mrb[0].mxu0
      %11550 = vdwg.mxu0
      %v11552 = vrot.slane %v11475, 2
      %11553 = vrot.lane.b32.xlu0 %v11552, 64
      %v11554 = vpop.permute.xlu0 %11553
      %v11555 = vsel %vm10002, %v11554, 0
      %11557 = vmatprep.subr.mxu0 0.0
      %11558 = vmatpush1.msra.mxu0 %v9901
      %11559 = vmatprep.subr.mxu0 0.0
      %11560 = vmatpush1.msra.mxu0 %v9902
      %11561 = vmatprep.subr.mxu0 0.0
      %11562 = vmatpush1.msra.mxu0 %v9903
      %11563 = vmatprep.subr.mxu0 0.0
      %11564 = vmatpush1.msra.mxu0 %v9904
      %11565 = vmatprep.subr.mxu0 0.0
      %11566 = vmatpush1.msra.mxu0 0.0
      %11567 = vmatprep.subr.mxu0 0.0
      %11568 = vmatpush1.msra.mxu0 0.0
      %11569 = vmatprep.subr.mxu0 0.0
      %11570 = vmatpush1.msra.mxu0 0.0
      %11571 = vmatprep.subr.mxu0 0.0
      %11572 = vmatpush1.msra.mxu0 0.0
      %11573 = vmatprep.subr.mxu0 0.0
      %11574 = vmatpush1.msra.mxu0 0.0
      %11575 = vmatprep.subr.mxu0 0.0
      %11576 = vmatpush1.msra.mxu0 0.0
      %11577 = vmatprep.subr.mxu0 0.0
      %11578 = vmatpush1.msra.mxu0 0.0
      %11579 = vmatprep.subr.mxu0 0.0
      %11580 = vmatpush1.msra.mxu0 0.0
      %11581 = vmatprep.subr.mxu0 0.0
      %11582 = vmatpush1.msra.mxu0 0.0
      %11583 = vmatprep.subr.mxu0 0.0
      %11584 = vmatpush1.msra.mxu0 0.0
      %11585 = vmatprep.subr.mxu0 0.0
      %11586 = vmatpush1.msra.mxu0 0.0
      %11587 = vmatprep.subr.mxu0 0.0
      %11588 = vmatpush1.msra.mxu0 0.0
      %11589 = vmatprep.subr.mxu0 0.0
      %11590 = vmatpush1.msra.mxu0 0.0
      %11591 = vmatprep.subr.mxu0 0.0
      %11592 = vmatpush1.msra.mxu0 0.0
      %11593 = vmatprep.subr.mxu0 0.0
      %11594 = vmatpush1.msra.mxu0 0.0
      %11595 = vmatprep.subr.mxu0 0.0
      %11596 = vmatpush1.msra.mxu0 0.0
      %11597 = vmatprep.subr.mxu0 0.0
      %11598 = vmatpush1.msra.mxu0 0.0
      %11599 = vmatprep.subr.mxu0 0.0
      %11600 = vmatpush1.msra.mxu0 0.0
      %11601 = vmatprep.subr.mxu0 0.0
      %11602 = vmatpush1.msra.mxu0 0.0
      %11603 = vmatprep.subr.mxu0 0.0
      %11604 = vmatpush1.msra.mxu0 0.0
      %11605 = vmatprep.subr.mxu0 0.0
      %11606 = vmatpush1.msra.mxu0 0.0
      %11607 = vmatprep.subr.mxu0 0.0
      %11608 = vmatpush1.msra.mxu0 0.0
      %11609 = vmatprep.subr.mxu0 0.0
      %11610 = vmatpush1.msra.mxu0 0.0
      %11611 = vmatprep.subr.mxu0 0.0
      %11612 = vmatpush1.msra.mxu0 0.0
      %11613 = vmatprep.subr.mxu0 0.0
      %11614 = vmatpush1.msra.mxu0 0.0
      %11615 = vmatprep.subr.mxu0 0.0
      %11616 = vmatpush1.msra.mxu0 0.0
      %11617 = vmatprep.subr.mxu0 0.0
      %11618 = vmatpush1.msra.mxu0 0.0
      %11619 = vmatprep.subr.mxu0 0.0
      %11620 = vmatpush1.msra.mxu0 0.0
      %11621 = vmatprep.mubr.f32.mxu0 0.0
      %11622 = vmatmul.mubr.f32.gmra.mrb[0].mxu0 %v11555
      %v11623 = vpop.f32.mrb[0].mxu0
      %v11624 = vadd.f32 %v11548, %v11623
      %v11625 = vpop.f32.mrb[0].mxu0
      %11626 = vdwg.mxu0
      %v11627 = vadd.f32 %v11624, %v9918
      %v11628 = vxor.u32 %v11627, 2147483648
      %v11629 = vmul.f32 %v11628, 1.442695
      %v11630 = vpow.pop %v11629
      %v11631 = vadd.f32 %v11630, 1.0
      %v11632 = vrcp.pop %v11631
      %v11633 = vmul.f32 1.0, %v11632
      %v11634 = vtanh.pop %v11627
      %v11635 = vmul.f32 %v11633, %v11368
      %11637 = vrot.lane.b32.xlu0 %v11634, 32
      %v11638 = vpop.permute.xlu0 %11637
      %v11640 = vmul.f32 %v11633, %v11638
      %11642 = vrot.lane.b32.xlu0 %v11640, 32
      %v11643 = vpop.permute.xlu0 %11642
      %v11645 = vadd.f32 %v11635, %v11643
      %v11646 = vtanh.pop %v11645
      %11648 = vrot.lane.b32.xlu0 %v11646, 32
      %v11649 = vpop.permute.xlu0 %11648
      %v11651 = vmul.f32 %v11633, %v11649
      %11652 = vmatprep.subr.mxu0 0.0
      %11653 = vmatpush1.msra.mxu0 %v9905
      %11654 = vmatprep.subr.mxu0 0.0
      %11655 = vmatpush1.msra.mxu0 %v9906
      %11656 = vmatprep.subr.mxu0 0.0
      %11657 = vmatpush1.msra.mxu0 %v9907
      %11658 = vmatprep.subr.mxu0 0.0
      %11659 = vmatpush1.msra.mxu0 %v9908
      %11660 = vmatprep.subr.mxu0 0.0
      %11661 = vmatpush1.msra.mxu0 0.0
      %11662 = vmatprep.subr.mxu0 0.0
      %11663 = vmatpush1.msra.mxu0 0.0
      %11664 = vmatprep.subr.mxu0 0.0
      %11665 = vmatpush1.msra.mxu0 0.0
      %11666 = vmatprep.subr.mxu0 0.0
      %11667 = vmatpush1.msra.mxu0 0.0
      %11668 = vmatprep.subr.mxu0 0.0
      %11669 = vmatpush1.msra.mxu0 0.0
      %11670 = vmatprep.subr.mxu0 0.0
      %11671 = vmatpush1.msra.mxu0 0.0
      %11672 = vmatprep.subr.mxu0 0.0
      %11673 = vmatpush1.msra.mxu0 0.0
      %11674 = vmatprep.subr.mxu0 0.0
      %11675 = vmatpush1.msra.mxu0 0.0
      %11676 = vmatprep.subr.mxu0 0.0
      %11677 = vmatpush1.msra.mxu0 0.0
      %11678 = vmatprep.subr.mxu0 0.0
      %11679 = vmatpush1.msra.mxu0 0.0
      %11680 = vmatprep.subr.mxu0 0.0
      %11681 = vmatpush1.msra.mxu0 0.0
      %11682 = vmatprep.subr.mxu0 0.0
      %11683 = vmatpush1.msra.mxu0 0.0
      %11684 = vmatprep.subr.mxu0 0.0
      %11685 = vmatpush1.msra.mxu0 0.0
      %11686 = vmatprep.subr.mxu0 0.0
      %11687 = vmatpush1.msra.mxu0 0.0
      %11688 = vmatprep.subr.mxu0 0.0
      %11689 = vmatpush1.msra.mxu0 0.0
      %11690 = vmatprep.subr.mxu0 0.0
      %11691 = vmatpush1.msra.mxu0 0.0
      %11692 = vmatprep.subr.mxu0 0.0
      %11693 = vmatpush1.msra.mxu0 0.0
      %11694 = vmatprep.subr.mxu0 0.0
      %11695 = vmatpush1.msra.mxu0 0.0
      %11696 = vmatprep.subr.mxu0 0.0
      %11697 = vmatpush1.msra.mxu0 0.0
      %11698 = vmatprep.subr.mxu0 0.0
      %11699 = vmatpush1.msra.mxu0 0.0
      %11700 = vmatprep.subr.mxu0 0.0
      %11701 = vmatpush1.msra.mxu0 0.0
      %11702 = vmatprep.subr.mxu0 0.0
      %11703 = vmatpush1.msra.mxu0 0.0
      %11704 = vmatprep.subr.mxu0 0.0
      %11705 = vmatpush1.msra.mxu0 0.0
      %11706 = vmatprep.subr.mxu0 0.0
      %11707 = vmatpush1.msra.mxu0 0.0
      %11708 = vmatprep.subr.mxu0 0.0
      %11709 = vmatpush1.msra.mxu0 0.0
      %11710 = vmatprep.subr.mxu0 0.0
      %11711 = vmatpush1.msra.mxu0 0.0
      %11712 = vmatprep.subr.mxu0 0.0
      %11713 = vmatpush1.msra.mxu0 0.0
      %11714 = vmatprep.subr.mxu0 0.0
      %11715 = vmatpush1.msra.mxu0 0.0
      %11716 = vmatprep.mubr.f32.mxu0 0.0
      %11717 = vmatmul.mubr.f32.gmra.mrb[0].mxu0 %v11555
      %v11718 = vpop.f32.mrb[0].mxu0
      %v11719 = vadd.f32 0.0, %v11718
      %v11720 = vpop.f32.mrb[0].mxu0
      %11721 = vdwg.mxu0
      %v11723 = vrot.slane %v11719, 4
      %v11725 = vadd.f32 %v9999, %v11723
      %v11726 = vxor.u32 %v11725, 2147483648
      %v11727 = vmul.f32 %v11726, 1.442695
      %v11728 = vpow.pop %v11727
      %v11729 = vadd.f32 %v11728, 1.0
      %v11730 = vrcp.pop %v11729
      %v11731 = vmul.f32 1.0, %v11730
      %v11732 = vtanh.pop %v11725
      %v11734 = vrot.slane %v11469, 6
      %v11736 = vmul.f32 %v11731, %v11734
      %11738 = vrot.lane.b32.xlu0 %v11732, 32
      %v11739 = vpop.permute.xlu0 %11738
      %v11741 = vmul.f32 %v11731, %v11739
      %11743 = vrot.lane.b32.xlu0 %v11741, 32
      %v11744 = vpop.permute.xlu0 %11743
      %v11746 = vadd.f32 %v11736, %v11744
      %v11747 = vtanh.pop %v11746
      %11749 = vrot.lane.b32.xlu0 %v11747, 32
      %v11750 = vpop.permute.xlu0 %11749
      %v11752 = vmul.f32 %v11731, %v11750
      %11754 = vrot.lane.b32.xlu0 %v11651, 64
      %v11755 = vpop.permute.xlu0 %11754
      %v11756 = vsel %vm10002, %v11755, 0
      %11758 = vmatprep.subr.mxu0 0.0
      %11759 = vmatpush1.msra.mxu0 %v9909
      %11760 = vmatprep.subr.mxu0 0.0
      %11761 = vmatpush1.msra.mxu0 %v9910
      %11762 = vmatprep.subr.mxu0 0.0
      %11763 = vmatpush1.msra.mxu0 %v9911
      %11764 = vmatprep.subr.mxu0 0.0
      %11765 = vmatpush1.msra.mxu0 %v9912
      %11766 = vmatprep.subr.mxu0 0.0
      %11767 = vmatpush1.msra.mxu0 0.0
      %11768 = vmatprep.subr.mxu0 0.0
      %11769 = vmatpush1.msra.mxu0 0.0
      %11770 = vmatprep.subr.mxu0 0.0
      %11771 = vmatpush1.msra.mxu0 0.0
      %11772 = vmatprep.subr.mxu0 0.0
      %11773 = vmatpush1.msra.mxu0 0.0
      %11774 = vmatprep.subr.mxu0 0.0
      %11775 = vmatpush1.msra.mxu0 0.0
      %11776 = vmatprep.subr.mxu0 0.0
      %11777 = vmatpush1.msra.mxu0 0.0
      %11778 = vmatprep.subr.mxu0 0.0
      %11779 = vmatpush1.msra.mxu0 0.0
      %11780 = vmatprep.subr.mxu0 0.0
      %11781 = vmatpush1.msra.mxu0 0.0
      %11782 = vmatprep.subr.mxu0 0.0
      %11783 = vmatpush1.msra.mxu0 0.0
      %11784 = vmatprep.subr.mxu0 0.0
      %11785 = vmatpush1.msra.mxu0 0.0
      %11786 = vmatprep.subr.mxu0 0.0
      %11787 = vmatpush1.msra.mxu0 0.0
      %11788 = vmatprep.subr.mxu0 0.0
      %11789 = vmatpush1.msra.mxu0 0.0
      %11790 = vmatprep.subr.mxu0 0.0
      %11791 = vmatpush1.msra.mxu0 0.0
      %11792 = vmatprep.subr.mxu0 0.0
      %11793 = vmatpush1.msra.mxu0 0.0
      %11794 = vmatprep.subr.mxu0 0.0
      %11795 = vmatpush1.msra.mxu0 0.0
      %11796 = vmatprep.subr.mxu0 0.0
      %11797 = vmatpush1.msra.mxu0 0.0
      %11798 = vmatprep.subr.mxu0 0.0
      %11799 = vmatpush1.msra.mxu0 0.0
      %11800 = vmatprep.subr.mxu0 0.0
      %11801 = vmatpush1.msra.mxu0 0.0
      %11802 = vmatprep.subr.mxu0 0.0
      %11803 = vmatpush1.msra.mxu0 0.0
      %11804 = vmatprep.subr.mxu0 0.0
      %11805 = vmatpush1.msra.mxu0 0.0
      %11806 = vmatprep.subr.mxu0 0.0
      %11807 = vmatpush1.msra.mxu0 0.0
      %11808 = vmatprep.subr.mxu0 0.0
      %11809 = vmatpush1.msra.mxu0 0.0
      %11810 = vmatprep.subr.mxu0 0.0
      %11811 = vmatpush1.msra.mxu0 0.0
      %11812 = vmatprep.subr.mxu0 0.0
      %11813 = vmatpush1.msra.mxu0 0.0
      %11814 = vmatprep.subr.mxu0 0.0
      %11815 = vmatpush1.msra.mxu0 0.0
      %11816 = vmatprep.subr.mxu0 0.0
      %11817 = vmatpush1.msra.mxu0 0.0
      %11818 = vmatprep.subr.mxu0 0.0
      %11819 = vmatpush1.msra.mxu0 0.0
      %11820 = vmatprep.subr.mxu0 0.0
      %11821 = vmatpush1.msra.mxu0 0.0
      %11822 = vmatprep.mubr.f32.mxu0 0.0
      %11823 = vmatmul.mubr.f32.gmra.mrb[0].mxu0 %v11756
      %v11824 = vpop.f32.mrb[0].mxu0
      %v11825 = vadd.f32 0.0, %v11824
      %v11826 = vpop.f32.mrb[0].mxu0
      %11827 = vdwg.mxu0
      %v11829 = vrot.slane %v11752, 4
      %11830 = vrot.lane.b32.xlu0 %v11829, 64
      %v11831 = vpop.permute.xlu0 %11830
      %v11832 = vsel %vm10002, %v11831, 0
      %11834 = vmatprep.subr.mxu0 0.0
      %11835 = vmatpush1.msra.mxu0 %v9901
      %11836 = vmatprep.subr.mxu0 0.0
      %11837 = vmatpush1.msra.mxu0 %v9902
      %11838 = vmatprep.subr.mxu0 0.0
      %11839 = vmatpush1.msra.mxu0 %v9903
      %11840 = vmatprep.subr.mxu0 0.0
      %11841 = vmatpush1.msra.mxu0 %v9904
      %11842 = vmatprep.subr.mxu0 0.0
      %11843 = vmatpush1.msra.mxu0 0.0
      %11844 = vmatprep.subr.mxu0 0.0
      %11845 = vmatpush1.msra.mxu0 0.0
      %11846 = vmatprep.subr.mxu0 0.0
      %11847 = vmatpush1.msra.mxu0 0.0
      %11848 = vmatprep.subr.mxu0 0.0
      %11849 = vmatpush1.msra.mxu0 0.0
      %11850 = vmatprep.subr.mxu0 0.0
      %11851 = vmatpush1.msra.mxu0 0.0
      %11852 = vmatprep.subr.mxu0 0.0
      %11853 = vmatpush1.msra.mxu0 0.0
      %11854 = vmatprep.subr.mxu0 0.0
      %11855 = vmatpush1.msra.mxu0 0.0
      %11856 = vmatprep.subr.mxu0 0.0
      %11857 = vmatpush1.msra.mxu0 0.0
      %11858 = vmatprep.subr.mxu0 0.0
      %11859 = vmatpush1.msra.mxu0 0.0
      %11860 = vmatprep.subr.mxu0 0.0
      %11861 = vmatpush1.msra.mxu0 0.0
      %11862 = vmatprep.subr.mxu0 0.0
      %11863 = vmatpush1.msra.mxu0 0.0
      %11864 = vmatprep.subr.mxu0 0.0
      %11865 = vmatpush1.msra.mxu0 0.0
      %11866 = vmatprep.subr.mxu0 0.0
      %11867 = vmatpush1.msra.mxu0 0.0
      %11868 = vmatprep.subr.mxu0 0.0
      %11869 = vmatpush1.msra.mxu0 0.0
      %11870 = vmatprep.subr.mxu0 0.0
      %11871 = vmatpush1.msra.mxu0 0.0
      %11872 = vmatprep.subr.mxu0 0.0
      %11873 = vmatpush1.msra.mxu0 0.0
      %11874 = vmatprep.subr.mxu0 0.0
      %11875 = vmatpush1.msra.mxu0 0.0
      %11876 = vmatprep.subr.mxu0 0.0
      %11877 = vmatpush1.msra.mxu0 0.0
      %11878 = vmatprep.subr.mxu0 0.0
      %11879 = vmatpush1.msra.mxu0 0.0
      %11880 = vmatprep.subr.mxu0 0.0
      %11881 = vmatpush1.msra.mxu0 0.0
      %11882 = vmatprep.subr.mxu0 0.0
      %11883 = vmatpush1.msra.mxu0 0.0
      %11884 = vmatprep.subr.mxu0 0.0
      %11885 = vmatpush1.msra.mxu0 0.0
      %11886 = vmatprep.subr.mxu0 0.0
      %11887 = vmatpush1.msra.mxu0 0.0
      %11888 = vmatprep.subr.mxu0 0.0
      %11889 = vmatpush1.msra.mxu0 0.0
      %11890 = vmatprep.subr.mxu0 0.0
      %11891 = vmatpush1.msra.mxu0 0.0
      %11892 = vmatprep.subr.mxu0 0.0
      %11893 = vmatpush1.msra.mxu0 0.0
      %11894 = vmatprep.subr.mxu0 0.0
      %11895 = vmatpush1.msra.mxu0 0.0
      %11896 = vmatprep.subr.mxu0 0.0
      %11897 = vmatpush1.msra.mxu0 0.0
      %11898 = vmatprep.mubr.f32.mxu0 0.0
      %11899 = vmatmul.mubr.f32.gmra.mrb[0].mxu0 %v11832
      %v11900 = vpop.f32.mrb[0].mxu0
      %v11901 = vadd.f32 %v11825, %v11900
      %v11902 = vpop.f32.mrb[0].mxu0
      %11903 = vdwg.mxu0
      %v11904 = vadd.f32 %v11901, %v9918
      %v11905 = vxor.u32 %v11904, 2147483648
      %v11906 = vmul.f32 %v11905, 1.442695
      %v11907 = vpow.pop %v11906
      %v11908 = vadd.f32 %v11907, 1.0
      %v11909 = vrcp.pop %v11908
      %v11910 = vmul.f32 1.0, %v11909
      %v11911 = vtanh.pop %v11904
      %v11912 = vmul.f32 %v11910, %v11645
      %11914 = vrot.lane.b32.xlu0 %v11911, 32
      %v11915 = vpop.permute.xlu0 %11914
      %v11917 = vmul.f32 %v11910, %v11915
      %11919 = vrot.lane.b32.xlu0 %v11917, 32
      %v11920 = vpop.permute.xlu0 %11919
      %v11922 = vadd.f32 %v11912, %v11920
      %v11923 = vtanh.pop %v11922
      %11925 = vrot.lane.b32.xlu0 %v11923, 32
      %v11926 = vpop.permute.xlu0 %11925
      %v11928 = vmul.f32 %v11910, %v11926
      %11929 = vmatprep.subr.mxu0 0.0
      %11930 = vmatpush1.msra.mxu0 %v9905
      %11931 = vmatprep.subr.mxu0 0.0
      %11932 = vmatpush1.msra.mxu0 %v9906
      %11933 = vmatprep.subr.mxu0 0.0
      %11934 = vmatpush1.msra.mxu0 %v9907
      %11935 = vmatprep.subr.mxu0 0.0
      %11936 = vmatpush1.msra.mxu0 %v9908
      %11937 = vmatprep.subr.mxu0 0.0
      %11938 = vmatpush1.msra.mxu0 0.0
      %11939 = vmatprep.subr.mxu0 0.0
      %11940 = vmatpush1.msra.mxu0 0.0
      %11941 = vmatprep.subr.mxu0 0.0
      %11942 = vmatpush1.msra.mxu0 0.0
      %11943 = vmatprep.subr.mxu0 0.0
      %11944 = vmatpush1.msra.mxu0 0.0
      %11945 = vmatprep.subr.mxu0 0.0
      %11946 = vmatpush1.msra.mxu0 0.0
      %11947 = vmatprep.subr.mxu0 0.0
      %11948 = vmatpush1.msra.mxu0 0.0
      %11949 = vmatprep.subr.mxu0 0.0
      %11950 = vmatpush1.msra.mxu0 0.0
      %11951 = vmatprep.subr.mxu0 0.0
      %11952 = vmatpush1.msra.mxu0 0.0
      %11953 = vmatprep.subr.mxu0 0.0
      %11954 = vmatpush1.msra.mxu0 0.0
      %11955 = vmatprep.subr.mxu0 0.0
      %11956 = vmatpush1.msra.mxu0 0.0
      %11957 = vmatprep.subr.mxu0 0.0
      %11958 = vmatpush1.msra.mxu0 0.0
      %11959 = vmatprep.subr.mxu0 0.0
      %11960 = vmatpush1.msra.mxu0 0.0
      %11961 = vmatprep.subr.mxu0 0.0
      %11962 = vmatpush1.msra.mxu0 0.0
      %11963 = vmatprep.subr.mxu0 0.0
      %11964 = vmatpush1.msra.mxu0 0.0
      %11965 = vmatprep.subr.mxu0 0.0
      %11966 = vmatpush1.msra.mxu0 0.0
      %11967 = vmatprep.subr.mxu0 0.0
      %11968 = vmatpush1.msra.mxu0 0.0
      %11969 = vmatprep.subr.mxu0 0.0
      %11970 = vmatpush1.msra.mxu0 0.0
      %11971 = vmatprep.subr.mxu0 0.0
      %11972 = vmatpush1.msra.mxu0 0.0
      %11973 = vmatprep.subr.mxu0 0.0
      %11974 = vmatpush1.msra.mxu0 0.0
      %11975 = vmatprep.subr.mxu0 0.0
      %11976 = vmatpush1.msra.mxu0 0.0
      %11977 = vmatprep.subr.mxu0 0.0
      %11978 = vmatpush1.msra.mxu0 0.0
      %11979 = vmatprep.subr.mxu0 0.0
      %11980 = vmatpush1.msra.mxu0 0.0
      %11981 = vmatprep.subr.mxu0 0.0
      %11982 = vmatpush1.msra.mxu0 0.0
      %11983 = vmatprep.subr.mxu0 0.0
      %11984 = vmatpush1.msra.mxu0 0.0
      %11985 = vmatprep.subr.mxu0 0.0
      %11986 = vmatpush1.msra.mxu0 0.0
      %11987 = vmatprep.subr.mxu0 0.0
      %11988 = vmatpush1.msra.mxu0 0.0
      %11989 = vmatprep.subr.mxu0 0.0
      %11990 = vmatpush1.msra.mxu0 0.0
      %11991 = vmatprep.subr.mxu0 0.0
      %11992 = vmatpush1.msra.mxu0 0.0
      %11993 = vmatprep.mubr.f32.mxu0 0.0
      %11994 = vmatmul.mubr.f32.gmra.mrb[0].mxu0 %v11832
      %v11995 = vpop.f32.mrb[0].mxu0
      %v11996 = vadd.f32 0.0, %v11995
      %v11997 = vpop.f32.mrb[0].mxu0
      %11998 = vdwg.mxu0
      %v12000 = vrot.slane %v11996, 2
      %v12002 = vadd.f32 %v9999, %v12000
      %v12003 = vxor.u32 %v12002, 2147483648
      %v12004 = vmul.f32 %v12003, 1.442695
      %v12005 = vpow.pop %v12004
      %v12006 = vadd.f32 %v12005, 1.0
      %v12007 = vrcp.pop %v12006
      %v12008 = vmul.f32 1.0, %v12007
      %v12009 = vtanh.pop %v12002
      %v12011 = vrot.slane %v11746, 6
      %v12013 = vmul.f32 %v12008, %v12011
      %12015 = vrot.lane.b32.xlu0 %v12009, 32
      %v12016 = vpop.permute.xlu0 %12015
      %v12018 = vmul.f32 %v12008, %v12016
      %12020 = vrot.lane.b32.xlu0 %v12018, 32
      %v12021 = vpop.permute.xlu0 %12020
      %v12023 = vadd.f32 %v12013, %v12021
      %v12024 = vtanh.pop %v12023
      %12026 = vrot.lane.b32.xlu0 %v12024, 32
      %v12027 = vpop.permute.xlu0 %12026
      %v12029 = vmul.f32 %v12008, %v12027
      %12031 = vrot.lane.b32.xlu0 %v11928, 64
      %v12032 = vpop.permute.xlu0 %12031
      %v12033 = vsel %vm10002, %v12032, 0
      %12035 = vmatprep.subr.mxu0 0.0
      %12036 = vmatpush1.msra.mxu0 %v9909
      %12037 = vmatprep.subr.mxu0 0.0
      %12038 = vmatpush1.msra.mxu0 %v9910
      %12039 = vmatprep.subr.mxu0 0.0
      %12040 = vmatpush1.msra.mxu0 %v9911
      %12041 = vmatprep.subr.mxu0 0.0
      %12042 = vmatpush1.msra.mxu0 %v9912
      %12043 = vmatprep.subr.mxu0 0.0
      %12044 = vmatpush1.msra.mxu0 0.0
      %12045 = vmatprep.subr.mxu0 0.0
      %12046 = vmatpush1.msra.mxu0 0.0
      %12047 = vmatprep.subr.mxu0 0.0
      %12048 = vmatpush1.msra.mxu0 0.0
      %12049 = vmatprep.subr.mxu0 0.0
      %12050 = vmatpush1.msra.mxu0 0.0
      %12051 = vmatprep.subr.mxu0 0.0
      %12052 = vmatpush1.msra.mxu0 0.0
      %12053 = vmatprep.subr.mxu0 0.0
      %12054 = vmatpush1.msra.mxu0 0.0
      %12055 = vmatprep.subr.mxu0 0.0
      %12056 = vmatpush1.msra.mxu0 0.0
      %12057 = vmatprep.subr.mxu0 0.0
      %12058 = vmatpush1.msra.mxu0 0.0
      %12059 = vmatprep.subr.mxu0 0.0
      %12060 = vmatpush1.msra.mxu0 0.0
      %12061 = vmatprep.subr.mxu0 0.0
      %12062 = vmatpush1.msra.mxu0 0.0
      %12063 = vmatprep.subr.mxu0 0.0
      %12064 = vmatpush1.msra.mxu0 0.0
      %12065 = vmatprep.subr.mxu0 0.0
      %12066 = vmatpush1.msra.mxu0 0.0
      %12067 = vmatprep.subr.mxu0 0.0
      %12068 = vmatpush1.msra.mxu0 0.0
      %12069 = vmatprep.subr.mxu0 0.0
      %12070 = vmatpush1.msra.mxu0 0.0
      %12071 = vmatprep.subr.mxu0 0.0
      %12072 = vmatpush1.msra.mxu0 0.0
      %12073 = vmatprep.subr.mxu0 0.0
      %12074 = vmatpush1.msra.mxu0 0.0
      %12075 = vmatprep.subr.mxu0 0.0
      %12076 = vmatpush1.msra.mxu0 0.0
      %12077 = vmatprep.subr.mxu0 0.0
      %12078 = vmatpush1.msra.mxu0 0.0
      %12079 = vmatprep.subr.mxu0 0.0
      %12080 = vmatpush1.msra.mxu0 0.0
      %12081 = vmatprep.subr.mxu0 0.0
      %12082 = vmatpush1.msra.mxu0 0.0
      %12083 = vmatprep.subr.mxu0 0.0
      %12084 = vmatpush1.msra.mxu0 0.0
      %12085 = vmatprep.subr.mxu0 0.0
      %12086 = vmatpush1.msra.mxu0 0.0
      %12087 = vmatprep.subr.mxu0 0.0
      %12088 = vmatpush1.msra.mxu0 0.0
      %12089 = vmatprep.subr.mxu0 0.0
      %12090 = vmatpush1.msra.mxu0 0.0
      %12091 = vmatprep.subr.mxu0 0.0
      %12092 = vmatpush1.msra.mxu0 0.0
      %12093 = vmatprep.subr.mxu0 0.0
      %12094 = vmatpush1.msra.mxu0 0.0
      %12095 = vmatprep.subr.mxu0 0.0
      %12096 = vmatpush1.msra.mxu0 0.0
      %12097 = vmatprep.subr.mxu0 0.0
      %12098 = vmatpush1.msra.mxu0 0.0
      %12099 = vmatprep.mubr.f32.mxu0 0.0
      %12100 = vmatmul.mubr.f32.gmra.mrb[0].mxu0 %v12033
      %v12101 = vpop.f32.mrb[0].mxu0
      %v12102 = vadd.f32 0.0, %v12101
      %v12103 = vpop.f32.mrb[0].mxu0
      %12104 = vdwg.mxu0
      %v12106 = vrot.slane %v12029, 6
      %12107 = vrot.lane.b32.xlu0 %v12106, 64
      %v12108 = vpop.permute.xlu0 %12107
      %v12109 = vsel %vm10002, %v12108, 0
      %12111 = vmatprep.subr.mxu0 0.0
      %12112 = vmatpush1.msra.mxu0 %v9901
      %12113 = vmatprep.subr.mxu0 0.0
      %12114 = vmatpush1.msra.mxu0 %v9902
      %12115 = vmatprep.subr.mxu0 0.0
      %12116 = vmatpush1.msra.mxu0 %v9903
      %12117 = vmatprep.subr.mxu0 0.0
      %12118 = vmatpush1.msra.mxu0 %v9904
      %12119 = vmatprep.subr.mxu0 0.0
      %12120 = vmatpush1.msra.mxu0 0.0
      %12121 = vmatprep.subr.mxu0 0.0
      %12122 = vmatpush1.msra.mxu0 0.0
      %12123 = vmatprep.subr.mxu0 0.0
      %12124 = vmatpush1.msra.mxu0 0.0
      %12125 = vmatprep.subr.mxu0 0.0
      %12126 = vmatpush1.msra.mxu0 0.0
      %12127 = vmatprep.subr.mxu0 0.0
      %12128 = vmatpush1.msra.mxu0 0.0
      %12129 = vmatprep.subr.mxu0 0.0
      %12130 = vmatpush1.msra.mxu0 0.0
      %12131 = vmatprep.subr.mxu0 0.0
      %12132 = vmatpush1.msra.mxu0 0.0
      %12133 = vmatprep.subr.mxu0 0.0
      %12134 = vmatpush1.msra.mxu0 0.0
      %12135 = vmatprep.subr.mxu0 0.0
      %12136 = vmatpush1.msra.mxu0 0.0
      %12137 = vmatprep.subr.mxu0 0.0
      %12138 = vmatpush1.msra.mxu0 0.0
      %12139 = vmatprep.subr.mxu0 0.0
      %12140 = vmatpush1.msra.mxu0 0.0
      %12141 = vmatprep.subr.mxu0 0.0
      %12142 = vmatpush1.msra.mxu0 0.0
      %12143 = vmatprep.subr.mxu0 0.0
      %12144 = vmatpush1.msra.mxu0 0.0
      %12145 = vmatprep.subr.mxu0 0.0
      %12146 = vmatpush1.msra.mxu0 0.0
      %12147 = vmatprep.subr.mxu0 0.0
      %12148 = vmatpush1.msra.mxu0 0.0
      %12149 = vmatprep.subr.mxu0 0.0
      %12150 = vmatpush1.msra.mxu0 0.0
      %12151 = vmatprep.subr.mxu0 0.0
      %12152 = vmatpush1.msra.mxu0 0.0
      %12153 = vmatprep.subr.mxu0 0.0
      %12154 = vmatpush1.msra.mxu0 0.0
      %12155 = vmatprep.subr.mxu0 0.0
      %12156 = vmatpush1.msra.mxu0 0.0
      %12157 = vmatprep.subr.mxu0 0.0
      %12158 = vmatpush1.msra.mxu0 0.0
      %12159 = vmatprep.subr.mxu0 0.0
      %12160 = vmatpush1.msra.mxu0 0.0
      %12161 = vmatprep.subr.mxu0 0.0
      %12162 = vmatpush1.msra.mxu0 0.0
      %12163 = vmatprep.subr.mxu0 0.0
      %12164 = vmatpush1.msra.mxu0 0.0
      %12165 = vmatprep.subr.mxu0 0.0
      %12166 = vmatpush1.msra.mxu0 0.0
      %12167 = vmatprep.subr.mxu0 0.0
      %12168 = vmatpush1.msra.mxu0 0.0
      %12169 = vmatprep.subr.mxu0 0.0
      %12170 = vmatpush1.msra.mxu0 0.0
      %12171 = vmatprep.subr.mxu0 0.0
      %12172 = vmatpush1.msra.mxu0 0.0
      %12173 = vmatprep.subr.mxu0 0.0
      %12174 = vmatpush1.msra.mxu0 0.0
      %12175 = vmatprep.mubr.f32.mxu0 0.0
      %12176 = vmatmul.mubr.f32.gmra.mrb[0].mxu0 %v12109
      %v12177 = vpop.f32.mrb[0].mxu0
      %v12178 = vadd.f32 %v12102, %v12177
      %v12179 = vpop.f32.mrb[0].mxu0
      %12180 = vdwg.mxu0
      %v12181 = vadd.f32 %v12178, %v9918
      %v12182 = vxor.u32 %v12181, 2147483648
      %v12183 = vmul.f32 %v12182, 1.442695
      %v12184 = vpow.pop %v12183
      %v12185 = vadd.f32 %v12184, 1.0
      %v12186 = vrcp.pop %v12185
      %v12187 = vmul.f32 1.0, %v12186
      %v12188 = vtanh.pop %v12181
      %v12189 = vmul.f32 %v12187, %v11922
      %12191 = vrot.lane.b32.xlu0 %v12188, 32
      %v12192 = vpop.permute.xlu0 %12191
      %v12194 = vmul.f32 %v12187, %v12192
      %12196 = vrot.lane.b32.xlu0 %v12194, 32
      %v12197 = vpop.permute.xlu0 %12196
      %v12199 = vadd.f32 %v12189, %v12197
      %v12200 = vtanh.pop %v12199
      %12202 = vrot.lane.b32.xlu0 %v12200, 32
      %v12203 = vpop.permute.xlu0 %12202
      %v12205 = vmul.f32 %v12187, %v12203
      %v12206 = vld [vmem:[%s18] sm:$0xff]
      %v12207 = vld [vmem:[%s18 + $0x8] sm:$0xff]
      %v12208 = vld [vmem:[%s18 + $0x10] sm:$0xff]
      %v12209 = vld [vmem:[%s18 + $0x18] sm:$0xff]
      %v12210 = vld [vmem:[#allocation29] sm:$0x1]
      %v12212 = vlaneseq
      %v12213 = vshrl.u32 %v12212, 7
      %v12214 = vsub.s32 0, %v12213
      %v12215 = vrot.slane %v12210, %v12214
      %12218 = vrot.lane.b32.xlu0 %v12205, 64
      %v12219 = vpop.permute.xlu0 %12218
      %v12220 = vsel %vm10002, %v12219, 0
      %12222 = vmatprep.subr.mxu0 0.0
      %12223 = vmatpush1.msra.mxu0 %v12206
      %12224 = vmatprep.subr.mxu0 0.0
      %12225 = vmatpush1.msra.mxu0 %v12207
      %12226 = vmatprep.subr.mxu0 0.0
      %12227 = vmatpush1.msra.mxu0 %v12208
      %12228 = vmatprep.subr.mxu0 0.0
      %12229 = vmatpush1.msra.mxu0 %v12209
      %12230 = vmatprep.subr.mxu0 0.0
      %12231 = vmatpush1.msra.mxu0 0.0
      %12232 = vmatprep.subr.mxu0 0.0
      %12233 = vmatpush1.msra.mxu0 0.0
      %12234 = vmatprep.subr.mxu0 0.0
      %12235 = vmatpush1.msra.mxu0 0.0
      %12236 = vmatprep.subr.mxu0 0.0
      %12237 = vmatpush1.msra.mxu0 0.0
      %12238 = vmatprep.subr.mxu0 0.0
      %12239 = vmatpush1.msra.mxu0 0.0
      %12240 = vmatprep.subr.mxu0 0.0
      %12241 = vmatpush1.msra.mxu0 0.0
      %12242 = vmatprep.subr.mxu0 0.0
      %12243 = vmatpush1.msra.mxu0 0.0
      %12244 = vmatprep.subr.mxu0 0.0
      %12245 = vmatpush1.msra.mxu0 0.0
      %12246 = vmatprep.subr.mxu0 0.0
      %12247 = vmatpush1.msra.mxu0 0.0
      %12248 = vmatprep.subr.mxu0 0.0
      %12249 = vmatpush1.msra.mxu0 0.0
      %12250 = vmatprep.subr.mxu0 0.0
      %12251 = vmatpush1.msra.mxu0 0.0
      %12252 = vmatprep.subr.mxu0 0.0
      %12253 = vmatpush1.msra.mxu0 0.0
      %12254 = vmatprep.subr.mxu0 0.0
      %12255 = vmatpush1.msra.mxu0 0.0
      %12256 = vmatprep.subr.mxu0 0.0
      %12257 = vmatpush1.msra.mxu0 0.0
      %12258 = vmatprep.subr.mxu0 0.0
      %12259 = vmatpush1.msra.mxu0 0.0
      %12260 = vmatprep.subr.mxu0 0.0
      %12261 = vmatpush1.msra.mxu0 0.0
      %12262 = vmatprep.subr.mxu0 0.0
      %12263 = vmatpush1.msra.mxu0 0.0
      %12264 = vmatprep.subr.mxu0 0.0
      %12265 = vmatpush1.msra.mxu0 0.0
      %12266 = vmatprep.subr.mxu0 0.0
      %12267 = vmatpush1.msra.mxu0 0.0
      %12268 = vmatprep.subr.mxu0 0.0
      %12269 = vmatpush1.msra.mxu0 0.0
      %12270 = vmatprep.subr.mxu0 0.0
      %12271 = vmatpush1.msra.mxu0 0.0
      %12272 = vmatprep.subr.mxu0 0.0
      %12273 = vmatpush1.msra.mxu0 0.0
      %12274 = vmatprep.subr.mxu0 0.0
      %12275 = vmatpush1.msra.mxu0 0.0
      %12276 = vmatprep.subr.mxu0 0.0
      %12277 = vmatpush1.msra.mxu0 0.0
      %12278 = vmatprep.subr.mxu0 0.0
      %12279 = vmatpush1.msra.mxu0 0.0
      %12280 = vmatprep.subr.mxu0 0.0
      %12281 = vmatpush1.msra.mxu0 0.0
      %12282 = vmatprep.subr.mxu0 0.0
      %12283 = vmatpush1.msra.mxu0 0.0
      %12284 = vmatprep.subr.mxu0 0.0
      %12285 = vmatpush1.msra.mxu0 0.0
      %12286 = vmatprep.mubr.f32.mxu0 0.0
      %12287 = vmatmul.mubr.f32.gmra.mrb[0].mxu0 %v12220
      %v12288 = vpop.f32.mrb[0].mxu0
      %v12289 = vadd.f32 %v12215, %v12288
      %v12290 = vpop.f32.mrb[0].mxu0
      %12291 = vdwg.mxu0
      %vm12292 = vcmask 33792
      %12293 = vst.msk [vmem:[#allocation30] sm:$0x3] %vm12292, %v12289
    $region153: #{forward.1} parent=1 // pred_fallthru
      _
    // Predicated region
    $region154: #{forward.1} parent=1 // pred_check
      _
    $region155: #{forward.1} parent=1 // pred_check_branch
      %12295 = sbr.rel (0) target = $region157
    $region156: #{forward.1} parent=1 // pred_region
      %s12297 = ssub.s32 32, 32
      %12298 = vsyncadd [#allocation5], %s12297
      %s12300 = sshll.u32 [#allocation30], 4
      %s12301 = int_to_ptr.vmem [resolvable:$true] %s12300
      %12303 = dma.vmem_to_hbm [thread:$0]  %s12301, 32, %s20, [#allocation5]
    $region157: #{forward.1} parent=1 // pred_fallthru
      _
    // Predicated region
    $region158: #{forward.1} parent=1 // pred_check
      _
    $region159: #{forward.1} parent=1 // pred_check_branch
      %12305 = sbr.rel (0) target = $region161
    $region160: #{forward.1} parent=1 // pred_region
      %12306 = dma.done [#allocation5], 32
    $region161: #{forward.1} parent=1 // pred_fallthru
      _
    %12307 = vsyncpa [#allocation4], 1
    %12308 = vsyncpa [#allocation7], 1
    %12309 = vsyncpa [#allocation10], 1
    %12310 = vsyncpa [#allocation13], 1
    %12311 = vsyncpa [#allocation16], 1
    %12312 = vsyncpa [#allocation19], 1
    %12313 = vsyncpa [#allocation22], 1
    %12314 = vsyncpa [#allocation25], 1
    %12315 = vsyncpa [#allocation28], 1
    %12316 = vsyncpa [#allocation5], 1

</llo_original>
